<compile_context>
chip_gen: v7x
topology: tpu7x:2x2x1
jax: 0.10.0
libtpu: 0.0.40
codegen_flags: <defaults>
</compile_context>

<pallas_src>
import jax
import jax.numpy as jnp
from jax import lax
from jax.experimental import pallas as pl
from jax.experimental.pallas import tpu as pltpu


def _make_resblock_kernel(num_groups: int, eps: float = 1e-5):
    def kernel(x_ref, emb_ref,
               g1w_ref, g1b_ref, g2w_ref, g2b_ref,
               w1_ref, b1_ref, w2_ref, b2_ref,
               fold_cg_ref, fold_gc_ref,
               out_ref, pad_ref):
        _, H, W, C = out_ref.shape
        G = num_groups
        inv_n = 1.0 / float(H * W * (C // G))

        # ---- zero only the 1-element halo of the bf16 padded scratch; the
        #      interior is fully overwritten before each conv.  Runs every grid
        #      step (not just program_id==0) so it stays correct when the
        #      parallel batch axis is split across TensorCores. ----
        pad_ref[:, 0:1, :, :] = jnp.zeros((1, 1, W + 2, C), jnp.bfloat16)
        pad_ref[:, H + 1:H + 2, :, :] = jnp.zeros((1, 1, W + 2, C), jnp.bfloat16)
        pad_ref[:, :, 0:1, :] = jnp.zeros((1, H + 2, 1, C), jnp.bfloat16)
        pad_ref[:, :, W + 1:W + 2, :] = jnp.zeros((1, H + 2, 1, C), jnp.bfloat16)

        fold_cg = fold_cg_ref[...]   # (C, G) one-hot: channel -> its group
        fold_gc = fold_gc_ref[...]   # (G, C) one-hot: group   -> its channels

        def gnorm_relu_to_pad(v, gamma, beta):
            # Relayout-free GroupNorm + ReLU.  C stays lane-dense throughout:
            # per-channel sums over H*W -> (1, C), folded to per-group stats
            # with tiny one-hot matmuls, broadcast back to per-channel
            # scale/shift vectors, applied as one fused FMA + ReLU.
            s_c = jnp.sum(v, axis=(1, 2))                       # (1, C) f32
            ss_c = jnp.sum(v * v, axis=(1, 2))                  # (1, C) f32
            s_g = jnp.dot(s_c, fold_cg, preferred_element_type=jnp.float32)
            ss_g = jnp.dot(ss_c, fold_cg, preferred_element_type=jnp.float32)
            mean_g = s_g * inv_n
            var_g = ss_g * inv_n - mean_g * mean_g
            rstd_g = lax.rsqrt(var_g + eps)
            mean_c = jnp.dot(mean_g, fold_gc, preferred_element_type=jnp.float32)
            rstd_c = jnp.dot(rstd_g, fold_gc, preferred_element_type=jnp.float32)
            scale_c = (rstd_c * gamma).reshape(1, 1, 1, C)
            shift_c = (beta - mean_c * rstd_c * gamma).reshape(1, 1, 1, C)
            y = jnp.maximum(v * scale_c + shift_c, 0.0)         # GN + ReLU
            # Single bf16 cast on the store into the conv-input scratch.
            pad_ref[:, 1:H + 1, 1:W + 1, :] = y.astype(jnp.bfloat16)

        def conv3x3(w_ref, bias):
            # 3x3 "same" conv as nine tap-wise K=C bf16 MXU matmuls with f32
            # accumulation (no im2col patch materialization / lane concat).
            acc = jnp.zeros((H * W, C), jnp.float32)
            for k in range(9):
                dy, dx = divmod(k, 3)
                tap = pad_ref[:, dy:dy + H, dx:dx + W, :].reshape(H * W, C)
                acc = acc + jnp.dot(tap, w_ref[k],
                                    preferred_element_type=jnp.float32)
            acc = acc + bias                                    # (1, C) bias
            return acc.reshape(1, H, W, C)

        x = x_ref[...].astype(jnp.float32) + emb_ref[...].astype(jnp.float32)
        gnorm_relu_to_pad(x, g1w_ref[...], g1b_ref[...])
        r = conv3x3(w1_ref, b1_ref[...])
        # dropout (eval mode) == identity
        gnorm_relu_to_pad(r, g2w_ref[...], g2b_ref[...])
        r = conv3x3(w2_ref, b2_ref[...])

        # Residual: re-read the bf16 inputs instead of keeping x live across
        # both GN+conv stages.
        out_ref[...] = r + (x_ref[...].astype(jnp.float32)
                            + emb_ref[...].astype(jnp.float32))

    return kernel


def _vmem_cap_bytes() -> int:
    # ~80% of physical per-core VMEM: ~51 MiB on v7x (64 MiB physical),
    # ~102 MiB on v5e/v6e (128 MiB physical).  Conservative fallback when the
    # hardware query is unavailable.
    try:
        info = pltpu.get_tpu_info()
        phys = getattr(info, "vmem_capacity_bytes", None)
        if phys:
            return int(phys * 0.8)
    except Exception:
        pass
    return 48 << 20


def resblock_forward_nhwc(x_nhwc, emb_nhwc, params, *, num_groups: int):
    """Pallas ResBlock forward on NHWC activations (bf16 HBM reads, f32 out)."""
    B, H, W, C = x_nhwc.shape
    assert C % num_groups == 0, "GroupNorm requires C % num_groups == 0"
    G = num_groups

    # bf16 at the HBM boundary (halves the read bytes for x / emb).
    x = x_nhwc.astype(jnp.bfloat16)
    e = emb_nhwc.astype(jnp.bfloat16)

    def tap_weight(w_oihw):
        # OIHW -> (ky, kx, cin, cout) -> (9, cin, cout), bf16 for the MXU.
        w = jnp.transpose(w_oihw, (2, 3, 1, 0))
        return w.reshape(9, C, C).astype(jnp.bfloat16)

    w1 = tap_weight(params["conv1_w"])
    w2 = tap_weight(params["conv2_w"])
    b1 = params["conv1_b"].reshape(1, C).astype(jnp.float32)
    b2 = params["conv2_b"].reshape(1, C).astype(jnp.float32)
    g1w = params["gn1_w"].reshape(1, C).astype(jnp.float32)
    g1b = params["gn1_b"].reshape(1, C).astype(jnp.float32)
    g2w = params["gn2_w"].reshape(1, C).astype(jnp.float32)
    g2b = params["gn2_b"].reshape(1, C).astype(jnp.float32)

    # One-hot channel<->group fold matrices for relayout-free GroupNorm stats.
    Cg = C // G
    ch = jnp.arange(C, dtype=jnp.int32)
    fold_cg = (ch[:, None] // Cg ==
               jnp.arange(G, dtype=jnp.int32)[None, :]).astype(jnp.float32)
    fold_gc = jnp.transpose(fold_cg)

    kernel = _make_resblock_kernel(num_groups)

    act_spec = pl.BlockSpec((1, H, W, C), lambda b: (b, 0, 0, 0))
    vec_spec = pl.BlockSpec((1, C), lambda b: (0, 0))
    w_spec = pl.BlockSpec((9, C, C), lambda b: (0, 0, 0))
    fold_cg_spec = pl.BlockSpec((C, G), lambda b: (0, 0))
    fold_gc_spec = pl.BlockSpec((G, C), lambda b: (0, 0))

    # ---- honest per-step VMEM budget ----
    act_bf16 = H * W * C * 2
    act_f32 = H * W * C * 4
    pad_bf16 = (H + 2) * (W + 2) * C * 2
    w_bytes = 2 * 9 * C * C * 2                   # two conv weights, bf16
    vec_bytes = 8 * C * 4 + 2 * G * C * 4
    io_bufs = 2 * (2 * act_bf16 + act_f32)        # double-buffered x, emb, out
    w_bufs = 2 * (w_bytes + vec_bytes)            # default double-buffering
    live = 4 * act_f32 + 2 * act_bf16             # x, GN out, conv acc, taps
    needed = io_bufs + w_bufs + pad_bf16 + live + (1 << 20)
    vmem_limit = int(max(16 << 20, min(int(needed * 1.25), _vmem_cap_bytes())))

    flops = B * (2 * 2 * H * W * 9 * C * C + 30 * H * W * C)
    bytes_accessed = (B * H * W * C * (2 + 2 + 4)
                      + 2 * 9 * C * C * 2 + 10 * C * 4)

    out_nhwc = pl.pallas_call(
        kernel,
        out_shape=jax.ShapeDtypeStruct((B, H, W, C), jnp.float32),
        grid_spec=pltpu.PrefetchScalarGridSpec(
            num_scalar_prefetch=0,
            grid=(B,),
            in_specs=[act_spec, act_spec,
                      vec_spec, vec_spec, vec_spec, vec_spec,
                      w_spec, vec_spec, w_spec, vec_spec,
                      fold_cg_spec, fold_gc_spec],
            out_specs=act_spec,
            scratch_shapes=[pltpu.VMEM((1, H + 2, W + 2, C), jnp.bfloat16)],
        ),
        compiler_params=pltpu.CompilerParams(
            dimension_semantics=("parallel",),
            vmem_limit_bytes=vmem_limit,
        ),
        cost_estimate=pl.CostEstimate(
            flops=flops,
            transcendentals=2 * B * G,
            bytes_accessed=bytes_accessed,
        ),
    )(x, e, g1w, g1b, g2w, g2b, w1, b1, w2, b2, fold_cg, fold_gc)

    return out_nhwc


def resblock_forward(x_nchw, emb_nchw, params, *, num_groups: int):
    """NCHW wrapper matching the PyTorch interface.

    NOTE: if the surrounding model already runs NHWC, call
    resblock_forward_nhwc directly and skip these layout transposes (each is
    an extra HBM read+write of x / emb / out outside the kernel).
    """
    B, C, H, W = x_nchw.shape
    emb = emb_nchw[:, :C, :, :]
    x = jnp.transpose(x_nchw, (0, 2, 3, 1))
    e = jnp.transpose(emb, (0, 2, 3, 1))
    out_nhwc = resblock_forward_nhwc(x, e, params, num_groups=num_groups)
    return jnp.transpose(out_nhwc, (0, 3, 1, 2))


def resblock_reference(x, emb, params, *, num_groups: int, eps: float = 1e-5):
    """Pure-JAX NCHW reference matching the PyTorch forward (f32 throughout)."""
    B, C, H, W = x.shape
    x = x + emb[:, :C, :, :]

    def gn_relu(v, gamma, beta):
        vg = v.reshape(B, num_groups, C // num_groups, H, W)
        mean = vg.mean(axis=(2, 3, 4), keepdims=True)
        var = ((vg - mean) ** 2).mean(axis=(2, 3, 4), keepdims=True)
        vn = ((vg - mean) / jnp.sqrt(var + eps)).reshape(B, C, H, W)
        y = vn * gamma.reshape(1, C, 1, 1) + beta.reshape(1, C, 1, 1)
        return jnp.maximum(y, 0.0)

    def conv(v, w, b):
        o = lax.conv_general_dilated(
            v, w, window_strides=(1, 1), padding="SAME",
            dimension_numbers=("NCHW", "OIHW", "NCHW"))
        return o + b.reshape(1, C, 1, 1)

    r = conv(gn_relu(x, params["gn1_w"], params["gn1_b"]),
             params["conv1_w"], params["conv1_b"])
    r = conv(gn_relu(r, params["gn2_w"], params["gn2_b"]),
             params["conv2_w"], params["conv2_b"])
    return r + x


if __name__ == "__main__":
    B, C, H, W = 2, 4, 16, 16
    NUM_GROUPS = 2
    DROPOUT_PROB = 0.1  # eval-mode identity

    key = jax.random.PRNGKey(0)
    keys = jax.random.split(key, 6)

    # Deterministic parameter init (shapes from ResBlock.__init__).
    fan_in = C * 3 * 3
    bound = 1.0 / (fan_in ** 0.5)
    params = {
        "gn1_w": jnp.ones((C,), jnp.float32),
        "gn1_b": jnp.zeros((C,), jnp.float32),
        "gn2_w": jnp.ones((C,), jnp.float32),
        "gn2_b": jnp.zeros((C,), jnp.float32),
        "conv1_w": jax.random.uniform(keys[0], (C, C, 3, 3), jnp.float32, -bound, bound),
        "conv1_b": jax.random.uniform(keys[1], (C,), jnp.float32, -bound, bound),
        "conv2_w": jax.random.uniform(keys[2], (C, C, 3, 3), jnp.float32, -bound, bound),
        "conv2_b": jax.random.uniform(keys[3], (C,), jnp.float32, -bound, bound),
    }

    x = jax.random.normal(keys[4], (B, C, H, W), jnp.float32)
    # embeddings has >= C channels; forward slices the first C.
    embeddings = jax.random.normal(keys[5], (B, C + 2, H, W), jnp.float32)

    out = resblock_forward(x, embeddings, params, num_groups=NUM_GROUPS)
    out = jax.block_until_ready(out)

    ref = resblock_reference(x, embeddings, params, num_groups=NUM_GROUPS)
    assert out.shape == (B, C, H, W)
    # bf16 activation I/O + bf16 MXU operands (f32 accumulation) => loose tol.
    max_err = jnp.max(jnp.abs(out - ref))
    assert jnp.allclose(out, ref, atol=5e-2, rtol=5e-2), f"max abs err {max_err}"

    print("KERNEL_OK")
</pallas_src>

<mosaic_0001>
module attributes {stable_mosaic.version = 11 : i64} {
  func.func @kernel(%arg0: i32, %arg1: memref<1x16x16x4xbf16, #tpu.memory_space<vmem>>, %arg2: memref<1x16x16x4xbf16, #tpu.memory_space<vmem>>, %arg3: memref<1x4xf32, #tpu.memory_space<vmem>>, %arg4: memref<1x4xf32, #tpu.memory_space<vmem>>, %arg5: memref<1x4xf32, #tpu.memory_space<vmem>>, %arg6: memref<1x4xf32, #tpu.memory_space<vmem>>, %arg7: memref<9x4x4xbf16, #tpu.memory_space<vmem>>, %arg8: memref<1x4xf32, #tpu.memory_space<vmem>>, %arg9: memref<9x4x4xbf16, #tpu.memory_space<vmem>>, %arg10: memref<1x4xf32, #tpu.memory_space<vmem>>, %arg11: memref<4x2xf32, #tpu.memory_space<vmem>>, %arg12: memref<2x4xf32, #tpu.memory_space<vmem>>, %arg13: memref<1x16x16x4xf32, #tpu.memory_space<vmem>>, %arg14: memref<1x18x18x4xbf16, #tpu.memory_space<vmem>>) attributes {dimension_semantics = [#tpu.dimension_semantics<parallel>], iteration_bounds = array<i64: 2>, scalar_prefetch = 0 : i64, scratch_operands = 1 : i64, tpu.core_type = #tpu.core_type<tc>, window_params = [{transform_indices = @transform_0, window_bounds = array<i64: 1, 16, 16, 4>}, {transform_indices = @transform_1, window_bounds = array<i64: 1, 16, 16, 4>}, {pipeline_mode = #tpu.pipeline_mode<synchronous>, transform_indices = @transform_2, window_bounds = array<i64: 1, 4>}, {pipeline_mode = #tpu.pipeline_mode<synchronous>, transform_indices = @transform_3, window_bounds = array<i64: 1, 4>}, {pipeline_mode = #tpu.pipeline_mode<synchronous>, transform_indices = @transform_4, window_bounds = array<i64: 1, 4>}, {pipeline_mode = #tpu.pipeline_mode<synchronous>, transform_indices = @transform_5, window_bounds = array<i64: 1, 4>}, {pipeline_mode = #tpu.pipeline_mode<synchronous>, transform_indices = @transform_6, window_bounds = array<i64: 9, 4, 4>}, {pipeline_mode = #tpu.pipeline_mode<synchronous>, transform_indices = @transform_7, window_bounds = array<i64: 1, 4>}, {pipeline_mode = #tpu.pipeline_mode<synchronous>, transform_indices = @transform_8, window_bounds = array<i64: 9, 4, 4>}, {pipeline_mode = #tpu.pipeline_mode<synchronous>, transform_indices = @transform_9, window_bounds = array<i64: 1, 4>}, {pipeline_mode = #tpu.pipeline_mode<synchronous>, transform_indices = @transform_10, window_bounds = array<i64: 4, 2>}, {pipeline_mode = #tpu.pipeline_mode<synchronous>, transform_indices = @transform_11, window_bounds = array<i64: 2, 4>}, {transform_indices = @transform_12, window_bounds = array<i64: 1, 16, 16, 4>}]} {
    %cst = arith.constant 0.000000e+00 : bf16
    %0 = vector.broadcast %cst : bf16 to vector<1x1x18x4xbf16>
    %c0 = arith.constant 0 : index
    %c0_0 = arith.constant 0 : index
    %c0_1 = arith.constant 0 : index
    %c0_2 = arith.constant 0 : index
    %1 = vector.load %arg14[%c0, %c0_0, %c0_1, %c0_2] : memref<1x18x18x4xbf16, #tpu.memory_space<vmem>>, vector<1x1x18x4xbf16>
    tpu.vector_store %arg14[%c0, %c0_0, %c0_1, %c0_2], %0 {strides = array<i32>} : memref<1x18x18x4xbf16, #tpu.memory_space<vmem>>, vector<1x1x18x4xbf16>,
    %cst_3 = arith.constant 0.000000e+00 : bf16
    %2 = vector.broadcast %cst_3 : bf16 to vector<1x1x18x4xbf16>
    %c0_4 = arith.constant 0 : index
    %c17 = arith.constant 17 : index
    %c0_5 = arith.constant 0 : index
    %c0_6 = arith.constant 0 : index
    %3 = vector.load %arg14[%c0_4, %c17, %c0_5, %c0_6] : memref<1x18x18x4xbf16, #tpu.memory_space<vmem>>, vector<1x1x18x4xbf16>
    tpu.vector_store %arg14[%c0_4, %c17, %c0_5, %c0_6], %2 {strides = array<i32>} : memref<1x18x18x4xbf16, #tpu.memory_space<vmem>>, vector<1x1x18x4xbf16>,
    %cst_7 = arith.constant 0.000000e+00 : bf16
    %4 = vector.broadcast %cst_7 : bf16 to vector<1x18x1x4xbf16>
    %c0_8 = arith.constant 0 : index
    %c0_9 = arith.constant 0 : index
    %c0_10 = arith.constant 0 : index
    %c0_11 = arith.constant 0 : index
    %5 = vector.load %arg14[%c0_8, %c0_9, %c0_10, %c0_11] : memref<1x18x18x4xbf16, #tpu.memory_space<vmem>>, vector<1x18x1x4xbf16>
    tpu.vector_store %arg14[%c0_8, %c0_9, %c0_10, %c0_11], %4 {strides = array<i32>} : memref<1x18x18x4xbf16, #tpu.memory_space<vmem>>, vector<1x18x1x4xbf16>,
    %cst_12 = arith.constant 0.000000e+00 : bf16
    %6 = vector.broadcast %cst_12 : bf16 to vector<1x18x1x4xbf16>
    %c0_13 = arith.constant 0 : index
    %c0_14 = arith.constant 0 : index
    %c17_15 = arith.constant 17 : index
    %c0_16 = arith.constant 0 : index
    %7 = vector.load %arg14[%c0_13, %c0_14, %c17_15, %c0_16] : memref<1x18x18x4xbf16, #tpu.memory_space<vmem>>, vector<1x18x1x4xbf16>
    tpu.vector_store %arg14[%c0_13, %c0_14, %c17_15, %c0_16], %6 {strides = array<i32>} : memref<1x18x18x4xbf16, #tpu.memory_space<vmem>>, vector<1x18x1x4xbf16>,
    %c0_17 = arith.constant 0 : index
    %c0_18 = arith.constant 0 : index
    %8 = vector.load %arg11[%c0_17, %c0_18] : memref<4x2xf32, #tpu.memory_space<vmem>>, vector<4x2xf32>
    %c0_19 = arith.constant 0 : index
    %c0_20 = arith.constant 0 : index
    %9 = vector.load %arg12[%c0_19, %c0_20] : memref<2x4xf32, #tpu.memory_space<vmem>>, vector<2x4xf32>
    %c0_21 = arith.constant 0 : index
    %c0_22 = arith.constant 0 : index
    %c0_23 = arith.constant 0 : index
    %c0_24 = arith.constant 0 : index
    %10 = vector.load %arg1[%c0_21, %c0_22, %c0_23, %c0_24] : memref<1x16x16x4xbf16, #tpu.memory_space<vmem>>, vector<1x16x16x4xbf16>
    %11 = arith.extf %10 : vector<1x16x16x4xbf16> to vector<1x16x16x4xf32>
    %c0_25 = arith.constant 0 : index
    %c0_26 = arith.constant 0 : index
    %c0_27 = arith.constant 0 : index
    %c0_28 = arith.constant 0 : index
    %12 = vector.load %arg2[%c0_25, %c0_26, %c0_27, %c0_28] : memref<1x16x16x4xbf16, #tpu.memory_space<vmem>>, vector<1x16x16x4xbf16>
    %13 = arith.extf %12 : vector<1x16x16x4xbf16> to vector<1x16x16x4xf32>
    %14 = arith.addf %11, %13 : vector<1x16x16x4xf32>
    %c0_29 = arith.constant 0 : index
    %c0_30 = arith.constant 0 : index
    %15 = vector.load %arg3[%c0_29, %c0_30] : memref<1x4xf32, #tpu.memory_space<vmem>>, vector<1x4xf32>
    %c0_31 = arith.constant 0 : index
    %c0_32 = arith.constant 0 : index
    %16 = vector.load %arg4[%c0_31, %c0_32] : memref<1x4xf32, #tpu.memory_space<vmem>>, vector<1x4xf32>
    %cst_33 = arith.constant dense<0.000000e+00> : vector<1x4xf32>
    %17 = vector.multi_reduction <add>, %14, %cst_33 [1, 2] : vector<1x16x16x4xf32> to vector<1x4xf32>
    %18 = arith.mulf %14, %14 : vector<1x16x16x4xf32>
    %cst_34 = arith.constant dense<0.000000e+00> : vector<1x4xf32>
    %19 = vector.multi_reduction <add>, %18, %cst_34 [1, 2] : vector<1x16x16x4xf32> to vector<1x4xf32>
    %cst_35 = arith.constant dense<0.000000e+00> : vector<1x2xf32>
    %20 = tpu.matmul %17, %8, %cst_35 {dimension_numbers = #tpu.dot_dimension_numbers<[1], [0], [0], [1], [0, 0, 1, 1], [], []>} : vector<1x4xf32>, vector<4x2xf32>, vector<1x2xf32> -> vector<1x2xf32>
    %cst_36 = arith.constant dense<0.000000e+00> : vector<1x2xf32>
    %21 = tpu.matmul %19, %8, %cst_36 {dimension_numbers = #tpu.dot_dimension_numbers<[1], [0], [0], [1], [0, 0, 1, 1], [], []>} : vector<1x4xf32>, vector<4x2xf32>, vector<1x2xf32> -> vector<1x2xf32>
    %cst_37 = arith.constant 0.001953125 : f32
    %22 = vector.broadcast %cst_37 : f32 to vector<1x2xf32>
    %23 = arith.mulf %20, %22 : vector<1x2xf32>
    %cst_38 = arith.constant 0.001953125 : f32
    %24 = vector.broadcast %cst_38 : f32 to vector<1x2xf32>
    %25 = arith.mulf %21, %24 : vector<1x2xf32>
    %26 = arith.mulf %23, %23 : vector<1x2xf32>
    %27 = arith.subf %25, %26 : vector<1x2xf32>
    %cst_39 = arith.constant 9.99999974E-6 : f32
    %28 = vector.broadcast %cst_39 : f32 to vector<1x2xf32>
    %29 = arith.addf %27, %28 : vector<1x2xf32>
    %30 = math.rsqrt %29 : vector<1x2xf32>
    %cst_40 = arith.constant dense<0.000000e+00> : vector<1x4xf32>
    %31 = tpu.matmul %23, %9, %cst_40 {dimension_numbers = #tpu.dot_dimension_numbers<[1], [0], [0], [1], [0, 0, 1, 1], [], []>} : vector<1x2xf32>, vector<2x4xf32>, vector<1x4xf32> -> vector<1x4xf32>
    %cst_41 = arith.constant dense<0.000000e+00> : vector<1x4xf32>
    %32 = tpu.matmul %30, %9, %cst_41 {dimension_numbers = #tpu.dot_dimension_numbers<[1], [0], [0], [1], [0, 0, 1, 1], [], []>} : vector<1x2xf32>, vector<2x4xf32>, vector<1x4xf32> -> vector<1x4xf32>
    %33 = arith.mulf %32, %15 : vector<1x4xf32>
    %34 = vector.shape_cast %33 : vector<1x4xf32> to vector<1x1x1x4xf32>
    %35 = arith.mulf %31, %32 : vector<1x4xf32>
    %36 = arith.mulf %35, %15 : vector<1x4xf32>
    %37 = arith.subf %16, %36 : vector<1x4xf32>
    %38 = vector.shape_cast %37 : vector<1x4xf32> to vector<1x1x1x4xf32>
    %39 = vector.broadcast %34 : vector<1x1x1x4xf32> to vector<1x16x16x4xf32>
    %40 = arith.mulf %14, %39 : vector<1x16x16x4xf32>
    %41 = vector.broadcast %38 : vector<1x1x1x4xf32> to vector<1x16x16x4xf32>
    %42 = arith.addf %40, %41 : vector<1x16x16x4xf32>
    %cst_42 = arith.constant 0.000000e+00 : f32
    %43 = vector.broadcast %cst_42 : f32 to vector<1x16x16x4xf32>
    %44 = arith.maximumf %42, %43 : vector<1x16x16x4xf32>
    %45 = arith.truncf %44 : vector<1x16x16x4xf32> to vector<1x16x16x4xbf16>
    %c0_43 = arith.constant 0 : index
    %c1 = arith.constant 1 : index
    %c1_44 = arith.constant 1 : index
    %c0_45 = arith.constant 0 : index
    %46 = vector.load %arg14[%c0_43, %c1, %c1_44, %c0_45] : memref<1x18x18x4xbf16, #tpu.memory_space<vmem>>, vector<1x16x16x4xbf16>
    tpu.vector_store %arg14[%c0_43, %c1, %c1_44, %c0_45], %45 {strides = array<i32>} : memref<1x18x18x4xbf16, #tpu.memory_space<vmem>>, vector<1x16x16x4xbf16>,
    %c0_46 = arith.constant 0 : index
    %c0_47 = arith.constant 0 : index
    %47 = vector.load %arg8[%c0_46, %c0_47] : memref<1x4xf32, #tpu.memory_space<vmem>>, vector<1x4xf32>
    %cst_48 = arith.constant 0.000000e+00 : f32
    %48 = vector.broadcast %cst_48 : f32 to vector<256x4xf32>
    %c0_49 = arith.constant 0 : index
    %c0_50 = arith.constant 0 : index
    %c0_51 = arith.constant 0 : index
    %c0_52 = arith.constant 0 : index
    %49 = vector.load %arg14[%c0_49, %c0_50, %c0_51, %c0_52] : memref<1x18x18x4xbf16, #tpu.memory_space<vmem>>, vector<1x16x16x4xbf16>
    %50 = vector.shape_cast %49 : vector<1x16x16x4xbf16> to vector<256x4xbf16>
    %c0_53 = arith.constant 0 : index
    %c0_54 = arith.constant 0 : index
    %c0_55 = arith.constant 0 : index
    %51 = vector.load %arg7[%c0_53, %c0_54, %c0_55] : memref<9x4x4xbf16, #tpu.memory_space<vmem>>, vector<1x4x4xbf16>
    %52 = vector.shape_cast %51 : vector<1x4x4xbf16> to vector<4x4xbf16>
    %cst_56 = arith.constant dense<0.000000e+00> : vector<256x4xf32>
    %53 = tpu.matmul %50, %52, %cst_56 {dimension_numbers = #tpu.dot_dimension_numbers<[1], [0], [0], [1], [0, 0, 1, 1], [], []>} : vector<256x4xbf16>, vector<4x4xbf16>, vector<256x4xf32> -> vector<256x4xf32>
    %54 = arith.addf %48, %53 : vector<256x4xf32>
    %c0_57 = arith.constant 0 : index
    %c0_58 = arith.constant 0 : index
    %c1_59 = arith.constant 1 : index
    %c0_60 = arith.constant 0 : index
    %55 = vector.load %arg14[%c0_57, %c0_58, %c1_59, %c0_60] : memref<1x18x18x4xbf16, #tpu.memory_space<vmem>>, vector<1x16x16x4xbf16>
    %56 = vector.shape_cast %55 : vector<1x16x16x4xbf16> to vector<256x4xbf16>
    %c1_61 = arith.constant 1 : index
    %c0_62 = arith.constant 0 : index
    %c0_63 = arith.constant 0 : index
    %57 = vector.load %arg7[%c1_61, %c0_62, %c0_63] : memref<9x4x4xbf16, #tpu.memory_space<vmem>>, vector<1x4x4xbf16>
    %58 = vector.shape_cast %57 : vector<1x4x4xbf16> to vector<4x4xbf16>
    %cst_64 = arith.constant dense<0.000000e+00> : vector<256x4xf32>
    %59 = tpu.matmul %56, %58, %cst_64 {dimension_numbers = #tpu.dot_dimension_numbers<[1], [0], [0], [1], [0, 0, 1, 1], [], []>} : vector<256x4xbf16>, vector<4x4xbf16>, vector<256x4xf32> -> vector<256x4xf32>
    %60 = arith.addf %54, %59 : vector<256x4xf32>
    %c0_65 = arith.constant 0 : index
    %c0_66 = arith.constant 0 : index
    %c2 = arith.constant 2 : index
    %c0_67 = arith.constant 0 : index
    %61 = vector.load %arg14[%c0_65, %c0_66, %c2, %c0_67] : memref<1x18x18x4xbf16, #tpu.memory_space<vmem>>, vector<1x16x16x4xbf16>
    %62 = vector.shape_cast %61 : vector<1x16x16x4xbf16> to vector<256x4xbf16>
    %c2_68 = arith.constant 2 : index
    %c0_69 = arith.constant 0 : index
    %c0_70 = arith.constant 0 : index
    %63 = vector.load %arg7[%c2_68, %c0_69, %c0_70] : memref<9x4x4xbf16, #tpu.memory_space<vmem>>, vector<1x4x4xbf16>
    %64 = vector.shape_cast %63 : vector<1x4x4xbf16> to vector<4x4xbf16>
    %cst_71 = arith.constant dense<0.000000e+00> : vector<256x4xf32>
    %65 = tpu.matmul %62, %64, %cst_71 {dimension_numbers = #tpu.dot_dimension_numbers<[1], [0], [0], [1], [0, 0, 1, 1], [], []>} : vector<256x4xbf16>, vector<4x4xbf16>, vector<256x4xf32> -> vector<256x4xf32>
    %66 = arith.addf %60, %65 : vector<256x4xf32>
    %c0_72 = arith.constant 0 : index
    %c1_73 = arith.constant 1 : index
    %c0_74 = arith.constant 0 : index
    %c0_75 = arith.constant 0 : index
    %67 = vector.load %arg14[%c0_72, %c1_73, %c0_74, %c0_75] : memref<1x18x18x4xbf16, #tpu.memory_space<vmem>>, vector<1x16x16x4xbf16>
    %68 = vector.shape_cast %67 : vector<1x16x16x4xbf16> to vector<256x4xbf16>
    %c3 = arith.constant 3 : index
    %c0_76 = arith.constant 0 : index
    %c0_77 = arith.constant 0 : index
    %69 = vector.load %arg7[%c3, %c0_76, %c0_77] : memref<9x4x4xbf16, #tpu.memory_space<vmem>>, vector<1x4x4xbf16>
    %70 = vector.shape_cast %69 : vector<1x4x4xbf16> to vector<4x4xbf16>
    %cst_78 = arith.constant dense<0.000000e+00> : vector<256x4xf32>
    %71 = tpu.matmul %68, %70, %cst_78 {dimension_numbers = #tpu.dot_dimension_numbers<[1], [0], [0], [1], [0, 0, 1, 1], [], []>} : vector<256x4xbf16>, vector<4x4xbf16>, vector<256x4xf32> -> vector<256x4xf32>
    %72 = arith.addf %66, %71 : vector<256x4xf32>
    %c0_79 = arith.constant 0 : index
    %c1_80 = arith.constant 1 : index
    %c1_81 = arith.constant 1 : index
    %c0_82 = arith.constant 0 : index
    %73 = vector.load %arg14[%c0_79, %c1_80, %c1_81, %c0_82] : memref<1x18x18x4xbf16, #tpu.memory_space<vmem>>, vector<1x16x16x4xbf16>
    %74 = vector.shape_cast %73 : vector<1x16x16x4xbf16> to vector<256x4xbf16>
    %c4 = arith.constant 4 : index
    %c0_83 = arith.constant 0 : index
    %c0_84 = arith.constant 0 : index
    %75 = vector.load %arg7[%c4, %c0_83, %c0_84] : memref<9x4x4xbf16, #tpu.memory_space<vmem>>, vector<1x4x4xbf16>
    %76 = vector.shape_cast %75 : vector<1x4x4xbf16> to vector<4x4xbf16>
    %cst_85 = arith.constant dense<0.000000e+00> : vector<256x4xf32>
    %77 = tpu.matmul %74, %76, %cst_85 {dimension_numbers = #tpu.dot_dimension_numbers<[1], [0], [0], [1], [0, 0, 1, 1], [], []>} : vector<256x4xbf16>, vector<4x4xbf16>, vector<256x4xf32> -> vector<256x4xf32>
    %78 = arith.addf %72, %77 : vector<256x4xf32>
    %c0_86 = arith.constant 0 : index
    %c1_87 = arith.constant 1 : index
    %c2_88 = arith.constant 2 : index
    %c0_89 = arith.constant 0 : index
    %79 = vector.load %arg14[%c0_86, %c1_87, %c2_88, %c0_89] : memref<1x18x18x4xbf16, #tpu.memory_space<vmem>>, vector<1x16x16x4xbf16>
    %80 = vector.shape_cast %79 : vector<1x16x16x4xbf16> to vector<256x4xbf16>
    %c5 = arith.constant 5 : index
    %c0_90 = arith.constant 0 : index
    %c0_91 = arith.constant 0 : index
    %81 = vector.load %arg7[%c5, %c0_90, %c0_91] : memref<9x4x4xbf16, #tpu.memory_space<vmem>>, vector<1x4x4xbf16>
    %82 = vector.shape_cast %81 : vector<1x4x4xbf16> to vector<4x4xbf16>
    %cst_92 = arith.constant dense<0.000000e+00> : vector<256x4xf32>
    %83 = tpu.matmul %80, %82, %cst_92 {dimension_numbers = #tpu.dot_dimension_numbers<[1], [0], [0], [1], [0, 0, 1, 1], [], []>} : vector<256x4xbf16>, vector<4x4xbf16>, vector<256x4xf32> -> vector<256x4xf32>
    %84 = arith.addf %78, %83 : vector<256x4xf32>
    %c0_93 = arith.constant 0 : index
    %c2_94 = arith.constant 2 : index
    %c0_95 = arith.constant 0 : index
    %c0_96 = arith.constant 0 : index
    %85 = vector.load %arg14[%c0_93, %c2_94, %c0_95, %c0_96] : memref<1x18x18x4xbf16, #tpu.memory_space<vmem>>, vector<1x16x16x4xbf16>
    %86 = vector.shape_cast %85 : vector<1x16x16x4xbf16> to vector<256x4xbf16>
    %c6 = arith.constant 6 : index
    %c0_97 = arith.constant 0 : index
    %c0_98 = arith.constant 0 : index
    %87 = vector.load %arg7[%c6, %c0_97, %c0_98] : memref<9x4x4xbf16, #tpu.memory_space<vmem>>, vector<1x4x4xbf16>
    %88 = vector.shape_cast %87 : vector<1x4x4xbf16> to vector<4x4xbf16>
    %cst_99 = arith.constant dense<0.000000e+00> : vector<256x4xf32>
    %89 = tpu.matmul %86, %88, %cst_99 {dimension_numbers = #tpu.dot_dimension_numbers<[1], [0], [0], [1], [0, 0, 1, 1], [], []>} : vector<256x4xbf16>, vector<4x4xbf16>, vector<256x4xf32> -> vector<256x4xf32>
    %90 = arith.addf %84, %89 : vector<256x4xf32>
    %c0_100 = arith.constant 0 : index
    %c2_101 = arith.constant 2 : index
    %c1_102 = arith.constant 1 : index
    %c0_103 = arith.constant 0 : index
    %91 = vector.load %arg14[%c0_100, %c2_101, %c1_102, %c0_103] : memref<1x18x18x4xbf16, #tpu.memory_space<vmem>>, vector<1x16x16x4xbf16>
    %92 = vector.shape_cast %91 : vector<1x16x16x4xbf16> to vector<256x4xbf16>
    %c7 = arith.constant 7 : index
    %c0_104 = arith.constant 0 : index
    %c0_105 = arith.constant 0 : index
    %93 = vector.load %arg7[%c7, %c0_104, %c0_105] : memref<9x4x4xbf16, #tpu.memory_space<vmem>>, vector<1x4x4xbf16>
    %94 = vector.shape_cast %93 : vector<1x4x4xbf16> to vector<4x4xbf16>
    %cst_106 = arith.constant dense<0.000000e+00> : vector<256x4xf32>
    %95 = tpu.matmul %92, %94, %cst_106 {dimension_numbers = #tpu.dot_dimension_numbers<[1], [0], [0], [1], [0, 0, 1, 1], [], []>} : vector<256x4xbf16>, vector<4x4xbf16>, vector<256x4xf32> -> vector<256x4xf32>
    %96 = arith.addf %90, %95 : vector<256x4xf32>
    %c0_107 = arith.constant 0 : index
    %c2_108 = arith.constant 2 : index
    %c2_109 = arith.constant 2 : index
    %c0_110 = arith.constant 0 : index
    %97 = vector.load %arg14[%c0_107, %c2_108, %c2_109, %c0_110] : memref<1x18x18x4xbf16, #tpu.memory_space<vmem>>, vector<1x16x16x4xbf16>
    %98 = vector.shape_cast %97 : vector<1x16x16x4xbf16> to vector<256x4xbf16>
    %c8 = arith.constant 8 : index
    %c0_111 = arith.constant 0 : index
    %c0_112 = arith.constant 0 : index
    %99 = vector.load %arg7[%c8, %c0_111, %c0_112] : memref<9x4x4xbf16, #tpu.memory_space<vmem>>, vector<1x4x4xbf16>
    %100 = vector.shape_cast %99 : vector<1x4x4xbf16> to vector<4x4xbf16>
    %cst_113 = arith.constant dense<0.000000e+00> : vector<256x4xf32>
    %101 = tpu.matmul %98, %100, %cst_113 {dimension_numbers = #tpu.dot_dimension_numbers<[1], [0], [0], [1], [0, 0, 1, 1], [], []>} : vector<256x4xbf16>, vector<4x4xbf16>, vector<256x4xf32> -> vector<256x4xf32>
    %102 = arith.addf %96, %101 : vector<256x4xf32>
    %103 = vector.broadcast %47 : vector<1x4xf32> to vector<256x4xf32>
    %104 = arith.addf %102, %103 : vector<256x4xf32>
    %105 = vector.shape_cast %104 : vector<256x4xf32> to vector<1x16x16x4xf32>
    %c0_114 = arith.constant 0 : index
    %c0_115 = arith.constant 0 : index
    %106 = vector.load %arg5[%c0_114, %c0_115] : memref<1x4xf32, #tpu.memory_space<vmem>>, vector<1x4xf32>
    %c0_116 = arith.constant 0 : index
    %c0_117 = arith.constant 0 : index
    %107 = vector.load %arg6[%c0_116, %c0_117] : memref<1x4xf32, #tpu.memory_space<vmem>>, vector<1x4xf32>
    %cst_118 = arith.constant dense<0.000000e+00> : vector<1x4xf32>
    %108 = vector.multi_reduction <add>, %105, %cst_118 [1, 2] : vector<1x16x16x4xf32> to vector<1x4xf32>
    %109 = arith.mulf %105, %105 : vector<1x16x16x4xf32>
    %cst_119 = arith.constant dense<0.000000e+00> : vector<1x4xf32>
    %110 = vector.multi_reduction <add>, %109, %cst_119 [1, 2] : vector<1x16x16x4xf32> to vector<1x4xf32>
    %cst_120 = arith.constant dense<0.000000e+00> : vector<1x2xf32>
    %111 = tpu.matmul %108, %8, %cst_120 {dimension_numbers = #tpu.dot_dimension_numbers<[1], [0], [0], [1], [0, 0, 1, 1], [], []>} : vector<1x4xf32>, vector<4x2xf32>, vector<1x2xf32> -> vector<1x2xf32>
    %cst_121 = arith.constant dense<0.000000e+00> : vector<1x2xf32>
    %112 = tpu.matmul %110, %8, %cst_121 {dimension_numbers = #tpu.dot_dimension_numbers<[1], [0], [0], [1], [0, 0, 1, 1], [], []>} : vector<1x4xf32>, vector<4x2xf32>, vector<1x2xf32> -> vector<1x2xf32>
    %cst_122 = arith.constant 0.001953125 : f32
    %113 = vector.broadcast %cst_122 : f32 to vector<1x2xf32>
    %114 = arith.mulf %111, %113 : vector<1x2xf32>
    %cst_123 = arith.constant 0.001953125 : f32
    %115 = vector.broadcast %cst_123 : f32 to vector<1x2xf32>
    %116 = arith.mulf %112, %115 : vector<1x2xf32>
    %117 = arith.mulf %114, %114 : vector<1x2xf32>
    %118 = arith.subf %116, %117 : vector<1x2xf32>
    %cst_124 = arith.constant 9.99999974E-6 : f32
    %119 = vector.broadcast %cst_124 : f32 to vector<1x2xf32>
    %120 = arith.addf %118, %119 : vector<1x2xf32>
    %121 = math.rsqrt %120 : vector<1x2xf32>
    %cst_125 = arith.constant dense<0.000000e+00> : vector<1x4xf32>
    %122 = tpu.matmul %114, %9, %cst_125 {dimension_numbers = #tpu.dot_dimension_numbers<[1], [0], [0], [1], [0, 0, 1, 1], [], []>} : vector<1x2xf32>, vector<2x4xf32>, vector<1x4xf32> -> vector<1x4xf32>
    %cst_126 = arith.constant dense<0.000000e+00> : vector<1x4xf32>
    %123 = tpu.matmul %121, %9, %cst_126 {dimension_numbers = #tpu.dot_dimension_numbers<[1], [0], [0], [1], [0, 0, 1, 1], [], []>} : vector<1x2xf32>, vector<2x4xf32>, vector<1x4xf32> -> vector<1x4xf32>
    %124 = arith.mulf %123, %106 : vector<1x4xf32>
    %125 = vector.shape_cast %124 : vector<1x4xf32> to vector<1x1x1x4xf32>
    %126 = arith.mulf %122, %123 : vector<1x4xf32>
    %127 = arith.mulf %126, %106 : vector<1x4xf32>
    %128 = arith.subf %107, %127 : vector<1x4xf32>
    %129 = vector.shape_cast %128 : vector<1x4xf32> to vector<1x1x1x4xf32>
    %130 = vector.broadcast %125 : vector<1x1x1x4xf32> to vector<1x16x16x4xf32>
    %131 = arith.mulf %105, %130 : vector<1x16x16x4xf32>
    %132 = vector.broadcast %129 : vector<1x1x1x4xf32> to vector<1x16x16x4xf32>
    %133 = arith.addf %131, %132 : vector<1x16x16x4xf32>
    %cst_127 = arith.constant 0.000000e+00 : f32
    %134 = vector.broadcast %cst_127 : f32 to vector<1x16x16x4xf32>
    %135 = arith.maximumf %133, %134 : vector<1x16x16x4xf32>
    %136 = arith.truncf %135 : vector<1x16x16x4xf32> to vector<1x16x16x4xbf16>
    %c0_128 = arith.constant 0 : index
    %c1_129 = arith.constant 1 : index
    %c1_130 = arith.constant 1 : index
    %c0_131 = arith.constant 0 : index
    %137 = vector.load %arg14[%c0_128, %c1_129, %c1_130, %c0_131] : memref<1x18x18x4xbf16, #tpu.memory_space<vmem>>, vector<1x16x16x4xbf16>
    tpu.vector_store %arg14[%c0_128, %c1_129, %c1_130, %c0_131], %136 {strides = array<i32>} : memref<1x18x18x4xbf16, #tpu.memory_space<vmem>>, vector<1x16x16x4xbf16>,
    %c0_132 = arith.constant 0 : index
    %c0_133 = arith.constant 0 : index
    %138 = vector.load %arg10[%c0_132, %c0_133] : memref<1x4xf32, #tpu.memory_space<vmem>>, vector<1x4xf32>
    %cst_134 = arith.constant 0.000000e+00 : f32
    %139 = vector.broadcast %cst_134 : f32 to vector<256x4xf32>
    %c0_135 = arith.constant 0 : index
    %c0_136 = arith.constant 0 : index
    %c0_137 = arith.constant 0 : index
    %c0_138 = arith.constant 0 : index
    %140 = vector.load %arg14[%c0_135, %c0_136, %c0_137, %c0_138] : memref<1x18x18x4xbf16, #tpu.memory_space<vmem>>, vector<1x16x16x4xbf16>
    %141 = vector.shape_cast %140 : vector<1x16x16x4xbf16> to vector<256x4xbf16>
    %c0_139 = arith.constant 0 : index
    %c0_140 = arith.constant 0 : index
    %c0_141 = arith.constant 0 : index
    %142 = vector.load %arg9[%c0_139, %c0_140, %c0_141] : memref<9x4x4xbf16, #tpu.memory_space<vmem>>, vector<1x4x4xbf16>
    %143 = vector.shape_cast %142 : vector<1x4x4xbf16> to vector<4x4xbf16>
    %cst_142 = arith.constant dense<0.000000e+00> : vector<256x4xf32>
    %144 = tpu.matmul %141, %143, %cst_142 {dimension_numbers = #tpu.dot_dimension_numbers<[1], [0], [0], [1], [0, 0, 1, 1], [], []>} : vector<256x4xbf16>, vector<4x4xbf16>, vector<256x4xf32> -> vector<256x4xf32>
    %145 = arith.addf %139, %144 : vector<256x4xf32>
    %c0_143 = arith.constant 0 : index
    %c0_144 = arith.constant 0 : index
    %c1_145 = arith.constant 1 : index
    %c0_146 = arith.constant 0 : index
    %146 = vector.load %arg14[%c0_143, %c0_144, %c1_145, %c0_146] : memref<1x18x18x4xbf16, #tpu.memory_space<vmem>>, vector<1x16x16x4xbf16>
    %147 = vector.shape_cast %146 : vector<1x16x16x4xbf16> to vector<256x4xbf16>
    %c1_147 = arith.constant 1 : index
    %c0_148 = arith.constant 0 : index
    %c0_149 = arith.constant 0 : index
    %148 = vector.load %arg9[%c1_147, %c0_148, %c0_149] : memref<9x4x4xbf16, #tpu.memory_space<vmem>>, vector<1x4x4xbf16>
    %149 = vector.shape_cast %148 : vector<1x4x4xbf16> to vector<4x4xbf16>
    %cst_150 = arith.constant dense<0.000000e+00> : vector<256x4xf32>
    %150 = tpu.matmul %147, %149, %cst_150 {dimension_numbers = #tpu.dot_dimension_numbers<[1], [0], [0], [1], [0, 0, 1, 1], [], []>} : vector<256x4xbf16>, vector<4x4xbf16>, vector<256x4xf32> -> vector<256x4xf32>
    %151 = arith.addf %145, %150 : vector<256x4xf32>
    %c0_151 = arith.constant 0 : index
    %c0_152 = arith.constant 0 : index
    %c2_153 = arith.constant 2 : index
    %c0_154 = arith.constant 0 : index
    %152 = vector.load %arg14[%c0_151, %c0_152, %c2_153, %c0_154] : memref<1x18x18x4xbf16, #tpu.memory_space<vmem>>, vector<1x16x16x4xbf16>
    %153 = vector.shape_cast %152 : vector<1x16x16x4xbf16> to vector<256x4xbf16>
    %c2_155 = arith.constant 2 : index
    %c0_156 = arith.constant 0 : index
    %c0_157 = arith.constant 0 : index
    %154 = vector.load %arg9[%c2_155, %c0_156, %c0_157] : memref<9x4x4xbf16, #tpu.memory_space<vmem>>, vector<1x4x4xbf16>
    %155 = vector.shape_cast %154 : vector<1x4x4xbf16> to vector<4x4xbf16>
    %cst_158 = arith.constant dense<0.000000e+00> : vector<256x4xf32>
    %156 = tpu.matmul %153, %155, %cst_158 {dimension_numbers = #tpu.dot_dimension_numbers<[1], [0], [0], [1], [0, 0, 1, 1], [], []>} : vector<256x4xbf16>, vector<4x4xbf16>, vector<256x4xf32> -> vector<256x4xf32>
    %157 = arith.addf %151, %156 : vector<256x4xf32>
    %c0_159 = arith.constant 0 : index
    %c1_160 = arith.constant 1 : index
    %c0_161 = arith.constant 0 : index
    %c0_162 = arith.constant 0 : index
    %158 = vector.load %arg14[%c0_159, %c1_160, %c0_161, %c0_162] : memref<1x18x18x4xbf16, #tpu.memory_space<vmem>>, vector<1x16x16x4xbf16>
    %159 = vector.shape_cast %158 : vector<1x16x16x4xbf16> to vector<256x4xbf16>
    %c3_163 = arith.constant 3 : index
    %c0_164 = arith.constant 0 : index
    %c0_165 = arith.constant 0 : index
    %160 = vector.load %arg9[%c3_163, %c0_164, %c0_165] : memref<9x4x4xbf16, #tpu.memory_space<vmem>>, vector<1x4x4xbf16>
    %161 = vector.shape_cast %160 : vector<1x4x4xbf16> to vector<4x4xbf16>
    %cst_166 = arith.constant dense<0.000000e+00> : vector<256x4xf32>
    %162 = tpu.matmul %159, %161, %cst_166 {dimension_numbers = #tpu.dot_dimension_numbers<[1], [0], [0], [1], [0, 0, 1, 1], [], []>} : vector<256x4xbf16>, vector<4x4xbf16>, vector<256x4xf32> -> vector<256x4xf32>
    %163 = arith.addf %157, %162 : vector<256x4xf32>
    %c0_167 = arith.constant 0 : index
    %c1_168 = arith.constant 1 : index
    %c1_169 = arith.constant 1 : index
    %c0_170 = arith.constant 0 : index
    %164 = vector.load %arg14[%c0_167, %c1_168, %c1_169, %c0_170] : memref<1x18x18x4xbf16, #tpu.memory_space<vmem>>, vector<1x16x16x4xbf16>
    %165 = vector.shape_cast %164 : vector<1x16x16x4xbf16> to vector<256x4xbf16>
    %c4_171 = arith.constant 4 : index
    %c0_172 = arith.constant 0 : index
    %c0_173 = arith.constant 0 : index
    %166 = vector.load %arg9[%c4_171, %c0_172, %c0_173] : memref<9x4x4xbf16, #tpu.memory_space<vmem>>, vector<1x4x4xbf16>
    %167 = vector.shape_cast %166 : vector<1x4x4xbf16> to vector<4x4xbf16>
    %cst_174 = arith.constant dense<0.000000e+00> : vector<256x4xf32>
    %168 = tpu.matmul %165, %167, %cst_174 {dimension_numbers = #tpu.dot_dimension_numbers<[1], [0], [0], [1], [0, 0, 1, 1], [], []>} : vector<256x4xbf16>, vector<4x4xbf16>, vector<256x4xf32> -> vector<256x4xf32>
    %169 = arith.addf %163, %168 : vector<256x4xf32>
    %c0_175 = arith.constant 0 : index
    %c1_176 = arith.constant 1 : index
    %c2_177 = arith.constant 2 : index
    %c0_178 = arith.constant 0 : index
    %170 = vector.load %arg14[%c0_175, %c1_176, %c2_177, %c0_178] : memref<1x18x18x4xbf16, #tpu.memory_space<vmem>>, vector<1x16x16x4xbf16>
    %171 = vector.shape_cast %170 : vector<1x16x16x4xbf16> to vector<256x4xbf16>
    %c5_179 = arith.constant 5 : index
    %c0_180 = arith.constant 0 : index
    %c0_181 = arith.constant 0 : index
    %172 = vector.load %arg9[%c5_179, %c0_180, %c0_181] : memref<9x4x4xbf16, #tpu.memory_space<vmem>>, vector<1x4x4xbf16>
    %173 = vector.shape_cast %172 : vector<1x4x4xbf16> to vector<4x4xbf16>
    %cst_182 = arith.constant dense<0.000000e+00> : vector<256x4xf32>
    %174 = tpu.matmul %171, %173, %cst_182 {dimension_numbers = #tpu.dot_dimension_numbers<[1], [0], [0], [1], [0, 0, 1, 1], [], []>} : vector<256x4xbf16>, vector<4x4xbf16>, vector<256x4xf32> -> vector<256x4xf32>
    %175 = arith.addf %169, %174 : vector<256x4xf32>
    %c0_183 = arith.constant 0 : index
    %c2_184 = arith.constant 2 : index
    %c0_185 = arith.constant 0 : index
    %c0_186 = arith.constant 0 : index
    %176 = vector.load %arg14[%c0_183, %c2_184, %c0_185, %c0_186] : memref<1x18x18x4xbf16, #tpu.memory_space<vmem>>, vector<1x16x16x4xbf16>
    %177 = vector.shape_cast %176 : vector<1x16x16x4xbf16> to vector<256x4xbf16>
    %c6_187 = arith.constant 6 : index
    %c0_188 = arith.constant 0 : index
    %c0_189 = arith.constant 0 : index
    %178 = vector.load %arg9[%c6_187, %c0_188, %c0_189] : memref<9x4x4xbf16, #tpu.memory_space<vmem>>, vector<1x4x4xbf16>
    %179 = vector.shape_cast %178 : vector<1x4x4xbf16> to vector<4x4xbf16>
    %cst_190 = arith.constant dense<0.000000e+00> : vector<256x4xf32>
    %180 = tpu.matmul %177, %179, %cst_190 {dimension_numbers = #tpu.dot_dimension_numbers<[1], [0], [0], [1], [0, 0, 1, 1], [], []>} : vector<256x4xbf16>, vector<4x4xbf16>, vector<256x4xf32> -> vector<256x4xf32>
    %181 = arith.addf %175, %180 : vector<256x4xf32>
    %c0_191 = arith.constant 0 : index
    %c2_192 = arith.constant 2 : index
    %c1_193 = arith.constant 1 : index
    %c0_194 = arith.constant 0 : index
    %182 = vector.load %arg14[%c0_191, %c2_192, %c1_193, %c0_194] : memref<1x18x18x4xbf16, #tpu.memory_space<vmem>>, vector<1x16x16x4xbf16>
    %183 = vector.shape_cast %182 : vector<1x16x16x4xbf16> to vector<256x4xbf16>
    %c7_195 = arith.constant 7 : index
    %c0_196 = arith.constant 0 : index
    %c0_197 = arith.constant 0 : index
    %184 = vector.load %arg9[%c7_195, %c0_196, %c0_197] : memref<9x4x4xbf16, #tpu.memory_space<vmem>>, vector<1x4x4xbf16>
    %185 = vector.shape_cast %184 : vector<1x4x4xbf16> to vector<4x4xbf16>
    %cst_198 = arith.constant dense<0.000000e+00> : vector<256x4xf32>
    %186 = tpu.matmul %183, %185, %cst_198 {dimension_numbers = #tpu.dot_dimension_numbers<[1], [0], [0], [1], [0, 0, 1, 1], [], []>} : vector<256x4xbf16>, vector<4x4xbf16>, vector<256x4xf32> -> vector<256x4xf32>
    %187 = arith.addf %181, %186 : vector<256x4xf32>
    %c0_199 = arith.constant 0 : index
    %c2_200 = arith.constant 2 : index
    %c2_201 = arith.constant 2 : index
    %c0_202 = arith.constant 0 : index
    %188 = vector.load %arg14[%c0_199, %c2_200, %c2_201, %c0_202] : memref<1x18x18x4xbf16, #tpu.memory_space<vmem>>, vector<1x16x16x4xbf16>
    %189 = vector.shape_cast %188 : vector<1x16x16x4xbf16> to vector<256x4xbf16>
    %c8_203 = arith.constant 8 : index
    %c0_204 = arith.constant 0 : index
    %c0_205 = arith.constant 0 : index
    %190 = vector.load %arg9[%c8_203, %c0_204, %c0_205] : memref<9x4x4xbf16, #tpu.memory_space<vmem>>, vector<1x4x4xbf16>
    %191 = vector.shape_cast %190 : vector<1x4x4xbf16> to vector<4x4xbf16>
    %cst_206 = arith.constant dense<0.000000e+00> : vector<256x4xf32>
    %192 = tpu.matmul %189, %191, %cst_206 {dimension_numbers = #tpu.dot_dimension_numbers<[1], [0], [0], [1], [0, 0, 1, 1], [], []>} : vector<256x4xbf16>, vector<4x4xbf16>, vector<256x4xf32> -> vector<256x4xf32>
    %193 = arith.addf %187, %192 : vector<256x4xf32>
    %194 = vector.broadcast %138 : vector<1x4xf32> to vector<256x4xf32>
    %195 = arith.addf %193, %194 : vector<256x4xf32>
    %196 = vector.shape_cast %195 : vector<256x4xf32> to vector<1x16x16x4xf32>
    %c0_207 = arith.constant 0 : index
    %c0_208 = arith.constant 0 : index
    %c0_209 = arith.constant 0 : index
    %c0_210 = arith.constant 0 : index
    %197 = vector.load %arg1[%c0_207, %c0_208, %c0_209, %c0_210] : memref<1x16x16x4xbf16, #tpu.memory_space<vmem>>, vector<1x16x16x4xbf16>
    %198 = arith.extf %197 : vector<1x16x16x4xbf16> to vector<1x16x16x4xf32>
    %c0_211 = arith.constant 0 : index
    %c0_212 = arith.constant 0 : index
    %c0_213 = arith.constant 0 : index
    %c0_214 = arith.constant 0 : index
    %199 = vector.load %arg2[%c0_211, %c0_212, %c0_213, %c0_214] : memref<1x16x16x4xbf16, #tpu.memory_space<vmem>>, vector<1x16x16x4xbf16>
    %200 = arith.extf %199 : vector<1x16x16x4xbf16> to vector<1x16x16x4xf32>
    %201 = arith.addf %198, %200 : vector<1x16x16x4xf32>
    %202 = arith.addf %196, %201 : vector<1x16x16x4xf32>
    %c0_215 = arith.constant 0 : index
    %c0_216 = arith.constant 0 : index
    %c0_217 = arith.constant 0 : index
    %c0_218 = arith.constant 0 : index
    %203 = vector.load %arg13[%c0_215, %c0_216, %c0_217, %c0_218] : memref<1x16x16x4xf32, #tpu.memory_space<vmem>>, vector<1x16x16x4xf32>
    tpu.vector_store %arg13[%c0_215, %c0_216, %c0_217, %c0_218], %202 {strides = array<i32>} : memref<1x16x16x4xf32, #tpu.memory_space<vmem>>, vector<1x16x16x4xf32>,
    return
  }
  func.func @transform_0(%arg0: i32) -> (i32, i32, i32, i32) {
    %c0_i32 = arith.constant 0 : i32
    %c0_i32_0 = arith.constant 0 : i32
    %c0_i32_1 = arith.constant 0 : i32
    %c0_i32_2 = arith.constant 0 : i32
    return %arg0, %c0_i32, %c0_i32_0, %c0_i32_1 : i32, i32, i32, i32
  }
  func.func @transform_1(%arg0: i32) -> (i32, i32, i32, i32) {
    %c0_i32 = arith.constant 0 : i32
    %c0_i32_0 = arith.constant 0 : i32
    %c0_i32_1 = arith.constant 0 : i32
    %c0_i32_2 = arith.constant 0 : i32
    return %arg0, %c0_i32, %c0_i32_0, %c0_i32_1 : i32, i32, i32, i32
  }
  func.func @transform_2(%arg0: i32) -> (i32, i32) {
    %c0_i32 = arith.constant 0 : i32
    %c0_i32_0 = arith.constant 0 : i32
    %c0_i32_1 = arith.constant 0 : i32
    return %c0_i32, %c0_i32_0 : i32, i32
  }
  func.func @transform_3(%arg0: i32) -> (i32, i32) {
    %c0_i32 = arith.constant 0 : i32
    %c0_i32_0 = arith.constant 0 : i32
    %c0_i32_1 = arith.constant 0 : i32
    return %c0_i32, %c0_i32_0 : i32, i32
  }
  func.func @transform_4(%arg0: i32) -> (i32, i32) {
    %c0_i32 = arith.constant 0 : i32
    %c0_i32_0 = arith.constant 0 : i32
    %c0_i32_1 = arith.constant 0 : i32
    return %c0_i32, %c0_i32_0 : i32, i32
  }
  func.func @transform_5(%arg0: i32) -> (i32, i32) {
    %c0_i32 = arith.constant 0 : i32
    %c0_i32_0 = arith.constant 0 : i32
    %c0_i32_1 = arith.constant 0 : i32
    return %c0_i32, %c0_i32_0 : i32, i32
  }
  func.func @transform_6(%arg0: i32) -> (i32, i32, i32) {
    %c0_i32 = arith.constant 0 : i32
    %c0_i32_0 = arith.constant 0 : i32
    %c0_i32_1 = arith.constant 0 : i32
    %c0_i32_2 = arith.constant 0 : i32
    return %c0_i32, %c0_i32_0, %c0_i32_1 : i32, i32, i32
  }
  func.func @transform_7(%arg0: i32) -> (i32, i32) {
    %c0_i32 = arith.constant 0 : i32
    %c0_i32_0 = arith.constant 0 : i32
    %c0_i32_1 = arith.constant 0 : i32
    return %c0_i32, %c0_i32_0 : i32, i32
  }
  func.func @transform_8(%arg0: i32) -> (i32, i32, i32) {
    %c0_i32 = arith.constant 0 : i32
    %c0_i32_0 = arith.constant 0 : i32
    %c0_i32_1 = arith.constant 0 : i32
    %c0_i32_2 = arith.constant 0 : i32
    return %c0_i32, %c0_i32_0, %c0_i32_1 : i32, i32, i32
  }
  func.func @transform_9(%arg0: i32) -> (i32, i32) {
    %c0_i32 = arith.constant 0 : i32
    %c0_i32_0 = arith.constant 0 : i32
    %c0_i32_1 = arith.constant 0 : i32
    return %c0_i32, %c0_i32_0 : i32, i32
  }
  func.func @transform_10(%arg0: i32) -> (i32, i32) {
    %c0_i32 = arith.constant 0 : i32
    %c0_i32_0 = arith.constant 0 : i32
    %c0_i32_1 = arith.constant 0 : i32
    return %c0_i32, %c0_i32_0 : i32, i32
  }
  func.func @transform_11(%arg0: i32) -> (i32, i32) {
    %c0_i32 = arith.constant 0 : i32
    %c0_i32_0 = arith.constant 0 : i32
    %c0_i32_1 = arith.constant 0 : i32
    return %c0_i32, %c0_i32_0 : i32, i32
  }
  func.func @transform_12(%arg0: i32) -> (i32, i32, i32, i32) {
    %c0_i32 = arith.constant 0 : i32
    %c0_i32_0 = arith.constant 0 : i32
    %c0_i32_1 = arith.constant 0 : i32
    %c0_i32_2 = arith.constant 0 : i32
    return %arg0, %c0_i32, %c0_i32_0, %c0_i32_1 : i32, i32, i32, i32
  }
}

</mosaic_0001>

<llo_original>
// kernel: tpu_custom_call.1
$region0: #{tpu_custom_call.1}
  #allocation0 [shape = 'u32[]', space=smem, size = 0x4, offset = 0x4, fixed_abs, tag = 'smem constant byte address 0x4 - core index']
  #allocation1 [shape = 'u32[144,128]{1,0:T(1,128)}', space=vmem, size = 0x12000, scoped, tag = 'internal scratch']
  #allocation2 [shape = 'bf16[1,18,18,4]{3,2,1,0:T(8,128)(2,1)}', space=vmem, size = 0x1b000, scoped, tag = 'scratch operand']
  %s0 = inlined_call_operand.vmem [shape: bf16[2,16,16,4], index: 0, kind: input, shape index: {}]
  %s1 = inlined_call_operand.vmem [shape: bf16[2,16,16,4], index: 1, kind: input, shape index: {}]
  %s2 = inlined_call_operand.vmem [shape: f32[1,4], index: 2, kind: input, shape index: {}]
  %s3 = inlined_call_operand.vmem [shape: f32[1,4], index: 3, kind: input, shape index: {}]
  %s4 = inlined_call_operand.vmem [shape: f32[1,4], index: 4, kind: input, shape index: {}]
  %s5 = inlined_call_operand.vmem [shape: f32[1,4], index: 5, kind: input, shape index: {}]
  %s6 = inlined_call_operand.vmem [shape: bf16[9,4,4], index: 6, kind: input, shape index: {}]
  %s7 = inlined_call_operand.vmem [shape: f32[1,4], index: 7, kind: input, shape index: {}]
  %s8 = inlined_call_operand.vmem [shape: bf16[9,4,4], index: 8, kind: input, shape index: {}]
  %s9 = inlined_call_operand.vmem [shape: f32[1,4], index: 9, kind: input, shape index: {}]
  %s10 = inlined_call_operand.vmem [shape: f32[4,2], index: 10, kind: input, shape index: {}]
  %s11 = inlined_call_operand.vmem [shape: f32[2,4], index: 11, kind: input, shape index: {}]
  %s12 = inlined_call_operand.vmem [shape: f32[2,16,16,4], index: 12, kind: output, shape index: {}]
  %s13 = sld [smem:[#allocation0]]
  $region81: #{tpu_custom_call.1} parent=0
    _
  %s15 = ssub.s32 1, %s13
  %s16 = scalar_select 0, %s15, %s13
  loop: start=0, step=1, limit=4
  $region2: #{tpu_custom_call.1} parent=0 // loop_pre_header
    _
  $region3: #{tpu_custom_call.1} parent=0 // loop_header
    %s18 = sphi 0, %s22
    %p19 = scmp.ge.s32.totalorder %s18, 4
    %s28 = sphi 0, %s30
    %s31 = sphi 0, %s28
    %s32 = sphi 0, %s31
    %s48 = sphi 0, %s32
    %s54 = sphi 0, %s56
    %s57 = sphi 0, %s54
    %s58 = sphi 0, %s57
    %s74 = sphi 0, %s58
    %s78 = sphi 0, %s78
    %s80 = sphi 0, %s78
    %s81 = sphi 0, %s80
    %s95 = sphi 0, %s81
    %s99 = sphi 0, %s99
    %s101 = sphi 0, %s99
    %s102 = sphi 0, %s101
    %s116 = sphi 0, %s102
    %s120 = sphi 0, %s120
    %s122 = sphi 0, %s120
    %s123 = sphi 0, %s122
    %s137 = sphi 0, %s123
    %s141 = sphi 0, %s141
    %s143 = sphi 0, %s141
    %s144 = sphi 0, %s143
    %s158 = sphi 0, %s144
    %s162 = sphi 0, %s162
    %s164 = sphi 0, %s162
    %s165 = sphi 0, %s164
    %s179 = sphi 0, %s165
    %s183 = sphi 0, %s183
    %s185 = sphi 0, %s183
    %s186 = sphi 0, %s185
    %s200 = sphi 0, %s186
    %s204 = sphi 0, %s204
    %s206 = sphi 0, %s204
    %s207 = sphi 0, %s206
    %s221 = sphi 0, %s207
    %s225 = sphi 0, %s225
    %s227 = sphi 0, %s225
    %s228 = sphi 0, %s227
    %s242 = sphi 0, %s228
    %s246 = sphi 0, %s246
    %s248 = sphi 0, %s246
    %s249 = sphi 0, %s248
    %s263 = sphi 0, %s249
    %s267 = sphi 0, %s267
    %s269 = sphi 0, %s267
    %s270 = sphi 0, %s269
    %s284 = sphi 0, %s270
    %s290 = sphi 0, %s292
    %s293 = sphi 0, %s290
    %s294 = sphi 0, %s293
    %s310 = sphi 0, %s294
  $region4: #{tpu_custom_call.1} parent=0 // loop_header_branch
    %21 = sbr.rel (%p19) target = $region8
  $region5: #{tpu_custom_call.1} parent=0 // loop_body
    %s23 = ssub.s32 %s18, 1
    %s24 = ssub.s32 %s18, 2
    %s25 = sadd.s32 %s18, 1
    %s26 = ssub.s32 %s18, %s25
    %p27 = scmp.eq.s32.totalorder %s26, 0
    %s29 = sadd.s32 %s28, 1
    %s30 = scalar_select %p27, %s28, %s29
    %p33 = pneg %p27
    %p34 = scmp.eq.s32.totalorder %s18, 1
    %p35 = por %p33, %p34
    %p36 = scmp.ne.s32.totalorder %s28, %s31
    %p37 = scmp.eq.s32.totalorder %s18, 0
    %p38 = por %p36, %p37
    %p39 = scmp.ne.s32.totalorder %s28, %s31
    %p40 = scmp.eq.s32.totalorder %s23, 1
    %p41 = por %p39, %p40
    %p42 = scmp.ne.s32.totalorder %s31, %s32
    %p43 = scmp.eq.s32.totalorder %s23, 0
    %p44 = por %p42, %p43
    %p45 = scmp.ne.s32.totalorder %s31, %s32
    %p46 = scmp.eq.s32.totalorder %s24, 1
    %p47 = por %p45, %p46
    %p49 = scmp.ne.s32.totalorder %s32, %s48
    %p50 = scmp.eq.s32.totalorder %s24, 0
    %p51 = por %p49, %p50
    %s52 = ssub.s32 %s18, %s25
    %p53 = scmp.eq.s32.totalorder %s52, 0
    %s55 = sadd.s32 %s54, 1
    %s56 = scalar_select %p53, %s54, %s55
    %p59 = pneg %p53
    %p60 = scmp.eq.s32.totalorder %s18, 1
    %p61 = por %p59, %p60
    %p62 = scmp.ne.s32.totalorder %s54, %s57
    %p63 = scmp.eq.s32.totalorder %s18, 0
    %p64 = por %p62, %p63
    %p65 = scmp.ne.s32.totalorder %s54, %s57
    %p66 = scmp.eq.s32.totalorder %s23, 1
    %p67 = por %p65, %p66
    %p68 = scmp.ne.s32.totalorder %s57, %s58
    %p69 = scmp.eq.s32.totalorder %s23, 0
    %p70 = por %p68, %p69
    %p71 = scmp.ne.s32.totalorder %s57, %s58
    %p72 = scmp.eq.s32.totalorder %s24, 1
    %p73 = por %p71, %p72
    %p75 = scmp.ne.s32.totalorder %s58, %s74
    %p76 = scmp.eq.s32.totalorder %s24, 0
    %p77 = por %p75, %p76
    %s79 = sadd.s32 %s78, 1
    %p82 = scmp.eq.s32.totalorder %s18, 1
    %p83 = scmp.ne.s32.totalorder %s78, %s80
    %p84 = scmp.eq.s32.totalorder %s18, 0
    %p85 = por %p83, %p84
    %p86 = scmp.ne.s32.totalorder %s78, %s80
    %p87 = scmp.eq.s32.totalorder %s23, 1
    %p88 = por %p86, %p87
    %p89 = scmp.ne.s32.totalorder %s80, %s81
    %p90 = scmp.eq.s32.totalorder %s23, 0
    %p91 = por %p89, %p90
    %p92 = scmp.ne.s32.totalorder %s80, %s81
    %p93 = scmp.eq.s32.totalorder %s24, 1
    %p94 = por %p92, %p93
    %p96 = scmp.ne.s32.totalorder %s81, %s95
    %p97 = scmp.eq.s32.totalorder %s24, 0
    %p98 = por %p96, %p97
    %s100 = sadd.s32 %s99, 1
    %p103 = scmp.eq.s32.totalorder %s18, 1
    %p104 = scmp.ne.s32.totalorder %s99, %s101
    %p105 = scmp.eq.s32.totalorder %s18, 0
    %p106 = por %p104, %p105
    %p107 = scmp.ne.s32.totalorder %s99, %s101
    %p108 = scmp.eq.s32.totalorder %s23, 1
    %p109 = por %p107, %p108
    %p110 = scmp.ne.s32.totalorder %s101, %s102
    %p111 = scmp.eq.s32.totalorder %s23, 0
    %p112 = por %p110, %p111
    %p113 = scmp.ne.s32.totalorder %s101, %s102
    %p114 = scmp.eq.s32.totalorder %s24, 1
    %p115 = por %p113, %p114
    %p117 = scmp.ne.s32.totalorder %s102, %s116
    %p118 = scmp.eq.s32.totalorder %s24, 0
    %p119 = por %p117, %p118
    %s121 = sadd.s32 %s120, 1
    %p124 = scmp.eq.s32.totalorder %s18, 1
    %p125 = scmp.ne.s32.totalorder %s120, %s122
    %p126 = scmp.eq.s32.totalorder %s18, 0
    %p127 = por %p125, %p126
    %p128 = scmp.ne.s32.totalorder %s120, %s122
    %p129 = scmp.eq.s32.totalorder %s23, 1
    %p130 = por %p128, %p129
    %p131 = scmp.ne.s32.totalorder %s122, %s123
    %p132 = scmp.eq.s32.totalorder %s23, 0
    %p133 = por %p131, %p132
    %p134 = scmp.ne.s32.totalorder %s122, %s123
    %p135 = scmp.eq.s32.totalorder %s24, 1
    %p136 = por %p134, %p135
    %p138 = scmp.ne.s32.totalorder %s123, %s137
    %p139 = scmp.eq.s32.totalorder %s24, 0
    %p140 = por %p138, %p139
    %s142 = sadd.s32 %s141, 1
    %p145 = scmp.eq.s32.totalorder %s18, 1
    %p146 = scmp.ne.s32.totalorder %s141, %s143
    %p147 = scmp.eq.s32.totalorder %s18, 0
    %p148 = por %p146, %p147
    %p149 = scmp.ne.s32.totalorder %s141, %s143
    %p150 = scmp.eq.s32.totalorder %s23, 1
    %p151 = por %p149, %p150
    %p152 = scmp.ne.s32.totalorder %s143, %s144
    %p153 = scmp.eq.s32.totalorder %s23, 0
    %p154 = por %p152, %p153
    %p155 = scmp.ne.s32.totalorder %s143, %s144
    %p156 = scmp.eq.s32.totalorder %s24, 1
    %p157 = por %p155, %p156
    %p159 = scmp.ne.s32.totalorder %s144, %s158
    %p160 = scmp.eq.s32.totalorder %s24, 0
    %p161 = por %p159, %p160
    %s163 = sadd.s32 %s162, 1
    %p166 = scmp.eq.s32.totalorder %s18, 1
    %p167 = scmp.ne.s32.totalorder %s162, %s164
    %p168 = scmp.eq.s32.totalorder %s18, 0
    %p169 = por %p167, %p168
    %p170 = scmp.ne.s32.totalorder %s162, %s164
    %p171 = scmp.eq.s32.totalorder %s23, 1
    %p172 = por %p170, %p171
    %p173 = scmp.ne.s32.totalorder %s164, %s165
    %p174 = scmp.eq.s32.totalorder %s23, 0
    %p175 = por %p173, %p174
    %p176 = scmp.ne.s32.totalorder %s164, %s165
    %p177 = scmp.eq.s32.totalorder %s24, 1
    %p178 = por %p176, %p177
    %p180 = scmp.ne.s32.totalorder %s165, %s179
    %p181 = scmp.eq.s32.totalorder %s24, 0
    %p182 = por %p180, %p181
    %s184 = sadd.s32 %s183, 1
    %p187 = scmp.eq.s32.totalorder %s18, 1
    %p188 = scmp.ne.s32.totalorder %s183, %s185
    %p189 = scmp.eq.s32.totalorder %s18, 0
    %p190 = por %p188, %p189
    %p191 = scmp.ne.s32.totalorder %s183, %s185
    %p192 = scmp.eq.s32.totalorder %s23, 1
    %p193 = por %p191, %p192
    %p194 = scmp.ne.s32.totalorder %s185, %s186
    %p195 = scmp.eq.s32.totalorder %s23, 0
    %p196 = por %p194, %p195
    %p197 = scmp.ne.s32.totalorder %s185, %s186
    %p198 = scmp.eq.s32.totalorder %s24, 1
    %p199 = por %p197, %p198
    %p201 = scmp.ne.s32.totalorder %s186, %s200
    %p202 = scmp.eq.s32.totalorder %s24, 0
    %p203 = por %p201, %p202
    %s205 = sadd.s32 %s204, 1
    %p208 = scmp.eq.s32.totalorder %s18, 1
    %p209 = scmp.ne.s32.totalorder %s204, %s206
    %p210 = scmp.eq.s32.totalorder %s18, 0
    %p211 = por %p209, %p210
    %p212 = scmp.ne.s32.totalorder %s204, %s206
    %p213 = scmp.eq.s32.totalorder %s23, 1
    %p214 = por %p212, %p213
    %p215 = scmp.ne.s32.totalorder %s206, %s207
    %p216 = scmp.eq.s32.totalorder %s23, 0
    %p217 = por %p215, %p216
    %p218 = scmp.ne.s32.totalorder %s206, %s207
    %p219 = scmp.eq.s32.totalorder %s24, 1
    %p220 = por %p218, %p219
    %p222 = scmp.ne.s32.totalorder %s207, %s221
    %p223 = scmp.eq.s32.totalorder %s24, 0
    %p224 = por %p222, %p223
    %s226 = sadd.s32 %s225, 1
    %p229 = scmp.eq.s32.totalorder %s18, 1
    %p230 = scmp.ne.s32.totalorder %s225, %s227
    %p231 = scmp.eq.s32.totalorder %s18, 0
    %p232 = por %p230, %p231
    %p233 = scmp.ne.s32.totalorder %s225, %s227
    %p234 = scmp.eq.s32.totalorder %s23, 1
    %p235 = por %p233, %p234
    %p236 = scmp.ne.s32.totalorder %s227, %s228
    %p237 = scmp.eq.s32.totalorder %s23, 0
    %p238 = por %p236, %p237
    %p239 = scmp.ne.s32.totalorder %s227, %s228
    %p240 = scmp.eq.s32.totalorder %s24, 1
    %p241 = por %p239, %p240
    %p243 = scmp.ne.s32.totalorder %s228, %s242
    %p244 = scmp.eq.s32.totalorder %s24, 0
    %p245 = por %p243, %p244
    %s247 = sadd.s32 %s246, 1
    %p250 = scmp.eq.s32.totalorder %s18, 1
    %p251 = scmp.ne.s32.totalorder %s246, %s248
    %p252 = scmp.eq.s32.totalorder %s18, 0
    %p253 = por %p251, %p252
    %p254 = scmp.ne.s32.totalorder %s246, %s248
    %p255 = scmp.eq.s32.totalorder %s23, 1
    %p256 = por %p254, %p255
    %p257 = scmp.ne.s32.totalorder %s248, %s249
    %p258 = scmp.eq.s32.totalorder %s23, 0
    %p259 = por %p257, %p258
    %p260 = scmp.ne.s32.totalorder %s248, %s249
    %p261 = scmp.eq.s32.totalorder %s24, 1
    %p262 = por %p260, %p261
    %p264 = scmp.ne.s32.totalorder %s249, %s263
    %p265 = scmp.eq.s32.totalorder %s24, 0
    %p266 = por %p264, %p265
    %s268 = sadd.s32 %s267, 1
    %p271 = scmp.eq.s32.totalorder %s18, 1
    %p272 = scmp.ne.s32.totalorder %s267, %s269
    %p273 = scmp.eq.s32.totalorder %s18, 0
    %p274 = por %p272, %p273
    %p275 = scmp.ne.s32.totalorder %s267, %s269
    %p276 = scmp.eq.s32.totalorder %s23, 1
    %p277 = por %p275, %p276
    %p278 = scmp.ne.s32.totalorder %s269, %s270
    %p279 = scmp.eq.s32.totalorder %s23, 0
    %p280 = por %p278, %p279
    %p281 = scmp.ne.s32.totalorder %s269, %s270
    %p282 = scmp.eq.s32.totalorder %s24, 1
    %p283 = por %p281, %p282
    %p285 = scmp.ne.s32.totalorder %s270, %s284
    %p286 = scmp.eq.s32.totalorder %s24, 0
    %p287 = por %p285, %p286
    %s288 = ssub.s32 %s18, %s25
    %p289 = scmp.eq.s32.totalorder %s288, 0
    %s291 = sadd.s32 %s290, 1
    %s292 = scalar_select %p289, %s290, %s291
    %p295 = pneg %p289
    %p296 = scmp.eq.s32.totalorder %s18, 1
    %p297 = por %p295, %p296
    %p298 = scmp.ne.s32.totalorder %s290, %s293
    %p299 = scmp.eq.s32.totalorder %s18, 0
    %p300 = por %p298, %p299
    %p301 = scmp.ne.s32.totalorder %s290, %s293
    %p302 = scmp.eq.s32.totalorder %s23, 1
    %p303 = por %p301, %p302
    %p304 = scmp.ne.s32.totalorder %s293, %s294
    %p305 = scmp.eq.s32.totalorder %s23, 0
    %p306 = por %p304, %p305
    %p307 = scmp.ne.s32.totalorder %s293, %s294
    %p308 = scmp.eq.s32.totalorder %s24, 1
    %p309 = por %p307, %p308
    %p311 = scmp.ne.s32.totalorder %s294, %s310
    %p312 = scmp.eq.s32.totalorder %s24, 0
    %p313 = por %p311, %p312
    %p314 = scmp.le.s32.totalorder 1, %s18
    %p315 = scmp.lt.s32.totalorder %s18, 3
    %p316 = pnand %p314, %p315
    %p317 = pneg %p316
    // Predicated region
    $region9: #{tpu_custom_call.1} parent=5 // pred_check
      _
    $region10: #{tpu_custom_call.1} parent=5 // pred_check_branch
      %319 = sbr.rel (%p316) target = $region12
    $region11: #{tpu_custom_call.1} parent=5 // pred_region
      %s320 = ssub.s32 %s18, 1
      // Predicated region
      $region13: #{tpu_custom_call.1} parent=11 // pred_check
        %p321 = pneg %p91
      $region14: #{tpu_custom_call.1} parent=11 // pred_check_branch
        %323 = sbr.rel (%p321) target = $region16
      $region15: #{tpu_custom_call.1} parent=11 // pred_region
        _
      $region16: #{tpu_custom_call.1} parent=11 // pred_fallthru
        _
      // Predicated region
      $region17: #{tpu_custom_call.1} parent=11 // pred_check
        %p324 = pneg %p112
      $region18: #{tpu_custom_call.1} parent=11 // pred_check_branch
        %326 = sbr.rel (%p324) target = $region20
      $region19: #{tpu_custom_call.1} parent=11 // pred_region
        _
      $region20: #{tpu_custom_call.1} parent=11 // pred_fallthru
        _
      // Predicated region
      $region21: #{tpu_custom_call.1} parent=11 // pred_check
        %p327 = pneg %p133
      $region22: #{tpu_custom_call.1} parent=11 // pred_check_branch
        %329 = sbr.rel (%p327) target = $region24
      $region23: #{tpu_custom_call.1} parent=11 // pred_region
        _
      $region24: #{tpu_custom_call.1} parent=11 // pred_fallthru
        _
      // Predicated region
      $region25: #{tpu_custom_call.1} parent=11 // pred_check
        %p330 = pneg %p154
      $region26: #{tpu_custom_call.1} parent=11 // pred_check_branch
        %332 = sbr.rel (%p330) target = $region28
      $region27: #{tpu_custom_call.1} parent=11 // pred_region
        _
      $region28: #{tpu_custom_call.1} parent=11 // pred_fallthru
        _
      // Predicated region
      $region29: #{tpu_custom_call.1} parent=11 // pred_check
        %p333 = pneg %p175
      $region30: #{tpu_custom_call.1} parent=11 // pred_check_branch
        %335 = sbr.rel (%p333) target = $region32
      $region31: #{tpu_custom_call.1} parent=11 // pred_region
        _
      $region32: #{tpu_custom_call.1} parent=11 // pred_fallthru
        _
      // Predicated region
      $region33: #{tpu_custom_call.1} parent=11 // pred_check
        %p336 = pneg %p196
      $region34: #{tpu_custom_call.1} parent=11 // pred_check_branch
        %338 = sbr.rel (%p336) target = $region36
      $region35: #{tpu_custom_call.1} parent=11 // pred_region
        _
      $region36: #{tpu_custom_call.1} parent=11 // pred_fallthru
        _
      // Predicated region
      $region37: #{tpu_custom_call.1} parent=11 // pred_check
        %p339 = pneg %p217
      $region38: #{tpu_custom_call.1} parent=11 // pred_check_branch
        %341 = sbr.rel (%p339) target = $region40
      $region39: #{tpu_custom_call.1} parent=11 // pred_region
        _
      $region40: #{tpu_custom_call.1} parent=11 // pred_fallthru
        _
      // Predicated region
      $region41: #{tpu_custom_call.1} parent=11 // pred_check
        %p342 = pneg %p238
      $region42: #{tpu_custom_call.1} parent=11 // pred_check_branch
        %344 = sbr.rel (%p342) target = $region44
      $region43: #{tpu_custom_call.1} parent=11 // pred_region
        _
      $region44: #{tpu_custom_call.1} parent=11 // pred_fallthru
        _
      // Predicated region
      $region45: #{tpu_custom_call.1} parent=11 // pred_check
        %p345 = pneg %p259
      $region46: #{tpu_custom_call.1} parent=11 // pred_check_branch
        %347 = sbr.rel (%p345) target = $region48
      $region47: #{tpu_custom_call.1} parent=11 // pred_region
        _
      $region48: #{tpu_custom_call.1} parent=11 // pred_fallthru
        _
      // Predicated region
      $region49: #{tpu_custom_call.1} parent=11 // pred_check
        %p348 = pneg %p280
      $region50: #{tpu_custom_call.1} parent=11 // pred_check_branch
        %350 = sbr.rel (%p348) target = $region52
      $region51: #{tpu_custom_call.1} parent=11 // pred_region
        _
      $region52: #{tpu_custom_call.1} parent=11 // pred_fallthru
        _
    $region12: #{tpu_custom_call.1} parent=5 // pred_fallthru
      _
    %p351 = scmp.lt.s32.totalorder %s18, 2
    // Predicated region
    $region53: #{tpu_custom_call.1} parent=5 // pred_check
      %p352 = pneg %p351
    $region54: #{tpu_custom_call.1} parent=5 // pred_check_branch
      %354 = sbr.rel (%p352) target = $region56
    $region55: #{tpu_custom_call.1} parent=5 // pred_region
      // Predicated region
      $region57: #{tpu_custom_call.1} parent=55 // pred_check
        %p355 = pneg %p38
      $region58: #{tpu_custom_call.1} parent=55 // pred_check_branch
        %357 = sbr.rel (%p355) target = $region60
      $region59: #{tpu_custom_call.1} parent=55 // pred_region
        %p358 = scmp.lt.s32.totalorder %s18, 1
        %s359 = scalar_select %p358, %s18, 1
        %s360 = smul.addr %s359, 32
        %s361 = smul.addr %s360, 4
        %s362 = scalar_lea.vmem %s0, %s361
      $region60: #{tpu_custom_call.1} parent=55 // pred_fallthru
        _
      // Predicated region
      $region61: #{tpu_custom_call.1} parent=55 // pred_check
        %p363 = pneg %p64
      $region62: #{tpu_custom_call.1} parent=55 // pred_check_branch
        %365 = sbr.rel (%p363) target = $region64
      $region63: #{tpu_custom_call.1} parent=55 // pred_region
        %p366 = scmp.lt.s32.totalorder %s18, 1
        %s367 = scalar_select %p366, %s18, 1
        %s368 = smul.addr %s367, 32
        %s369 = smul.addr %s368, 4
        %s370 = scalar_lea.vmem %s1, %s369
      $region64: #{tpu_custom_call.1} parent=55 // pred_fallthru
        _
    $region56: #{tpu_custom_call.1} parent=5 // pred_fallthru
      _
    %p371 = scmp.le.s32.totalorder 1, %s18
    %p372 = scmp.lt.s32.totalorder %s18, 3
    %p373 = pnand %p371, %p372
    %p374 = pneg %p373
    // Predicated region
    $region65: #{tpu_custom_call.1} parent=5 // pred_check
      _
    $region66: #{tpu_custom_call.1} parent=5 // pred_check_branch
      %376 = sbr.rel (%p373) target = $region68
    $region67: #{tpu_custom_call.1} parent=5 // pred_region
      %s377 = ssub.s32 %s18, 1
      %p378 = scmp.lt.s32.totalorder %s23, 1
      %s379 = scalar_select %p378, %s23, 1
      %s380 = smul.addr %s379, 32
      %s381 = smul.addr %s380, 4
      %s382 = scalar_lea.vmem %s0, %s381
      %p383 = pneg %p44
      %p384 = pneg %p41
      %p385 = scmp.lt.s32.totalorder %s23, 1
      %s386 = scalar_select %p385, %s23, 1
      %s387 = smul.addr %s386, 32
      %s388 = smul.addr %s387, 4
      %s389 = scalar_lea.vmem %s1, %s388
      %p390 = pneg %p70
      %p391 = pneg %p67
      %p392 = pneg %p91
      %p393 = pneg %p88
      %p394 = pneg %p112
      %p395 = pneg %p109
      %p396 = pneg %p133
      %p397 = pneg %p130
      %p398 = pneg %p154
      %p399 = pneg %p151
      %p400 = pneg %p175
      %p401 = pneg %p172
      %p402 = pneg %p196
      %p403 = pneg %p193
      %p404 = pneg %p217
      %p405 = pneg %p214
      %p406 = pneg %p238
      %p407 = pneg %p235
      %p408 = pneg %p259
      %p409 = pneg %p256
      %p410 = pneg %p280
      %p411 = pneg %p277
      %p412 = pneg %p306
      %p413 = pneg %p303
      %p414 = scmp.lt.s32.totalorder %s23, 1
      %s415 = scalar_select %p414, %s23, 1
      %s416 = smul.addr %s415, 32
      %s417 = smul.addr %s416, 8
      %s418 = scalar_lea.vmem %s12, %s417
      %p419 = scmp.lt.s32.totalorder %s23, 1
      %s420 = scalar_select %p419, %s23, 1
      %s421 = smul.addr %s420, 32
      %s422 = smul.addr %s421, 4
      %s423 = scalar_lea.vmem %s0, %s422
      %p424 = scmp.lt.s32.totalorder %s23, 1
      %s425 = scalar_select %p424, %s23, 1
      %s426 = smul.addr %s425, 32
      %s427 = smul.addr %s426, 4
      %s428 = scalar_lea.vmem %s1, %s427
      %p429 = scmp.lt.s32.totalorder %s23, 1
      %s430 = scalar_select %p429, %s23, 1
      %s431 = smul.addr %s430, 32
      %s432 = smul.addr %s431, 8
      %s433 = scalar_lea.vmem %s12, %s432
      %vm435 = vcmask 27648
      %436 = vst.msk [vmem:[#allocation2] sm:$0xf] %vm435, 0
      %437 = vst.msk [vmem:[#allocation2 + $0x4] sm:$0xf] %vm435, 0
      %vm438 = vcmask 24576
      %439 = vst.msk [vmem:[#allocation2 + $0x8] sm:$0x1] %vm438, 0
      %s440 = scalar_lea.vmem [#allocation2], 204
      %441 = vst.msk [vmem:[%s440] sm:$0xf] %vm435, 0
      %442 = vst.msk [vmem:[%s440 + $0x4] sm:$0xf] %vm435, 0
      %443 = vst.msk [vmem:[%s440 + $0x8] sm:$0x1] %vm438, 0
      %vm444 = vcmask 24576
      %vm445 = vsmask.f32 256
      %vm446 = vmand %vm444, %vm445
      %v447 = vld [vmem:[#allocation2] sm:$0x1]
      %v448 = vsel %vm446, 0, %v447
      %449 = vst [vmem:[#allocation2] sm:$0x1] %v448
      %v450 = vld [vmem:[#allocation2 + $0xc] sm:$0x1]
      %v451 = vsel %vm446, 0, %v450
      %452 = vst [vmem:[#allocation2 + $0xc] sm:$0x1] %v451
      %v453 = vld [vmem:[#allocation2 + $0x18] sm:$0x1]
      %v454 = vsel %vm446, 0, %v453
      %455 = vst [vmem:[#allocation2 + $0x18] sm:$0x1] %v454
      %v456 = vld [vmem:[#allocation2 + $0x24] sm:$0x1]
      %v457 = vsel %vm446, 0, %v456
      %458 = vst [vmem:[#allocation2 + $0x24] sm:$0x1] %v457
      %v459 = vld [vmem:[#allocation2 + $0x30] sm:$0x1]
      %v460 = vsel %vm446, 0, %v459
      %461 = vst [vmem:[#allocation2 + $0x30] sm:$0x1] %v460
      %v462 = vld [vmem:[#allocation2 + $0x3c] sm:$0x1]
      %v463 = vsel %vm446, 0, %v462
      %464 = vst [vmem:[#allocation2 + $0x3c] sm:$0x1] %v463
      %v465 = vld [vmem:[#allocation2 + $0x48] sm:$0x1]
      %v466 = vsel %vm446, 0, %v465
      %467 = vst [vmem:[#allocation2 + $0x48] sm:$0x1] %v466
      %v468 = vld [vmem:[#allocation2 + $0x54] sm:$0x1]
      %v469 = vsel %vm446, 0, %v468
      %470 = vst [vmem:[#allocation2 + $0x54] sm:$0x1] %v469
      %v471 = vld [vmem:[#allocation2 + $0x60] sm:$0x1]
      %v472 = vsel %vm446, 0, %v471
      %473 = vst [vmem:[#allocation2 + $0x60] sm:$0x1] %v472
      %v474 = vld [vmem:[#allocation2 + $0x6c] sm:$0x1]
      %v475 = vsel %vm446, 0, %v474
      %476 = vst [vmem:[#allocation2 + $0x6c] sm:$0x1] %v475
      %v477 = vld [vmem:[#allocation2 + $0x78] sm:$0x1]
      %v478 = vsel %vm446, 0, %v477
      %479 = vst [vmem:[#allocation2 + $0x78] sm:$0x1] %v478
      %v480 = vld [vmem:[#allocation2 + $0x84] sm:$0x1]
      %v481 = vsel %vm446, 0, %v480
      %482 = vst [vmem:[#allocation2 + $0x84] sm:$0x1] %v481
      %v483 = vld [vmem:[#allocation2 + $0x90] sm:$0x1]
      %v484 = vsel %vm446, 0, %v483
      %485 = vst [vmem:[#allocation2 + $0x90] sm:$0x1] %v484
      %v486 = vld [vmem:[#allocation2 + $0x9c] sm:$0x1]
      %v487 = vsel %vm446, 0, %v486
      %488 = vst [vmem:[#allocation2 + $0x9c] sm:$0x1] %v487
      %v489 = vld [vmem:[#allocation2 + $0xa8] sm:$0x1]
      %v490 = vsel %vm446, 0, %v489
      %491 = vst [vmem:[#allocation2 + $0xa8] sm:$0x1] %v490
      %v492 = vld [vmem:[#allocation2 + $0xb4] sm:$0x1]
      %v493 = vsel %vm446, 0, %v492
      %494 = vst [vmem:[#allocation2 + $0xb4] sm:$0x1] %v493
      %v495 = vld [vmem:[#allocation2 + $0xc0] sm:$0x1]
      %v496 = vsel %vm446, 0, %v495
      %497 = vst [vmem:[#allocation2 + $0xc0] sm:$0x1] %v496
      %v498 = vld [vmem:[#allocation2 + $0xcc] sm:$0x1]
      %v499 = vsel %vm446, 0, %v498
      %500 = vst [vmem:[#allocation2 + $0xcc] sm:$0x1] %v499
      %vm501 = vsmask.f32 7938
      %vm502 = vmand %vm444, %vm501
      %v503 = vld [vmem:[#allocation2 + $0x8] sm:$0x1]
      %v504 = vsel %vm502, 0, %v503
      %505 = vst [vmem:[#allocation2 + $0x8] sm:$0x1] %v504
      %v506 = vld [vmem:[#allocation2 + $0x14] sm:$0x1]
      %v507 = vsel %vm502, 0, %v506
      %508 = vst [vmem:[#allocation2 + $0x14] sm:$0x1] %v507
      %v509 = vld [vmem:[#allocation2 + $0x20] sm:$0x1]
      %v510 = vsel %vm502, 0, %v509
      %511 = vst [vmem:[#allocation2 + $0x20] sm:$0x1] %v510
      %v512 = vld [vmem:[#allocation2 + $0x2c] sm:$0x1]
      %v513 = vsel %vm502, 0, %v512
      %514 = vst [vmem:[#allocation2 + $0x2c] sm:$0x1] %v513
      %v515 = vld [vmem:[#allocation2 + $0x38] sm:$0x1]
      %v516 = vsel %vm502, 0, %v515
      %517 = vst [vmem:[#allocation2 + $0x38] sm:$0x1] %v516
      %v518 = vld [vmem:[#allocation2 + $0x44] sm:$0x1]
      %v519 = vsel %vm502, 0, %v518
      %520 = vst [vmem:[#allocation2 + $0x44] sm:$0x1] %v519
      %v521 = vld [vmem:[#allocation2 + $0x50] sm:$0x1]
      %v522 = vsel %vm502, 0, %v521
      %523 = vst [vmem:[#allocation2 + $0x50] sm:$0x1] %v522
      %v524 = vld [vmem:[#allocation2 + $0x5c] sm:$0x1]
      %v525 = vsel %vm502, 0, %v524
      %526 = vst [vmem:[#allocation2 + $0x5c] sm:$0x1] %v525
      %v527 = vld [vmem:[#allocation2 + $0x68] sm:$0x1]
      %v528 = vsel %vm502, 0, %v527
      %529 = vst [vmem:[#allocation2 + $0x68] sm:$0x1] %v528
      %v530 = vld [vmem:[#allocation2 + $0x74] sm:$0x1]
      %v531 = vsel %vm502, 0, %v530
      %532 = vst [vmem:[#allocation2 + $0x74] sm:$0x1] %v531
      %v533 = vld [vmem:[#allocation2 + $0x80] sm:$0x1]
      %v534 = vsel %vm502, 0, %v533
      %535 = vst [vmem:[#allocation2 + $0x80] sm:$0x1] %v534
      %v536 = vld [vmem:[#allocation2 + $0x8c] sm:$0x1]
      %v537 = vsel %vm502, 0, %v536
      %538 = vst [vmem:[#allocation2 + $0x8c] sm:$0x1] %v537
      %v539 = vld [vmem:[#allocation2 + $0x98] sm:$0x1]
      %v540 = vsel %vm502, 0, %v539
      %541 = vst [vmem:[#allocation2 + $0x98] sm:$0x1] %v540
      %v542 = vld [vmem:[#allocation2 + $0xa4] sm:$0x1]
      %v543 = vsel %vm502, 0, %v542
      %544 = vst [vmem:[#allocation2 + $0xa4] sm:$0x1] %v543
      %v545 = vld [vmem:[#allocation2 + $0xb0] sm:$0x1]
      %v546 = vsel %vm502, 0, %v545
      %547 = vst [vmem:[#allocation2 + $0xb0] sm:$0x1] %v546
      %v548 = vld [vmem:[#allocation2 + $0xbc] sm:$0x1]
      %v549 = vsel %vm502, 0, %v548
      %550 = vst [vmem:[#allocation2 + $0xbc] sm:$0x1] %v549
      %v551 = vld [vmem:[#allocation2 + $0xc8] sm:$0x1]
      %v552 = vsel %vm502, 0, %v551
      %553 = vst [vmem:[#allocation2 + $0xc8] sm:$0x1] %v552
      %v554 = vld [vmem:[#allocation2 + $0xd4] sm:$0x1]
      %v555 = vsel %vm502, 0, %v554
      %556 = vst [vmem:[#allocation2 + $0xd4] sm:$0x1] %v555
      %v557 = vld [vmem:[%s10] sm:$0xf]
      %v558 = vld [vmem:[%s11] sm:$0x3]
      %v559 = vld [vmem:[%s423] sm:$0xf]
      %v560 = vld [vmem:[%s423 + $0x4] sm:$0xf]
      %v561 = vld [vmem:[%s423 + $0x8] sm:$0xf]
      %v562 = vld [vmem:[%s423 + $0xc] sm:$0xf]
      %v563 = vld [vmem:[%s423 + $0x10] sm:$0xf]
      %v564 = vld [vmem:[%s423 + $0x14] sm:$0xf]
      %v565 = vld [vmem:[%s423 + $0x18] sm:$0xf]
      %v566 = vld [vmem:[%s423 + $0x1c] sm:$0xf]
      %v567 = vld [vmem:[%s423 + $0x20] sm:$0xf]
      %v568 = vld [vmem:[%s423 + $0x24] sm:$0xf]
      %v569 = vld [vmem:[%s423 + $0x28] sm:$0xf]
      %v570 = vld [vmem:[%s423 + $0x2c] sm:$0xf]
      %v571 = vld [vmem:[%s423 + $0x30] sm:$0xf]
      %v572 = vld [vmem:[%s423 + $0x34] sm:$0xf]
      %v573 = vld [vmem:[%s423 + $0x38] sm:$0xf]
      %v574 = vld [vmem:[%s423 + $0x3c] sm:$0xf]
      %v575 = vld [vmem:[%s423 + $0x40] sm:$0xf]
      %v576 = vld [vmem:[%s423 + $0x44] sm:$0xf]
      %v577 = vld [vmem:[%s423 + $0x48] sm:$0xf]
      %v578 = vld [vmem:[%s423 + $0x4c] sm:$0xf]
      %v579 = vld [vmem:[%s423 + $0x50] sm:$0xf]
      %v580 = vld [vmem:[%s423 + $0x54] sm:$0xf]
      %v581 = vld [vmem:[%s423 + $0x58] sm:$0xf]
      %v582 = vld [vmem:[%s423 + $0x5c] sm:$0xf]
      %v583 = vld [vmem:[%s423 + $0x60] sm:$0xf]
      %v584 = vld [vmem:[%s423 + $0x64] sm:$0xf]
      %v585 = vld [vmem:[%s423 + $0x68] sm:$0xf]
      %v586 = vld [vmem:[%s423 + $0x6c] sm:$0xf]
      %v587 = vld [vmem:[%s423 + $0x70] sm:$0xf]
      %v588 = vld [vmem:[%s423 + $0x74] sm:$0xf]
      %v589 = vld [vmem:[%s423 + $0x78] sm:$0xf]
      %v590 = vld [vmem:[%s423 + $0x7c] sm:$0xf]
      %v591 = vunpack.c.l.bf16 %v559
      %v592 = vunpack.c.l.bf16 %v560
      %v593 = vunpack.c.l.bf16 %v561
      %v594 = vunpack.c.l.bf16 %v562
      %v595 = vunpack.c.l.bf16 %v563
      %v596 = vunpack.c.l.bf16 %v564
      %v597 = vunpack.c.l.bf16 %v565
      %v598 = vunpack.c.l.bf16 %v566
      %v599 = vunpack.c.l.bf16 %v567
      %v600 = vunpack.c.l.bf16 %v568
      %v601 = vunpack.c.l.bf16 %v569
      %v602 = vunpack.c.l.bf16 %v570
      %v603 = vunpack.c.l.bf16 %v571
      %v604 = vunpack.c.l.bf16 %v572
      %v605 = vunpack.c.l.bf16 %v573
      %v606 = vunpack.c.l.bf16 %v574
      %v607 = vunpack.c.l.bf16 %v575
      %v608 = vunpack.c.l.bf16 %v576
      %v609 = vunpack.c.l.bf16 %v577
      %v610 = vunpack.c.l.bf16 %v578
      %v611 = vunpack.c.l.bf16 %v579
      %v612 = vunpack.c.l.bf16 %v580
      %v613 = vunpack.c.l.bf16 %v581
      %v614 = vunpack.c.l.bf16 %v582
      %v615 = vunpack.c.l.bf16 %v583
      %v616 = vunpack.c.l.bf16 %v584
      %v617 = vunpack.c.l.bf16 %v585
      %v618 = vunpack.c.l.bf16 %v586
      %v619 = vunpack.c.l.bf16 %v587
      %v620 = vunpack.c.l.bf16 %v588
      %v621 = vunpack.c.l.bf16 %v589
      %v622 = vunpack.c.l.bf16 %v590
      %v623 = vld [vmem:[%s428] sm:$0xf]
      %v624 = vld [vmem:[%s428 + $0x4] sm:$0xf]
      %v625 = vld [vmem:[%s428 + $0x8] sm:$0xf]
      %v626 = vld [vmem:[%s428 + $0xc] sm:$0xf]
      %v627 = vld [vmem:[%s428 + $0x10] sm:$0xf]
      %v628 = vld [vmem:[%s428 + $0x14] sm:$0xf]
      %v629 = vld [vmem:[%s428 + $0x18] sm:$0xf]
      %v630 = vld [vmem:[%s428 + $0x1c] sm:$0xf]
      %v631 = vld [vmem:[%s428 + $0x20] sm:$0xf]
      %v632 = vld [vmem:[%s428 + $0x24] sm:$0xf]
      %v633 = vld [vmem:[%s428 + $0x28] sm:$0xf]
      %v634 = vld [vmem:[%s428 + $0x2c] sm:$0xf]
      %v635 = vld [vmem:[%s428 + $0x30] sm:$0xf]
      %v636 = vld [vmem:[%s428 + $0x34] sm:$0xf]
      %v637 = vld [vmem:[%s428 + $0x38] sm:$0xf]
      %v638 = vld [vmem:[%s428 + $0x3c] sm:$0xf]
      %v639 = vld [vmem:[%s428 + $0x40] sm:$0xf]
      %v640 = vld [vmem:[%s428 + $0x44] sm:$0xf]
      %v641 = vld [vmem:[%s428 + $0x48] sm:$0xf]
      %v642 = vld [vmem:[%s428 + $0x4c] sm:$0xf]
      %v643 = vld [vmem:[%s428 + $0x50] sm:$0xf]
      %v644 = vld [vmem:[%s428 + $0x54] sm:$0xf]
      %v645 = vld [vmem:[%s428 + $0x58] sm:$0xf]
      %v646 = vld [vmem:[%s428 + $0x5c] sm:$0xf]
      %v647 = vld [vmem:[%s428 + $0x60] sm:$0xf]
      %v648 = vld [vmem:[%s428 + $0x64] sm:$0xf]
      %v649 = vld [vmem:[%s428 + $0x68] sm:$0xf]
      %v650 = vld [vmem:[%s428 + $0x6c] sm:$0xf]
      %v651 = vld [vmem:[%s428 + $0x70] sm:$0xf]
      %v652 = vld [vmem:[%s428 + $0x74] sm:$0xf]
      %v653 = vld [vmem:[%s428 + $0x78] sm:$0xf]
      %v654 = vld [vmem:[%s428 + $0x7c] sm:$0xf]
      %v655 = vunpack.c.l.bf16 %v623
      %v656 = vunpack.c.l.bf16 %v624
      %v657 = vunpack.c.l.bf16 %v625
      %v658 = vunpack.c.l.bf16 %v626
      %v659 = vunpack.c.l.bf16 %v627
      %v660 = vunpack.c.l.bf16 %v628
      %v661 = vunpack.c.l.bf16 %v629
      %v662 = vunpack.c.l.bf16 %v630
      %v663 = vunpack.c.l.bf16 %v631
      %v664 = vunpack.c.l.bf16 %v632
      %v665 = vunpack.c.l.bf16 %v633
      %v666 = vunpack.c.l.bf16 %v634
      %v667 = vunpack.c.l.bf16 %v635
      %v668 = vunpack.c.l.bf16 %v636
      %v669 = vunpack.c.l.bf16 %v637
      %v670 = vunpack.c.l.bf16 %v638
      %v671 = vunpack.c.l.bf16 %v639
      %v672 = vunpack.c.l.bf16 %v640
      %v673 = vunpack.c.l.bf16 %v641
      %v674 = vunpack.c.l.bf16 %v642
      %v675 = vunpack.c.l.bf16 %v643
      %v676 = vunpack.c.l.bf16 %v644
      %v677 = vunpack.c.l.bf16 %v645
      %v678 = vunpack.c.l.bf16 %v646
      %v679 = vunpack.c.l.bf16 %v647
      %v680 = vunpack.c.l.bf16 %v648
      %v681 = vunpack.c.l.bf16 %v649
      %v682 = vunpack.c.l.bf16 %v650
      %v683 = vunpack.c.l.bf16 %v651
      %v684 = vunpack.c.l.bf16 %v652
      %v685 = vunpack.c.l.bf16 %v653
      %v686 = vunpack.c.l.bf16 %v654
      %v687 = vadd.f32 %v591, %v655
      %v688 = vadd.f32 %v592, %v656
      %v689 = vadd.f32 %v593, %v657
      %v690 = vadd.f32 %v594, %v658
      %v691 = vadd.f32 %v595, %v659
      %v692 = vadd.f32 %v596, %v660
      %v693 = vadd.f32 %v597, %v661
      %v694 = vadd.f32 %v598, %v662
      %v695 = vadd.f32 %v599, %v663
      %v696 = vadd.f32 %v600, %v664
      %v697 = vadd.f32 %v601, %v665
      %v698 = vadd.f32 %v602, %v666
      %v699 = vadd.f32 %v603, %v667
      %v700 = vadd.f32 %v604, %v668
      %v701 = vadd.f32 %v605, %v669
      %v702 = vadd.f32 %v606, %v670
      %v703 = vadd.f32 %v607, %v671
      %v704 = vadd.f32 %v608, %v672
      %v705 = vadd.f32 %v609, %v673
      %v706 = vadd.f32 %v610, %v674
      %v707 = vadd.f32 %v611, %v675
      %v708 = vadd.f32 %v612, %v676
      %v709 = vadd.f32 %v613, %v677
      %v710 = vadd.f32 %v614, %v678
      %v711 = vadd.f32 %v615, %v679
      %v712 = vadd.f32 %v616, %v680
      %v713 = vadd.f32 %v617, %v681
      %v714 = vadd.f32 %v618, %v682
      %v715 = vadd.f32 %v619, %v683
      %v716 = vadd.f32 %v620, %v684
      %v717 = vadd.f32 %v621, %v685
      %v718 = vadd.f32 %v622, %v686
      %v719 = vld [vmem:[%s2] sm:$0x1]
      %v720 = vld [vmem:[%s3] sm:$0x1]
      %vm721 = vcmask 31744
      %v722 = vsel %vm721, %v687, 0.0
      %v723 = vsel %vm721, %v688, 0.0
      %v724 = vadd.f32 %v722, %v723
      %v725 = vsel %vm721, %v689, 0.0
      %v726 = vadd.f32 %v724, %v725
      %v727 = vsel %vm721, %v690, 0.0
      %v728 = vadd.f32 %v726, %v727
      %v729 = vsel %vm721, %v691, 0.0
      %v730 = vadd.f32 %v728, %v729
      %v731 = vsel %vm721, %v692, 0.0
      %v732 = vadd.f32 %v730, %v731
      %v733 = vsel %vm721, %v693, 0.0
      %v734 = vadd.f32 %v732, %v733
      %v735 = vsel %vm721, %v694, 0.0
      %v736 = vadd.f32 %v734, %v735
      %v737 = vsel %vm721, %v695, 0.0
      %v738 = vadd.f32 %v736, %v737
      %v739 = vsel %vm721, %v696, 0.0
      %v740 = vadd.f32 %v738, %v739
      %v741 = vsel %vm721, %v697, 0.0
      %v742 = vadd.f32 %v740, %v741
      %v743 = vsel %vm721, %v698, 0.0
      %v744 = vadd.f32 %v742, %v743
      %v745 = vsel %vm721, %v699, 0.0
      %v746 = vadd.f32 %v744, %v745
      %v747 = vsel %vm721, %v700, 0.0
      %v748 = vadd.f32 %v746, %v747
      %v749 = vsel %vm721, %v701, 0.0
      %v750 = vadd.f32 %v748, %v749
      %v751 = vsel %vm721, %v702, 0.0
      %v752 = vadd.f32 %v750, %v751
      %v753 = vsel %vm721, %v703, 0.0
      %v754 = vadd.f32 %v752, %v753
      %v755 = vsel %vm721, %v704, 0.0
      %v756 = vadd.f32 %v754, %v755
      %v757 = vsel %vm721, %v705, 0.0
      %v758 = vadd.f32 %v756, %v757
      %v759 = vsel %vm721, %v706, 0.0
      %v760 = vadd.f32 %v758, %v759
      %v761 = vsel %vm721, %v707, 0.0
      %v762 = vadd.f32 %v760, %v761
      %v763 = vsel %vm721, %v708, 0.0
      %v764 = vadd.f32 %v762, %v763
      %v765 = vsel %vm721, %v709, 0.0
      %v766 = vadd.f32 %v764, %v765
      %v767 = vsel %vm721, %v710, 0.0
      %v768 = vadd.f32 %v766, %v767
      %v769 = vsel %vm721, %v711, 0.0
      %v770 = vadd.f32 %v768, %v769
      %v771 = vsel %vm721, %v712, 0.0
      %v772 = vadd.f32 %v770, %v771
      %v773 = vsel %vm721, %v713, 0.0
      %v774 = vadd.f32 %v772, %v773
      %v775 = vsel %vm721, %v714, 0.0
      %v776 = vadd.f32 %v774, %v775
      %v777 = vsel %vm721, %v715, 0.0
      %v778 = vadd.f32 %v776, %v777
      %v779 = vsel %vm721, %v716, 0.0
      %v780 = vadd.f32 %v778, %v779
      %v781 = vsel %vm721, %v717, 0.0
      %v782 = vadd.f32 %v780, %v781
      %v783 = vsel %vm721, %v718, 0.0
      %v784 = vadd.f32 %v782, %v783
      %v785 = vrot.slane %v784, 4
      %v786 = vadd.f32 %v784, %v785
      %v787 = vrot.slane %v786, 2
      %v788 = vadd.f32 %v786, %v787
      %v789 = vrot.slane %v788, 1
      %v790 = vadd.f32 %v788, %v789
      %v791 = vmul.f32 %v687, %v687
      %v792 = vmul.f32 %v688, %v688
      %v793 = vmul.f32 %v689, %v689
      %v794 = vmul.f32 %v690, %v690
      %v795 = vmul.f32 %v691, %v691
      %v796 = vmul.f32 %v692, %v692
      %v797 = vmul.f32 %v693, %v693
      %v798 = vmul.f32 %v694, %v694
      %v799 = vmul.f32 %v695, %v695
      %v800 = vmul.f32 %v696, %v696
      %v801 = vmul.f32 %v697, %v697
      %v802 = vmul.f32 %v698, %v698
      %v803 = vmul.f32 %v699, %v699
      %v804 = vmul.f32 %v700, %v700
      %v805 = vmul.f32 %v701, %v701
      %v806 = vmul.f32 %v702, %v702
      %v807 = vmul.f32 %v703, %v703
      %v808 = vmul.f32 %v704, %v704
      %v809 = vmul.f32 %v705, %v705
      %v810 = vmul.f32 %v706, %v706
      %v811 = vmul.f32 %v707, %v707
      %v812 = vmul.f32 %v708, %v708
      %v813 = vmul.f32 %v709, %v709
      %v814 = vmul.f32 %v710, %v710
      %v815 = vmul.f32 %v711, %v711
      %v816 = vmul.f32 %v712, %v712
      %v817 = vmul.f32 %v713, %v713
      %v818 = vmul.f32 %v714, %v714
      %v819 = vmul.f32 %v715, %v715
      %v820 = vmul.f32 %v716, %v716
      %v821 = vmul.f32 %v717, %v717
      %v822 = vmul.f32 %v718, %v718
      %v823 = vsel %vm721, %v791, 0.0
      %v824 = vsel %vm721, %v792, 0.0
      %v825 = vadd.f32 %v823, %v824
      %v826 = vsel %vm721, %v793, 0.0
      %v827 = vadd.f32 %v825, %v826
      %v828 = vsel %vm721, %v794, 0.0
      %v829 = vadd.f32 %v827, %v828
      %v830 = vsel %vm721, %v795, 0.0
      %v831 = vadd.f32 %v829, %v830
      %v832 = vsel %vm721, %v796, 0.0
      %v833 = vadd.f32 %v831, %v832
      %v834 = vsel %vm721, %v797, 0.0
      %v835 = vadd.f32 %v833, %v834
      %v836 = vsel %vm721, %v798, 0.0
      %v837 = vadd.f32 %v835, %v836
      %v838 = vsel %vm721, %v799, 0.0
      %v839 = vadd.f32 %v837, %v838
      %v840 = vsel %vm721, %v800, 0.0
      %v841 = vadd.f32 %v839, %v840
      %v842 = vsel %vm721, %v801, 0.0
      %v843 = vadd.f32 %v841, %v842
      %v844 = vsel %vm721, %v802, 0.0
      %v845 = vadd.f32 %v843, %v844
      %v846 = vsel %vm721, %v803, 0.0
      %v847 = vadd.f32 %v845, %v846
      %v848 = vsel %vm721, %v804, 0.0
      %v849 = vadd.f32 %v847, %v848
      %v850 = vsel %vm721, %v805, 0.0
      %v851 = vadd.f32 %v849, %v850
      %v852 = vsel %vm721, %v806, 0.0
      %v853 = vadd.f32 %v851, %v852
      %v854 = vsel %vm721, %v807, 0.0
      %v855 = vadd.f32 %v853, %v854
      %v856 = vsel %vm721, %v808, 0.0
      %v857 = vadd.f32 %v855, %v856
      %v858 = vsel %vm721, %v809, 0.0
      %v859 = vadd.f32 %v857, %v858
      %v860 = vsel %vm721, %v810, 0.0
      %v861 = vadd.f32 %v859, %v860
      %v862 = vsel %vm721, %v811, 0.0
      %v863 = vadd.f32 %v861, %v862
      %v864 = vsel %vm721, %v812, 0.0
      %v865 = vadd.f32 %v863, %v864
      %v866 = vsel %vm721, %v813, 0.0
      %v867 = vadd.f32 %v865, %v866
      %v868 = vsel %vm721, %v814, 0.0
      %v869 = vadd.f32 %v867, %v868
      %v870 = vsel %vm721, %v815, 0.0
      %v871 = vadd.f32 %v869, %v870
      %v872 = vsel %vm721, %v816, 0.0
      %v873 = vadd.f32 %v871, %v872
      %v874 = vsel %vm721, %v817, 0.0
      %v875 = vadd.f32 %v873, %v874
      %v876 = vsel %vm721, %v818, 0.0
      %v877 = vadd.f32 %v875, %v876
      %v878 = vsel %vm721, %v819, 0.0
      %v879 = vadd.f32 %v877, %v878
      %v880 = vsel %vm721, %v820, 0.0
      %v881 = vadd.f32 %v879, %v880
      %v882 = vsel %vm721, %v821, 0.0
      %v883 = vadd.f32 %v881, %v882
      %v884 = vsel %vm721, %v822, 0.0
      %v885 = vadd.f32 %v883, %v884
      %v886 = vrot.slane %v885, 4
      %v887 = vadd.f32 %v885, %v886
      %v888 = vrot.slane %v887, 2
      %v889 = vadd.f32 %v887, %v888
      %v890 = vrot.slane %v889, 1
      %v891 = vadd.f32 %v889, %v890
      %v893 = vsel %vm721, %v790, 0
      %vm895 = vcmask 1043456
      %v897 = vsel %vm895, %v557, 0
      %899 = vmatprep.subr.mxu0 0.0
      %900 = vmatpush1.msra.mxu0 %v897
      %901 = vmatprep.subr.mxu0 0.0
      %902 = vmatpush1.msra.mxu0 0.0
      %903 = vmatprep.subr.mxu0 0.0
      %904 = vmatpush1.msra.mxu0 0.0
      %905 = vmatprep.subr.mxu0 0.0
      %906 = vmatpush1.msra.mxu0 0.0
      %907 = vmatprep.subr.mxu0 0.0
      %908 = vmatpush1.msra.mxu0 0.0
      %909 = vmatprep.subr.mxu0 0.0
      %910 = vmatpush1.msra.mxu0 0.0
      %911 = vmatprep.subr.mxu0 0.0
      %912 = vmatpush1.msra.mxu0 0.0
      %913 = vmatprep.subr.mxu0 0.0
      %914 = vmatpush1.msra.mxu0 0.0
      %915 = vmatprep.subr.mxu0 0.0
      %916 = vmatpush1.msra.mxu0 0.0
      %917 = vmatprep.subr.mxu0 0.0
      %918 = vmatpush1.msra.mxu0 0.0
      %919 = vmatprep.subr.mxu0 0.0
      %920 = vmatpush1.msra.mxu0 0.0
      %921 = vmatprep.subr.mxu0 0.0
      %922 = vmatpush1.msra.mxu0 0.0
      %923 = vmatprep.subr.mxu0 0.0
      %924 = vmatpush1.msra.mxu0 0.0
      %925 = vmatprep.subr.mxu0 0.0
      %926 = vmatpush1.msra.mxu0 0.0
      %927 = vmatprep.subr.mxu0 0.0
      %928 = vmatpush1.msra.mxu0 0.0
      %929 = vmatprep.subr.mxu0 0.0
      %930 = vmatpush1.msra.mxu0 0.0
      %931 = vmatprep.subr.mxu0 0.0
      %932 = vmatpush1.msra.mxu0 0.0
      %933 = vmatprep.subr.mxu0 0.0
      %934 = vmatpush1.msra.mxu0 0.0
      %935 = vmatprep.subr.mxu0 0.0
      %936 = vmatpush1.msra.mxu0 0.0
      %937 = vmatprep.subr.mxu0 0.0
      %938 = vmatpush1.msra.mxu0 0.0
      %939 = vmatprep.subr.mxu0 0.0
      %940 = vmatpush1.msra.mxu0 0.0
      %941 = vmatprep.subr.mxu0 0.0
      %942 = vmatpush1.msra.mxu0 0.0
      %943 = vmatprep.subr.mxu0 0.0
      %944 = vmatpush1.msra.mxu0 0.0
      %945 = vmatprep.subr.mxu0 0.0
      %946 = vmatpush1.msra.mxu0 0.0
      %947 = vmatprep.subr.mxu0 0.0
      %948 = vmatpush1.msra.mxu0 0.0
      %949 = vmatprep.subr.mxu0 0.0
      %950 = vmatpush1.msra.mxu0 0.0
      %951 = vmatprep.subr.mxu0 0.0
      %952 = vmatpush1.msra.mxu0 0.0
      %953 = vmatprep.subr.mxu0 0.0
      %954 = vmatpush1.msra.mxu0 0.0
      %955 = vmatprep.subr.mxu0 0.0
      %956 = vmatpush1.msra.mxu0 0.0
      %957 = vmatprep.subr.mxu0 0.0
      %958 = vmatpush1.msra.mxu0 0.0
      %959 = vmatprep.subr.mxu0 0.0
      %960 = vmatpush1.msra.mxu0 0.0
      %961 = vmatprep.subr.mxu0 0.0
      %962 = vmatpush1.msra.mxu0 0.0
      %963 = vmatprep.mubr.f32.mxu0 0.0
      %964 = vmatmul.mubr.f32.gmra.mrb[0].mxu0 %v893
      %v965 = vpop.f32.mrb[0].mxu0
      %v966 = vadd.f32 0.0, %v965
      %v967 = vpop.f32.mrb[0].mxu0
      %968 = vdwg.mxu0
      %v970 = vsel %vm721, %v891, 0
      %972 = vmatprep.subr.mxu0 0.0
      %973 = vmatpush1.msra.mxu0 %v897
      %974 = vmatprep.subr.mxu0 0.0
      %975 = vmatpush1.msra.mxu0 0.0
      %976 = vmatprep.subr.mxu0 0.0
      %977 = vmatpush1.msra.mxu0 0.0
      %978 = vmatprep.subr.mxu0 0.0
      %979 = vmatpush1.msra.mxu0 0.0
      %980 = vmatprep.subr.mxu0 0.0
      %981 = vmatpush1.msra.mxu0 0.0
      %982 = vmatprep.subr.mxu0 0.0
      %983 = vmatpush1.msra.mxu0 0.0
      %984 = vmatprep.subr.mxu0 0.0
      %985 = vmatpush1.msra.mxu0 0.0
      %986 = vmatprep.subr.mxu0 0.0
      %987 = vmatpush1.msra.mxu0 0.0
      %988 = vmatprep.subr.mxu0 0.0
      %989 = vmatpush1.msra.mxu0 0.0
      %990 = vmatprep.subr.mxu0 0.0
      %991 = vmatpush1.msra.mxu0 0.0
      %992 = vmatprep.subr.mxu0 0.0
      %993 = vmatpush1.msra.mxu0 0.0
      %994 = vmatprep.subr.mxu0 0.0
      %995 = vmatpush1.msra.mxu0 0.0
      %996 = vmatprep.subr.mxu0 0.0
      %997 = vmatpush1.msra.mxu0 0.0
      %998 = vmatprep.subr.mxu0 0.0
      %999 = vmatpush1.msra.mxu0 0.0
      %1000 = vmatprep.subr.mxu0 0.0
      %1001 = vmatpush1.msra.mxu0 0.0
      %1002 = vmatprep.subr.mxu0 0.0
      %1003 = vmatpush1.msra.mxu0 0.0
      %1004 = vmatprep.subr.mxu0 0.0
      %1005 = vmatpush1.msra.mxu0 0.0
      %1006 = vmatprep.subr.mxu0 0.0
      %1007 = vmatpush1.msra.mxu0 0.0
      %1008 = vmatprep.subr.mxu0 0.0
      %1009 = vmatpush1.msra.mxu0 0.0
      %1010 = vmatprep.subr.mxu0 0.0
      %1011 = vmatpush1.msra.mxu0 0.0
      %1012 = vmatprep.subr.mxu0 0.0
      %1013 = vmatpush1.msra.mxu0 0.0
      %1014 = vmatprep.subr.mxu0 0.0
      %1015 = vmatpush1.msra.mxu0 0.0
      %1016 = vmatprep.subr.mxu0 0.0
      %1017 = vmatpush1.msra.mxu0 0.0
      %1018 = vmatprep.subr.mxu0 0.0
      %1019 = vmatpush1.msra.mxu0 0.0
      %1020 = vmatprep.subr.mxu0 0.0
      %1021 = vmatpush1.msra.mxu0 0.0
      %1022 = vmatprep.subr.mxu0 0.0
      %1023 = vmatpush1.msra.mxu0 0.0
      %1024 = vmatprep.subr.mxu0 0.0
      %1025 = vmatpush1.msra.mxu0 0.0
      %1026 = vmatprep.subr.mxu0 0.0
      %1027 = vmatpush1.msra.mxu0 0.0
      %1028 = vmatprep.subr.mxu0 0.0
      %1029 = vmatpush1.msra.mxu0 0.0
      %1030 = vmatprep.subr.mxu0 0.0
      %1031 = vmatpush1.msra.mxu0 0.0
      %1032 = vmatprep.subr.mxu0 0.0
      %1033 = vmatpush1.msra.mxu0 0.0
      %1034 = vmatprep.subr.mxu0 0.0
      %1035 = vmatpush1.msra.mxu0 0.0
      %1036 = vmatprep.mubr.f32.mxu0 0.0
      %1037 = vmatmul.mubr.f32.gmra.mrb[0].mxu0 %v970
      %v1038 = vpop.f32.mrb[0].mxu0
      %v1039 = vadd.f32 0.0, %v1038
      %v1040 = vpop.f32.mrb[0].mxu0
      %1041 = vdwg.mxu0
      %v1042 = vmul.f32 %v966, 0.001953125
      %v1043 = vmul.f32 %v1039, 0.001953125
      %v1044 = vmul.f32 %v1042, %v1042
      %v1045 = vsub.f32 %v1043, %v1044
      %v1046 = vadd.f32 %v1045, 1e-05
      %v1047 = vrsqrt.pop %v1046
      %vm1048 = vcmask 15360
      %v1050 = vsel %vm1048, %v1042, 0
      %vm1052 = vcmask 1041408
      %v1054 = vsel %vm1052, %v558, 0
      %1056 = vmatprep.subr.mxu0 0.0
      %1057 = vmatpush1.msra.mxu0 %v1054
      %1058 = vmatprep.subr.mxu0 0.0
      %1059 = vmatpush1.msra.mxu0 0.0
      %1060 = vmatprep.subr.mxu0 0.0
      %1061 = vmatpush1.msra.mxu0 0.0
      %1062 = vmatprep.subr.mxu0 0.0
      %1063 = vmatpush1.msra.mxu0 0.0
      %1064 = vmatprep.subr.mxu0 0.0
      %1065 = vmatpush1.msra.mxu0 0.0
      %1066 = vmatprep.subr.mxu0 0.0
      %1067 = vmatpush1.msra.mxu0 0.0
      %1068 = vmatprep.subr.mxu0 0.0
      %1069 = vmatpush1.msra.mxu0 0.0
      %1070 = vmatprep.subr.mxu0 0.0
      %1071 = vmatpush1.msra.mxu0 0.0
      %1072 = vmatprep.subr.mxu0 0.0
      %1073 = vmatpush1.msra.mxu0 0.0
      %1074 = vmatprep.subr.mxu0 0.0
      %1075 = vmatpush1.msra.mxu0 0.0
      %1076 = vmatprep.subr.mxu0 0.0
      %1077 = vmatpush1.msra.mxu0 0.0
      %1078 = vmatprep.subr.mxu0 0.0
      %1079 = vmatpush1.msra.mxu0 0.0
      %1080 = vmatprep.subr.mxu0 0.0
      %1081 = vmatpush1.msra.mxu0 0.0
      %1082 = vmatprep.subr.mxu0 0.0
      %1083 = vmatpush1.msra.mxu0 0.0
      %1084 = vmatprep.subr.mxu0 0.0
      %1085 = vmatpush1.msra.mxu0 0.0
      %1086 = vmatprep.subr.mxu0 0.0
      %1087 = vmatpush1.msra.mxu0 0.0
      %1088 = vmatprep.subr.mxu0 0.0
      %1089 = vmatpush1.msra.mxu0 0.0
      %1090 = vmatprep.subr.mxu0 0.0
      %1091 = vmatpush1.msra.mxu0 0.0
      %1092 = vmatprep.subr.mxu0 0.0
      %1093 = vmatpush1.msra.mxu0 0.0
      %1094 = vmatprep.subr.mxu0 0.0
      %1095 = vmatpush1.msra.mxu0 0.0
      %1096 = vmatprep.subr.mxu0 0.0
      %1097 = vmatpush1.msra.mxu0 0.0
      %1098 = vmatprep.subr.mxu0 0.0
      %1099 = vmatpush1.msra.mxu0 0.0
      %1100 = vmatprep.subr.mxu0 0.0
      %1101 = vmatpush1.msra.mxu0 0.0
      %1102 = vmatprep.subr.mxu0 0.0
      %1103 = vmatpush1.msra.mxu0 0.0
      %1104 = vmatprep.subr.mxu0 0.0
      %1105 = vmatpush1.msra.mxu0 0.0
      %1106 = vmatprep.subr.mxu0 0.0
      %1107 = vmatpush1.msra.mxu0 0.0
      %1108 = vmatprep.subr.mxu0 0.0
      %1109 = vmatpush1.msra.mxu0 0.0
      %1110 = vmatprep.subr.mxu0 0.0
      %1111 = vmatpush1.msra.mxu0 0.0
      %1112 = vmatprep.subr.mxu0 0.0
      %1113 = vmatpush1.msra.mxu0 0.0
      %1114 = vmatprep.subr.mxu0 0.0
      %1115 = vmatpush1.msra.mxu0 0.0
      %1116 = vmatprep.subr.mxu0 0.0
      %1117 = vmatpush1.msra.mxu0 0.0
      %1118 = vmatprep.subr.mxu0 0.0
      %1119 = vmatpush1.msra.mxu0 0.0
      %1120 = vmatprep.mubr.f32.mxu0 0.0
      %1121 = vmatmul.mubr.f32.gmra.mrb[0].mxu0 %v1050
      %v1122 = vpop.f32.mrb[0].mxu0
      %v1123 = vadd.f32 0.0, %v1122
      %v1124 = vpop.f32.mrb[0].mxu0
      %1125 = vdwg.mxu0
      %v1127 = vsel %vm1048, %v1047, 0
      %1129 = vmatprep.subr.mxu0 0.0
      %1130 = vmatpush1.msra.mxu0 %v1054
      %1131 = vmatprep.subr.mxu0 0.0
      %1132 = vmatpush1.msra.mxu0 0.0
      %1133 = vmatprep.subr.mxu0 0.0
      %1134 = vmatpush1.msra.mxu0 0.0
      %1135 = vmatprep.subr.mxu0 0.0
      %1136 = vmatpush1.msra.mxu0 0.0
      %1137 = vmatprep.subr.mxu0 0.0
      %1138 = vmatpush1.msra.mxu0 0.0
      %1139 = vmatprep.subr.mxu0 0.0
      %1140 = vmatpush1.msra.mxu0 0.0
      %1141 = vmatprep.subr.mxu0 0.0
      %1142 = vmatpush1.msra.mxu0 0.0
      %1143 = vmatprep.subr.mxu0 0.0
      %1144 = vmatpush1.msra.mxu0 0.0
      %1145 = vmatprep.subr.mxu0 0.0
      %1146 = vmatpush1.msra.mxu0 0.0
      %1147 = vmatprep.subr.mxu0 0.0
      %1148 = vmatpush1.msra.mxu0 0.0
      %1149 = vmatprep.subr.mxu0 0.0
      %1150 = vmatpush1.msra.mxu0 0.0
      %1151 = vmatprep.subr.mxu0 0.0
      %1152 = vmatpush1.msra.mxu0 0.0
      %1153 = vmatprep.subr.mxu0 0.0
      %1154 = vmatpush1.msra.mxu0 0.0
      %1155 = vmatprep.subr.mxu0 0.0
      %1156 = vmatpush1.msra.mxu0 0.0
      %1157 = vmatprep.subr.mxu0 0.0
      %1158 = vmatpush1.msra.mxu0 0.0
      %1159 = vmatprep.subr.mxu0 0.0
      %1160 = vmatpush1.msra.mxu0 0.0
      %1161 = vmatprep.subr.mxu0 0.0
      %1162 = vmatpush1.msra.mxu0 0.0
      %1163 = vmatprep.subr.mxu0 0.0
      %1164 = vmatpush1.msra.mxu0 0.0
      %1165 = vmatprep.subr.mxu0 0.0
      %1166 = vmatpush1.msra.mxu0 0.0
      %1167 = vmatprep.subr.mxu0 0.0
      %1168 = vmatpush1.msra.mxu0 0.0
      %1169 = vmatprep.subr.mxu0 0.0
      %1170 = vmatpush1.msra.mxu0 0.0
      %1171 = vmatprep.subr.mxu0 0.0
      %1172 = vmatpush1.msra.mxu0 0.0
      %1173 = vmatprep.subr.mxu0 0.0
      %1174 = vmatpush1.msra.mxu0 0.0
      %1175 = vmatprep.subr.mxu0 0.0
      %1176 = vmatpush1.msra.mxu0 0.0
      %1177 = vmatprep.subr.mxu0 0.0
      %1178 = vmatpush1.msra.mxu0 0.0
      %1179 = vmatprep.subr.mxu0 0.0
      %1180 = vmatpush1.msra.mxu0 0.0
      %1181 = vmatprep.subr.mxu0 0.0
      %1182 = vmatpush1.msra.mxu0 0.0
      %1183 = vmatprep.subr.mxu0 0.0
      %1184 = vmatpush1.msra.mxu0 0.0
      %1185 = vmatprep.subr.mxu0 0.0
      %1186 = vmatpush1.msra.mxu0 0.0
      %1187 = vmatprep.subr.mxu0 0.0
      %1188 = vmatpush1.msra.mxu0 0.0
      %1189 = vmatprep.subr.mxu0 0.0
      %1190 = vmatpush1.msra.mxu0 0.0
      %1191 = vmatprep.subr.mxu0 0.0
      %1192 = vmatpush1.msra.mxu0 0.0
      %1193 = vmatprep.mubr.f32.mxu0 0.0
      %1194 = vmatmul.mubr.f32.gmra.mrb[0].mxu0 %v1127
      %v1195 = vpop.f32.mrb[0].mxu0
      %v1196 = vadd.f32 0.0, %v1195
      %v1197 = vpop.f32.mrb[0].mxu0
      %1198 = vdwg.mxu0
      %v1199 = vmul.f32 %v1196, %v719
      %v1200 = vmul.f32 %v1123, %v1196
      %v1201 = vmul.f32 %v1200, %v719
      %v1202 = vsub.f32 %v720, %v1201
      %v1203 = vlaneseq
      %v1204 = vshrl.u32 %v1203, 7
      %v1205 = vsub.s32 0, %v1204
      %v1206 = vrot.slane %v1199, %v1205
      %v1207 = vmul.f32 %v687, %v1206
      %v1208 = vmul.f32 %v688, %v1206
      %v1209 = vmul.f32 %v689, %v1206
      %v1210 = vmul.f32 %v690, %v1206
      %v1211 = vmul.f32 %v691, %v1206
      %v1212 = vmul.f32 %v692, %v1206
      %v1213 = vmul.f32 %v693, %v1206
      %v1214 = vmul.f32 %v694, %v1206
      %v1215 = vmul.f32 %v695, %v1206
      %v1216 = vmul.f32 %v696, %v1206
      %v1217 = vmul.f32 %v697, %v1206
      %v1218 = vmul.f32 %v698, %v1206
      %v1219 = vmul.f32 %v699, %v1206
      %v1220 = vmul.f32 %v700, %v1206
      %v1221 = vmul.f32 %v701, %v1206
      %v1222 = vmul.f32 %v702, %v1206
      %v1223 = vmul.f32 %v703, %v1206
      %v1224 = vmul.f32 %v704, %v1206
      %v1225 = vmul.f32 %v705, %v1206
      %v1226 = vmul.f32 %v706, %v1206
      %v1227 = vmul.f32 %v707, %v1206
      %v1228 = vmul.f32 %v708, %v1206
      %v1229 = vmul.f32 %v709, %v1206
      %v1230 = vmul.f32 %v710, %v1206
      %v1231 = vmul.f32 %v711, %v1206
      %v1232 = vmul.f32 %v712, %v1206
      %v1233 = vmul.f32 %v713, %v1206
      %v1234 = vmul.f32 %v714, %v1206
      %v1235 = vmul.f32 %v715, %v1206
      %v1236 = vmul.f32 %v716, %v1206
      %v1237 = vmul.f32 %v717, %v1206
      %v1238 = vmul.f32 %v718, %v1206
      %v1240 = vlaneseq
      %v1241 = vshrl.u32 %v1240, 7
      %v1242 = vsub.s32 0, %v1241
      %v1243 = vrot.slane %v1202, %v1242
      %v1245 = vadd.f32 %v1207, %v1243
      %v1246 = vadd.f32 %v1208, %v1243
      %v1247 = vadd.f32 %v1209, %v1243
      %v1248 = vadd.f32 %v1210, %v1243
      %v1249 = vadd.f32 %v1211, %v1243
      %v1250 = vadd.f32 %v1212, %v1243
      %v1251 = vadd.f32 %v1213, %v1243
      %v1252 = vadd.f32 %v1214, %v1243
      %v1253 = vadd.f32 %v1215, %v1243
      %v1254 = vadd.f32 %v1216, %v1243
      %v1255 = vadd.f32 %v1217, %v1243
      %v1256 = vadd.f32 %v1218, %v1243
      %v1257 = vadd.f32 %v1219, %v1243
      %v1258 = vadd.f32 %v1220, %v1243
      %v1259 = vadd.f32 %v1221, %v1243
      %v1260 = vadd.f32 %v1222, %v1243
      %v1261 = vadd.f32 %v1223, %v1243
      %v1262 = vadd.f32 %v1224, %v1243
      %v1263 = vadd.f32 %v1225, %v1243
      %v1264 = vadd.f32 %v1226, %v1243
      %v1265 = vadd.f32 %v1227, %v1243
      %v1266 = vadd.f32 %v1228, %v1243
      %v1267 = vadd.f32 %v1229, %v1243
      %v1268 = vadd.f32 %v1230, %v1243
      %v1269 = vadd.f32 %v1231, %v1243
      %v1270 = vadd.f32 %v1232, %v1243
      %v1271 = vadd.f32 %v1233, %v1243
      %v1272 = vadd.f32 %v1234, %v1243
      %v1273 = vadd.f32 %v1235, %v1243
      %v1274 = vadd.f32 %v1236, %v1243
      %v1275 = vadd.f32 %v1237, %v1243
      %v1276 = vadd.f32 %v1238, %v1243
      %v1277 = vmax.f32 %v1245, 0.0
      %v1278 = vmax.f32 %v1246, 0.0
      %v1279 = vmax.f32 %v1247, 0.0
      %v1280 = vmax.f32 %v1248, 0.0
      %v1281 = vmax.f32 %v1249, 0.0
      %v1282 = vmax.f32 %v1250, 0.0
      %v1283 = vmax.f32 %v1251, 0.0
      %v1284 = vmax.f32 %v1252, 0.0
      %v1285 = vmax.f32 %v1253, 0.0
      %v1286 = vmax.f32 %v1254, 0.0
      %v1287 = vmax.f32 %v1255, 0.0
      %v1288 = vmax.f32 %v1256, 0.0
      %v1289 = vmax.f32 %v1257, 0.0
      %v1290 = vmax.f32 %v1258, 0.0
      %v1291 = vmax.f32 %v1259, 0.0
      %v1292 = vmax.f32 %v1260, 0.0
      %v1293 = vmax.f32 %v1261, 0.0
      %v1294 = vmax.f32 %v1262, 0.0
      %v1295 = vmax.f32 %v1263, 0.0
      %v1296 = vmax.f32 %v1264, 0.0
      %v1297 = vmax.f32 %v1265, 0.0
      %v1298 = vmax.f32 %v1266, 0.0
      %v1299 = vmax.f32 %v1267, 0.0
      %v1300 = vmax.f32 %v1268, 0.0
      %v1301 = vmax.f32 %v1269, 0.0
      %v1302 = vmax.f32 %v1270, 0.0
      %v1303 = vmax.f32 %v1271, 0.0
      %v1304 = vmax.f32 %v1272, 0.0
      %v1305 = vmax.f32 %v1273, 0.0
      %v1306 = vmax.f32 %v1274, 0.0
      %v1307 = vmax.f32 %v1275, 0.0
      %v1308 = vmax.f32 %v1276, 0.0
      %v1309 = vpack.c.bf16 %v1278, %v1277
      %v1310 = vpack.c.bf16 %v1280, %v1279
      %v1311 = vpack.c.bf16 %v1282, %v1281
      %v1312 = vpack.c.bf16 %v1284, %v1283
      %v1313 = vpack.c.bf16 %v1286, %v1285
      %v1314 = vpack.c.bf16 %v1288, %v1287
      %v1315 = vpack.c.bf16 %v1290, %v1289
      %v1316 = vpack.c.bf16 %v1292, %v1291
      %v1317 = vpack.c.bf16 %v1294, %v1293
      %v1318 = vpack.c.bf16 %v1296, %v1295
      %v1319 = vpack.c.bf16 %v1298, %v1297
      %v1320 = vpack.c.bf16 %v1300, %v1299
      %v1321 = vpack.c.bf16 %v1302, %v1301
      %v1322 = vpack.c.bf16 %v1304, %v1303
      %v1323 = vpack.c.bf16 %v1306, %v1305
      %v1324 = vpack.c.bf16 %v1308, %v1307
      %v1341 = vunpack.c.l.b16 %v1309
      %v1342 = vunpack.c.h.b16 %v1309
      %v1343 = vunpack.c.l.b16 %v1310
      %v1344 = vunpack.c.h.b16 %v1310
      %v1345 = vunpack.c.l.b16 %v1311
      %v1346 = vunpack.c.h.b16 %v1311
      %v1347 = vunpack.c.l.b16 %v1312
      %v1348 = vunpack.c.h.b16 %v1312
      %v1349 = vunpack.c.l.b16 %v1313
      %v1350 = vunpack.c.h.b16 %v1313
      %v1351 = vunpack.c.l.b16 %v1314
      %v1352 = vunpack.c.h.b16 %v1314
      %v1353 = vunpack.c.l.b16 %v1315
      %v1354 = vunpack.c.h.b16 %v1315
      %v1355 = vunpack.c.l.b16 %v1316
      %v1356 = vunpack.c.h.b16 %v1316
      %v1357 = vunpack.c.l.b16 %v1317
      %v1358 = vunpack.c.h.b16 %v1317
      %v1359 = vunpack.c.l.b16 %v1318
      %v1360 = vunpack.c.h.b16 %v1318
      %v1361 = vunpack.c.l.b16 %v1319
      %v1362 = vunpack.c.h.b16 %v1319
      %v1363 = vunpack.c.l.b16 %v1320
      %v1364 = vunpack.c.h.b16 %v1320
      %v1365 = vunpack.c.l.b16 %v1321
      %v1366 = vunpack.c.h.b16 %v1321
      %v1367 = vunpack.c.l.b16 %v1322
      %v1368 = vunpack.c.h.b16 %v1322
      %v1369 = vunpack.c.l.b16 %v1323
      %v1370 = vunpack.c.h.b16 %v1323
      %v1371 = vunpack.c.l.b16 %v1324
      %v1372 = vunpack.c.h.b16 %v1324
      %v1373 = vpack.c.b16 %v1341, %v1341
      %v1374 = vpack.c.b16 %v1342, %v1342
      %v1375 = vpack.c.b16 %v1343, %v1343
      %v1376 = vpack.c.b16 %v1344, %v1344
      %v1377 = vpack.c.b16 %v1345, %v1345
      %v1378 = vpack.c.b16 %v1346, %v1346
      %v1379 = vpack.c.b16 %v1347, %v1347
      %v1380 = vpack.c.b16 %v1348, %v1348
      %v1381 = vpack.c.b16 %v1349, %v1349
      %v1382 = vpack.c.b16 %v1350, %v1350
      %v1383 = vpack.c.b16 %v1351, %v1351
      %v1384 = vpack.c.b16 %v1352, %v1352
      %v1385 = vpack.c.b16 %v1353, %v1353
      %v1386 = vpack.c.b16 %v1354, %v1354
      %v1387 = vpack.c.b16 %v1355, %v1355
      %v1388 = vpack.c.b16 %v1356, %v1356
      %v1389 = vpack.c.b16 %v1357, %v1357
      %v1390 = vpack.c.b16 %v1358, %v1358
      %v1391 = vpack.c.b16 %v1359, %v1359
      %v1392 = vpack.c.b16 %v1360, %v1360
      %v1393 = vpack.c.b16 %v1361, %v1361
      %v1394 = vpack.c.b16 %v1362, %v1362
      %v1395 = vpack.c.b16 %v1363, %v1363
      %v1396 = vpack.c.b16 %v1364, %v1364
      %v1397 = vpack.c.b16 %v1365, %v1365
      %v1398 = vpack.c.b16 %v1366, %v1366
      %v1399 = vpack.c.b16 %v1367, %v1367
      %v1400 = vpack.c.b16 %v1368, %v1368
      %v1401 = vpack.c.b16 %v1369, %v1369
      %v1402 = vpack.c.b16 %v1370, %v1370
      %v1403 = vpack.c.b16 %v1371, %v1371
      %v1404 = vpack.c.b16 %v1372, %v1372
      %vm1405 = vsmask.f32 4368
      %vm1406 = vmor %vm445, %vm1405
      %v1408 = vshrl.u32 %v1373, 16
      %v1410 = vrot.slane %v1408, 7
      %v1411 = vshll.u32 %v1373, 16
      %v1413 = vor.u32 %v1410, %v1411
      %v1414 = vrot.slane %v1410, 4
      %v1416 = vshrl.u32 %v1374, 16
      %v1418 = vrot.slane %v1416, 7
      %v1419 = vshll.u32 %v1374, 16
      %v1421 = vor.u32 %v1418, %v1419
      %v1422 = vsel %vm1406, %v1414, %v1421
      %v1423 = vrot.slane %v1418, 4
      %v1425 = vshrl.u32 %v1375, 16
      %v1427 = vrot.slane %v1425, 7
      %v1428 = vshll.u32 %v1375, 16
      %v1430 = vor.u32 %v1427, %v1428
      %v1431 = vrot.slane %v1427, 4
      %v1433 = vshrl.u32 %v1376, 16
      %v1435 = vrot.slane %v1433, 7
      %v1436 = vshll.u32 %v1376, 16
      %v1438 = vor.u32 %v1435, %v1436
      %v1439 = vsel %vm1406, %v1431, %v1438
      %v1440 = vrot.slane %v1435, 4
      %v1442 = vshrl.u32 %v1377, 16
      %v1444 = vrot.slane %v1442, 7
      %v1445 = vshll.u32 %v1377, 16
      %v1447 = vor.u32 %v1444, %v1445
      %v1448 = vrot.slane %v1444, 4
      %v1450 = vshrl.u32 %v1378, 16
      %v1452 = vrot.slane %v1450, 7
      %v1453 = vshll.u32 %v1378, 16
      %v1455 = vor.u32 %v1452, %v1453
      %v1456 = vsel %vm1406, %v1448, %v1455
      %v1457 = vrot.slane %v1452, 4
      %v1459 = vshrl.u32 %v1379, 16
      %v1461 = vrot.slane %v1459, 7
      %v1462 = vshll.u32 %v1379, 16
      %v1464 = vor.u32 %v1461, %v1462
      %v1465 = vrot.slane %v1461, 4
      %v1467 = vshrl.u32 %v1380, 16
      %v1469 = vrot.slane %v1467, 7
      %v1470 = vshll.u32 %v1380, 16
      %v1472 = vor.u32 %v1469, %v1470
      %v1473 = vsel %vm1406, %v1465, %v1472
      %v1474 = vrot.slane %v1469, 4
      %v1476 = vshrl.u32 %v1381, 16
      %v1478 = vrot.slane %v1476, 7
      %v1479 = vshll.u32 %v1381, 16
      %v1481 = vor.u32 %v1478, %v1479
      %v1482 = vrot.slane %v1478, 4
      %v1484 = vshrl.u32 %v1382, 16
      %v1486 = vrot.slane %v1484, 7
      %v1487 = vshll.u32 %v1382, 16
      %v1489 = vor.u32 %v1486, %v1487
      %v1490 = vsel %vm1406, %v1482, %v1489
      %v1491 = vrot.slane %v1486, 4
      %v1493 = vshrl.u32 %v1383, 16
      %v1495 = vrot.slane %v1493, 7
      %v1496 = vshll.u32 %v1383, 16
      %v1498 = vor.u32 %v1495, %v1496
      %v1499 = vrot.slane %v1495, 4
      %v1501 = vshrl.u32 %v1384, 16
      %v1503 = vrot.slane %v1501, 7
      %v1504 = vshll.u32 %v1384, 16
      %v1506 = vor.u32 %v1503, %v1504
      %v1507 = vsel %vm1406, %v1499, %v1506
      %v1508 = vrot.slane %v1503, 4
      %v1510 = vshrl.u32 %v1385, 16
      %v1512 = vrot.slane %v1510, 7
      %v1513 = vshll.u32 %v1385, 16
      %v1515 = vor.u32 %v1512, %v1513
      %v1516 = vrot.slane %v1512, 4
      %v1518 = vshrl.u32 %v1386, 16
      %v1520 = vrot.slane %v1518, 7
      %v1521 = vshll.u32 %v1386, 16
      %v1523 = vor.u32 %v1520, %v1521
      %v1524 = vsel %vm1406, %v1516, %v1523
      %v1525 = vrot.slane %v1520, 4
      %v1527 = vshrl.u32 %v1387, 16
      %v1529 = vrot.slane %v1527, 7
      %v1530 = vshll.u32 %v1387, 16
      %v1532 = vor.u32 %v1529, %v1530
      %v1533 = vrot.slane %v1529, 4
      %v1535 = vshrl.u32 %v1388, 16
      %v1537 = vrot.slane %v1535, 7
      %v1538 = vshll.u32 %v1388, 16
      %v1540 = vor.u32 %v1537, %v1538
      %v1541 = vsel %vm1406, %v1533, %v1540
      %v1542 = vrot.slane %v1537, 4
      %v1544 = vshrl.u32 %v1389, 16
      %v1546 = vrot.slane %v1544, 7
      %v1547 = vshll.u32 %v1389, 16
      %v1549 = vor.u32 %v1546, %v1547
      %v1550 = vrot.slane %v1546, 4
      %v1552 = vshrl.u32 %v1390, 16
      %v1554 = vrot.slane %v1552, 7
      %v1555 = vshll.u32 %v1390, 16
      %v1557 = vor.u32 %v1554, %v1555
      %v1558 = vsel %vm1406, %v1550, %v1557
      %v1559 = vrot.slane %v1554, 4
      %v1561 = vshrl.u32 %v1391, 16
      %v1563 = vrot.slane %v1561, 7
      %v1564 = vshll.u32 %v1391, 16
      %v1566 = vor.u32 %v1563, %v1564
      %v1567 = vrot.slane %v1563, 4
      %v1569 = vshrl.u32 %v1392, 16
      %v1571 = vrot.slane %v1569, 7
      %v1572 = vshll.u32 %v1392, 16
      %v1574 = vor.u32 %v1571, %v1572
      %v1575 = vsel %vm1406, %v1567, %v1574
      %v1576 = vrot.slane %v1571, 4
      %v1578 = vshrl.u32 %v1393, 16
      %v1580 = vrot.slane %v1578, 7
      %v1581 = vshll.u32 %v1393, 16
      %v1583 = vor.u32 %v1580, %v1581
      %v1584 = vrot.slane %v1580, 4
      %v1586 = vshrl.u32 %v1394, 16
      %v1588 = vrot.slane %v1586, 7
      %v1589 = vshll.u32 %v1394, 16
      %v1591 = vor.u32 %v1588, %v1589
      %v1592 = vsel %vm1406, %v1584, %v1591
      %v1593 = vrot.slane %v1588, 4
      %v1595 = vshrl.u32 %v1395, 16
      %v1597 = vrot.slane %v1595, 7
      %v1598 = vshll.u32 %v1395, 16
      %v1600 = vor.u32 %v1597, %v1598
      %v1601 = vrot.slane %v1597, 4
      %v1603 = vshrl.u32 %v1396, 16
      %v1605 = vrot.slane %v1603, 7
      %v1606 = vshll.u32 %v1396, 16
      %v1608 = vor.u32 %v1605, %v1606
      %v1609 = vsel %vm1406, %v1601, %v1608
      %v1610 = vrot.slane %v1605, 4
      %v1612 = vshrl.u32 %v1397, 16
      %v1614 = vrot.slane %v1612, 7
      %v1615 = vshll.u32 %v1397, 16
      %v1617 = vor.u32 %v1614, %v1615
      %v1618 = vrot.slane %v1614, 4
      %v1620 = vshrl.u32 %v1398, 16
      %v1622 = vrot.slane %v1620, 7
      %v1623 = vshll.u32 %v1398, 16
      %v1625 = vor.u32 %v1622, %v1623
      %v1626 = vsel %vm1406, %v1618, %v1625
      %v1627 = vrot.slane %v1622, 4
      %v1629 = vshrl.u32 %v1399, 16
      %v1631 = vrot.slane %v1629, 7
      %v1632 = vshll.u32 %v1399, 16
      %v1634 = vor.u32 %v1631, %v1632
      %v1635 = vrot.slane %v1631, 4
      %v1637 = vshrl.u32 %v1400, 16
      %v1639 = vrot.slane %v1637, 7
      %v1640 = vshll.u32 %v1400, 16
      %v1642 = vor.u32 %v1639, %v1640
      %v1643 = vsel %vm1406, %v1635, %v1642
      %v1644 = vrot.slane %v1639, 4
      %v1646 = vshrl.u32 %v1401, 16
      %v1648 = vrot.slane %v1646, 7
      %v1649 = vshll.u32 %v1401, 16
      %v1651 = vor.u32 %v1648, %v1649
      %v1652 = vrot.slane %v1648, 4
      %v1654 = vshrl.u32 %v1402, 16
      %v1656 = vrot.slane %v1654, 7
      %v1657 = vshll.u32 %v1402, 16
      %v1659 = vor.u32 %v1656, %v1657
      %v1660 = vsel %vm1406, %v1652, %v1659
      %v1661 = vrot.slane %v1656, 4
      %v1663 = vshrl.u32 %v1403, 16
      %v1665 = vrot.slane %v1663, 7
      %v1666 = vshll.u32 %v1403, 16
      %v1668 = vor.u32 %v1665, %v1666
      %v1669 = vrot.slane %v1665, 4
      %v1671 = vshrl.u32 %v1404, 16
      %v1673 = vrot.slane %v1671, 7
      %v1674 = vshll.u32 %v1404, 16
      %v1676 = vor.u32 %v1673, %v1674
      %v1677 = vsel %vm1406, %v1669, %v1676
      %v1678 = vrot.slane %v1673, 4
      %s1727 = scalar_lea.vmem [#allocation2], 12
      %vm1728 = vcmask 27648
      %vm1729 = vmand %vm1728, %vm501
      %v1730 = vld [vmem:[%s1727] sm:$0xf]
      %v1731 = vsel %vm1729, %v1413, %v1730
      %1732 = vst [vmem:[%s1727] sm:$0xf] %v1731
      %1733 = vst.msk [vmem:[%s1727 + $0x4] sm:$0xf] %vm435, %v1422
      %v1734 = vld [vmem:[%s1727 + $0x8] sm:$0x1]
      %v1735 = vsel %vm446, %v1423, %v1734
      %1736 = vst [vmem:[%s1727 + $0x8] sm:$0x1] %v1735
      %v1737 = vld [vmem:[%s1727 + $0xc] sm:$0xf]
      %v1738 = vsel %vm1729, %v1430, %v1737
      %1739 = vst [vmem:[%s1727 + $0xc] sm:$0xf] %v1738
      %1740 = vst.msk [vmem:[%s1727 + $0x10] sm:$0xf] %vm435, %v1439
      %v1741 = vld [vmem:[%s1727 + $0x14] sm:$0x1]
      %v1742 = vsel %vm446, %v1440, %v1741
      %1743 = vst [vmem:[%s1727 + $0x14] sm:$0x1] %v1742
      %v1744 = vld [vmem:[%s1727 + $0x18] sm:$0xf]
      %v1745 = vsel %vm1729, %v1447, %v1744
      %1746 = vst [vmem:[%s1727 + $0x18] sm:$0xf] %v1745
      %1747 = vst.msk [vmem:[%s1727 + $0x1c] sm:$0xf] %vm435, %v1456
      %v1748 = vld [vmem:[%s1727 + $0x20] sm:$0x1]
      %v1749 = vsel %vm446, %v1457, %v1748
      %1750 = vst [vmem:[%s1727 + $0x20] sm:$0x1] %v1749
      %v1751 = vld [vmem:[%s1727 + $0x24] sm:$0xf]
      %v1752 = vsel %vm1729, %v1464, %v1751
      %1753 = vst [vmem:[%s1727 + $0x24] sm:$0xf] %v1752
      %1754 = vst.msk [vmem:[%s1727 + $0x28] sm:$0xf] %vm435, %v1473
      %v1755 = vld [vmem:[%s1727 + $0x2c] sm:$0x1]
      %v1756 = vsel %vm446, %v1474, %v1755
      %1757 = vst [vmem:[%s1727 + $0x2c] sm:$0x1] %v1756
      %v1758 = vld [vmem:[%s1727 + $0x30] sm:$0xf]
      %v1759 = vsel %vm1729, %v1481, %v1758
      %1760 = vst [vmem:[%s1727 + $0x30] sm:$0xf] %v1759
      %1761 = vst.msk [vmem:[%s1727 + $0x34] sm:$0xf] %vm435, %v1490
      %v1762 = vld [vmem:[%s1727 + $0x38] sm:$0x1]
      %v1763 = vsel %vm446, %v1491, %v1762
      %1764 = vst [vmem:[%s1727 + $0x38] sm:$0x1] %v1763
      %v1765 = vld [vmem:[%s1727 + $0x3c] sm:$0xf]
      %v1766 = vsel %vm1729, %v1498, %v1765
      %1767 = vst [vmem:[%s1727 + $0x3c] sm:$0xf] %v1766
      %1768 = vst.msk [vmem:[%s1727 + $0x40] sm:$0xf] %vm435, %v1507
      %v1769 = vld [vmem:[%s1727 + $0x44] sm:$0x1]
      %v1770 = vsel %vm446, %v1508, %v1769
      %1771 = vst [vmem:[%s1727 + $0x44] sm:$0x1] %v1770
      %v1772 = vld [vmem:[%s1727 + $0x48] sm:$0xf]
      %v1773 = vsel %vm1729, %v1515, %v1772
      %1774 = vst [vmem:[%s1727 + $0x48] sm:$0xf] %v1773
      %1775 = vst.msk [vmem:[%s1727 + $0x4c] sm:$0xf] %vm435, %v1524
      %v1776 = vld [vmem:[%s1727 + $0x50] sm:$0x1]
      %v1777 = vsel %vm446, %v1525, %v1776
      %1778 = vst [vmem:[%s1727 + $0x50] sm:$0x1] %v1777
      %v1779 = vld [vmem:[%s1727 + $0x54] sm:$0xf]
      %v1780 = vsel %vm1729, %v1532, %v1779
      %1781 = vst [vmem:[%s1727 + $0x54] sm:$0xf] %v1780
      %1782 = vst.msk [vmem:[%s1727 + $0x58] sm:$0xf] %vm435, %v1541
      %v1783 = vld [vmem:[%s1727 + $0x5c] sm:$0x1]
      %v1784 = vsel %vm446, %v1542, %v1783
      %1785 = vst [vmem:[%s1727 + $0x5c] sm:$0x1] %v1784
      %v1786 = vld [vmem:[%s1727 + $0x60] sm:$0xf]
      %v1787 = vsel %vm1729, %v1549, %v1786
      %1788 = vst [vmem:[%s1727 + $0x60] sm:$0xf] %v1787
      %1789 = vst.msk [vmem:[%s1727 + $0x64] sm:$0xf] %vm435, %v1558
      %v1790 = vld [vmem:[%s1727 + $0x68] sm:$0x1]
      %v1791 = vsel %vm446, %v1559, %v1790
      %1792 = vst [vmem:[%s1727 + $0x68] sm:$0x1] %v1791
      %v1793 = vld [vmem:[%s1727 + $0x6c] sm:$0xf]
      %v1794 = vsel %vm1729, %v1566, %v1793
      %1795 = vst [vmem:[%s1727 + $0x6c] sm:$0xf] %v1794
      %1796 = vst.msk [vmem:[%s1727 + $0x70] sm:$0xf] %vm435, %v1575
      %v1797 = vld [vmem:[%s1727 + $0x74] sm:$0x1]
      %v1798 = vsel %vm446, %v1576, %v1797
      %1799 = vst [vmem:[%s1727 + $0x74] sm:$0x1] %v1798
      %v1800 = vld [vmem:[%s1727 + $0x78] sm:$0xf]
      %v1801 = vsel %vm1729, %v1583, %v1800
      %1802 = vst [vmem:[%s1727 + $0x78] sm:$0xf] %v1801
      %1803 = vst.msk [vmem:[%s1727 + $0x7c] sm:$0xf] %vm435, %v1592
      %v1804 = vld [vmem:[%s1727 + $0x80] sm:$0x1]
      %v1805 = vsel %vm446, %v1593, %v1804
      %1806 = vst [vmem:[%s1727 + $0x80] sm:$0x1] %v1805
      %v1807 = vld [vmem:[%s1727 + $0x84] sm:$0xf]
      %v1808 = vsel %vm1729, %v1600, %v1807
      %1809 = vst [vmem:[%s1727 + $0x84] sm:$0xf] %v1808
      %1810 = vst.msk [vmem:[%s1727 + $0x88] sm:$0xf] %vm435, %v1609
      %v1811 = vld [vmem:[%s1727 + $0x8c] sm:$0x1]
      %v1812 = vsel %vm446, %v1610, %v1811
      %1813 = vst [vmem:[%s1727 + $0x8c] sm:$0x1] %v1812
      %v1814 = vld [vmem:[%s1727 + $0x90] sm:$0xf]
      %v1815 = vsel %vm1729, %v1617, %v1814
      %1816 = vst [vmem:[%s1727 + $0x90] sm:$0xf] %v1815
      %1817 = vst.msk [vmem:[%s1727 + $0x94] sm:$0xf] %vm435, %v1626
      %v1818 = vld [vmem:[%s1727 + $0x98] sm:$0x1]
      %v1819 = vsel %vm446, %v1627, %v1818
      %1820 = vst [vmem:[%s1727 + $0x98] sm:$0x1] %v1819
      %v1821 = vld [vmem:[%s1727 + $0x9c] sm:$0xf]
      %v1822 = vsel %vm1729, %v1634, %v1821
      %1823 = vst [vmem:[%s1727 + $0x9c] sm:$0xf] %v1822
      %1824 = vst.msk [vmem:[%s1727 + $0xa0] sm:$0xf] %vm435, %v1643
      %v1825 = vld [vmem:[%s1727 + $0xa4] sm:$0x1]
      %v1826 = vsel %vm446, %v1644, %v1825
      %1827 = vst [vmem:[%s1727 + $0xa4] sm:$0x1] %v1826
      %v1828 = vld [vmem:[%s1727 + $0xa8] sm:$0xf]
      %v1829 = vsel %vm1729, %v1651, %v1828
      %1830 = vst [vmem:[%s1727 + $0xa8] sm:$0xf] %v1829
      %1831 = vst.msk [vmem:[%s1727 + $0xac] sm:$0xf] %vm435, %v1660
      %v1832 = vld [vmem:[%s1727 + $0xb0] sm:$0x1]
      %v1833 = vsel %vm446, %v1661, %v1832
      %1834 = vst [vmem:[%s1727 + $0xb0] sm:$0x1] %v1833
      %v1835 = vld [vmem:[%s1727 + $0xb4] sm:$0xf]
      %v1836 = vsel %vm1729, %v1668, %v1835
      %1837 = vst [vmem:[%s1727 + $0xb4] sm:$0xf] %v1836
      %1838 = vst.msk [vmem:[%s1727 + $0xb8] sm:$0xf] %vm435, %v1677
      %v1839 = vld [vmem:[%s1727 + $0xbc] sm:$0x1]
      %v1840 = vsel %vm446, %v1678, %v1839
      %1841 = vst [vmem:[%s1727 + $0xbc] sm:$0x1] %v1840
      %v1842 = vld [vmem:[%s7] sm:$0x1]
      %v1843 = vld [vmem:[#allocation2] sm:$0xf]
      %v1844 = vld [vmem:[#allocation2 + $0x4] sm:$0xf]
      %v1845 = vld [vmem:[#allocation2 + $0xc] sm:$0xf]
      %v1846 = vld [vmem:[#allocation2 + $0x10] sm:$0xf]
      %v1847 = vld [vmem:[#allocation2 + $0x18] sm:$0xf]
      %v1848 = vld [vmem:[#allocation2 + $0x1c] sm:$0xf]
      %v1849 = vld [vmem:[#allocation2 + $0x24] sm:$0xf]
      %v1850 = vld [vmem:[#allocation2 + $0x28] sm:$0xf]
      %v1851 = vld [vmem:[#allocation2 + $0x30] sm:$0xf]
      %v1852 = vld [vmem:[#allocation2 + $0x34] sm:$0xf]
      %v1853 = vld [vmem:[#allocation2 + $0x3c] sm:$0xf]
      %v1854 = vld [vmem:[#allocation2 + $0x40] sm:$0xf]
      %v1855 = vld [vmem:[#allocation2 + $0x48] sm:$0xf]
      %v1856 = vld [vmem:[#allocation2 + $0x4c] sm:$0xf]
      %v1857 = vld [vmem:[#allocation2 + $0x54] sm:$0xf]
      %v1858 = vld [vmem:[#allocation2 + $0x58] sm:$0xf]
      %v1859 = vld [vmem:[#allocation2 + $0x60] sm:$0xf]
      %v1860 = vld [vmem:[#allocation2 + $0x64] sm:$0xf]
      %v1861 = vld [vmem:[#allocation2 + $0x6c] sm:$0xf]
      %v1862 = vld [vmem:[#allocation2 + $0x70] sm:$0xf]
      %v1863 = vld [vmem:[#allocation2 + $0x78] sm:$0xf]
      %v1864 = vld [vmem:[#allocation2 + $0x7c] sm:$0xf]
      %v1865 = vld [vmem:[#allocation2 + $0x84] sm:$0xf]
      %v1866 = vld [vmem:[#allocation2 + $0x88] sm:$0xf]
      %v1867 = vld [vmem:[#allocation2 + $0x90] sm:$0xf]
      %v1868 = vld [vmem:[#allocation2 + $0x94] sm:$0xf]
      %v1869 = vld [vmem:[#allocation2 + $0x9c] sm:$0xf]
      %v1870 = vld [vmem:[#allocation2 + $0xa0] sm:$0xf]
      %v1871 = vld [vmem:[#allocation2 + $0xa8] sm:$0xf]
      %v1872 = vld [vmem:[#allocation2 + $0xac] sm:$0xf]
      %v1873 = vld [vmem:[#allocation2 + $0xb4] sm:$0xf]
      %v1874 = vld [vmem:[#allocation2 + $0xb8] sm:$0xf]
      %v1875 = vld [vmem:[%s6] sm:$0x3]
      %v1876 = vld [vmem:[#allocation2 + $0x8] sm:$0x1]
      %v1877 = vld [vmem:[#allocation2 + $0x14] sm:$0x1]
      %v1878 = vld [vmem:[#allocation2 + $0x20] sm:$0x1]
      %v1879 = vld [vmem:[#allocation2 + $0x2c] sm:$0x1]
      %v1880 = vld [vmem:[#allocation2 + $0x38] sm:$0x1]
      %v1881 = vld [vmem:[#allocation2 + $0x44] sm:$0x1]
      %v1882 = vld [vmem:[#allocation2 + $0x50] sm:$0x1]
      %v1883 = vld [vmem:[#allocation2 + $0x5c] sm:$0x1]
      %v1884 = vld [vmem:[#allocation2 + $0x68] sm:$0x1]
      %v1885 = vld [vmem:[#allocation2 + $0x74] sm:$0x1]
      %v1886 = vld [vmem:[#allocation2 + $0x80] sm:$0x1]
      %v1887 = vld [vmem:[#allocation2 + $0x8c] sm:$0x1]
      %v1888 = vld [vmem:[#allocation2 + $0x98] sm:$0x1]
      %v1889 = vld [vmem:[#allocation2 + $0xa4] sm:$0x1]
      %v1890 = vld [vmem:[#allocation2 + $0xb0] sm:$0x1]
      %v1891 = vld [vmem:[#allocation2 + $0xbc] sm:$0x1]
      %vm1892 = vsmask.f32 3328
      %vm1893 = vsmask.f32 7440
      %vm1894 = vmor %vm1892, %vm1893
      %v1896 = vshrl.u32 %v1843, 16
      %v1898 = vrot.slane %v1896, 4
      %v1899 = vshll.u32 %v1843, 16
      %v1901 = vrot.slane %v1899, 5
      %v1902 = vor.u32 %v1898, %v1901
      %v1903 = vrot.slane %v1902, 4
      %v1905 = vshll.u32 %v1844, 16
      %v1907 = vrot.slane %v1905, 5
      %v1908 = vsel %vm1894, %v1903, %v1907
      %v1909 = vshrl.u32 %v1844, 16
      %v1911 = vrot.slane %v1909, 4
      %v1912 = vor.u32 %v1911, %v1907
      %v1913 = vrot.slane %v1912, 4
      %v1915 = vshll.u32 %v1876, 16
      %v1917 = vrot.slane %v1915, 5
      %v1918 = vsel %vm1894, %v1913, %v1917
      %v1920 = vshrl.u32 %v1845, 16
      %v1922 = vrot.slane %v1920, 4
      %v1923 = vshll.u32 %v1845, 16
      %v1925 = vrot.slane %v1923, 5
      %v1926 = vor.u32 %v1922, %v1925
      %v1927 = vrot.slane %v1926, 4
      %v1929 = vshll.u32 %v1846, 16
      %v1931 = vrot.slane %v1929, 5
      %v1932 = vsel %vm1894, %v1927, %v1931
      %v1933 = vshrl.u32 %v1846, 16
      %v1935 = vrot.slane %v1933, 4
      %v1936 = vor.u32 %v1935, %v1931
      %v1937 = vrot.slane %v1936, 4
      %v1939 = vshll.u32 %v1877, 16
      %v1941 = vrot.slane %v1939, 5
      %v1942 = vsel %vm1894, %v1937, %v1941
      %v1944 = vshrl.u32 %v1847, 16
      %v1946 = vrot.slane %v1944, 4
      %v1947 = vshll.u32 %v1847, 16
      %v1949 = vrot.slane %v1947, 5
      %v1950 = vor.u32 %v1946, %v1949
      %v1951 = vrot.slane %v1950, 4
      %v1953 = vshll.u32 %v1848, 16
      %v1955 = vrot.slane %v1953, 5
      %v1956 = vsel %vm1894, %v1951, %v1955
      %v1957 = vshrl.u32 %v1848, 16
      %v1959 = vrot.slane %v1957, 4
      %v1960 = vor.u32 %v1959, %v1955
      %v1961 = vrot.slane %v1960, 4
      %v1963 = vshll.u32 %v1878, 16
      %v1965 = vrot.slane %v1963, 5
      %v1966 = vsel %vm1894, %v1961, %v1965
      %v1968 = vshrl.u32 %v1849, 16
      %v1970 = vrot.slane %v1968, 4
      %v1971 = vshll.u32 %v1849, 16
      %v1973 = vrot.slane %v1971, 5
      %v1974 = vor.u32 %v1970, %v1973
      %v1975 = vrot.slane %v1974, 4
      %v1977 = vshll.u32 %v1850, 16
      %v1979 = vrot.slane %v1977, 5
      %v1980 = vsel %vm1894, %v1975, %v1979
      %v1981 = vshrl.u32 %v1850, 16
      %v1983 = vrot.slane %v1981, 4
      %v1984 = vor.u32 %v1983, %v1979
      %v1985 = vrot.slane %v1984, 4
      %v1987 = vshll.u32 %v1879, 16
      %v1989 = vrot.slane %v1987, 5
      %v1990 = vsel %vm1894, %v1985, %v1989
      %v1992 = vshrl.u32 %v1851, 16
      %v1994 = vrot.slane %v1992, 4
      %v1995 = vshll.u32 %v1851, 16
      %v1997 = vrot.slane %v1995, 5
      %v1998 = vor.u32 %v1994, %v1997
      %v1999 = vrot.slane %v1998, 4
      %v2001 = vshll.u32 %v1852, 16
      %v2003 = vrot.slane %v2001, 5
      %v2004 = vsel %vm1894, %v1999, %v2003
      %v2005 = vshrl.u32 %v1852, 16
      %v2007 = vrot.slane %v2005, 4
      %v2008 = vor.u32 %v2007, %v2003
      %v2009 = vrot.slane %v2008, 4
      %v2011 = vshll.u32 %v1880, 16
      %v2013 = vrot.slane %v2011, 5
      %v2014 = vsel %vm1894, %v2009, %v2013
      %v2016 = vshrl.u32 %v1853, 16
      %v2018 = vrot.slane %v2016, 4
      %v2019 = vshll.u32 %v1853, 16
      %v2021 = vrot.slane %v2019, 5
      %v2022 = vor.u32 %v2018, %v2021
      %v2023 = vrot.slane %v2022, 4
      %v2025 = vshll.u32 %v1854, 16
      %v2027 = vrot.slane %v2025, 5
      %v2028 = vsel %vm1894, %v2023, %v2027
      %v2029 = vshrl.u32 %v1854, 16
      %v2031 = vrot.slane %v2029, 4
      %v2032 = vor.u32 %v2031, %v2027
      %v2033 = vrot.slane %v2032, 4
      %v2035 = vshll.u32 %v1881, 16
      %v2037 = vrot.slane %v2035, 5
      %v2038 = vsel %vm1894, %v2033, %v2037
      %v2040 = vshrl.u32 %v1855, 16
      %v2042 = vrot.slane %v2040, 4
      %v2043 = vshll.u32 %v1855, 16
      %v2045 = vrot.slane %v2043, 5
      %v2046 = vor.u32 %v2042, %v2045
      %v2047 = vrot.slane %v2046, 4
      %v2049 = vshll.u32 %v1856, 16
      %v2051 = vrot.slane %v2049, 5
      %v2052 = vsel %vm1894, %v2047, %v2051
      %v2053 = vshrl.u32 %v1856, 16
      %v2055 = vrot.slane %v2053, 4
      %v2056 = vor.u32 %v2055, %v2051
      %v2057 = vrot.slane %v2056, 4
      %v2059 = vshll.u32 %v1882, 16
      %v2061 = vrot.slane %v2059, 5
      %v2062 = vsel %vm1894, %v2057, %v2061
      %v2064 = vshrl.u32 %v1857, 16
      %v2066 = vrot.slane %v2064, 4
      %v2067 = vshll.u32 %v1857, 16
      %v2069 = vrot.slane %v2067, 5
      %v2070 = vor.u32 %v2066, %v2069
      %v2071 = vrot.slane %v2070, 4
      %v2073 = vshll.u32 %v1858, 16
      %v2075 = vrot.slane %v2073, 5
      %v2076 = vsel %vm1894, %v2071, %v2075
      %v2077 = vshrl.u32 %v1858, 16
      %v2079 = vrot.slane %v2077, 4
      %v2080 = vor.u32 %v2079, %v2075
      %v2081 = vrot.slane %v2080, 4
      %v2083 = vshll.u32 %v1883, 16
      %v2085 = vrot.slane %v2083, 5
      %v2086 = vsel %vm1894, %v2081, %v2085
      %v2088 = vshrl.u32 %v1859, 16
      %v2090 = vrot.slane %v2088, 4
      %v2091 = vshll.u32 %v1859, 16
      %v2093 = vrot.slane %v2091, 5
      %v2094 = vor.u32 %v2090, %v2093
      %v2095 = vrot.slane %v2094, 4
      %v2097 = vshll.u32 %v1860, 16
      %v2099 = vrot.slane %v2097, 5
      %v2100 = vsel %vm1894, %v2095, %v2099
      %v2101 = vshrl.u32 %v1860, 16
      %v2103 = vrot.slane %v2101, 4
      %v2104 = vor.u32 %v2103, %v2099
      %v2105 = vrot.slane %v2104, 4
      %v2107 = vshll.u32 %v1884, 16
      %v2109 = vrot.slane %v2107, 5
      %v2110 = vsel %vm1894, %v2105, %v2109
      %v2112 = vshrl.u32 %v1861, 16
      %v2114 = vrot.slane %v2112, 4
      %v2115 = vshll.u32 %v1861, 16
      %v2117 = vrot.slane %v2115, 5
      %v2118 = vor.u32 %v2114, %v2117
      %v2119 = vrot.slane %v2118, 4
      %v2121 = vshll.u32 %v1862, 16
      %v2123 = vrot.slane %v2121, 5
      %v2124 = vsel %vm1894, %v2119, %v2123
      %v2125 = vshrl.u32 %v1862, 16
      %v2127 = vrot.slane %v2125, 4
      %v2128 = vor.u32 %v2127, %v2123
      %v2129 = vrot.slane %v2128, 4
      %v2131 = vshll.u32 %v1885, 16
      %v2133 = vrot.slane %v2131, 5
      %v2134 = vsel %vm1894, %v2129, %v2133
      %v2136 = vshrl.u32 %v1863, 16
      %v2138 = vrot.slane %v2136, 4
      %v2139 = vshll.u32 %v1863, 16
      %v2141 = vrot.slane %v2139, 5
      %v2142 = vor.u32 %v2138, %v2141
      %v2143 = vrot.slane %v2142, 4
      %v2145 = vshll.u32 %v1864, 16
      %v2147 = vrot.slane %v2145, 5
      %v2148 = vsel %vm1894, %v2143, %v2147
      %v2149 = vshrl.u32 %v1864, 16
      %v2151 = vrot.slane %v2149, 4
      %v2152 = vor.u32 %v2151, %v2147
      %v2153 = vrot.slane %v2152, 4
      %v2155 = vshll.u32 %v1886, 16
      %v2157 = vrot.slane %v2155, 5
      %v2158 = vsel %vm1894, %v2153, %v2157
      %v2160 = vshrl.u32 %v1865, 16
      %v2162 = vrot.slane %v2160, 4
      %v2163 = vshll.u32 %v1865, 16
      %v2165 = vrot.slane %v2163, 5
      %v2166 = vor.u32 %v2162, %v2165
      %v2167 = vrot.slane %v2166, 4
      %v2169 = vshll.u32 %v1866, 16
      %v2171 = vrot.slane %v2169, 5
      %v2172 = vsel %vm1894, %v2167, %v2171
      %v2173 = vshrl.u32 %v1866, 16
      %v2175 = vrot.slane %v2173, 4
      %v2176 = vor.u32 %v2175, %v2171
      %v2177 = vrot.slane %v2176, 4
      %v2179 = vshll.u32 %v1887, 16
      %v2181 = vrot.slane %v2179, 5
      %v2182 = vsel %vm1894, %v2177, %v2181
      %v2184 = vshrl.u32 %v1867, 16
      %v2186 = vrot.slane %v2184, 4
      %v2187 = vshll.u32 %v1867, 16
      %v2189 = vrot.slane %v2187, 5
      %v2190 = vor.u32 %v2186, %v2189
      %v2191 = vrot.slane %v2190, 4
      %v2193 = vshll.u32 %v1868, 16
      %v2195 = vrot.slane %v2193, 5
      %v2196 = vsel %vm1894, %v2191, %v2195
      %v2197 = vshrl.u32 %v1868, 16
      %v2199 = vrot.slane %v2197, 4
      %v2200 = vor.u32 %v2199, %v2195
      %v2201 = vrot.slane %v2200, 4
      %v2203 = vshll.u32 %v1888, 16
      %v2205 = vrot.slane %v2203, 5
      %v2206 = vsel %vm1894, %v2201, %v2205
      %v2208 = vshrl.u32 %v1869, 16
      %v2210 = vrot.slane %v2208, 4
      %v2211 = vshll.u32 %v1869, 16
      %v2213 = vrot.slane %v2211, 5
      %v2214 = vor.u32 %v2210, %v2213
      %v2215 = vrot.slane %v2214, 4
      %v2217 = vshll.u32 %v1870, 16
      %v2219 = vrot.slane %v2217, 5
      %v2220 = vsel %vm1894, %v2215, %v2219
      %v2221 = vshrl.u32 %v1870, 16
      %v2223 = vrot.slane %v2221, 4
      %v2224 = vor.u32 %v2223, %v2219
      %v2225 = vrot.slane %v2224, 4
      %v2227 = vshll.u32 %v1889, 16
      %v2229 = vrot.slane %v2227, 5
      %v2230 = vsel %vm1894, %v2225, %v2229
      %v2232 = vshrl.u32 %v1871, 16
      %v2234 = vrot.slane %v2232, 4
      %v2235 = vshll.u32 %v1871, 16
      %v2237 = vrot.slane %v2235, 5
      %v2238 = vor.u32 %v2234, %v2237
      %v2239 = vrot.slane %v2238, 4
      %v2241 = vshll.u32 %v1872, 16
      %v2243 = vrot.slane %v2241, 5
      %v2244 = vsel %vm1894, %v2239, %v2243
      %v2245 = vshrl.u32 %v1872, 16
      %v2247 = vrot.slane %v2245, 4
      %v2248 = vor.u32 %v2247, %v2243
      %v2249 = vrot.slane %v2248, 4
      %v2251 = vshll.u32 %v1890, 16
      %v2253 = vrot.slane %v2251, 5
      %v2254 = vsel %vm1894, %v2249, %v2253
      %v2256 = vshrl.u32 %v1873, 16
      %v2258 = vrot.slane %v2256, 4
      %v2259 = vshll.u32 %v1873, 16
      %v2261 = vrot.slane %v2259, 5
      %v2262 = vor.u32 %v2258, %v2261
      %v2263 = vrot.slane %v2262, 4
      %v2265 = vshll.u32 %v1874, 16
      %v2267 = vrot.slane %v2265, 5
      %v2268 = vsel %vm1894, %v2263, %v2267
      %v2269 = vshrl.u32 %v1874, 16
      %v2271 = vrot.slane %v2269, 4
      %v2272 = vor.u32 %v2271, %v2267
      %v2273 = vrot.slane %v2272, 4
      %v2275 = vshll.u32 %v1891, 16
      %v2277 = vrot.slane %v2275, 5
      %v2278 = vsel %vm1894, %v2273, %v2277
      %s2279 = scalar_lea.vmem %s6, 2
      %v2280 = vld [vmem:[%s2279] sm:$0x3]
      %v2281 = vunpack.c.l.b16 %v1908
      %v2282 = vunpack.c.l.b16 %v1918
      %v2283 = vunpack.c.l.b16 %v1932
      %v2284 = vunpack.c.l.b16 %v1942
      %v2285 = vunpack.c.l.b16 %v1956
      %v2286 = vunpack.c.l.b16 %v1966
      %v2287 = vunpack.c.l.b16 %v1980
      %v2288 = vunpack.c.l.b16 %v1990
      %v2289 = vunpack.c.l.b16 %v2004
      %v2290 = vunpack.c.l.b16 %v2014
      %v2291 = vunpack.c.l.b16 %v2028
      %v2292 = vunpack.c.l.b16 %v2038
      %v2293 = vunpack.c.l.b16 %v2052
      %v2294 = vunpack.c.l.b16 %v2062
      %v2295 = vunpack.c.l.b16 %v2076
      %v2296 = vunpack.c.l.b16 %v2086
      %v2297 = vunpack.c.l.b16 %v2100
      %v2298 = vunpack.c.l.b16 %v2110
      %v2299 = vunpack.c.l.b16 %v2124
      %v2300 = vunpack.c.l.b16 %v2134
      %v2301 = vunpack.c.l.b16 %v2148
      %v2302 = vunpack.c.l.b16 %v2158
      %v2303 = vunpack.c.l.b16 %v2172
      %v2304 = vunpack.c.l.b16 %v2182
      %v2305 = vunpack.c.l.b16 %v2196
      %v2306 = vunpack.c.l.b16 %v2206
      %v2307 = vunpack.c.l.b16 %v2220
      %v2308 = vunpack.c.l.b16 %v2230
      %v2309 = vunpack.c.l.b16 %v2244
      %v2310 = vunpack.c.l.b16 %v2254
      %v2311 = vunpack.c.l.b16 %v2268
      %v2312 = vunpack.c.l.b16 %v2278
      %v2313 = vpack.c.b16 %v2282, %v2281
      %v2314 = vpack.c.b16 %v2284, %v2283
      %v2315 = vpack.c.b16 %v2286, %v2285
      %v2316 = vpack.c.b16 %v2288, %v2287
      %v2317 = vpack.c.b16 %v2290, %v2289
      %v2318 = vpack.c.b16 %v2292, %v2291
      %v2319 = vpack.c.b16 %v2294, %v2293
      %v2320 = vpack.c.b16 %v2296, %v2295
      %v2321 = vpack.c.b16 %v2298, %v2297
      %v2322 = vpack.c.b16 %v2300, %v2299
      %v2323 = vpack.c.b16 %v2302, %v2301
      %v2324 = vpack.c.b16 %v2304, %v2303
      %v2325 = vpack.c.b16 %v2306, %v2305
      %v2326 = vpack.c.b16 %v2308, %v2307
      %v2327 = vpack.c.b16 %v2310, %v2309
      %v2328 = vpack.c.b16 %v2312, %v2311
      %v2330 = vsel %vm721, %v2313, 0
      %v2333 = vsel %vm721, %v2314, 0
      %v2336 = vsel %vm721, %v2315, 0
      %v2339 = vsel %vm721, %v2316, 0
      %v2342 = vsel %vm721, %v2317, 0
      %v2345 = vsel %vm721, %v2318, 0
      %v2348 = vsel %vm721, %v2319, 0
      %v2351 = vsel %vm721, %v2320, 0
      %v2354 = vsel %vm721, %v2321, 0
      %v2357 = vsel %vm721, %v2322, 0
      %v2360 = vsel %vm721, %v2323, 0
      %v2363 = vsel %vm721, %v2324, 0
      %v2366 = vsel %vm721, %v2325, 0
      %v2369 = vsel %vm721, %v2326, 0
      %v2372 = vsel %vm721, %v2327, 0
      %v2375 = vsel %vm721, %v2328, 0
      %v2378 = vsel %vm1052, %v2280, 0
      %2380 = vmatprep.subr.bf16.mxu0 0
      %2381 = vmatpush1.bf16.msra.mxu0 %v2378
      %2382 = vmatprep.subr.bf16.mxu0 0
      %2383 = vmatpush1.bf16.msra.mxu0 0
      %2384 = vmatprep.subr.bf16.mxu0 0
      %2385 = vmatpush1.bf16.msra.mxu0 0
      %2386 = vmatprep.subr.bf16.mxu0 0
      %2387 = vmatpush1.bf16.msra.mxu0 0
      %2388 = vmatprep.subr.bf16.mxu0 0
      %2389 = vmatpush1.bf16.msra.mxu0 0
      %2390 = vmatprep.subr.bf16.mxu0 0
      %2391 = vmatpush1.bf16.msra.mxu0 0
      %2392 = vmatprep.subr.bf16.mxu0 0
      %2393 = vmatpush1.bf16.msra.mxu0 0
      %2394 = vmatprep.subr.bf16.mxu0 0
      %2395 = vmatpush1.bf16.msra.mxu0 0
      %2396 = vmatprep.subr.bf16.mxu0 0
      %2397 = vmatpush1.bf16.msra.mxu0 0
      %2398 = vmatprep.subr.bf16.mxu0 0
      %2399 = vmatpush1.bf16.msra.mxu0 0
      %2400 = vmatprep.subr.bf16.mxu0 0
      %2401 = vmatpush1.bf16.msra.mxu0 0
      %2402 = vmatprep.subr.bf16.mxu0 0
      %2403 = vmatpush1.bf16.msra.mxu0 0
      %2404 = vmatprep.subr.bf16.mxu0 0
      %2405 = vmatpush1.bf16.msra.mxu0 0
      %2406 = vmatprep.subr.bf16.mxu0 0
      %2407 = vmatpush1.bf16.msra.mxu0 0
      %2408 = vmatprep.subr.bf16.mxu0 0
      %2409 = vmatpush1.bf16.msra.mxu0 0
      %2410 = vmatprep.subr.bf16.mxu0 0
      %2411 = vmatpush1.bf16.msra.mxu0 0
      %2412 = vmatprep.mubr.bf16.mxu0 0
      %2413 = vmatmul.mubr.bf16.gmra.mrb[0].mxu0 %v2330
      %v2414 = vpop.f32.mrb[0].mxu0
      %v2415 = vadd.f32 0.0, %v2414
      %v2416 = vpop.f32.mrb[0].mxu0
      %v2417 = vpop.f32.mrb[0].mxu0
      %v2418 = vadd.f32 0.0, %v2417
      %v2419 = vpop.f32.mrb[0].mxu0
      %2420 = vmatprep.mubr.bf16.mxu0 0
      %2421 = vmatmul.mubr.bf16.gmra.mrb[0].mxu0 %v2333
      %v2422 = vpop.f32.mrb[0].mxu0
      %v2423 = vadd.f32 0.0, %v2422
      %v2424 = vpop.f32.mrb[0].mxu0
      %v2425 = vpop.f32.mrb[0].mxu0
      %v2426 = vadd.f32 0.0, %v2425
      %v2427 = vpop.f32.mrb[0].mxu0
      %2428 = vmatprep.mubr.bf16.mxu0 0
      %2429 = vmatmul.mubr.bf16.gmra.mrb[0].mxu0 %v2336
      %v2430 = vpop.f32.mrb[0].mxu0
      %v2431 = vadd.f32 0.0, %v2430
      %v2432 = vpop.f32.mrb[0].mxu0
      %v2433 = vpop.f32.mrb[0].mxu0
      %v2434 = vadd.f32 0.0, %v2433
      %v2435 = vpop.f32.mrb[0].mxu0
      %2436 = vmatprep.mubr.bf16.mxu0 0
      %2437 = vmatmul.mubr.bf16.gmra.mrb[0].mxu0 %v2339
      %v2438 = vpop.f32.mrb[0].mxu0
      %v2439 = vadd.f32 0.0, %v2438
      %v2440 = vpop.f32.mrb[0].mxu0
      %v2441 = vpop.f32.mrb[0].mxu0
      %v2442 = vadd.f32 0.0, %v2441
      %v2443 = vpop.f32.mrb[0].mxu0
      %2444 = vmatprep.mubr.bf16.mxu0 0
      %2445 = vmatmul.mubr.bf16.gmra.mrb[0].mxu0 %v2342
      %v2446 = vpop.f32.mrb[0].mxu0
      %v2447 = vadd.f32 0.0, %v2446
      %v2448 = vpop.f32.mrb[0].mxu0
      %v2449 = vpop.f32.mrb[0].mxu0
      %v2450 = vadd.f32 0.0, %v2449
      %v2451 = vpop.f32.mrb[0].mxu0
      %2452 = vmatprep.mubr.bf16.mxu0 0
      %2453 = vmatmul.mubr.bf16.gmra.mrb[0].mxu0 %v2345
      %v2454 = vpop.f32.mrb[0].mxu0
      %v2455 = vadd.f32 0.0, %v2454
      %v2456 = vpop.f32.mrb[0].mxu0
      %v2457 = vpop.f32.mrb[0].mxu0
      %v2458 = vadd.f32 0.0, %v2457
      %v2459 = vpop.f32.mrb[0].mxu0
      %2460 = vmatprep.mubr.bf16.mxu0 0
      %2461 = vmatmul.mubr.bf16.gmra.mrb[0].mxu0 %v2348
      %v2462 = vpop.f32.mrb[0].mxu0
      %v2463 = vadd.f32 0.0, %v2462
      %v2464 = vpop.f32.mrb[0].mxu0
      %v2465 = vpop.f32.mrb[0].mxu0
      %v2466 = vadd.f32 0.0, %v2465
      %v2467 = vpop.f32.mrb[0].mxu0
      %2468 = vmatprep.mubr.bf16.mxu0 0
      %2469 = vmatmul.mubr.bf16.gmra.mrb[0].mxu0 %v2351
      %v2470 = vpop.f32.mrb[0].mxu0
      %v2471 = vadd.f32 0.0, %v2470
      %v2472 = vpop.f32.mrb[0].mxu0
      %v2473 = vpop.f32.mrb[0].mxu0
      %v2474 = vadd.f32 0.0, %v2473
      %v2475 = vpop.f32.mrb[0].mxu0
      %2476 = vmatprep.mubr.bf16.mxu0 0
      %2477 = vmatmul.mubr.bf16.gmra.mrb[0].mxu0 %v2354
      %v2478 = vpop.f32.mrb[0].mxu0
      %v2479 = vadd.f32 0.0, %v2478
      %v2480 = vpop.f32.mrb[0].mxu0
      %v2481 = vpop.f32.mrb[0].mxu0
      %v2482 = vadd.f32 0.0, %v2481
      %v2483 = vpop.f32.mrb[0].mxu0
      %2484 = vmatprep.mubr.bf16.mxu0 0
      %2485 = vmatmul.mubr.bf16.gmra.mrb[0].mxu0 %v2357
      %v2486 = vpop.f32.mrb[0].mxu0
      %v2487 = vadd.f32 0.0, %v2486
      %v2488 = vpop.f32.mrb[0].mxu0
      %v2489 = vpop.f32.mrb[0].mxu0
      %v2490 = vadd.f32 0.0, %v2489
      %v2491 = vpop.f32.mrb[0].mxu0
      %2492 = vmatprep.mubr.bf16.mxu0 0
      %2493 = vmatmul.mubr.bf16.gmra.mrb[0].mxu0 %v2360
      %v2494 = vpop.f32.mrb[0].mxu0
      %v2495 = vadd.f32 0.0, %v2494
      %v2496 = vpop.f32.mrb[0].mxu0
      %v2497 = vpop.f32.mrb[0].mxu0
      %v2498 = vadd.f32 0.0, %v2497
      %v2499 = vpop.f32.mrb[0].mxu0
      %2500 = vmatprep.mubr.bf16.mxu0 0
      %2501 = vmatmul.mubr.bf16.gmra.mrb[0].mxu0 %v2363
      %v2502 = vpop.f32.mrb[0].mxu0
      %v2503 = vadd.f32 0.0, %v2502
      %v2504 = vpop.f32.mrb[0].mxu0
      %v2505 = vpop.f32.mrb[0].mxu0
      %v2506 = vadd.f32 0.0, %v2505
      %v2507 = vpop.f32.mrb[0].mxu0
      %2508 = vmatprep.mubr.bf16.mxu0 0
      %2509 = vmatmul.mubr.bf16.gmra.mrb[0].mxu0 %v2366
      %v2510 = vpop.f32.mrb[0].mxu0
      %v2511 = vadd.f32 0.0, %v2510
      %v2512 = vpop.f32.mrb[0].mxu0
      %v2513 = vpop.f32.mrb[0].mxu0
      %v2514 = vadd.f32 0.0, %v2513
      %v2515 = vpop.f32.mrb[0].mxu0
      %2516 = vmatprep.mubr.bf16.mxu0 0
      %2517 = vmatmul.mubr.bf16.gmra.mrb[0].mxu0 %v2369
      %v2518 = vpop.f32.mrb[0].mxu0
      %v2519 = vadd.f32 0.0, %v2518
      %v2520 = vpop.f32.mrb[0].mxu0
      %v2521 = vpop.f32.mrb[0].mxu0
      %v2522 = vadd.f32 0.0, %v2521
      %v2523 = vpop.f32.mrb[0].mxu0
      %2524 = vmatprep.mubr.bf16.mxu0 0
      %2525 = vmatmul.mubr.bf16.gmra.mrb[0].mxu0 %v2372
      %v2526 = vpop.f32.mrb[0].mxu0
      %v2527 = vadd.f32 0.0, %v2526
      %v2528 = vpop.f32.mrb[0].mxu0
      %v2529 = vpop.f32.mrb[0].mxu0
      %v2530 = vadd.f32 0.0, %v2529
      %v2531 = vpop.f32.mrb[0].mxu0
      %2532 = vmatprep.mubr.bf16.mxu0 0
      %2533 = vmatmul.mubr.bf16.gmra.mrb[0].mxu0 %v2375
      %v2534 = vpop.f32.mrb[0].mxu0
      %v2535 = vadd.f32 0.0, %v2534
      %v2536 = vpop.f32.mrb[0].mxu0
      %v2537 = vpop.f32.mrb[0].mxu0
      %v2538 = vadd.f32 0.0, %v2537
      %v2539 = vpop.f32.mrb[0].mxu0
      %2540 = vdwg.mxu0
      %v2573 = vunpack.c.l.b16 %v1843
      %v2574 = vunpack.c.l.b16 %v1844
      %v2575 = vunpack.c.l.b16 %v1845
      %v2576 = vunpack.c.l.b16 %v1846
      %v2577 = vunpack.c.l.b16 %v1847
      %v2578 = vunpack.c.l.b16 %v1848
      %v2579 = vunpack.c.l.b16 %v1849
      %v2580 = vunpack.c.l.b16 %v1850
      %v2581 = vunpack.c.l.b16 %v1851
      %v2582 = vunpack.c.l.b16 %v1852
      %v2583 = vunpack.c.l.b16 %v1853
      %v2584 = vunpack.c.l.b16 %v1854
      %v2585 = vunpack.c.l.b16 %v1855
      %v2586 = vunpack.c.l.b16 %v1856
      %v2587 = vunpack.c.l.b16 %v1857
      %v2588 = vunpack.c.l.b16 %v1858
      %v2589 = vunpack.c.l.b16 %v1859
      %v2590 = vunpack.c.l.b16 %v1860
      %v2591 = vunpack.c.l.b16 %v1861
      %v2592 = vunpack.c.l.b16 %v1862
      %v2593 = vunpack.c.l.b16 %v1863
      %v2594 = vunpack.c.l.b16 %v1864
      %v2595 = vunpack.c.l.b16 %v1865
      %v2596 = vunpack.c.l.b16 %v1866
      %v2597 = vunpack.c.l.b16 %v1867
      %v2598 = vunpack.c.l.b16 %v1868
      %v2599 = vunpack.c.l.b16 %v1869
      %v2600 = vunpack.c.l.b16 %v1870
      %v2601 = vunpack.c.l.b16 %v1871
      %v2602 = vunpack.c.l.b16 %v1872
      %v2603 = vunpack.c.l.b16 %v1873
      %v2604 = vunpack.c.l.b16 %v1874
      %v2605 = vpack.c.b16 %v2574, %v2573
      %v2606 = vpack.c.b16 %v2576, %v2575
      %v2607 = vpack.c.b16 %v2578, %v2577
      %v2608 = vpack.c.b16 %v2580, %v2579
      %v2609 = vpack.c.b16 %v2582, %v2581
      %v2610 = vpack.c.b16 %v2584, %v2583
      %v2611 = vpack.c.b16 %v2586, %v2585
      %v2612 = vpack.c.b16 %v2588, %v2587
      %v2613 = vpack.c.b16 %v2590, %v2589
      %v2614 = vpack.c.b16 %v2592, %v2591
      %v2615 = vpack.c.b16 %v2594, %v2593
      %v2616 = vpack.c.b16 %v2596, %v2595
      %v2617 = vpack.c.b16 %v2598, %v2597
      %v2618 = vpack.c.b16 %v2600, %v2599
      %v2619 = vpack.c.b16 %v2602, %v2601
      %v2620 = vpack.c.b16 %v2604, %v2603
      %v2622 = vsel %vm721, %v2605, 0
      %v2625 = vsel %vm721, %v2606, 0
      %v2628 = vsel %vm721, %v2607, 0
      %v2631 = vsel %vm721, %v2608, 0
      %v2634 = vsel %vm721, %v2609, 0
      %v2637 = vsel %vm721, %v2610, 0
      %v2640 = vsel %vm721, %v2611, 0
      %v2643 = vsel %vm721, %v2612, 0
      %v2646 = vsel %vm721, %v2613, 0
      %v2649 = vsel %vm721, %v2614, 0
      %v2652 = vsel %vm721, %v2615, 0
      %v2655 = vsel %vm721, %v2616, 0
      %v2658 = vsel %vm721, %v2617, 0
      %v2661 = vsel %vm721, %v2618, 0
      %v2664 = vsel %vm721, %v2619, 0
      %v2667 = vsel %vm721, %v2620, 0
      %v2670 = vsel %vm1052, %v1875, 0
      %2672 = vmatprep.subr.bf16.mxu0 0
      %2673 = vmatpush1.bf16.msra.mxu0 %v2670
      %2674 = vmatprep.subr.bf16.mxu0 0
      %2675 = vmatpush1.bf16.msra.mxu0 0
      %2676 = vmatprep.subr.bf16.mxu0 0
      %2677 = vmatpush1.bf16.msra.mxu0 0
      %2678 = vmatprep.subr.bf16.mxu0 0
      %2679 = vmatpush1.bf16.msra.mxu0 0
      %2680 = vmatprep.subr.bf16.mxu0 0
      %2681 = vmatpush1.bf16.msra.mxu0 0
      %2682 = vmatprep.subr.bf16.mxu0 0
      %2683 = vmatpush1.bf16.msra.mxu0 0
      %2684 = vmatprep.subr.bf16.mxu0 0
      %2685 = vmatpush1.bf16.msra.mxu0 0
      %2686 = vmatprep.subr.bf16.mxu0 0
      %2687 = vmatpush1.bf16.msra.mxu0 0
      %2688 = vmatprep.subr.bf16.mxu0 0
      %2689 = vmatpush1.bf16.msra.mxu0 0
      %2690 = vmatprep.subr.bf16.mxu0 0
      %2691 = vmatpush1.bf16.msra.mxu0 0
      %2692 = vmatprep.subr.bf16.mxu0 0
      %2693 = vmatpush1.bf16.msra.mxu0 0
      %2694 = vmatprep.subr.bf16.mxu0 0
      %2695 = vmatpush1.bf16.msra.mxu0 0
      %2696 = vmatprep.subr.bf16.mxu0 0
      %2697 = vmatpush1.bf16.msra.mxu0 0
      %2698 = vmatprep.subr.bf16.mxu0 0
      %2699 = vmatpush1.bf16.msra.mxu0 0
      %2700 = vmatprep.subr.bf16.mxu0 0
      %2701 = vmatpush1.bf16.msra.mxu0 0
      %2702 = vmatprep.subr.bf16.mxu0 0
      %2703 = vmatpush1.bf16.msra.mxu0 0
      %2704 = vmatprep.mubr.bf16.mxu0 0
      %2705 = vmatmul.mubr.bf16.gmra.mrb[0].mxu0 %v2622
      %v2706 = vpop.f32.mrb[0].mxu0
      %v2707 = vadd.f32 %v2415, %v2706
      %v2708 = vpop.f32.mrb[0].mxu0
      %v2709 = vpop.f32.mrb[0].mxu0
      %v2710 = vadd.f32 %v2418, %v2709
      %v2711 = vpop.f32.mrb[0].mxu0
      %2712 = vmatprep.mubr.bf16.mxu0 0
      %2713 = vmatmul.mubr.bf16.gmra.mrb[0].mxu0 %v2625
      %v2714 = vpop.f32.mrb[0].mxu0
      %v2715 = vadd.f32 %v2423, %v2714
      %v2716 = vpop.f32.mrb[0].mxu0
      %v2717 = vpop.f32.mrb[0].mxu0
      %v2718 = vadd.f32 %v2426, %v2717
      %v2719 = vpop.f32.mrb[0].mxu0
      %2720 = vmatprep.mubr.bf16.mxu0 0
      %2721 = vmatmul.mubr.bf16.gmra.mrb[0].mxu0 %v2628
      %v2722 = vpop.f32.mrb[0].mxu0
      %v2723 = vadd.f32 %v2431, %v2722
      %v2724 = vpop.f32.mrb[0].mxu0
      %v2725 = vpop.f32.mrb[0].mxu0
      %v2726 = vadd.f32 %v2434, %v2725
      %v2727 = vpop.f32.mrb[0].mxu0
      %2728 = vmatprep.mubr.bf16.mxu0 0
      %2729 = vmatmul.mubr.bf16.gmra.mrb[0].mxu0 %v2631
      %v2730 = vpop.f32.mrb[0].mxu0
      %v2731 = vadd.f32 %v2439, %v2730
      %v2732 = vpop.f32.mrb[0].mxu0
      %v2733 = vpop.f32.mrb[0].mxu0
      %v2734 = vadd.f32 %v2442, %v2733
      %v2735 = vpop.f32.mrb[0].mxu0
      %2736 = vmatprep.mubr.bf16.mxu0 0
      %2737 = vmatmul.mubr.bf16.gmra.mrb[0].mxu0 %v2634
      %v2738 = vpop.f32.mrb[0].mxu0
      %v2739 = vadd.f32 %v2447, %v2738
      %v2740 = vpop.f32.mrb[0].mxu0
      %v2741 = vpop.f32.mrb[0].mxu0
      %v2742 = vadd.f32 %v2450, %v2741
      %v2743 = vpop.f32.mrb[0].mxu0
      %2744 = vmatprep.mubr.bf16.mxu0 0
      %2745 = vmatmul.mubr.bf16.gmra.mrb[0].mxu0 %v2637
      %v2746 = vpop.f32.mrb[0].mxu0
      %v2747 = vadd.f32 %v2455, %v2746
      %v2748 = vpop.f32.mrb[0].mxu0
      %v2749 = vpop.f32.mrb[0].mxu0
      %v2750 = vadd.f32 %v2458, %v2749
      %v2751 = vpop.f32.mrb[0].mxu0
      %2752 = vmatprep.mubr.bf16.mxu0 0
      %2753 = vmatmul.mubr.bf16.gmra.mrb[0].mxu0 %v2640
      %v2754 = vpop.f32.mrb[0].mxu0
      %v2755 = vadd.f32 %v2463, %v2754
      %v2756 = vpop.f32.mrb[0].mxu0
      %v2757 = vpop.f32.mrb[0].mxu0
      %v2758 = vadd.f32 %v2466, %v2757
      %v2759 = vpop.f32.mrb[0].mxu0
      %2760 = vmatprep.mubr.bf16.mxu0 0
      %2761 = vmatmul.mubr.bf16.gmra.mrb[0].mxu0 %v2643
      %v2762 = vpop.f32.mrb[0].mxu0
      %v2763 = vadd.f32 %v2471, %v2762
      %v2764 = vpop.f32.mrb[0].mxu0
      %v2765 = vpop.f32.mrb[0].mxu0
      %v2766 = vadd.f32 %v2474, %v2765
      %v2767 = vpop.f32.mrb[0].mxu0
      %2768 = vmatprep.mubr.bf16.mxu0 0
      %2769 = vmatmul.mubr.bf16.gmra.mrb[0].mxu0 %v2646
      %v2770 = vpop.f32.mrb[0].mxu0
      %v2771 = vadd.f32 %v2479, %v2770
      %v2772 = vpop.f32.mrb[0].mxu0
      %v2773 = vpop.f32.mrb[0].mxu0
      %v2774 = vadd.f32 %v2482, %v2773
      %v2775 = vpop.f32.mrb[0].mxu0
      %2776 = vmatprep.mubr.bf16.mxu0 0
      %2777 = vmatmul.mubr.bf16.gmra.mrb[0].mxu0 %v2649
      %v2778 = vpop.f32.mrb[0].mxu0
      %v2779 = vadd.f32 %v2487, %v2778
      %v2780 = vpop.f32.mrb[0].mxu0
      %v2781 = vpop.f32.mrb[0].mxu0
      %v2782 = vadd.f32 %v2490, %v2781
      %v2783 = vpop.f32.mrb[0].mxu0
      %2784 = vmatprep.mubr.bf16.mxu0 0
      %2785 = vmatmul.mubr.bf16.gmra.mrb[0].mxu0 %v2652
      %v2786 = vpop.f32.mrb[0].mxu0
      %v2787 = vadd.f32 %v2495, %v2786
      %v2788 = vpop.f32.mrb[0].mxu0
      %v2789 = vpop.f32.mrb[0].mxu0
      %v2790 = vadd.f32 %v2498, %v2789
      %v2791 = vpop.f32.mrb[0].mxu0
      %2792 = vmatprep.mubr.bf16.mxu0 0
      %2793 = vmatmul.mubr.bf16.gmra.mrb[0].mxu0 %v2655
      %v2794 = vpop.f32.mrb[0].mxu0
      %v2795 = vadd.f32 %v2503, %v2794
      %v2796 = vpop.f32.mrb[0].mxu0
      %v2797 = vpop.f32.mrb[0].mxu0
      %v2798 = vadd.f32 %v2506, %v2797
      %v2799 = vpop.f32.mrb[0].mxu0
      %2800 = vmatprep.mubr.bf16.mxu0 0
      %2801 = vmatmul.mubr.bf16.gmra.mrb[0].mxu0 %v2658
      %v2802 = vpop.f32.mrb[0].mxu0
      %v2803 = vadd.f32 %v2511, %v2802
      %v2804 = vpop.f32.mrb[0].mxu0
      %v2805 = vpop.f32.mrb[0].mxu0
      %v2806 = vadd.f32 %v2514, %v2805
      %v2807 = vpop.f32.mrb[0].mxu0
      %2808 = vmatprep.mubr.bf16.mxu0 0
      %2809 = vmatmul.mubr.bf16.gmra.mrb[0].mxu0 %v2661
      %v2810 = vpop.f32.mrb[0].mxu0
      %v2811 = vadd.f32 %v2519, %v2810
      %v2812 = vpop.f32.mrb[0].mxu0
      %v2813 = vpop.f32.mrb[0].mxu0
      %v2814 = vadd.f32 %v2522, %v2813
      %v2815 = vpop.f32.mrb[0].mxu0
      %2816 = vmatprep.mubr.bf16.mxu0 0
      %2817 = vmatmul.mubr.bf16.gmra.mrb[0].mxu0 %v2664
      %v2818 = vpop.f32.mrb[0].mxu0
      %v2819 = vadd.f32 %v2527, %v2818
      %v2820 = vpop.f32.mrb[0].mxu0
      %v2821 = vpop.f32.mrb[0].mxu0
      %v2822 = vadd.f32 %v2530, %v2821
      %v2823 = vpop.f32.mrb[0].mxu0
      %2824 = vmatprep.mubr.bf16.mxu0 0
      %2825 = vmatmul.mubr.bf16.gmra.mrb[0].mxu0 %v2667
      %v2826 = vpop.f32.mrb[0].mxu0
      %v2827 = vadd.f32 %v2535, %v2826
      %v2828 = vpop.f32.mrb[0].mxu0
      %v2829 = vpop.f32.mrb[0].mxu0
      %v2830 = vadd.f32 %v2538, %v2829
      %v2831 = vpop.f32.mrb[0].mxu0
      %2832 = vdwg.mxu0
      %v2833 = vld [vmem:[#allocation2] sm:$0xe]
      %v2834 = vld [vmem:[#allocation2 + $0xc] sm:$0xe]
      %v2835 = vld [vmem:[#allocation2 + $0x18] sm:$0xe]
      %v2836 = vld [vmem:[#allocation2 + $0x24] sm:$0xe]
      %v2837 = vld [vmem:[#allocation2 + $0x30] sm:$0xe]
      %v2838 = vld [vmem:[#allocation2 + $0x3c] sm:$0xe]
      %v2839 = vld [vmem:[#allocation2 + $0x48] sm:$0xe]
      %v2840 = vld [vmem:[#allocation2 + $0x54] sm:$0xe]
      %v2841 = vld [vmem:[#allocation2 + $0x60] sm:$0xe]
      %v2842 = vld [vmem:[#allocation2 + $0x6c] sm:$0xe]
      %v2843 = vld [vmem:[#allocation2 + $0x78] sm:$0xe]
      %v2844 = vld [vmem:[#allocation2 + $0x84] sm:$0xe]
      %v2845 = vld [vmem:[#allocation2 + $0x90] sm:$0xe]
      %v2846 = vld [vmem:[#allocation2 + $0x9c] sm:$0xe]
      %v2847 = vld [vmem:[#allocation2 + $0xa8] sm:$0xe]
      %v2848 = vld [vmem:[#allocation2 + $0xb4] sm:$0xe]
      %vm2881 = vcmask 1042432
      %vm2882 = vcmask 1046532
      %vm2883 = vmor %vm2881, %vm2882
      %v2884 = vrot.slane %v2833, 5
      %v2885 = vrot.slane %v2884, 4
      %v2886 = vrot.slane %v1844, 5
      %v2887 = vsel %vm2883, %v2885, %v2886
      %v2888 = vrot.slane %v2886, 4
      %v2889 = vrot.slane %v1876, 5
      %v2890 = vsel %vm2883, %v2888, %v2889
      %v2891 = vrot.slane %v2834, 5
      %v2892 = vrot.slane %v2891, 4
      %v2893 = vrot.slane %v1846, 5
      %v2894 = vsel %vm2883, %v2892, %v2893
      %v2895 = vrot.slane %v2893, 4
      %v2896 = vrot.slane %v1877, 5
      %v2897 = vsel %vm2883, %v2895, %v2896
      %v2898 = vrot.slane %v2835, 5
      %v2899 = vrot.slane %v2898, 4
      %v2900 = vrot.slane %v1848, 5
      %v2901 = vsel %vm2883, %v2899, %v2900
      %v2902 = vrot.slane %v2900, 4
      %v2903 = vrot.slane %v1878, 5
      %v2904 = vsel %vm2883, %v2902, %v2903
      %v2905 = vrot.slane %v2836, 5
      %v2906 = vrot.slane %v2905, 4
      %v2907 = vrot.slane %v1850, 5
      %v2908 = vsel %vm2883, %v2906, %v2907
      %v2909 = vrot.slane %v2907, 4
      %v2910 = vrot.slane %v1879, 5
      %v2911 = vsel %vm2883, %v2909, %v2910
      %v2912 = vrot.slane %v2837, 5
      %v2913 = vrot.slane %v2912, 4
      %v2914 = vrot.slane %v1852, 5
      %v2915 = vsel %vm2883, %v2913, %v2914
      %v2916 = vrot.slane %v2914, 4
      %v2917 = vrot.slane %v1880, 5
      %v2918 = vsel %vm2883, %v2916, %v2917
      %v2919 = vrot.slane %v2838, 5
      %v2920 = vrot.slane %v2919, 4
      %v2921 = vrot.slane %v1854, 5
      %v2922 = vsel %vm2883, %v2920, %v2921
      %v2923 = vrot.slane %v2921, 4
      %v2924 = vrot.slane %v1881, 5
      %v2925 = vsel %vm2883, %v2923, %v2924
      %v2926 = vrot.slane %v2839, 5
      %v2927 = vrot.slane %v2926, 4
      %v2928 = vrot.slane %v1856, 5
      %v2929 = vsel %vm2883, %v2927, %v2928
      %v2930 = vrot.slane %v2928, 4
      %v2931 = vrot.slane %v1882, 5
      %v2932 = vsel %vm2883, %v2930, %v2931
      %v2933 = vrot.slane %v2840, 5
      %v2934 = vrot.slane %v2933, 4
      %v2935 = vrot.slane %v1858, 5
      %v2936 = vsel %vm2883, %v2934, %v2935
      %v2937 = vrot.slane %v2935, 4
      %v2938 = vrot.slane %v1883, 5
      %v2939 = vsel %vm2883, %v2937, %v2938
      %v2940 = vrot.slane %v2841, 5
      %v2941 = vrot.slane %v2940, 4
      %v2942 = vrot.slane %v1860, 5
      %v2943 = vsel %vm2883, %v2941, %v2942
      %v2944 = vrot.slane %v2942, 4
      %v2945 = vrot.slane %v1884, 5
      %v2946 = vsel %vm2883, %v2944, %v2945
      %v2947 = vrot.slane %v2842, 5
      %v2948 = vrot.slane %v2947, 4
      %v2949 = vrot.slane %v1862, 5
      %v2950 = vsel %vm2883, %v2948, %v2949
      %v2951 = vrot.slane %v2949, 4
      %v2952 = vrot.slane %v1885, 5
      %v2953 = vsel %vm2883, %v2951, %v2952
      %v2954 = vrot.slane %v2843, 5
      %v2955 = vrot.slane %v2954, 4
      %v2956 = vrot.slane %v1864, 5
      %v2957 = vsel %vm2883, %v2955, %v2956
      %v2958 = vrot.slane %v2956, 4
      %v2959 = vrot.slane %v1886, 5
      %v2960 = vsel %vm2883, %v2958, %v2959
      %v2961 = vrot.slane %v2844, 5
      %v2962 = vrot.slane %v2961, 4
      %v2963 = vrot.slane %v1866, 5
      %v2964 = vsel %vm2883, %v2962, %v2963
      %v2965 = vrot.slane %v2963, 4
      %v2966 = vrot.slane %v1887, 5
      %v2967 = vsel %vm2883, %v2965, %v2966
      %v2968 = vrot.slane %v2845, 5
      %v2969 = vrot.slane %v2968, 4
      %v2970 = vrot.slane %v1868, 5
      %v2971 = vsel %vm2883, %v2969, %v2970
      %v2972 = vrot.slane %v2970, 4
      %v2973 = vrot.slane %v1888, 5
      %v2974 = vsel %vm2883, %v2972, %v2973
      %v2975 = vrot.slane %v2846, 5
      %v2976 = vrot.slane %v2975, 4
      %v2977 = vrot.slane %v1870, 5
      %v2978 = vsel %vm2883, %v2976, %v2977
      %v2979 = vrot.slane %v2977, 4
      %v2980 = vrot.slane %v1889, 5
      %v2981 = vsel %vm2883, %v2979, %v2980
      %v2982 = vrot.slane %v2847, 5
      %v2983 = vrot.slane %v2982, 4
      %v2984 = vrot.slane %v1872, 5
      %v2985 = vsel %vm2883, %v2983, %v2984
      %v2986 = vrot.slane %v2984, 4
      %v2987 = vrot.slane %v1890, 5
      %v2988 = vsel %vm2883, %v2986, %v2987
      %v2989 = vrot.slane %v2848, 5
      %v2990 = vrot.slane %v2989, 4
      %v2991 = vrot.slane %v1874, 5
      %v2992 = vsel %vm2883, %v2990, %v2991
      %v2993 = vrot.slane %v2991, 4
      %v2994 = vrot.slane %v1891, 5
      %v2995 = vsel %vm2883, %v2993, %v2994
      %s2996 = scalar_lea.vmem %s6, 4
      %v2997 = vld [vmem:[%s2996] sm:$0x3]
      %v2998 = vunpack.c.l.b16 %v2887
      %v2999 = vunpack.c.l.b16 %v2890
      %v3000 = vunpack.c.l.b16 %v2894
      %v3001 = vunpack.c.l.b16 %v2897
      %v3002 = vunpack.c.l.b16 %v2901
      %v3003 = vunpack.c.l.b16 %v2904
      %v3004 = vunpack.c.l.b16 %v2908
      %v3005 = vunpack.c.l.b16 %v2911
      %v3006 = vunpack.c.l.b16 %v2915
      %v3007 = vunpack.c.l.b16 %v2918
      %v3008 = vunpack.c.l.b16 %v2922
      %v3009 = vunpack.c.l.b16 %v2925
      %v3010 = vunpack.c.l.b16 %v2929
      %v3011 = vunpack.c.l.b16 %v2932
      %v3012 = vunpack.c.l.b16 %v2936
      %v3013 = vunpack.c.l.b16 %v2939
      %v3014 = vunpack.c.l.b16 %v2943
      %v3015 = vunpack.c.l.b16 %v2946
      %v3016 = vunpack.c.l.b16 %v2950
      %v3017 = vunpack.c.l.b16 %v2953
      %v3018 = vunpack.c.l.b16 %v2957
      %v3019 = vunpack.c.l.b16 %v2960
      %v3020 = vunpack.c.l.b16 %v2964
      %v3021 = vunpack.c.l.b16 %v2967
      %v3022 = vunpack.c.l.b16 %v2971
      %v3023 = vunpack.c.l.b16 %v2974
      %v3024 = vunpack.c.l.b16 %v2978
      %v3025 = vunpack.c.l.b16 %v2981
      %v3026 = vunpack.c.l.b16 %v2985
      %v3027 = vunpack.c.l.b16 %v2988
      %v3028 = vunpack.c.l.b16 %v2992
      %v3029 = vunpack.c.l.b16 %v2995
      %v3030 = vpack.c.b16 %v2999, %v2998
      %v3031 = vpack.c.b16 %v3001, %v3000
      %v3032 = vpack.c.b16 %v3003, %v3002
      %v3033 = vpack.c.b16 %v3005, %v3004
      %v3034 = vpack.c.b16 %v3007, %v3006
      %v3035 = vpack.c.b16 %v3009, %v3008
      %v3036 = vpack.c.b16 %v3011, %v3010
      %v3037 = vpack.c.b16 %v3013, %v3012
      %v3038 = vpack.c.b16 %v3015, %v3014
      %v3039 = vpack.c.b16 %v3017, %v3016
      %v3040 = vpack.c.b16 %v3019, %v3018
      %v3041 = vpack.c.b16 %v3021, %v3020
      %v3042 = vpack.c.b16 %v3023, %v3022
      %v3043 = vpack.c.b16 %v3025, %v3024
      %v3044 = vpack.c.b16 %v3027, %v3026
      %v3045 = vpack.c.b16 %v3029, %v3028
      %v3047 = vsel %vm721, %v3030, 0
      %v3050 = vsel %vm721, %v3031, 0
      %v3053 = vsel %vm721, %v3032, 0
      %v3056 = vsel %vm721, %v3033, 0
      %v3059 = vsel %vm721, %v3034, 0
      %v3062 = vsel %vm721, %v3035, 0
      %v3065 = vsel %vm721, %v3036, 0
      %v3068 = vsel %vm721, %v3037, 0
      %v3071 = vsel %vm721, %v3038, 0
      %v3074 = vsel %vm721, %v3039, 0
      %v3077 = vsel %vm721, %v3040, 0
      %v3080 = vsel %vm721, %v3041, 0
      %v3083 = vsel %vm721, %v3042, 0
      %v3086 = vsel %vm721, %v3043, 0
      %v3089 = vsel %vm721, %v3044, 0
      %v3092 = vsel %vm721, %v3045, 0
      %v3095 = vsel %vm1052, %v2997, 0
      %3097 = vmatprep.subr.bf16.mxu0 0
      %3098 = vmatpush1.bf16.msra.mxu0 %v3095
      %3099 = vmatprep.subr.bf16.mxu0 0
      %3100 = vmatpush1.bf16.msra.mxu0 0
      %3101 = vmatprep.subr.bf16.mxu0 0
      %3102 = vmatpush1.bf16.msra.mxu0 0
      %3103 = vmatprep.subr.bf16.mxu0 0
      %3104 = vmatpush1.bf16.msra.mxu0 0
      %3105 = vmatprep.subr.bf16.mxu0 0
      %3106 = vmatpush1.bf16.msra.mxu0 0
      %3107 = vmatprep.subr.bf16.mxu0 0
      %3108 = vmatpush1.bf16.msra.mxu0 0
      %3109 = vmatprep.subr.bf16.mxu0 0
      %3110 = vmatpush1.bf16.msra.mxu0 0
      %3111 = vmatprep.subr.bf16.mxu0 0
      %3112 = vmatpush1.bf16.msra.mxu0 0
      %3113 = vmatprep.subr.bf16.mxu0 0
      %3114 = vmatpush1.bf16.msra.mxu0 0
      %3115 = vmatprep.subr.bf16.mxu0 0
      %3116 = vmatpush1.bf16.msra.mxu0 0
      %3117 = vmatprep.subr.bf16.mxu0 0
      %3118 = vmatpush1.bf16.msra.mxu0 0
      %3119 = vmatprep.subr.bf16.mxu0 0
      %3120 = vmatpush1.bf16.msra.mxu0 0
      %3121 = vmatprep.subr.bf16.mxu0 0
      %3122 = vmatpush1.bf16.msra.mxu0 0
      %3123 = vmatprep.subr.bf16.mxu0 0
      %3124 = vmatpush1.bf16.msra.mxu0 0
      %3125 = vmatprep.subr.bf16.mxu0 0
      %3126 = vmatpush1.bf16.msra.mxu0 0
      %3127 = vmatprep.subr.bf16.mxu0 0
      %3128 = vmatpush1.bf16.msra.mxu0 0
      %3129 = vmatprep.mubr.bf16.mxu0 0
      %3130 = vmatmul.mubr.bf16.gmra.mrb[0].mxu0 %v3047
      %v3131 = vpop.f32.mrb[0].mxu0
      %v3132 = vadd.f32 0.0, %v3131
      %v3133 = vpop.f32.mrb[0].mxu0
      %v3134 = vpop.f32.mrb[0].mxu0
      %v3135 = vadd.f32 0.0, %v3134
      %v3136 = vpop.f32.mrb[0].mxu0
      %3137 = vmatprep.mubr.bf16.mxu0 0
      %3138 = vmatmul.mubr.bf16.gmra.mrb[0].mxu0 %v3050
      %v3139 = vpop.f32.mrb[0].mxu0
      %v3140 = vadd.f32 0.0, %v3139
      %v3141 = vpop.f32.mrb[0].mxu0
      %v3142 = vpop.f32.mrb[0].mxu0
      %v3143 = vadd.f32 0.0, %v3142
      %v3144 = vpop.f32.mrb[0].mxu0
      %3145 = vmatprep.mubr.bf16.mxu0 0
      %3146 = vmatmul.mubr.bf16.gmra.mrb[0].mxu0 %v3053
      %v3147 = vpop.f32.mrb[0].mxu0
      %v3148 = vadd.f32 0.0, %v3147
      %v3149 = vpop.f32.mrb[0].mxu0
      %v3150 = vpop.f32.mrb[0].mxu0
      %v3151 = vadd.f32 0.0, %v3150
      %v3152 = vpop.f32.mrb[0].mxu0
      %3153 = vmatprep.mubr.bf16.mxu0 0
      %3154 = vmatmul.mubr.bf16.gmra.mrb[0].mxu0 %v3056
      %v3155 = vpop.f32.mrb[0].mxu0
      %v3156 = vadd.f32 0.0, %v3155
      %v3157 = vpop.f32.mrb[0].mxu0
      %v3158 = vpop.f32.mrb[0].mxu0
      %v3159 = vadd.f32 0.0, %v3158
      %v3160 = vpop.f32.mrb[0].mxu0
      %3161 = vmatprep.mubr.bf16.mxu0 0
      %3162 = vmatmul.mubr.bf16.gmra.mrb[0].mxu0 %v3059
      %v3163 = vpop.f32.mrb[0].mxu0
      %v3164 = vadd.f32 0.0, %v3163
      %v3165 = vpop.f32.mrb[0].mxu0
      %v3166 = vpop.f32.mrb[0].mxu0
      %v3167 = vadd.f32 0.0, %v3166
      %v3168 = vpop.f32.mrb[0].mxu0
      %3169 = vmatprep.mubr.bf16.mxu0 0
      %3170 = vmatmul.mubr.bf16.gmra.mrb[0].mxu0 %v3062
      %v3171 = vpop.f32.mrb[0].mxu0
      %v3172 = vadd.f32 0.0, %v3171
      %v3173 = vpop.f32.mrb[0].mxu0
      %v3174 = vpop.f32.mrb[0].mxu0
      %v3175 = vadd.f32 0.0, %v3174
      %v3176 = vpop.f32.mrb[0].mxu0
      %3177 = vmatprep.mubr.bf16.mxu0 0
      %3178 = vmatmul.mubr.bf16.gmra.mrb[0].mxu0 %v3065
      %v3179 = vpop.f32.mrb[0].mxu0
      %v3180 = vadd.f32 0.0, %v3179
      %v3181 = vpop.f32.mrb[0].mxu0
      %v3182 = vpop.f32.mrb[0].mxu0
      %v3183 = vadd.f32 0.0, %v3182
      %v3184 = vpop.f32.mrb[0].mxu0
      %3185 = vmatprep.mubr.bf16.mxu0 0
      %3186 = vmatmul.mubr.bf16.gmra.mrb[0].mxu0 %v3068
      %v3187 = vpop.f32.mrb[0].mxu0
      %v3188 = vadd.f32 0.0, %v3187
      %v3189 = vpop.f32.mrb[0].mxu0
      %v3190 = vpop.f32.mrb[0].mxu0
      %v3191 = vadd.f32 0.0, %v3190
      %v3192 = vpop.f32.mrb[0].mxu0
      %3193 = vmatprep.mubr.bf16.mxu0 0
      %3194 = vmatmul.mubr.bf16.gmra.mrb[0].mxu0 %v3071
      %v3195 = vpop.f32.mrb[0].mxu0
      %v3196 = vadd.f32 0.0, %v3195
      %v3197 = vpop.f32.mrb[0].mxu0
      %v3198 = vpop.f32.mrb[0].mxu0
      %v3199 = vadd.f32 0.0, %v3198
      %v3200 = vpop.f32.mrb[0].mxu0
      %3201 = vmatprep.mubr.bf16.mxu0 0
      %3202 = vmatmul.mubr.bf16.gmra.mrb[0].mxu0 %v3074
      %v3203 = vpop.f32.mrb[0].mxu0
      %v3204 = vadd.f32 0.0, %v3203
      %v3205 = vpop.f32.mrb[0].mxu0
      %v3206 = vpop.f32.mrb[0].mxu0
      %v3207 = vadd.f32 0.0, %v3206
      %v3208 = vpop.f32.mrb[0].mxu0
      %3209 = vmatprep.mubr.bf16.mxu0 0
      %3210 = vmatmul.mubr.bf16.gmra.mrb[0].mxu0 %v3077
      %v3211 = vpop.f32.mrb[0].mxu0
      %v3212 = vadd.f32 0.0, %v3211
      %v3213 = vpop.f32.mrb[0].mxu0
      %v3214 = vpop.f32.mrb[0].mxu0
      %v3215 = vadd.f32 0.0, %v3214
      %v3216 = vpop.f32.mrb[0].mxu0
      %3217 = vmatprep.mubr.bf16.mxu0 0
      %3218 = vmatmul.mubr.bf16.gmra.mrb[0].mxu0 %v3080
      %v3219 = vpop.f32.mrb[0].mxu0
      %v3220 = vadd.f32 0.0, %v3219
      %v3221 = vpop.f32.mrb[0].mxu0
      %v3222 = vpop.f32.mrb[0].mxu0
      %v3223 = vadd.f32 0.0, %v3222
      %v3224 = vpop.f32.mrb[0].mxu0
      %3225 = vmatprep.mubr.bf16.mxu0 0
      %3226 = vmatmul.mubr.bf16.gmra.mrb[0].mxu0 %v3083
      %v3227 = vpop.f32.mrb[0].mxu0
      %v3228 = vadd.f32 0.0, %v3227
      %v3229 = vpop.f32.mrb[0].mxu0
      %v3230 = vpop.f32.mrb[0].mxu0
      %v3231 = vadd.f32 0.0, %v3230
      %v3232 = vpop.f32.mrb[0].mxu0
      %3233 = vmatprep.mubr.bf16.mxu0 0
      %3234 = vmatmul.mubr.bf16.gmra.mrb[0].mxu0 %v3086
      %v3235 = vpop.f32.mrb[0].mxu0
      %v3236 = vadd.f32 0.0, %v3235
      %v3237 = vpop.f32.mrb[0].mxu0
      %v3238 = vpop.f32.mrb[0].mxu0
      %v3239 = vadd.f32 0.0, %v3238
      %v3240 = vpop.f32.mrb[0].mxu0
      %3241 = vmatprep.mubr.bf16.mxu0 0
      %3242 = vmatmul.mubr.bf16.gmra.mrb[0].mxu0 %v3089
      %v3243 = vpop.f32.mrb[0].mxu0
      %v3244 = vadd.f32 0.0, %v3243
      %v3245 = vpop.f32.mrb[0].mxu0
      %v3246 = vpop.f32.mrb[0].mxu0
      %v3247 = vadd.f32 0.0, %v3246
      %v3248 = vpop.f32.mrb[0].mxu0
      %3249 = vmatprep.mubr.bf16.mxu0 0
      %3250 = vmatmul.mubr.bf16.gmra.mrb[0].mxu0 %v3092
      %v3251 = vpop.f32.mrb[0].mxu0
      %v3252 = vadd.f32 0.0, %v3251
      %v3253 = vpop.f32.mrb[0].mxu0
      %v3254 = vpop.f32.mrb[0].mxu0
      %v3255 = vadd.f32 0.0, %v3254
      %v3256 = vpop.f32.mrb[0].mxu0
      %3257 = vdwg.mxu0
      %v3258 = vadd.f32 %v2707, %v3132
      %v3259 = vadd.f32 %v2710, %v3135
      %v3260 = vadd.f32 %v2715, %v3140
      %v3261 = vadd.f32 %v2718, %v3143
      %v3262 = vadd.f32 %v2723, %v3148
      %v3263 = vadd.f32 %v2726, %v3151
      %v3264 = vadd.f32 %v2731, %v3156
      %v3265 = vadd.f32 %v2734, %v3159
      %v3266 = vadd.f32 %v2739, %v3164
      %v3267 = vadd.f32 %v2742, %v3167
      %v3268 = vadd.f32 %v2747, %v3172
      %v3269 = vadd.f32 %v2750, %v3175
      %v3270 = vadd.f32 %v2755, %v3180
      %v3271 = vadd.f32 %v2758, %v3183
      %v3272 = vadd.f32 %v2763, %v3188
      %v3273 = vadd.f32 %v2766, %v3191
      %v3274 = vadd.f32 %v2771, %v3196
      %v3275 = vadd.f32 %v2774, %v3199
      %v3276 = vadd.f32 %v2779, %v3204
      %v3277 = vadd.f32 %v2782, %v3207
      %v3278 = vadd.f32 %v2787, %v3212
      %v3279 = vadd.f32 %v2790, %v3215
      %v3280 = vadd.f32 %v2795, %v3220
      %v3281 = vadd.f32 %v2798, %v3223
      %v3282 = vadd.f32 %v2803, %v3228
      %v3283 = vadd.f32 %v2806, %v3231
      %v3284 = vadd.f32 %v2811, %v3236
      %v3285 = vadd.f32 %v2814, %v3239
      %v3286 = vadd.f32 %v2819, %v3244
      %v3287 = vadd.f32 %v2822, %v3247
      %v3288 = vadd.f32 %v2827, %v3252
      %v3289 = vadd.f32 %v2830, %v3255
      %v3290 = vld [vmem:[%s1727] sm:$0xf]
      %v3291 = vld [vmem:[%s1727 + $0x4] sm:$0xf]
      %v3292 = vld [vmem:[%s1727 + $0xc] sm:$0xf]
      %v3293 = vld [vmem:[%s1727 + $0x10] sm:$0xf]
      %v3294 = vld [vmem:[%s1727 + $0x18] sm:$0xf]
      %v3295 = vld [vmem:[%s1727 + $0x1c] sm:$0xf]
      %v3296 = vld [vmem:[%s1727 + $0x24] sm:$0xf]
      %v3297 = vld [vmem:[%s1727 + $0x28] sm:$0xf]
      %v3298 = vld [vmem:[%s1727 + $0x30] sm:$0xf]
      %v3299 = vld [vmem:[%s1727 + $0x34] sm:$0xf]
      %v3300 = vld [vmem:[%s1727 + $0x3c] sm:$0xf]
      %v3301 = vld [vmem:[%s1727 + $0x40] sm:$0xf]
      %v3302 = vld [vmem:[%s1727 + $0x48] sm:$0xf]
      %v3303 = vld [vmem:[%s1727 + $0x4c] sm:$0xf]
      %v3304 = vld [vmem:[%s1727 + $0x54] sm:$0xf]
      %v3305 = vld [vmem:[%s1727 + $0x58] sm:$0xf]
      %v3306 = vld [vmem:[%s1727 + $0x60] sm:$0xf]
      %v3307 = vld [vmem:[%s1727 + $0x64] sm:$0xf]
      %v3308 = vld [vmem:[%s1727 + $0x6c] sm:$0xf]
      %v3309 = vld [vmem:[%s1727 + $0x70] sm:$0xf]
      %v3310 = vld [vmem:[%s1727 + $0x78] sm:$0xf]
      %v3311 = vld [vmem:[%s1727 + $0x7c] sm:$0xf]
      %v3312 = vld [vmem:[%s1727 + $0x84] sm:$0xf]
      %v3313 = vld [vmem:[%s1727 + $0x88] sm:$0xf]
      %v3314 = vld [vmem:[%s1727 + $0x90] sm:$0xf]
      %v3315 = vld [vmem:[%s1727 + $0x94] sm:$0xf]
      %v3316 = vld [vmem:[%s1727 + $0x9c] sm:$0xf]
      %v3317 = vld [vmem:[%s1727 + $0xa0] sm:$0xf]
      %v3318 = vld [vmem:[%s1727 + $0xa8] sm:$0xf]
      %v3319 = vld [vmem:[%s1727 + $0xac] sm:$0xf]
      %v3320 = vld [vmem:[%s1727 + $0xb4] sm:$0xf]
      %v3321 = vld [vmem:[%s1727 + $0xb8] sm:$0xf]
      %s3322 = scalar_lea.vmem %s6, 6
      %v3323 = vld [vmem:[%s3322] sm:$0x3]
      %v3356 = vunpack.c.l.b16 %v3290
      %v3357 = vunpack.c.l.b16 %v3291
      %v3358 = vunpack.c.l.b16 %v3292
      %v3359 = vunpack.c.l.b16 %v3293
      %v3360 = vunpack.c.l.b16 %v3294
      %v3361 = vunpack.c.l.b16 %v3295
      %v3362 = vunpack.c.l.b16 %v3296
      %v3363 = vunpack.c.l.b16 %v3297
      %v3364 = vunpack.c.l.b16 %v3298
      %v3365 = vunpack.c.l.b16 %v3299
      %v3366 = vunpack.c.l.b16 %v3300
      %v3367 = vunpack.c.l.b16 %v3301
      %v3368 = vunpack.c.l.b16 %v3302
      %v3369 = vunpack.c.l.b16 %v3303
      %v3370 = vunpack.c.l.b16 %v3304
      %v3371 = vunpack.c.l.b16 %v3305
      %v3372 = vunpack.c.l.b16 %v3306
      %v3373 = vunpack.c.l.b16 %v3307
      %v3374 = vunpack.c.l.b16 %v3308
      %v3375 = vunpack.c.l.b16 %v3309
      %v3376 = vunpack.c.l.b16 %v3310
      %v3377 = vunpack.c.l.b16 %v3311
      %v3378 = vunpack.c.l.b16 %v3312
      %v3379 = vunpack.c.l.b16 %v3313
      %v3380 = vunpack.c.l.b16 %v3314
      %v3381 = vunpack.c.l.b16 %v3315
      %v3382 = vunpack.c.l.b16 %v3316
      %v3383 = vunpack.c.l.b16 %v3317
      %v3384 = vunpack.c.l.b16 %v3318
      %v3385 = vunpack.c.l.b16 %v3319
      %v3386 = vunpack.c.l.b16 %v3320
      %v3387 = vunpack.c.l.b16 %v3321
      %v3388 = vpack.c.b16 %v3357, %v3356
      %v3389 = vpack.c.b16 %v3359, %v3358
      %v3390 = vpack.c.b16 %v3361, %v3360
      %v3391 = vpack.c.b16 %v3363, %v3362
      %v3392 = vpack.c.b16 %v3365, %v3364
      %v3393 = vpack.c.b16 %v3367, %v3366
      %v3394 = vpack.c.b16 %v3369, %v3368
      %v3395 = vpack.c.b16 %v3371, %v3370
      %v3396 = vpack.c.b16 %v3373, %v3372
      %v3397 = vpack.c.b16 %v3375, %v3374
      %v3398 = vpack.c.b16 %v3377, %v3376
      %v3399 = vpack.c.b16 %v3379, %v3378
      %v3400 = vpack.c.b16 %v3381, %v3380
      %v3401 = vpack.c.b16 %v3383, %v3382
      %v3402 = vpack.c.b16 %v3385, %v3384
      %v3403 = vpack.c.b16 %v3387, %v3386
      %v3405 = vsel %vm721, %v3388, 0
      %v3408 = vsel %vm721, %v3389, 0
      %v3411 = vsel %vm721, %v3390, 0
      %v3414 = vsel %vm721, %v3391, 0
      %v3417 = vsel %vm721, %v3392, 0
      %v3420 = vsel %vm721, %v3393, 0
      %v3423 = vsel %vm721, %v3394, 0
      %v3426 = vsel %vm721, %v3395, 0
      %v3429 = vsel %vm721, %v3396, 0
      %v3432 = vsel %vm721, %v3397, 0
      %v3435 = vsel %vm721, %v3398, 0
      %v3438 = vsel %vm721, %v3399, 0
      %v3441 = vsel %vm721, %v3400, 0
      %v3444 = vsel %vm721, %v3401, 0
      %v3447 = vsel %vm721, %v3402, 0
      %v3450 = vsel %vm721, %v3403, 0
      %v3453 = vsel %vm1052, %v3323, 0
      %3455 = vmatprep.subr.bf16.mxu0 0
      %3456 = vmatpush1.bf16.msra.mxu0 %v3453
      %3457 = vmatprep.subr.bf16.mxu0 0
      %3458 = vmatpush1.bf16.msra.mxu0 0
      %3459 = vmatprep.subr.bf16.mxu0 0
      %3460 = vmatpush1.bf16.msra.mxu0 0
      %3461 = vmatprep.subr.bf16.mxu0 0
      %3462 = vmatpush1.bf16.msra.mxu0 0
      %3463 = vmatprep.subr.bf16.mxu0 0
      %3464 = vmatpush1.bf16.msra.mxu0 0
      %3465 = vmatprep.subr.bf16.mxu0 0
      %3466 = vmatpush1.bf16.msra.mxu0 0
      %3467 = vmatprep.subr.bf16.mxu0 0
      %3468 = vmatpush1.bf16.msra.mxu0 0
      %3469 = vmatprep.subr.bf16.mxu0 0
      %3470 = vmatpush1.bf16.msra.mxu0 0
      %3471 = vmatprep.subr.bf16.mxu0 0
      %3472 = vmatpush1.bf16.msra.mxu0 0
      %3473 = vmatprep.subr.bf16.mxu0 0
      %3474 = vmatpush1.bf16.msra.mxu0 0
      %3475 = vmatprep.subr.bf16.mxu0 0
      %3476 = vmatpush1.bf16.msra.mxu0 0
      %3477 = vmatprep.subr.bf16.mxu0 0
      %3478 = vmatpush1.bf16.msra.mxu0 0
      %3479 = vmatprep.subr.bf16.mxu0 0
      %3480 = vmatpush1.bf16.msra.mxu0 0
      %3481 = vmatprep.subr.bf16.mxu0 0
      %3482 = vmatpush1.bf16.msra.mxu0 0
      %3483 = vmatprep.subr.bf16.mxu0 0
      %3484 = vmatpush1.bf16.msra.mxu0 0
      %3485 = vmatprep.subr.bf16.mxu0 0
      %3486 = vmatpush1.bf16.msra.mxu0 0
      %3487 = vmatprep.mubr.bf16.mxu0 0
      %3488 = vmatmul.mubr.bf16.gmra.mrb[0].mxu0 %v3405
      %v3489 = vpop.f32.mrb[0].mxu0
      %v3490 = vadd.f32 0.0, %v3489
      %v3491 = vpop.f32.mrb[0].mxu0
      %v3492 = vpop.f32.mrb[0].mxu0
      %v3493 = vadd.f32 0.0, %v3492
      %v3494 = vpop.f32.mrb[0].mxu0
      %3495 = vmatprep.mubr.bf16.mxu0 0
      %3496 = vmatmul.mubr.bf16.gmra.mrb[0].mxu0 %v3408
      %v3497 = vpop.f32.mrb[0].mxu0
      %v3498 = vadd.f32 0.0, %v3497
      %v3499 = vpop.f32.mrb[0].mxu0
      %v3500 = vpop.f32.mrb[0].mxu0
      %v3501 = vadd.f32 0.0, %v3500
      %v3502 = vpop.f32.mrb[0].mxu0
      %3503 = vmatprep.mubr.bf16.mxu0 0
      %3504 = vmatmul.mubr.bf16.gmra.mrb[0].mxu0 %v3411
      %v3505 = vpop.f32.mrb[0].mxu0
      %v3506 = vadd.f32 0.0, %v3505
      %v3507 = vpop.f32.mrb[0].mxu0
      %v3508 = vpop.f32.mrb[0].mxu0
      %v3509 = vadd.f32 0.0, %v3508
      %v3510 = vpop.f32.mrb[0].mxu0
      %3511 = vmatprep.mubr.bf16.mxu0 0
      %3512 = vmatmul.mubr.bf16.gmra.mrb[0].mxu0 %v3414
      %v3513 = vpop.f32.mrb[0].mxu0
      %v3514 = vadd.f32 0.0, %v3513
      %v3515 = vpop.f32.mrb[0].mxu0
      %v3516 = vpop.f32.mrb[0].mxu0
      %v3517 = vadd.f32 0.0, %v3516
      %v3518 = vpop.f32.mrb[0].mxu0
      %3519 = vmatprep.mubr.bf16.mxu0 0
      %3520 = vmatmul.mubr.bf16.gmra.mrb[0].mxu0 %v3417
      %v3521 = vpop.f32.mrb[0].mxu0
      %v3522 = vadd.f32 0.0, %v3521
      %v3523 = vpop.f32.mrb[0].mxu0
      %v3524 = vpop.f32.mrb[0].mxu0
      %v3525 = vadd.f32 0.0, %v3524
      %v3526 = vpop.f32.mrb[0].mxu0
      %3527 = vmatprep.mubr.bf16.mxu0 0
      %3528 = vmatmul.mubr.bf16.gmra.mrb[0].mxu0 %v3420
      %v3529 = vpop.f32.mrb[0].mxu0
      %v3530 = vadd.f32 0.0, %v3529
      %v3531 = vpop.f32.mrb[0].mxu0
      %v3532 = vpop.f32.mrb[0].mxu0
      %v3533 = vadd.f32 0.0, %v3532
      %v3534 = vpop.f32.mrb[0].mxu0
      %3535 = vmatprep.mubr.bf16.mxu0 0
      %3536 = vmatmul.mubr.bf16.gmra.mrb[0].mxu0 %v3423
      %v3537 = vpop.f32.mrb[0].mxu0
      %v3538 = vadd.f32 0.0, %v3537
      %v3539 = vpop.f32.mrb[0].mxu0
      %v3540 = vpop.f32.mrb[0].mxu0
      %v3541 = vadd.f32 0.0, %v3540
      %v3542 = vpop.f32.mrb[0].mxu0
      %3543 = vmatprep.mubr.bf16.mxu0 0
      %3544 = vmatmul.mubr.bf16.gmra.mrb[0].mxu0 %v3426
      %v3545 = vpop.f32.mrb[0].mxu0
      %v3546 = vadd.f32 0.0, %v3545
      %v3547 = vpop.f32.mrb[0].mxu0
      %v3548 = vpop.f32.mrb[0].mxu0
      %v3549 = vadd.f32 0.0, %v3548
      %v3550 = vpop.f32.mrb[0].mxu0
      %3551 = vmatprep.mubr.bf16.mxu0 0
      %3552 = vmatmul.mubr.bf16.gmra.mrb[0].mxu0 %v3429
      %v3553 = vpop.f32.mrb[0].mxu0
      %v3554 = vadd.f32 0.0, %v3553
      %v3555 = vpop.f32.mrb[0].mxu0
      %v3556 = vpop.f32.mrb[0].mxu0
      %v3557 = vadd.f32 0.0, %v3556
      %v3558 = vpop.f32.mrb[0].mxu0
      %3559 = vmatprep.mubr.bf16.mxu0 0
      %3560 = vmatmul.mubr.bf16.gmra.mrb[0].mxu0 %v3432
      %v3561 = vpop.f32.mrb[0].mxu0
      %v3562 = vadd.f32 0.0, %v3561
      %v3563 = vpop.f32.mrb[0].mxu0
      %v3564 = vpop.f32.mrb[0].mxu0
      %v3565 = vadd.f32 0.0, %v3564
      %v3566 = vpop.f32.mrb[0].mxu0
      %3567 = vmatprep.mubr.bf16.mxu0 0
      %3568 = vmatmul.mubr.bf16.gmra.mrb[0].mxu0 %v3435
      %v3569 = vpop.f32.mrb[0].mxu0
      %v3570 = vadd.f32 0.0, %v3569
      %v3571 = vpop.f32.mrb[0].mxu0
      %v3572 = vpop.f32.mrb[0].mxu0
      %v3573 = vadd.f32 0.0, %v3572
      %v3574 = vpop.f32.mrb[0].mxu0
      %3575 = vmatprep.mubr.bf16.mxu0 0
      %3576 = vmatmul.mubr.bf16.gmra.mrb[0].mxu0 %v3438
      %v3577 = vpop.f32.mrb[0].mxu0
      %v3578 = vadd.f32 0.0, %v3577
      %v3579 = vpop.f32.mrb[0].mxu0
      %v3580 = vpop.f32.mrb[0].mxu0
      %v3581 = vadd.f32 0.0, %v3580
      %v3582 = vpop.f32.mrb[0].mxu0
      %3583 = vmatprep.mubr.bf16.mxu0 0
      %3584 = vmatmul.mubr.bf16.gmra.mrb[0].mxu0 %v3441
      %v3585 = vpop.f32.mrb[0].mxu0
      %v3586 = vadd.f32 0.0, %v3585
      %v3587 = vpop.f32.mrb[0].mxu0
      %v3588 = vpop.f32.mrb[0].mxu0
      %v3589 = vadd.f32 0.0, %v3588
      %v3590 = vpop.f32.mrb[0].mxu0
      %3591 = vmatprep.mubr.bf16.mxu0 0
      %3592 = vmatmul.mubr.bf16.gmra.mrb[0].mxu0 %v3444
      %v3593 = vpop.f32.mrb[0].mxu0
      %v3594 = vadd.f32 0.0, %v3593
      %v3595 = vpop.f32.mrb[0].mxu0
      %v3596 = vpop.f32.mrb[0].mxu0
      %v3597 = vadd.f32 0.0, %v3596
      %v3598 = vpop.f32.mrb[0].mxu0
      %3599 = vmatprep.mubr.bf16.mxu0 0
      %3600 = vmatmul.mubr.bf16.gmra.mrb[0].mxu0 %v3447
      %v3601 = vpop.f32.mrb[0].mxu0
      %v3602 = vadd.f32 0.0, %v3601
      %v3603 = vpop.f32.mrb[0].mxu0
      %v3604 = vpop.f32.mrb[0].mxu0
      %v3605 = vadd.f32 0.0, %v3604
      %v3606 = vpop.f32.mrb[0].mxu0
      %3607 = vmatprep.mubr.bf16.mxu0 0
      %3608 = vmatmul.mubr.bf16.gmra.mrb[0].mxu0 %v3450
      %v3609 = vpop.f32.mrb[0].mxu0
      %v3610 = vadd.f32 0.0, %v3609
      %v3611 = vpop.f32.mrb[0].mxu0
      %v3612 = vpop.f32.mrb[0].mxu0
      %v3613 = vadd.f32 0.0, %v3612
      %v3614 = vpop.f32.mrb[0].mxu0
      %3615 = vdwg.mxu0
      %v3616 = vadd.f32 %v3258, %v3490
      %v3617 = vadd.f32 %v3259, %v3493
      %v3618 = vadd.f32 %v3260, %v3498
      %v3619 = vadd.f32 %v3261, %v3501
      %v3620 = vadd.f32 %v3262, %v3506
      %v3621 = vadd.f32 %v3263, %v3509
      %v3622 = vadd.f32 %v3264, %v3514
      %v3623 = vadd.f32 %v3265, %v3517
      %v3624 = vadd.f32 %v3266, %v3522
      %v3625 = vadd.f32 %v3267, %v3525
      %v3626 = vadd.f32 %v3268, %v3530
      %v3627 = vadd.f32 %v3269, %v3533
      %v3628 = vadd.f32 %v3270, %v3538
      %v3629 = vadd.f32 %v3271, %v3541
      %v3630 = vadd.f32 %v3272, %v3546
      %v3631 = vadd.f32 %v3273, %v3549
      %v3632 = vadd.f32 %v3274, %v3554
      %v3633 = vadd.f32 %v3275, %v3557
      %v3634 = vadd.f32 %v3276, %v3562
      %v3635 = vadd.f32 %v3277, %v3565
      %v3636 = vadd.f32 %v3278, %v3570
      %v3637 = vadd.f32 %v3279, %v3573
      %v3638 = vadd.f32 %v3280, %v3578
      %v3639 = vadd.f32 %v3281, %v3581
      %v3640 = vadd.f32 %v3282, %v3586
      %v3641 = vadd.f32 %v3283, %v3589
      %v3642 = vadd.f32 %v3284, %v3594
      %v3643 = vadd.f32 %v3285, %v3597
      %v3644 = vadd.f32 %v3286, %v3602
      %v3645 = vadd.f32 %v3287, %v3605
      %v3646 = vadd.f32 %v3288, %v3610
      %v3647 = vadd.f32 %v3289, %v3613
      %v3648 = vld [vmem:[%s1727] sm:$0xf]
      %v3649 = vld [vmem:[%s1727 + $0x4] sm:$0xf]
      %v3650 = vld [vmem:[%s1727 + $0x8] sm:$0x1]
      %v3651 = vld [vmem:[%s1727 + $0xc] sm:$0xf]
      %v3652 = vld [vmem:[%s1727 + $0x10] sm:$0xf]
      %v3653 = vld [vmem:[%s1727 + $0x14] sm:$0x1]
      %v3654 = vld [vmem:[%s1727 + $0x18] sm:$0xf]
      %v3655 = vld [vmem:[%s1727 + $0x1c] sm:$0xf]
      %v3656 = vld [vmem:[%s1727 + $0x20] sm:$0x1]
      %v3657 = vld [vmem:[%s1727 + $0x24] sm:$0xf]
      %v3658 = vld [vmem:[%s1727 + $0x28] sm:$0xf]
      %v3659 = vld [vmem:[%s1727 + $0x2c] sm:$0x1]
      %v3660 = vld [vmem:[%s1727 + $0x30] sm:$0xf]
      %v3661 = vld [vmem:[%s1727 + $0x34] sm:$0xf]
      %v3662 = vld [vmem:[%s1727 + $0x38] sm:$0x1]
      %v3663 = vld [vmem:[%s1727 + $0x3c] sm:$0xf]
      %v3664 = vld [vmem:[%s1727 + $0x40] sm:$0xf]
      %v3665 = vld [vmem:[%s1727 + $0x44] sm:$0x1]
      %v3666 = vld [vmem:[%s1727 + $0x48] sm:$0xf]
      %v3667 = vld [vmem:[%s1727 + $0x4c] sm:$0xf]
      %v3668 = vld [vmem:[%s1727 + $0x50] sm:$0x1]
      %v3669 = vld [vmem:[%s1727 + $0x54] sm:$0xf]
      %v3670 = vld [vmem:[%s1727 + $0x58] sm:$0xf]
      %v3671 = vld [vmem:[%s1727 + $0x5c] sm:$0x1]
      %v3672 = vld [vmem:[%s1727 + $0x60] sm:$0xf]
      %v3673 = vld [vmem:[%s1727 + $0x64] sm:$0xf]
      %v3674 = vld [vmem:[%s1727 + $0x68] sm:$0x1]
      %v3675 = vld [vmem:[%s1727 + $0x6c] sm:$0xf]
      %v3676 = vld [vmem:[%s1727 + $0x70] sm:$0xf]
      %v3677 = vld [vmem:[%s1727 + $0x74] sm:$0x1]
      %v3678 = vld [vmem:[%s1727 + $0x78] sm:$0xf]
      %v3679 = vld [vmem:[%s1727 + $0x7c] sm:$0xf]
      %v3680 = vld [vmem:[%s1727 + $0x80] sm:$0x1]
      %v3681 = vld [vmem:[%s1727 + $0x84] sm:$0xf]
      %v3682 = vld [vmem:[%s1727 + $0x88] sm:$0xf]
      %v3683 = vld [vmem:[%s1727 + $0x8c] sm:$0x1]
      %v3684 = vld [vmem:[%s1727 + $0x90] sm:$0xf]
      %v3685 = vld [vmem:[%s1727 + $0x94] sm:$0xf]
      %v3686 = vld [vmem:[%s1727 + $0x98] sm:$0x1]
      %v3687 = vld [vmem:[%s1727 + $0x9c] sm:$0xf]
      %v3688 = vld [vmem:[%s1727 + $0xa0] sm:$0xf]
      %v3689 = vld [vmem:[%s1727 + $0xa4] sm:$0x1]
      %v3690 = vld [vmem:[%s1727 + $0xa8] sm:$0xf]
      %v3691 = vld [vmem:[%s1727 + $0xac] sm:$0xf]
      %v3692 = vld [vmem:[%s1727 + $0xb0] sm:$0x1]
      %v3693 = vld [vmem:[%s1727 + $0xb4] sm:$0xf]
      %v3694 = vld [vmem:[%s1727 + $0xb8] sm:$0xf]
      %v3695 = vld [vmem:[%s1727 + $0xbc] sm:$0x1]
      %v3697 = vshrl.u32 %v3648, 16
      %v3699 = vrot.slane %v3697, 4
      %v3700 = vshll.u32 %v3648, 16
      %v3702 = vrot.slane %v3700, 5
      %v3703 = vor.u32 %v3699, %v3702
      %v3704 = vrot.slane %v3703, 4
      %v3706 = vshll.u32 %v3649, 16
      %v3708 = vrot.slane %v3706, 5
      %v3709 = vsel %vm1894, %v3704, %v3708
      %v3710 = vshrl.u32 %v3649, 16
      %v3712 = vrot.slane %v3710, 4
      %v3713 = vor.u32 %v3712, %v3708
      %v3714 = vrot.slane %v3713, 4
      %v3716 = vshll.u32 %v3650, 16
      %v3718 = vrot.slane %v3716, 5
      %v3719 = vsel %vm1894, %v3714, %v3718
      %v3721 = vshrl.u32 %v3651, 16
      %v3723 = vrot.slane %v3721, 4
      %v3724 = vshll.u32 %v3651, 16
      %v3726 = vrot.slane %v3724, 5
      %v3727 = vor.u32 %v3723, %v3726
      %v3728 = vrot.slane %v3727, 4
      %v3730 = vshll.u32 %v3652, 16
      %v3732 = vrot.slane %v3730, 5
      %v3733 = vsel %vm1894, %v3728, %v3732
      %v3734 = vshrl.u32 %v3652, 16
      %v3736 = vrot.slane %v3734, 4
      %v3737 = vor.u32 %v3736, %v3732
      %v3738 = vrot.slane %v3737, 4
      %v3740 = vshll.u32 %v3653, 16
      %v3742 = vrot.slane %v3740, 5
      %v3743 = vsel %vm1894, %v3738, %v3742
      %v3745 = vshrl.u32 %v3654, 16
      %v3747 = vrot.slane %v3745, 4
      %v3748 = vshll.u32 %v3654, 16
      %v3750 = vrot.slane %v3748, 5
      %v3751 = vor.u32 %v3747, %v3750
      %v3752 = vrot.slane %v3751, 4
      %v3754 = vshll.u32 %v3655, 16
      %v3756 = vrot.slane %v3754, 5
      %v3757 = vsel %vm1894, %v3752, %v3756
      %v3758 = vshrl.u32 %v3655, 16
      %v3760 = vrot.slane %v3758, 4
      %v3761 = vor.u32 %v3760, %v3756
      %v3762 = vrot.slane %v3761, 4
      %v3764 = vshll.u32 %v3656, 16
      %v3766 = vrot.slane %v3764, 5
      %v3767 = vsel %vm1894, %v3762, %v3766
      %v3769 = vshrl.u32 %v3657, 16
      %v3771 = vrot.slane %v3769, 4
      %v3772 = vshll.u32 %v3657, 16
      %v3774 = vrot.slane %v3772, 5
      %v3775 = vor.u32 %v3771, %v3774
      %v3776 = vrot.slane %v3775, 4
      %v3778 = vshll.u32 %v3658, 16
      %v3780 = vrot.slane %v3778, 5
      %v3781 = vsel %vm1894, %v3776, %v3780
      %v3782 = vshrl.u32 %v3658, 16
      %v3784 = vrot.slane %v3782, 4
      %v3785 = vor.u32 %v3784, %v3780
      %v3786 = vrot.slane %v3785, 4
      %v3788 = vshll.u32 %v3659, 16
      %v3790 = vrot.slane %v3788, 5
      %v3791 = vsel %vm1894, %v3786, %v3790
      %v3793 = vshrl.u32 %v3660, 16
      %v3795 = vrot.slane %v3793, 4
      %v3796 = vshll.u32 %v3660, 16
      %v3798 = vrot.slane %v3796, 5
      %v3799 = vor.u32 %v3795, %v3798
      %v3800 = vrot.slane %v3799, 4
      %v3802 = vshll.u32 %v3661, 16
      %v3804 = vrot.slane %v3802, 5
      %v3805 = vsel %vm1894, %v3800, %v3804
      %v3806 = vshrl.u32 %v3661, 16
      %v3808 = vrot.slane %v3806, 4
      %v3809 = vor.u32 %v3808, %v3804
      %v3810 = vrot.slane %v3809, 4
      %v3812 = vshll.u32 %v3662, 16
      %v3814 = vrot.slane %v3812, 5
      %v3815 = vsel %vm1894, %v3810, %v3814
      %v3817 = vshrl.u32 %v3663, 16
      %v3819 = vrot.slane %v3817, 4
      %v3820 = vshll.u32 %v3663, 16
      %v3822 = vrot.slane %v3820, 5
      %v3823 = vor.u32 %v3819, %v3822
      %v3824 = vrot.slane %v3823, 4
      %v3826 = vshll.u32 %v3664, 16
      %v3828 = vrot.slane %v3826, 5
      %v3829 = vsel %vm1894, %v3824, %v3828
      %v3830 = vshrl.u32 %v3664, 16
      %v3832 = vrot.slane %v3830, 4
      %v3833 = vor.u32 %v3832, %v3828
      %v3834 = vrot.slane %v3833, 4
      %v3836 = vshll.u32 %v3665, 16
      %v3838 = vrot.slane %v3836, 5
      %v3839 = vsel %vm1894, %v3834, %v3838
      %v3841 = vshrl.u32 %v3666, 16
      %v3843 = vrot.slane %v3841, 4
      %v3844 = vshll.u32 %v3666, 16
      %v3846 = vrot.slane %v3844, 5
      %v3847 = vor.u32 %v3843, %v3846
      %v3848 = vrot.slane %v3847, 4
      %v3850 = vshll.u32 %v3667, 16
      %v3852 = vrot.slane %v3850, 5
      %v3853 = vsel %vm1894, %v3848, %v3852
      %v3854 = vshrl.u32 %v3667, 16
      %v3856 = vrot.slane %v3854, 4
      %v3857 = vor.u32 %v3856, %v3852
      %v3858 = vrot.slane %v3857, 4
      %v3860 = vshll.u32 %v3668, 16
      %v3862 = vrot.slane %v3860, 5
      %v3863 = vsel %vm1894, %v3858, %v3862
      %v3865 = vshrl.u32 %v3669, 16
      %v3867 = vrot.slane %v3865, 4
      %v3868 = vshll.u32 %v3669, 16
      %v3870 = vrot.slane %v3868, 5
      %v3871 = vor.u32 %v3867, %v3870
      %v3872 = vrot.slane %v3871, 4
      %v3874 = vshll.u32 %v3670, 16
      %v3876 = vrot.slane %v3874, 5
      %v3877 = vsel %vm1894, %v3872, %v3876
      %v3878 = vshrl.u32 %v3670, 16
      %v3880 = vrot.slane %v3878, 4
      %v3881 = vor.u32 %v3880, %v3876
      %v3882 = vrot.slane %v3881, 4
      %v3884 = vshll.u32 %v3671, 16
      %v3886 = vrot.slane %v3884, 5
      %v3887 = vsel %vm1894, %v3882, %v3886
      %v3889 = vshrl.u32 %v3672, 16
      %v3891 = vrot.slane %v3889, 4
      %v3892 = vshll.u32 %v3672, 16
      %v3894 = vrot.slane %v3892, 5
      %v3895 = vor.u32 %v3891, %v3894
      %v3896 = vrot.slane %v3895, 4
      %v3898 = vshll.u32 %v3673, 16
      %v3900 = vrot.slane %v3898, 5
      %v3901 = vsel %vm1894, %v3896, %v3900
      %v3902 = vshrl.u32 %v3673, 16
      %v3904 = vrot.slane %v3902, 4
      %v3905 = vor.u32 %v3904, %v3900
      %v3906 = vrot.slane %v3905, 4
      %v3908 = vshll.u32 %v3674, 16
      %v3910 = vrot.slane %v3908, 5
      %v3911 = vsel %vm1894, %v3906, %v3910
      %v3913 = vshrl.u32 %v3675, 16
      %v3915 = vrot.slane %v3913, 4
      %v3916 = vshll.u32 %v3675, 16
      %v3918 = vrot.slane %v3916, 5
      %v3919 = vor.u32 %v3915, %v3918
      %v3920 = vrot.slane %v3919, 4
      %v3922 = vshll.u32 %v3676, 16
      %v3924 = vrot.slane %v3922, 5
      %v3925 = vsel %vm1894, %v3920, %v3924
      %v3926 = vshrl.u32 %v3676, 16
      %v3928 = vrot.slane %v3926, 4
      %v3929 = vor.u32 %v3928, %v3924
      %v3930 = vrot.slane %v3929, 4
      %v3932 = vshll.u32 %v3677, 16
      %v3934 = vrot.slane %v3932, 5
      %v3935 = vsel %vm1894, %v3930, %v3934
      %v3937 = vshrl.u32 %v3678, 16
      %v3939 = vrot.slane %v3937, 4
      %v3940 = vshll.u32 %v3678, 16
      %v3942 = vrot.slane %v3940, 5
      %v3943 = vor.u32 %v3939, %v3942
      %v3944 = vrot.slane %v3943, 4
      %v3946 = vshll.u32 %v3679, 16
      %v3948 = vrot.slane %v3946, 5
      %v3949 = vsel %vm1894, %v3944, %v3948
      %v3950 = vshrl.u32 %v3679, 16
      %v3952 = vrot.slane %v3950, 4
      %v3953 = vor.u32 %v3952, %v3948
      %v3954 = vrot.slane %v3953, 4
      %v3956 = vshll.u32 %v3680, 16
      %v3958 = vrot.slane %v3956, 5
      %v3959 = vsel %vm1894, %v3954, %v3958
      %v3961 = vshrl.u32 %v3681, 16
      %v3963 = vrot.slane %v3961, 4
      %v3964 = vshll.u32 %v3681, 16
      %v3966 = vrot.slane %v3964, 5
      %v3967 = vor.u32 %v3963, %v3966
      %v3968 = vrot.slane %v3967, 4
      %v3970 = vshll.u32 %v3682, 16
      %v3972 = vrot.slane %v3970, 5
      %v3973 = vsel %vm1894, %v3968, %v3972
      %v3974 = vshrl.u32 %v3682, 16
      %v3976 = vrot.slane %v3974, 4
      %v3977 = vor.u32 %v3976, %v3972
      %v3978 = vrot.slane %v3977, 4
      %v3980 = vshll.u32 %v3683, 16
      %v3982 = vrot.slane %v3980, 5
      %v3983 = vsel %vm1894, %v3978, %v3982
      %v3985 = vshrl.u32 %v3684, 16
      %v3987 = vrot.slane %v3985, 4
      %v3988 = vshll.u32 %v3684, 16
      %v3990 = vrot.slane %v3988, 5
      %v3991 = vor.u32 %v3987, %v3990
      %v3992 = vrot.slane %v3991, 4
      %v3994 = vshll.u32 %v3685, 16
      %v3996 = vrot.slane %v3994, 5
      %v3997 = vsel %vm1894, %v3992, %v3996
      %v3998 = vshrl.u32 %v3685, 16
      %v4000 = vrot.slane %v3998, 4
      %v4001 = vor.u32 %v4000, %v3996
      %v4002 = vrot.slane %v4001, 4
      %v4004 = vshll.u32 %v3686, 16
      %v4006 = vrot.slane %v4004, 5
      %v4007 = vsel %vm1894, %v4002, %v4006
      %v4009 = vshrl.u32 %v3687, 16
      %v4011 = vrot.slane %v4009, 4
      %v4012 = vshll.u32 %v3687, 16
      %v4014 = vrot.slane %v4012, 5
      %v4015 = vor.u32 %v4011, %v4014
      %v4016 = vrot.slane %v4015, 4
      %v4018 = vshll.u32 %v3688, 16
      %v4020 = vrot.slane %v4018, 5
      %v4021 = vsel %vm1894, %v4016, %v4020
      %v4022 = vshrl.u32 %v3688, 16
      %v4024 = vrot.slane %v4022, 4
      %v4025 = vor.u32 %v4024, %v4020
      %v4026 = vrot.slane %v4025, 4
      %v4028 = vshll.u32 %v3689, 16
      %v4030 = vrot.slane %v4028, 5
      %v4031 = vsel %vm1894, %v4026, %v4030
      %v4033 = vshrl.u32 %v3690, 16
      %v4035 = vrot.slane %v4033, 4
      %v4036 = vshll.u32 %v3690, 16
      %v4038 = vrot.slane %v4036, 5
      %v4039 = vor.u32 %v4035, %v4038
      %v4040 = vrot.slane %v4039, 4
      %v4042 = vshll.u32 %v3691, 16
      %v4044 = vrot.slane %v4042, 5
      %v4045 = vsel %vm1894, %v4040, %v4044
      %v4046 = vshrl.u32 %v3691, 16
      %v4048 = vrot.slane %v4046, 4
      %v4049 = vor.u32 %v4048, %v4044
      %v4050 = vrot.slane %v4049, 4
      %v4052 = vshll.u32 %v3692, 16
      %v4054 = vrot.slane %v4052, 5
      %v4055 = vsel %vm1894, %v4050, %v4054
      %v4057 = vshrl.u32 %v3693, 16
      %v4059 = vrot.slane %v4057, 4
      %v4060 = vshll.u32 %v3693, 16
      %v4062 = vrot.slane %v4060, 5
      %v4063 = vor.u32 %v4059, %v4062
      %v4064 = vrot.slane %v4063, 4
      %v4066 = vshll.u32 %v3694, 16
      %v4068 = vrot.slane %v4066, 5
      %v4069 = vsel %vm1894, %v4064, %v4068
      %v4070 = vshrl.u32 %v3694, 16
      %v4072 = vrot.slane %v4070, 4
      %v4073 = vor.u32 %v4072, %v4068
      %v4074 = vrot.slane %v4073, 4
      %v4076 = vshll.u32 %v3695, 16
      %v4078 = vrot.slane %v4076, 5
      %v4079 = vsel %vm1894, %v4074, %v4078
      %s4080 = scalar_lea.vmem %s6, 8
      %v4081 = vld [vmem:[%s4080] sm:$0x3]
      %v4082 = vunpack.c.l.b16 %v3709
      %v4083 = vunpack.c.l.b16 %v3719
      %v4084 = vunpack.c.l.b16 %v3733
      %v4085 = vunpack.c.l.b16 %v3743
      %v4086 = vunpack.c.l.b16 %v3757
      %v4087 = vunpack.c.l.b16 %v3767
      %v4088 = vunpack.c.l.b16 %v3781
      %v4089 = vunpack.c.l.b16 %v3791
      %v4090 = vunpack.c.l.b16 %v3805
      %v4091 = vunpack.c.l.b16 %v3815
      %v4092 = vunpack.c.l.b16 %v3829
      %v4093 = vunpack.c.l.b16 %v3839
      %v4094 = vunpack.c.l.b16 %v3853
      %v4095 = vunpack.c.l.b16 %v3863
      %v4096 = vunpack.c.l.b16 %v3877
      %v4097 = vunpack.c.l.b16 %v3887
      %v4098 = vunpack.c.l.b16 %v3901
      %v4099 = vunpack.c.l.b16 %v3911
      %v4100 = vunpack.c.l.b16 %v3925
      %v4101 = vunpack.c.l.b16 %v3935
      %v4102 = vunpack.c.l.b16 %v3949
      %v4103 = vunpack.c.l.b16 %v3959
      %v4104 = vunpack.c.l.b16 %v3973
      %v4105 = vunpack.c.l.b16 %v3983
      %v4106 = vunpack.c.l.b16 %v3997
      %v4107 = vunpack.c.l.b16 %v4007
      %v4108 = vunpack.c.l.b16 %v4021
      %v4109 = vunpack.c.l.b16 %v4031
      %v4110 = vunpack.c.l.b16 %v4045
      %v4111 = vunpack.c.l.b16 %v4055
      %v4112 = vunpack.c.l.b16 %v4069
      %v4113 = vunpack.c.l.b16 %v4079
      %v4114 = vpack.c.b16 %v4083, %v4082
      %v4115 = vpack.c.b16 %v4085, %v4084
      %v4116 = vpack.c.b16 %v4087, %v4086
      %v4117 = vpack.c.b16 %v4089, %v4088
      %v4118 = vpack.c.b16 %v4091, %v4090
      %v4119 = vpack.c.b16 %v4093, %v4092
      %v4120 = vpack.c.b16 %v4095, %v4094
      %v4121 = vpack.c.b16 %v4097, %v4096
      %v4122 = vpack.c.b16 %v4099, %v4098
      %v4123 = vpack.c.b16 %v4101, %v4100
      %v4124 = vpack.c.b16 %v4103, %v4102
      %v4125 = vpack.c.b16 %v4105, %v4104
      %v4126 = vpack.c.b16 %v4107, %v4106
      %v4127 = vpack.c.b16 %v4109, %v4108
      %v4128 = vpack.c.b16 %v4111, %v4110
      %v4129 = vpack.c.b16 %v4113, %v4112
      %v4131 = vsel %vm721, %v4114, 0
      %v4134 = vsel %vm721, %v4115, 0
      %v4137 = vsel %vm721, %v4116, 0
      %v4140 = vsel %vm721, %v4117, 0
      %v4143 = vsel %vm721, %v4118, 0
      %v4146 = vsel %vm721, %v4119, 0
      %v4149 = vsel %vm721, %v4120, 0
      %v4152 = vsel %vm721, %v4121, 0
      %v4155 = vsel %vm721, %v4122, 0
      %v4158 = vsel %vm721, %v4123, 0
      %v4161 = vsel %vm721, %v4124, 0
      %v4164 = vsel %vm721, %v4125, 0
      %v4167 = vsel %vm721, %v4126, 0
      %v4170 = vsel %vm721, %v4127, 0
      %v4173 = vsel %vm721, %v4128, 0
      %v4176 = vsel %vm721, %v4129, 0
      %v4179 = vsel %vm1052, %v4081, 0
      %4181 = vmatprep.subr.bf16.mxu0 0
      %4182 = vmatpush1.bf16.msra.mxu0 %v4179
      %4183 = vmatprep.subr.bf16.mxu0 0
      %4184 = vmatpush1.bf16.msra.mxu0 0
      %4185 = vmatprep.subr.bf16.mxu0 0
      %4186 = vmatpush1.bf16.msra.mxu0 0
      %4187 = vmatprep.subr.bf16.mxu0 0
      %4188 = vmatpush1.bf16.msra.mxu0 0
      %4189 = vmatprep.subr.bf16.mxu0 0
      %4190 = vmatpush1.bf16.msra.mxu0 0
      %4191 = vmatprep.subr.bf16.mxu0 0
      %4192 = vmatpush1.bf16.msra.mxu0 0
      %4193 = vmatprep.subr.bf16.mxu0 0
      %4194 = vmatpush1.bf16.msra.mxu0 0
      %4195 = vmatprep.subr.bf16.mxu0 0
      %4196 = vmatpush1.bf16.msra.mxu0 0
      %4197 = vmatprep.subr.bf16.mxu0 0
      %4198 = vmatpush1.bf16.msra.mxu0 0
      %4199 = vmatprep.subr.bf16.mxu0 0
      %4200 = vmatpush1.bf16.msra.mxu0 0
      %4201 = vmatprep.subr.bf16.mxu0 0
      %4202 = vmatpush1.bf16.msra.mxu0 0
      %4203 = vmatprep.subr.bf16.mxu0 0
      %4204 = vmatpush1.bf16.msra.mxu0 0
      %4205 = vmatprep.subr.bf16.mxu0 0
      %4206 = vmatpush1.bf16.msra.mxu0 0
      %4207 = vmatprep.subr.bf16.mxu0 0
      %4208 = vmatpush1.bf16.msra.mxu0 0
      %4209 = vmatprep.subr.bf16.mxu0 0
      %4210 = vmatpush1.bf16.msra.mxu0 0
      %4211 = vmatprep.subr.bf16.mxu0 0
      %4212 = vmatpush1.bf16.msra.mxu0 0
      %4213 = vmatprep.mubr.bf16.mxu0 0
      %4214 = vmatmul.mubr.bf16.gmra.mrb[0].mxu0 %v4131
      %v4215 = vpop.f32.mrb[0].mxu0
      %v4216 = vadd.f32 0.0, %v4215
      %v4217 = vpop.f32.mrb[0].mxu0
      %v4218 = vpop.f32.mrb[0].mxu0
      %v4219 = vadd.f32 0.0, %v4218
      %v4220 = vpop.f32.mrb[0].mxu0
      %4221 = vmatprep.mubr.bf16.mxu0 0
      %4222 = vmatmul.mubr.bf16.gmra.mrb[0].mxu0 %v4134
      %v4223 = vpop.f32.mrb[0].mxu0
      %v4224 = vadd.f32 0.0, %v4223
      %v4225 = vpop.f32.mrb[0].mxu0
      %v4226 = vpop.f32.mrb[0].mxu0
      %v4227 = vadd.f32 0.0, %v4226
      %v4228 = vpop.f32.mrb[0].mxu0
      %4229 = vmatprep.mubr.bf16.mxu0 0
      %4230 = vmatmul.mubr.bf16.gmra.mrb[0].mxu0 %v4137
      %v4231 = vpop.f32.mrb[0].mxu0
      %v4232 = vadd.f32 0.0, %v4231
      %v4233 = vpop.f32.mrb[0].mxu0
      %v4234 = vpop.f32.mrb[0].mxu0
      %v4235 = vadd.f32 0.0, %v4234
      %v4236 = vpop.f32.mrb[0].mxu0
      %4237 = vmatprep.mubr.bf16.mxu0 0
      %4238 = vmatmul.mubr.bf16.gmra.mrb[0].mxu0 %v4140
      %v4239 = vpop.f32.mrb[0].mxu0
      %v4240 = vadd.f32 0.0, %v4239
      %v4241 = vpop.f32.mrb[0].mxu0
      %v4242 = vpop.f32.mrb[0].mxu0
      %v4243 = vadd.f32 0.0, %v4242
      %v4244 = vpop.f32.mrb[0].mxu0
      %4245 = vmatprep.mubr.bf16.mxu0 0
      %4246 = vmatmul.mubr.bf16.gmra.mrb[0].mxu0 %v4143
      %v4247 = vpop.f32.mrb[0].mxu0
      %v4248 = vadd.f32 0.0, %v4247
      %v4249 = vpop.f32.mrb[0].mxu0
      %v4250 = vpop.f32.mrb[0].mxu0
      %v4251 = vadd.f32 0.0, %v4250
      %v4252 = vpop.f32.mrb[0].mxu0
      %4253 = vmatprep.mubr.bf16.mxu0 0
      %4254 = vmatmul.mubr.bf16.gmra.mrb[0].mxu0 %v4146
      %v4255 = vpop.f32.mrb[0].mxu0
      %v4256 = vadd.f32 0.0, %v4255
      %v4257 = vpop.f32.mrb[0].mxu0
      %v4258 = vpop.f32.mrb[0].mxu0
      %v4259 = vadd.f32 0.0, %v4258
      %v4260 = vpop.f32.mrb[0].mxu0
      %4261 = vmatprep.mubr.bf16.mxu0 0
      %4262 = vmatmul.mubr.bf16.gmra.mrb[0].mxu0 %v4149
      %v4263 = vpop.f32.mrb[0].mxu0
      %v4264 = vadd.f32 0.0, %v4263
      %v4265 = vpop.f32.mrb[0].mxu0
      %v4266 = vpop.f32.mrb[0].mxu0
      %v4267 = vadd.f32 0.0, %v4266
      %v4268 = vpop.f32.mrb[0].mxu0
      %4269 = vmatprep.mubr.bf16.mxu0 0
      %4270 = vmatmul.mubr.bf16.gmra.mrb[0].mxu0 %v4152
      %v4271 = vpop.f32.mrb[0].mxu0
      %v4272 = vadd.f32 0.0, %v4271
      %v4273 = vpop.f32.mrb[0].mxu0
      %v4274 = vpop.f32.mrb[0].mxu0
      %v4275 = vadd.f32 0.0, %v4274
      %v4276 = vpop.f32.mrb[0].mxu0
      %4277 = vmatprep.mubr.bf16.mxu0 0
      %4278 = vmatmul.mubr.bf16.gmra.mrb[0].mxu0 %v4155
      %v4279 = vpop.f32.mrb[0].mxu0
      %v4280 = vadd.f32 0.0, %v4279
      %v4281 = vpop.f32.mrb[0].mxu0
      %v4282 = vpop.f32.mrb[0].mxu0
      %v4283 = vadd.f32 0.0, %v4282
      %v4284 = vpop.f32.mrb[0].mxu0
      %4285 = vmatprep.mubr.bf16.mxu0 0
      %4286 = vmatmul.mubr.bf16.gmra.mrb[0].mxu0 %v4158
      %v4287 = vpop.f32.mrb[0].mxu0
      %v4288 = vadd.f32 0.0, %v4287
      %v4289 = vpop.f32.mrb[0].mxu0
      %v4290 = vpop.f32.mrb[0].mxu0
      %v4291 = vadd.f32 0.0, %v4290
      %v4292 = vpop.f32.mrb[0].mxu0
      %4293 = vmatprep.mubr.bf16.mxu0 0
      %4294 = vmatmul.mubr.bf16.gmra.mrb[0].mxu0 %v4161
      %v4295 = vpop.f32.mrb[0].mxu0
      %v4296 = vadd.f32 0.0, %v4295
      %v4297 = vpop.f32.mrb[0].mxu0
      %v4298 = vpop.f32.mrb[0].mxu0
      %v4299 = vadd.f32 0.0, %v4298
      %v4300 = vpop.f32.mrb[0].mxu0
      %4301 = vmatprep.mubr.bf16.mxu0 0
      %4302 = vmatmul.mubr.bf16.gmra.mrb[0].mxu0 %v4164
      %v4303 = vpop.f32.mrb[0].mxu0
      %v4304 = vadd.f32 0.0, %v4303
      %v4305 = vpop.f32.mrb[0].mxu0
      %v4306 = vpop.f32.mrb[0].mxu0
      %v4307 = vadd.f32 0.0, %v4306
      %v4308 = vpop.f32.mrb[0].mxu0
      %4309 = vmatprep.mubr.bf16.mxu0 0
      %4310 = vmatmul.mubr.bf16.gmra.mrb[0].mxu0 %v4167
      %v4311 = vpop.f32.mrb[0].mxu0
      %v4312 = vadd.f32 0.0, %v4311
      %v4313 = vpop.f32.mrb[0].mxu0
      %v4314 = vpop.f32.mrb[0].mxu0
      %v4315 = vadd.f32 0.0, %v4314
      %v4316 = vpop.f32.mrb[0].mxu0
      %4317 = vmatprep.mubr.bf16.mxu0 0
      %4318 = vmatmul.mubr.bf16.gmra.mrb[0].mxu0 %v4170
      %v4319 = vpop.f32.mrb[0].mxu0
      %v4320 = vadd.f32 0.0, %v4319
      %v4321 = vpop.f32.mrb[0].mxu0
      %v4322 = vpop.f32.mrb[0].mxu0
      %v4323 = vadd.f32 0.0, %v4322
      %v4324 = vpop.f32.mrb[0].mxu0
      %4325 = vmatprep.mubr.bf16.mxu0 0
      %4326 = vmatmul.mubr.bf16.gmra.mrb[0].mxu0 %v4173
      %v4327 = vpop.f32.mrb[0].mxu0
      %v4328 = vadd.f32 0.0, %v4327
      %v4329 = vpop.f32.mrb[0].mxu0
      %v4330 = vpop.f32.mrb[0].mxu0
      %v4331 = vadd.f32 0.0, %v4330
      %v4332 = vpop.f32.mrb[0].mxu0
      %4333 = vmatprep.mubr.bf16.mxu0 0
      %4334 = vmatmul.mubr.bf16.gmra.mrb[0].mxu0 %v4176
      %v4335 = vpop.f32.mrb[0].mxu0
      %v4336 = vadd.f32 0.0, %v4335
      %v4337 = vpop.f32.mrb[0].mxu0
      %v4338 = vpop.f32.mrb[0].mxu0
      %v4339 = vadd.f32 0.0, %v4338
      %v4340 = vpop.f32.mrb[0].mxu0
      %4341 = vdwg.mxu0
      %v4342 = vadd.f32 %v3616, %v4216
      %v4343 = vadd.f32 %v3617, %v4219
      %v4344 = vadd.f32 %v3618, %v4224
      %v4345 = vadd.f32 %v3619, %v4227
      %v4346 = vadd.f32 %v3620, %v4232
      %v4347 = vadd.f32 %v3621, %v4235
      %v4348 = vadd.f32 %v3622, %v4240
      %v4349 = vadd.f32 %v3623, %v4243
      %v4350 = vadd.f32 %v3624, %v4248
      %v4351 = vadd.f32 %v3625, %v4251
      %v4352 = vadd.f32 %v3626, %v4256
      %v4353 = vadd.f32 %v3627, %v4259
      %v4354 = vadd.f32 %v3628, %v4264
      %v4355 = vadd.f32 %v3629, %v4267
      %v4356 = vadd.f32 %v3630, %v4272
      %v4357 = vadd.f32 %v3631, %v4275
      %v4358 = vadd.f32 %v3632, %v4280
      %v4359 = vadd.f32 %v3633, %v4283
      %v4360 = vadd.f32 %v3634, %v4288
      %v4361 = vadd.f32 %v3635, %v4291
      %v4362 = vadd.f32 %v3636, %v4296
      %v4363 = vadd.f32 %v3637, %v4299
      %v4364 = vadd.f32 %v3638, %v4304
      %v4365 = vadd.f32 %v3639, %v4307
      %v4366 = vadd.f32 %v3640, %v4312
      %v4367 = vadd.f32 %v3641, %v4315
      %v4368 = vadd.f32 %v3642, %v4320
      %v4369 = vadd.f32 %v3643, %v4323
      %v4370 = vadd.f32 %v3644, %v4328
      %v4371 = vadd.f32 %v3645, %v4331
      %v4372 = vadd.f32 %v3646, %v4336
      %v4373 = vadd.f32 %v3647, %v4339
      %v4374 = vld [vmem:[%s1727] sm:$0xe]
      %v4375 = vld [vmem:[%s1727 + $0xc] sm:$0xe]
      %v4376 = vld [vmem:[%s1727 + $0x18] sm:$0xe]
      %v4377 = vld [vmem:[%s1727 + $0x24] sm:$0xe]
      %v4378 = vld [vmem:[%s1727 + $0x30] sm:$0xe]
      %v4379 = vld [vmem:[%s1727 + $0x3c] sm:$0xe]
      %v4380 = vld [vmem:[%s1727 + $0x48] sm:$0xe]
      %v4381 = vld [vmem:[%s1727 + $0x54] sm:$0xe]
      %v4382 = vld [vmem:[%s1727 + $0x60] sm:$0xe]
      %v4383 = vld [vmem:[%s1727 + $0x6c] sm:$0xe]
      %v4384 = vld [vmem:[%s1727 + $0x78] sm:$0xe]
      %v4385 = vld [vmem:[%s1727 + $0x84] sm:$0xe]
      %v4386 = vld [vmem:[%s1727 + $0x90] sm:$0xe]
      %v4387 = vld [vmem:[%s1727 + $0x9c] sm:$0xe]
      %v4388 = vld [vmem:[%s1727 + $0xa8] sm:$0xe]
      %v4389 = vld [vmem:[%s1727 + $0xb4] sm:$0xe]
      %v4438 = vrot.slane %v4374, 5
      %v4439 = vrot.slane %v4438, 4
      %v4440 = vrot.slane %v3649, 5
      %v4441 = vsel %vm2883, %v4439, %v4440
      %v4442 = vrot.slane %v4440, 4
      %v4443 = vrot.slane %v3650, 5
      %v4444 = vsel %vm2883, %v4442, %v4443
      %v4445 = vrot.slane %v4375, 5
      %v4446 = vrot.slane %v4445, 4
      %v4447 = vrot.slane %v3652, 5
      %v4448 = vsel %vm2883, %v4446, %v4447
      %v4449 = vrot.slane %v4447, 4
      %v4450 = vrot.slane %v3653, 5
      %v4451 = vsel %vm2883, %v4449, %v4450
      %v4452 = vrot.slane %v4376, 5
      %v4453 = vrot.slane %v4452, 4
      %v4454 = vrot.slane %v3655, 5
      %v4455 = vsel %vm2883, %v4453, %v4454
      %v4456 = vrot.slane %v4454, 4
      %v4457 = vrot.slane %v3656, 5
      %v4458 = vsel %vm2883, %v4456, %v4457
      %v4459 = vrot.slane %v4377, 5
      %v4460 = vrot.slane %v4459, 4
      %v4461 = vrot.slane %v3658, 5
      %v4462 = vsel %vm2883, %v4460, %v4461
      %v4463 = vrot.slane %v4461, 4
      %v4464 = vrot.slane %v3659, 5
      %v4465 = vsel %vm2883, %v4463, %v4464
      %v4466 = vrot.slane %v4378, 5
      %v4467 = vrot.slane %v4466, 4
      %v4468 = vrot.slane %v3661, 5
      %v4469 = vsel %vm2883, %v4467, %v4468
      %v4470 = vrot.slane %v4468, 4
      %v4471 = vrot.slane %v3662, 5
      %v4472 = vsel %vm2883, %v4470, %v4471
      %v4473 = vrot.slane %v4379, 5
      %v4474 = vrot.slane %v4473, 4
      %v4475 = vrot.slane %v3664, 5
      %v4476 = vsel %vm2883, %v4474, %v4475
      %v4477 = vrot.slane %v4475, 4
      %v4478 = vrot.slane %v3665, 5
      %v4479 = vsel %vm2883, %v4477, %v4478
      %v4480 = vrot.slane %v4380, 5
      %v4481 = vrot.slane %v4480, 4
      %v4482 = vrot.slane %v3667, 5
      %v4483 = vsel %vm2883, %v4481, %v4482
      %v4484 = vrot.slane %v4482, 4
      %v4485 = vrot.slane %v3668, 5
      %v4486 = vsel %vm2883, %v4484, %v4485
      %v4487 = vrot.slane %v4381, 5
      %v4488 = vrot.slane %v4487, 4
      %v4489 = vrot.slane %v3670, 5
      %v4490 = vsel %vm2883, %v4488, %v4489
      %v4491 = vrot.slane %v4489, 4
      %v4492 = vrot.slane %v3671, 5
      %v4493 = vsel %vm2883, %v4491, %v4492
      %v4494 = vrot.slane %v4382, 5
      %v4495 = vrot.slane %v4494, 4
      %v4496 = vrot.slane %v3673, 5
      %v4497 = vsel %vm2883, %v4495, %v4496
      %v4498 = vrot.slane %v4496, 4
      %v4499 = vrot.slane %v3674, 5
      %v4500 = vsel %vm2883, %v4498, %v4499
      %v4501 = vrot.slane %v4383, 5
      %v4502 = vrot.slane %v4501, 4
      %v4503 = vrot.slane %v3676, 5
      %v4504 = vsel %vm2883, %v4502, %v4503
      %v4505 = vrot.slane %v4503, 4
      %v4506 = vrot.slane %v3677, 5
      %v4507 = vsel %vm2883, %v4505, %v4506
      %v4508 = vrot.slane %v4384, 5
      %v4509 = vrot.slane %v4508, 4
      %v4510 = vrot.slane %v3679, 5
      %v4511 = vsel %vm2883, %v4509, %v4510
      %v4512 = vrot.slane %v4510, 4
      %v4513 = vrot.slane %v3680, 5
      %v4514 = vsel %vm2883, %v4512, %v4513
      %v4515 = vrot.slane %v4385, 5
      %v4516 = vrot.slane %v4515, 4
      %v4517 = vrot.slane %v3682, 5
      %v4518 = vsel %vm2883, %v4516, %v4517
      %v4519 = vrot.slane %v4517, 4
      %v4520 = vrot.slane %v3683, 5
      %v4521 = vsel %vm2883, %v4519, %v4520
      %v4522 = vrot.slane %v4386, 5
      %v4523 = vrot.slane %v4522, 4
      %v4524 = vrot.slane %v3685, 5
      %v4525 = vsel %vm2883, %v4523, %v4524
      %v4526 = vrot.slane %v4524, 4
      %v4527 = vrot.slane %v3686, 5
      %v4528 = vsel %vm2883, %v4526, %v4527
      %v4529 = vrot.slane %v4387, 5
      %v4530 = vrot.slane %v4529, 4
      %v4531 = vrot.slane %v3688, 5
      %v4532 = vsel %vm2883, %v4530, %v4531
      %v4533 = vrot.slane %v4531, 4
      %v4534 = vrot.slane %v3689, 5
      %v4535 = vsel %vm2883, %v4533, %v4534
      %v4536 = vrot.slane %v4388, 5
      %v4537 = vrot.slane %v4536, 4
      %v4538 = vrot.slane %v3691, 5
      %v4539 = vsel %vm2883, %v4537, %v4538
      %v4540 = vrot.slane %v4538, 4
      %v4541 = vrot.slane %v3692, 5
      %v4542 = vsel %vm2883, %v4540, %v4541
      %v4543 = vrot.slane %v4389, 5
      %v4544 = vrot.slane %v4543, 4
      %v4545 = vrot.slane %v3694, 5
      %v4546 = vsel %vm2883, %v4544, %v4545
      %v4547 = vrot.slane %v4545, 4
      %v4548 = vrot.slane %v3695, 5
      %v4549 = vsel %vm2883, %v4547, %v4548
      %s4550 = scalar_lea.vmem %s6, 10
      %v4551 = vld [vmem:[%s4550] sm:$0x3]
      %v4552 = vunpack.c.l.b16 %v4441
      %v4553 = vunpack.c.l.b16 %v4444
      %v4554 = vunpack.c.l.b16 %v4448
      %v4555 = vunpack.c.l.b16 %v4451
      %v4556 = vunpack.c.l.b16 %v4455
      %v4557 = vunpack.c.l.b16 %v4458
      %v4558 = vunpack.c.l.b16 %v4462
      %v4559 = vunpack.c.l.b16 %v4465
      %v4560 = vunpack.c.l.b16 %v4469
      %v4561 = vunpack.c.l.b16 %v4472
      %v4562 = vunpack.c.l.b16 %v4476
      %v4563 = vunpack.c.l.b16 %v4479
      %v4564 = vunpack.c.l.b16 %v4483
      %v4565 = vunpack.c.l.b16 %v4486
      %v4566 = vunpack.c.l.b16 %v4490
      %v4567 = vunpack.c.l.b16 %v4493
      %v4568 = vunpack.c.l.b16 %v4497
      %v4569 = vunpack.c.l.b16 %v4500
      %v4570 = vunpack.c.l.b16 %v4504
      %v4571 = vunpack.c.l.b16 %v4507
      %v4572 = vunpack.c.l.b16 %v4511
      %v4573 = vunpack.c.l.b16 %v4514
      %v4574 = vunpack.c.l.b16 %v4518
      %v4575 = vunpack.c.l.b16 %v4521
      %v4576 = vunpack.c.l.b16 %v4525
      %v4577 = vunpack.c.l.b16 %v4528
      %v4578 = vunpack.c.l.b16 %v4532
      %v4579 = vunpack.c.l.b16 %v4535
      %v4580 = vunpack.c.l.b16 %v4539
      %v4581 = vunpack.c.l.b16 %v4542
      %v4582 = vunpack.c.l.b16 %v4546
      %v4583 = vunpack.c.l.b16 %v4549
      %v4584 = vpack.c.b16 %v4553, %v4552
      %v4585 = vpack.c.b16 %v4555, %v4554
      %v4586 = vpack.c.b16 %v4557, %v4556
      %v4587 = vpack.c.b16 %v4559, %v4558
      %v4588 = vpack.c.b16 %v4561, %v4560
      %v4589 = vpack.c.b16 %v4563, %v4562
      %v4590 = vpack.c.b16 %v4565, %v4564
      %v4591 = vpack.c.b16 %v4567, %v4566
      %v4592 = vpack.c.b16 %v4569, %v4568
      %v4593 = vpack.c.b16 %v4571, %v4570
      %v4594 = vpack.c.b16 %v4573, %v4572
      %v4595 = vpack.c.b16 %v4575, %v4574
      %v4596 = vpack.c.b16 %v4577, %v4576
      %v4597 = vpack.c.b16 %v4579, %v4578
      %v4598 = vpack.c.b16 %v4581, %v4580
      %v4599 = vpack.c.b16 %v4583, %v4582
      %v4601 = vsel %vm721, %v4584, 0
      %v4604 = vsel %vm721, %v4585, 0
      %v4607 = vsel %vm721, %v4586, 0
      %v4610 = vsel %vm721, %v4587, 0
      %v4613 = vsel %vm721, %v4588, 0
      %v4616 = vsel %vm721, %v4589, 0
      %v4619 = vsel %vm721, %v4590, 0
      %v4622 = vsel %vm721, %v4591, 0
      %v4625 = vsel %vm721, %v4592, 0
      %v4628 = vsel %vm721, %v4593, 0
      %v4631 = vsel %vm721, %v4594, 0
      %v4634 = vsel %vm721, %v4595, 0
      %v4637 = vsel %vm721, %v4596, 0
      %v4640 = vsel %vm721, %v4597, 0
      %v4643 = vsel %vm721, %v4598, 0
      %v4646 = vsel %vm721, %v4599, 0
      %v4649 = vsel %vm1052, %v4551, 0
      %4651 = vmatprep.subr.bf16.mxu0 0
      %4652 = vmatpush1.bf16.msra.mxu0 %v4649
      %4653 = vmatprep.subr.bf16.mxu0 0
      %4654 = vmatpush1.bf16.msra.mxu0 0
      %4655 = vmatprep.subr.bf16.mxu0 0
      %4656 = vmatpush1.bf16.msra.mxu0 0
      %4657 = vmatprep.subr.bf16.mxu0 0
      %4658 = vmatpush1.bf16.msra.mxu0 0
      %4659 = vmatprep.subr.bf16.mxu0 0
      %4660 = vmatpush1.bf16.msra.mxu0 0
      %4661 = vmatprep.subr.bf16.mxu0 0
      %4662 = vmatpush1.bf16.msra.mxu0 0
      %4663 = vmatprep.subr.bf16.mxu0 0
      %4664 = vmatpush1.bf16.msra.mxu0 0
      %4665 = vmatprep.subr.bf16.mxu0 0
      %4666 = vmatpush1.bf16.msra.mxu0 0
      %4667 = vmatprep.subr.bf16.mxu0 0
      %4668 = vmatpush1.bf16.msra.mxu0 0
      %4669 = vmatprep.subr.bf16.mxu0 0
      %4670 = vmatpush1.bf16.msra.mxu0 0
      %4671 = vmatprep.subr.bf16.mxu0 0
      %4672 = vmatpush1.bf16.msra.mxu0 0
      %4673 = vmatprep.subr.bf16.mxu0 0
      %4674 = vmatpush1.bf16.msra.mxu0 0
      %4675 = vmatprep.subr.bf16.mxu0 0
      %4676 = vmatpush1.bf16.msra.mxu0 0
      %4677 = vmatprep.subr.bf16.mxu0 0
      %4678 = vmatpush1.bf16.msra.mxu0 0
      %4679 = vmatprep.subr.bf16.mxu0 0
      %4680 = vmatpush1.bf16.msra.mxu0 0
      %4681 = vmatprep.subr.bf16.mxu0 0
      %4682 = vmatpush1.bf16.msra.mxu0 0
      %4683 = vmatprep.mubr.bf16.mxu0 0
      %4684 = vmatmul.mubr.bf16.gmra.mrb[0].mxu0 %v4601
      %v4685 = vpop.f32.mrb[0].mxu0
      %v4686 = vadd.f32 0.0, %v4685
      %v4687 = vpop.f32.mrb[0].mxu0
      %v4688 = vpop.f32.mrb[0].mxu0
      %v4689 = vadd.f32 0.0, %v4688
      %v4690 = vpop.f32.mrb[0].mxu0
      %4691 = vmatprep.mubr.bf16.mxu0 0
      %4692 = vmatmul.mubr.bf16.gmra.mrb[0].mxu0 %v4604
      %v4693 = vpop.f32.mrb[0].mxu0
      %v4694 = vadd.f32 0.0, %v4693
      %v4695 = vpop.f32.mrb[0].mxu0
      %v4696 = vpop.f32.mrb[0].mxu0
      %v4697 = vadd.f32 0.0, %v4696
      %v4698 = vpop.f32.mrb[0].mxu0
      %4699 = vmatprep.mubr.bf16.mxu0 0
      %4700 = vmatmul.mubr.bf16.gmra.mrb[0].mxu0 %v4607
      %v4701 = vpop.f32.mrb[0].mxu0
      %v4702 = vadd.f32 0.0, %v4701
      %v4703 = vpop.f32.mrb[0].mxu0
      %v4704 = vpop.f32.mrb[0].mxu0
      %v4705 = vadd.f32 0.0, %v4704
      %v4706 = vpop.f32.mrb[0].mxu0
      %4707 = vmatprep.mubr.bf16.mxu0 0
      %4708 = vmatmul.mubr.bf16.gmra.mrb[0].mxu0 %v4610
      %v4709 = vpop.f32.mrb[0].mxu0
      %v4710 = vadd.f32 0.0, %v4709
      %v4711 = vpop.f32.mrb[0].mxu0
      %v4712 = vpop.f32.mrb[0].mxu0
      %v4713 = vadd.f32 0.0, %v4712
      %v4714 = vpop.f32.mrb[0].mxu0
      %4715 = vmatprep.mubr.bf16.mxu0 0
      %4716 = vmatmul.mubr.bf16.gmra.mrb[0].mxu0 %v4613
      %v4717 = vpop.f32.mrb[0].mxu0
      %v4718 = vadd.f32 0.0, %v4717
      %v4719 = vpop.f32.mrb[0].mxu0
      %v4720 = vpop.f32.mrb[0].mxu0
      %v4721 = vadd.f32 0.0, %v4720
      %v4722 = vpop.f32.mrb[0].mxu0
      %4723 = vmatprep.mubr.bf16.mxu0 0
      %4724 = vmatmul.mubr.bf16.gmra.mrb[0].mxu0 %v4616
      %v4725 = vpop.f32.mrb[0].mxu0
      %v4726 = vadd.f32 0.0, %v4725
      %v4727 = vpop.f32.mrb[0].mxu0
      %v4728 = vpop.f32.mrb[0].mxu0
      %v4729 = vadd.f32 0.0, %v4728
      %v4730 = vpop.f32.mrb[0].mxu0
      %4731 = vmatprep.mubr.bf16.mxu0 0
      %4732 = vmatmul.mubr.bf16.gmra.mrb[0].mxu0 %v4619
      %v4733 = vpop.f32.mrb[0].mxu0
      %v4734 = vadd.f32 0.0, %v4733
      %v4735 = vpop.f32.mrb[0].mxu0
      %v4736 = vpop.f32.mrb[0].mxu0
      %v4737 = vadd.f32 0.0, %v4736
      %v4738 = vpop.f32.mrb[0].mxu0
      %4739 = vmatprep.mubr.bf16.mxu0 0
      %4740 = vmatmul.mubr.bf16.gmra.mrb[0].mxu0 %v4622
      %v4741 = vpop.f32.mrb[0].mxu0
      %v4742 = vadd.f32 0.0, %v4741
      %v4743 = vpop.f32.mrb[0].mxu0
      %v4744 = vpop.f32.mrb[0].mxu0
      %v4745 = vadd.f32 0.0, %v4744
      %v4746 = vpop.f32.mrb[0].mxu0
      %4747 = vmatprep.mubr.bf16.mxu0 0
      %4748 = vmatmul.mubr.bf16.gmra.mrb[0].mxu0 %v4625
      %v4749 = vpop.f32.mrb[0].mxu0
      %v4750 = vadd.f32 0.0, %v4749
      %v4751 = vpop.f32.mrb[0].mxu0
      %v4752 = vpop.f32.mrb[0].mxu0
      %v4753 = vadd.f32 0.0, %v4752
      %v4754 = vpop.f32.mrb[0].mxu0
      %4755 = vmatprep.mubr.bf16.mxu0 0
      %4756 = vmatmul.mubr.bf16.gmra.mrb[0].mxu0 %v4628
      %v4757 = vpop.f32.mrb[0].mxu0
      %v4758 = vadd.f32 0.0, %v4757
      %v4759 = vpop.f32.mrb[0].mxu0
      %v4760 = vpop.f32.mrb[0].mxu0
      %v4761 = vadd.f32 0.0, %v4760
      %v4762 = vpop.f32.mrb[0].mxu0
      %4763 = vmatprep.mubr.bf16.mxu0 0
      %4764 = vmatmul.mubr.bf16.gmra.mrb[0].mxu0 %v4631
      %v4765 = vpop.f32.mrb[0].mxu0
      %v4766 = vadd.f32 0.0, %v4765
      %v4767 = vpop.f32.mrb[0].mxu0
      %v4768 = vpop.f32.mrb[0].mxu0
      %v4769 = vadd.f32 0.0, %v4768
      %v4770 = vpop.f32.mrb[0].mxu0
      %4771 = vmatprep.mubr.bf16.mxu0 0
      %4772 = vmatmul.mubr.bf16.gmra.mrb[0].mxu0 %v4634
      %v4773 = vpop.f32.mrb[0].mxu0
      %v4774 = vadd.f32 0.0, %v4773
      %v4775 = vpop.f32.mrb[0].mxu0
      %v4776 = vpop.f32.mrb[0].mxu0
      %v4777 = vadd.f32 0.0, %v4776
      %v4778 = vpop.f32.mrb[0].mxu0
      %4779 = vmatprep.mubr.bf16.mxu0 0
      %4780 = vmatmul.mubr.bf16.gmra.mrb[0].mxu0 %v4637
      %v4781 = vpop.f32.mrb[0].mxu0
      %v4782 = vadd.f32 0.0, %v4781
      %v4783 = vpop.f32.mrb[0].mxu0
      %v4784 = vpop.f32.mrb[0].mxu0
      %v4785 = vadd.f32 0.0, %v4784
      %v4786 = vpop.f32.mrb[0].mxu0
      %4787 = vmatprep.mubr.bf16.mxu0 0
      %4788 = vmatmul.mubr.bf16.gmra.mrb[0].mxu0 %v4640
      %v4789 = vpop.f32.mrb[0].mxu0
      %v4790 = vadd.f32 0.0, %v4789
      %v4791 = vpop.f32.mrb[0].mxu0
      %v4792 = vpop.f32.mrb[0].mxu0
      %v4793 = vadd.f32 0.0, %v4792
      %v4794 = vpop.f32.mrb[0].mxu0
      %4795 = vmatprep.mubr.bf16.mxu0 0
      %4796 = vmatmul.mubr.bf16.gmra.mrb[0].mxu0 %v4643
      %v4797 = vpop.f32.mrb[0].mxu0
      %v4798 = vadd.f32 0.0, %v4797
      %v4799 = vpop.f32.mrb[0].mxu0
      %v4800 = vpop.f32.mrb[0].mxu0
      %v4801 = vadd.f32 0.0, %v4800
      %v4802 = vpop.f32.mrb[0].mxu0
      %4803 = vmatprep.mubr.bf16.mxu0 0
      %4804 = vmatmul.mubr.bf16.gmra.mrb[0].mxu0 %v4646
      %v4805 = vpop.f32.mrb[0].mxu0
      %v4806 = vadd.f32 0.0, %v4805
      %v4807 = vpop.f32.mrb[0].mxu0
      %v4808 = vpop.f32.mrb[0].mxu0
      %v4809 = vadd.f32 0.0, %v4808
      %v4810 = vpop.f32.mrb[0].mxu0
      %4811 = vdwg.mxu0
      %v4812 = vadd.f32 %v4342, %v4686
      %v4813 = vadd.f32 %v4343, %v4689
      %v4814 = vadd.f32 %v4344, %v4694
      %v4815 = vadd.f32 %v4345, %v4697
      %v4816 = vadd.f32 %v4346, %v4702
      %v4817 = vadd.f32 %v4347, %v4705
      %v4818 = vadd.f32 %v4348, %v4710
      %v4819 = vadd.f32 %v4349, %v4713
      %v4820 = vadd.f32 %v4350, %v4718
      %v4821 = vadd.f32 %v4351, %v4721
      %v4822 = vadd.f32 %v4352, %v4726
      %v4823 = vadd.f32 %v4353, %v4729
      %v4824 = vadd.f32 %v4354, %v4734
      %v4825 = vadd.f32 %v4355, %v4737
      %v4826 = vadd.f32 %v4356, %v4742
      %v4827 = vadd.f32 %v4357, %v4745
      %v4828 = vadd.f32 %v4358, %v4750
      %v4829 = vadd.f32 %v4359, %v4753
      %v4830 = vadd.f32 %v4360, %v4758
      %v4831 = vadd.f32 %v4361, %v4761
      %v4832 = vadd.f32 %v4362, %v4766
      %v4833 = vadd.f32 %v4363, %v4769
      %v4834 = vadd.f32 %v4364, %v4774
      %v4835 = vadd.f32 %v4365, %v4777
      %v4836 = vadd.f32 %v4366, %v4782
      %v4837 = vadd.f32 %v4367, %v4785
      %v4838 = vadd.f32 %v4368, %v4790
      %v4839 = vadd.f32 %v4369, %v4793
      %v4840 = vadd.f32 %v4370, %v4798
      %v4841 = vadd.f32 %v4371, %v4801
      %v4842 = vadd.f32 %v4372, %v4806
      %v4843 = vadd.f32 %v4373, %v4809
      %s4844 = scalar_lea.vmem [#allocation2], 24
      %v4845 = vld [vmem:[%s4844] sm:$0xf]
      %v4846 = vld [vmem:[%s4844 + $0x4] sm:$0xf]
      %v4847 = vld [vmem:[%s4844 + $0xc] sm:$0xf]
      %v4848 = vld [vmem:[%s4844 + $0x10] sm:$0xf]
      %v4849 = vld [vmem:[%s4844 + $0x18] sm:$0xf]
      %v4850 = vld [vmem:[%s4844 + $0x1c] sm:$0xf]
      %v4851 = vld [vmem:[%s4844 + $0x24] sm:$0xf]
      %v4852 = vld [vmem:[%s4844 + $0x28] sm:$0xf]
      %v4853 = vld [vmem:[%s4844 + $0x30] sm:$0xf]
      %v4854 = vld [vmem:[%s4844 + $0x34] sm:$0xf]
      %v4855 = vld [vmem:[%s4844 + $0x3c] sm:$0xf]
      %v4856 = vld [vmem:[%s4844 + $0x40] sm:$0xf]
      %v4857 = vld [vmem:[%s4844 + $0x48] sm:$0xf]
      %v4858 = vld [vmem:[%s4844 + $0x4c] sm:$0xf]
      %v4859 = vld [vmem:[%s4844 + $0x54] sm:$0xf]
      %v4860 = vld [vmem:[%s4844 + $0x58] sm:$0xf]
      %v4861 = vld [vmem:[%s4844 + $0x60] sm:$0xf]
      %v4862 = vld [vmem:[%s4844 + $0x64] sm:$0xf]
      %v4863 = vld [vmem:[%s4844 + $0x6c] sm:$0xf]
      %v4864 = vld [vmem:[%s4844 + $0x70] sm:$0xf]
      %v4865 = vld [vmem:[%s4844 + $0x78] sm:$0xf]
      %v4866 = vld [vmem:[%s4844 + $0x7c] sm:$0xf]
      %v4867 = vld [vmem:[%s4844 + $0x84] sm:$0xf]
      %v4868 = vld [vmem:[%s4844 + $0x88] sm:$0xf]
      %v4869 = vld [vmem:[%s4844 + $0x90] sm:$0xf]
      %v4870 = vld [vmem:[%s4844 + $0x94] sm:$0xf]
      %v4871 = vld [vmem:[%s4844 + $0x9c] sm:$0xf]
      %v4872 = vld [vmem:[%s4844 + $0xa0] sm:$0xf]
      %v4873 = vld [vmem:[%s4844 + $0xa8] sm:$0xf]
      %v4874 = vld [vmem:[%s4844 + $0xac] sm:$0xf]
      %v4875 = vld [vmem:[%s4844 + $0xb4] sm:$0xf]
      %v4876 = vld [vmem:[%s4844 + $0xb8] sm:$0xf]
      %s4877 = scalar_lea.vmem %s6, 12
      %v4878 = vld [vmem:[%s4877] sm:$0x3]
      %v4911 = vunpack.c.l.b16 %v4845
      %v4912 = vunpack.c.l.b16 %v4846
      %v4913 = vunpack.c.l.b16 %v4847
      %v4914 = vunpack.c.l.b16 %v4848
      %v4915 = vunpack.c.l.b16 %v4849
      %v4916 = vunpack.c.l.b16 %v4850
      %v4917 = vunpack.c.l.b16 %v4851
      %v4918 = vunpack.c.l.b16 %v4852
      %v4919 = vunpack.c.l.b16 %v4853
      %v4920 = vunpack.c.l.b16 %v4854
      %v4921 = vunpack.c.l.b16 %v4855
      %v4922 = vunpack.c.l.b16 %v4856
      %v4923 = vunpack.c.l.b16 %v4857
      %v4924 = vunpack.c.l.b16 %v4858
      %v4925 = vunpack.c.l.b16 %v4859
      %v4926 = vunpack.c.l.b16 %v4860
      %v4927 = vunpack.c.l.b16 %v4861
      %v4928 = vunpack.c.l.b16 %v4862
      %v4929 = vunpack.c.l.b16 %v4863
      %v4930 = vunpack.c.l.b16 %v4864
      %v4931 = vunpack.c.l.b16 %v4865
      %v4932 = vunpack.c.l.b16 %v4866
      %v4933 = vunpack.c.l.b16 %v4867
      %v4934 = vunpack.c.l.b16 %v4868
      %v4935 = vunpack.c.l.b16 %v4869
      %v4936 = vunpack.c.l.b16 %v4870
      %v4937 = vunpack.c.l.b16 %v4871
      %v4938 = vunpack.c.l.b16 %v4872
      %v4939 = vunpack.c.l.b16 %v4873
      %v4940 = vunpack.c.l.b16 %v4874
      %v4941 = vunpack.c.l.b16 %v4875
      %v4942 = vunpack.c.l.b16 %v4876
      %v4943 = vpack.c.b16 %v4912, %v4911
      %v4944 = vpack.c.b16 %v4914, %v4913
      %v4945 = vpack.c.b16 %v4916, %v4915
      %v4946 = vpack.c.b16 %v4918, %v4917
      %v4947 = vpack.c.b16 %v4920, %v4919
      %v4948 = vpack.c.b16 %v4922, %v4921
      %v4949 = vpack.c.b16 %v4924, %v4923
      %v4950 = vpack.c.b16 %v4926, %v4925
      %v4951 = vpack.c.b16 %v4928, %v4927
      %v4952 = vpack.c.b16 %v4930, %v4929
      %v4953 = vpack.c.b16 %v4932, %v4931
      %v4954 = vpack.c.b16 %v4934, %v4933
      %v4955 = vpack.c.b16 %v4936, %v4935
      %v4956 = vpack.c.b16 %v4938, %v4937
      %v4957 = vpack.c.b16 %v4940, %v4939
      %v4958 = vpack.c.b16 %v4942, %v4941
      %v4960 = vsel %vm721, %v4943, 0
      %v4963 = vsel %vm721, %v4944, 0
      %v4966 = vsel %vm721, %v4945, 0
      %v4969 = vsel %vm721, %v4946, 0
      %v4972 = vsel %vm721, %v4947, 0
      %v4975 = vsel %vm721, %v4948, 0
      %v4978 = vsel %vm721, %v4949, 0
      %v4981 = vsel %vm721, %v4950, 0
      %v4984 = vsel %vm721, %v4951, 0
      %v4987 = vsel %vm721, %v4952, 0
      %v4990 = vsel %vm721, %v4953, 0
      %v4993 = vsel %vm721, %v4954, 0
      %v4996 = vsel %vm721, %v4955, 0
      %v4999 = vsel %vm721, %v4956, 0
      %v5002 = vsel %vm721, %v4957, 0
      %v5005 = vsel %vm721, %v4958, 0
      %v5008 = vsel %vm1052, %v4878, 0
      %5010 = vmatprep.subr.bf16.mxu0 0
      %5011 = vmatpush1.bf16.msra.mxu0 %v5008
      %5012 = vmatprep.subr.bf16.mxu0 0
      %5013 = vmatpush1.bf16.msra.mxu0 0
      %5014 = vmatprep.subr.bf16.mxu0 0
      %5015 = vmatpush1.bf16.msra.mxu0 0
      %5016 = vmatprep.subr.bf16.mxu0 0
      %5017 = vmatpush1.bf16.msra.mxu0 0
      %5018 = vmatprep.subr.bf16.mxu0 0
      %5019 = vmatpush1.bf16.msra.mxu0 0
      %5020 = vmatprep.subr.bf16.mxu0 0
      %5021 = vmatpush1.bf16.msra.mxu0 0
      %5022 = vmatprep.subr.bf16.mxu0 0
      %5023 = vmatpush1.bf16.msra.mxu0 0
      %5024 = vmatprep.subr.bf16.mxu0 0
      %5025 = vmatpush1.bf16.msra.mxu0 0
      %5026 = vmatprep.subr.bf16.mxu0 0
      %5027 = vmatpush1.bf16.msra.mxu0 0
      %5028 = vmatprep.subr.bf16.mxu0 0
      %5029 = vmatpush1.bf16.msra.mxu0 0
      %5030 = vmatprep.subr.bf16.mxu0 0
      %5031 = vmatpush1.bf16.msra.mxu0 0
      %5032 = vmatprep.subr.bf16.mxu0 0
      %5033 = vmatpush1.bf16.msra.mxu0 0
      %5034 = vmatprep.subr.bf16.mxu0 0
      %5035 = vmatpush1.bf16.msra.mxu0 0
      %5036 = vmatprep.subr.bf16.mxu0 0
      %5037 = vmatpush1.bf16.msra.mxu0 0
      %5038 = vmatprep.subr.bf16.mxu0 0
      %5039 = vmatpush1.bf16.msra.mxu0 0
      %5040 = vmatprep.subr.bf16.mxu0 0
      %5041 = vmatpush1.bf16.msra.mxu0 0
      %5042 = vmatprep.mubr.bf16.mxu0 0
      %5043 = vmatmul.mubr.bf16.gmra.mrb[0].mxu0 %v4960
      %v5044 = vpop.f32.mrb[0].mxu0
      %v5045 = vadd.f32 0.0, %v5044
      %v5046 = vpop.f32.mrb[0].mxu0
      %v5047 = vpop.f32.mrb[0].mxu0
      %v5048 = vadd.f32 0.0, %v5047
      %v5049 = vpop.f32.mrb[0].mxu0
      %5050 = vmatprep.mubr.bf16.mxu0 0
      %5051 = vmatmul.mubr.bf16.gmra.mrb[0].mxu0 %v4963
      %v5052 = vpop.f32.mrb[0].mxu0
      %v5053 = vadd.f32 0.0, %v5052
      %v5054 = vpop.f32.mrb[0].mxu0
      %v5055 = vpop.f32.mrb[0].mxu0
      %v5056 = vadd.f32 0.0, %v5055
      %v5057 = vpop.f32.mrb[0].mxu0
      %5058 = vmatprep.mubr.bf16.mxu0 0
      %5059 = vmatmul.mubr.bf16.gmra.mrb[0].mxu0 %v4966
      %v5060 = vpop.f32.mrb[0].mxu0
      %v5061 = vadd.f32 0.0, %v5060
      %v5062 = vpop.f32.mrb[0].mxu0
      %v5063 = vpop.f32.mrb[0].mxu0
      %v5064 = vadd.f32 0.0, %v5063
      %v5065 = vpop.f32.mrb[0].mxu0
      %5066 = vmatprep.mubr.bf16.mxu0 0
      %5067 = vmatmul.mubr.bf16.gmra.mrb[0].mxu0 %v4969
      %v5068 = vpop.f32.mrb[0].mxu0
      %v5069 = vadd.f32 0.0, %v5068
      %v5070 = vpop.f32.mrb[0].mxu0
      %v5071 = vpop.f32.mrb[0].mxu0
      %v5072 = vadd.f32 0.0, %v5071
      %v5073 = vpop.f32.mrb[0].mxu0
      %5074 = vmatprep.mubr.bf16.mxu0 0
      %5075 = vmatmul.mubr.bf16.gmra.mrb[0].mxu0 %v4972
      %v5076 = vpop.f32.mrb[0].mxu0
      %v5077 = vadd.f32 0.0, %v5076
      %v5078 = vpop.f32.mrb[0].mxu0
      %v5079 = vpop.f32.mrb[0].mxu0
      %v5080 = vadd.f32 0.0, %v5079
      %v5081 = vpop.f32.mrb[0].mxu0
      %5082 = vmatprep.mubr.bf16.mxu0 0
      %5083 = vmatmul.mubr.bf16.gmra.mrb[0].mxu0 %v4975
      %v5084 = vpop.f32.mrb[0].mxu0
      %v5085 = vadd.f32 0.0, %v5084
      %v5086 = vpop.f32.mrb[0].mxu0
      %v5087 = vpop.f32.mrb[0].mxu0
      %v5088 = vadd.f32 0.0, %v5087
      %v5089 = vpop.f32.mrb[0].mxu0
      %5090 = vmatprep.mubr.bf16.mxu0 0
      %5091 = vmatmul.mubr.bf16.gmra.mrb[0].mxu0 %v4978
      %v5092 = vpop.f32.mrb[0].mxu0
      %v5093 = vadd.f32 0.0, %v5092
      %v5094 = vpop.f32.mrb[0].mxu0
      %v5095 = vpop.f32.mrb[0].mxu0
      %v5096 = vadd.f32 0.0, %v5095
      %v5097 = vpop.f32.mrb[0].mxu0
      %5098 = vmatprep.mubr.bf16.mxu0 0
      %5099 = vmatmul.mubr.bf16.gmra.mrb[0].mxu0 %v4981
      %v5100 = vpop.f32.mrb[0].mxu0
      %v5101 = vadd.f32 0.0, %v5100
      %v5102 = vpop.f32.mrb[0].mxu0
      %v5103 = vpop.f32.mrb[0].mxu0
      %v5104 = vadd.f32 0.0, %v5103
      %v5105 = vpop.f32.mrb[0].mxu0
      %5106 = vmatprep.mubr.bf16.mxu0 0
      %5107 = vmatmul.mubr.bf16.gmra.mrb[0].mxu0 %v4984
      %v5108 = vpop.f32.mrb[0].mxu0
      %v5109 = vadd.f32 0.0, %v5108
      %v5110 = vpop.f32.mrb[0].mxu0
      %v5111 = vpop.f32.mrb[0].mxu0
      %v5112 = vadd.f32 0.0, %v5111
      %v5113 = vpop.f32.mrb[0].mxu0
      %5114 = vmatprep.mubr.bf16.mxu0 0
      %5115 = vmatmul.mubr.bf16.gmra.mrb[0].mxu0 %v4987
      %v5116 = vpop.f32.mrb[0].mxu0
      %v5117 = vadd.f32 0.0, %v5116
      %v5118 = vpop.f32.mrb[0].mxu0
      %v5119 = vpop.f32.mrb[0].mxu0
      %v5120 = vadd.f32 0.0, %v5119
      %v5121 = vpop.f32.mrb[0].mxu0
      %5122 = vmatprep.mubr.bf16.mxu0 0
      %5123 = vmatmul.mubr.bf16.gmra.mrb[0].mxu0 %v4990
      %v5124 = vpop.f32.mrb[0].mxu0
      %v5125 = vadd.f32 0.0, %v5124
      %v5126 = vpop.f32.mrb[0].mxu0
      %v5127 = vpop.f32.mrb[0].mxu0
      %v5128 = vadd.f32 0.0, %v5127
      %v5129 = vpop.f32.mrb[0].mxu0
      %5130 = vmatprep.mubr.bf16.mxu0 0
      %5131 = vmatmul.mubr.bf16.gmra.mrb[0].mxu0 %v4993
      %v5132 = vpop.f32.mrb[0].mxu0
      %v5133 = vadd.f32 0.0, %v5132
      %v5134 = vpop.f32.mrb[0].mxu0
      %v5135 = vpop.f32.mrb[0].mxu0
      %v5136 = vadd.f32 0.0, %v5135
      %v5137 = vpop.f32.mrb[0].mxu0
      %5138 = vmatprep.mubr.bf16.mxu0 0
      %5139 = vmatmul.mubr.bf16.gmra.mrb[0].mxu0 %v4996
      %v5140 = vpop.f32.mrb[0].mxu0
      %v5141 = vadd.f32 0.0, %v5140
      %v5142 = vpop.f32.mrb[0].mxu0
      %v5143 = vpop.f32.mrb[0].mxu0
      %v5144 = vadd.f32 0.0, %v5143
      %v5145 = vpop.f32.mrb[0].mxu0
      %5146 = vmatprep.mubr.bf16.mxu0 0
      %5147 = vmatmul.mubr.bf16.gmra.mrb[0].mxu0 %v4999
      %v5148 = vpop.f32.mrb[0].mxu0
      %v5149 = vadd.f32 0.0, %v5148
      %v5150 = vpop.f32.mrb[0].mxu0
      %v5151 = vpop.f32.mrb[0].mxu0
      %v5152 = vadd.f32 0.0, %v5151
      %v5153 = vpop.f32.mrb[0].mxu0
      %5154 = vmatprep.mubr.bf16.mxu0 0
      %5155 = vmatmul.mubr.bf16.gmra.mrb[0].mxu0 %v5002
      %v5156 = vpop.f32.mrb[0].mxu0
      %v5157 = vadd.f32 0.0, %v5156
      %v5158 = vpop.f32.mrb[0].mxu0
      %v5159 = vpop.f32.mrb[0].mxu0
      %v5160 = vadd.f32 0.0, %v5159
      %v5161 = vpop.f32.mrb[0].mxu0
      %5162 = vmatprep.mubr.bf16.mxu0 0
      %5163 = vmatmul.mubr.bf16.gmra.mrb[0].mxu0 %v5005
      %v5164 = vpop.f32.mrb[0].mxu0
      %v5165 = vadd.f32 0.0, %v5164
      %v5166 = vpop.f32.mrb[0].mxu0
      %v5167 = vpop.f32.mrb[0].mxu0
      %v5168 = vadd.f32 0.0, %v5167
      %v5169 = vpop.f32.mrb[0].mxu0
      %5170 = vdwg.mxu0
      %v5171 = vadd.f32 %v4812, %v5045
      %v5172 = vadd.f32 %v4813, %v5048
      %v5173 = vadd.f32 %v4814, %v5053
      %v5174 = vadd.f32 %v4815, %v5056
      %v5175 = vadd.f32 %v4816, %v5061
      %v5176 = vadd.f32 %v4817, %v5064
      %v5177 = vadd.f32 %v4818, %v5069
      %v5178 = vadd.f32 %v4819, %v5072
      %v5179 = vadd.f32 %v4820, %v5077
      %v5180 = vadd.f32 %v4821, %v5080
      %v5181 = vadd.f32 %v4822, %v5085
      %v5182 = vadd.f32 %v4823, %v5088
      %v5183 = vadd.f32 %v4824, %v5093
      %v5184 = vadd.f32 %v4825, %v5096
      %v5185 = vadd.f32 %v4826, %v5101
      %v5186 = vadd.f32 %v4827, %v5104
      %v5187 = vadd.f32 %v4828, %v5109
      %v5188 = vadd.f32 %v4829, %v5112
      %v5189 = vadd.f32 %v4830, %v5117
      %v5190 = vadd.f32 %v4831, %v5120
      %v5191 = vadd.f32 %v4832, %v5125
      %v5192 = vadd.f32 %v4833, %v5128
      %v5193 = vadd.f32 %v4834, %v5133
      %v5194 = vadd.f32 %v4835, %v5136
      %v5195 = vadd.f32 %v4836, %v5141
      %v5196 = vadd.f32 %v4837, %v5144
      %v5197 = vadd.f32 %v4838, %v5149
      %v5198 = vadd.f32 %v4839, %v5152
      %v5199 = vadd.f32 %v4840, %v5157
      %v5200 = vadd.f32 %v4841, %v5160
      %v5201 = vadd.f32 %v4842, %v5165
      %v5202 = vadd.f32 %v4843, %v5168
      %v5203 = vld [vmem:[%s4844] sm:$0xf]
      %v5204 = vld [vmem:[%s4844 + $0x4] sm:$0xf]
      %v5205 = vld [vmem:[%s4844 + $0x8] sm:$0x1]
      %v5206 = vld [vmem:[%s4844 + $0xc] sm:$0xf]
      %v5207 = vld [vmem:[%s4844 + $0x10] sm:$0xf]
      %v5208 = vld [vmem:[%s4844 + $0x14] sm:$0x1]
      %v5209 = vld [vmem:[%s4844 + $0x18] sm:$0xf]
      %v5210 = vld [vmem:[%s4844 + $0x1c] sm:$0xf]
      %v5211 = vld [vmem:[%s4844 + $0x20] sm:$0x1]
      %v5212 = vld [vmem:[%s4844 + $0x24] sm:$0xf]
      %v5213 = vld [vmem:[%s4844 + $0x28] sm:$0xf]
      %v5214 = vld [vmem:[%s4844 + $0x2c] sm:$0x1]
      %v5215 = vld [vmem:[%s4844 + $0x30] sm:$0xf]
      %v5216 = vld [vmem:[%s4844 + $0x34] sm:$0xf]
      %v5217 = vld [vmem:[%s4844 + $0x38] sm:$0x1]
      %v5218 = vld [vmem:[%s4844 + $0x3c] sm:$0xf]
      %v5219 = vld [vmem:[%s4844 + $0x40] sm:$0xf]
      %v5220 = vld [vmem:[%s4844 + $0x44] sm:$0x1]
      %v5221 = vld [vmem:[%s4844 + $0x48] sm:$0xf]
      %v5222 = vld [vmem:[%s4844 + $0x4c] sm:$0xf]
      %v5223 = vld [vmem:[%s4844 + $0x50] sm:$0x1]
      %v5224 = vld [vmem:[%s4844 + $0x54] sm:$0xf]
      %v5225 = vld [vmem:[%s4844 + $0x58] sm:$0xf]
      %v5226 = vld [vmem:[%s4844 + $0x5c] sm:$0x1]
      %v5227 = vld [vmem:[%s4844 + $0x60] sm:$0xf]
      %v5228 = vld [vmem:[%s4844 + $0x64] sm:$0xf]
      %v5229 = vld [vmem:[%s4844 + $0x68] sm:$0x1]
      %v5230 = vld [vmem:[%s4844 + $0x6c] sm:$0xf]
      %v5231 = vld [vmem:[%s4844 + $0x70] sm:$0xf]
      %v5232 = vld [vmem:[%s4844 + $0x74] sm:$0x1]
      %v5233 = vld [vmem:[%s4844 + $0x78] sm:$0xf]
      %v5234 = vld [vmem:[%s4844 + $0x7c] sm:$0xf]
      %v5235 = vld [vmem:[%s4844 + $0x80] sm:$0x1]
      %v5236 = vld [vmem:[%s4844 + $0x84] sm:$0xf]
      %v5237 = vld [vmem:[%s4844 + $0x88] sm:$0xf]
      %v5238 = vld [vmem:[%s4844 + $0x8c] sm:$0x1]
      %v5239 = vld [vmem:[%s4844 + $0x90] sm:$0xf]
      %v5240 = vld [vmem:[%s4844 + $0x94] sm:$0xf]
      %v5241 = vld [vmem:[%s4844 + $0x98] sm:$0x1]
      %v5242 = vld [vmem:[%s4844 + $0x9c] sm:$0xf]
      %v5243 = vld [vmem:[%s4844 + $0xa0] sm:$0xf]
      %v5244 = vld [vmem:[%s4844 + $0xa4] sm:$0x1]
      %v5245 = vld [vmem:[%s4844 + $0xa8] sm:$0xf]
      %v5246 = vld [vmem:[%s4844 + $0xac] sm:$0xf]
      %v5247 = vld [vmem:[%s4844 + $0xb0] sm:$0x1]
      %v5248 = vld [vmem:[%s4844 + $0xb4] sm:$0xf]
      %v5249 = vld [vmem:[%s4844 + $0xb8] sm:$0xf]
      %v5250 = vld [vmem:[%s4844 + $0xbc] sm:$0x1]
      %v5252 = vshrl.u32 %v5203, 16
      %v5254 = vrot.slane %v5252, 4
      %v5255 = vshll.u32 %v5203, 16
      %v5257 = vrot.slane %v5255, 5
      %v5258 = vor.u32 %v5254, %v5257
      %v5259 = vrot.slane %v5258, 4
      %v5261 = vshll.u32 %v5204, 16
      %v5263 = vrot.slane %v5261, 5
      %v5264 = vsel %vm1894, %v5259, %v5263
      %v5265 = vshrl.u32 %v5204, 16
      %v5267 = vrot.slane %v5265, 4
      %v5268 = vor.u32 %v5267, %v5263
      %v5269 = vrot.slane %v5268, 4
      %v5271 = vshll.u32 %v5205, 16
      %v5273 = vrot.slane %v5271, 5
      %v5274 = vsel %vm1894, %v5269, %v5273
      %v5276 = vshrl.u32 %v5206, 16
      %v5278 = vrot.slane %v5276, 4
      %v5279 = vshll.u32 %v5206, 16
      %v5281 = vrot.slane %v5279, 5
      %v5282 = vor.u32 %v5278, %v5281
      %v5283 = vrot.slane %v5282, 4
      %v5285 = vshll.u32 %v5207, 16
      %v5287 = vrot.slane %v5285, 5
      %v5288 = vsel %vm1894, %v5283, %v5287
      %v5289 = vshrl.u32 %v5207, 16
      %v5291 = vrot.slane %v5289, 4
      %v5292 = vor.u32 %v5291, %v5287
      %v5293 = vrot.slane %v5292, 4
      %v5295 = vshll.u32 %v5208, 16
      %v5297 = vrot.slane %v5295, 5
      %v5298 = vsel %vm1894, %v5293, %v5297
      %v5300 = vshrl.u32 %v5209, 16
      %v5302 = vrot.slane %v5300, 4
      %v5303 = vshll.u32 %v5209, 16
      %v5305 = vrot.slane %v5303, 5
      %v5306 = vor.u32 %v5302, %v5305
      %v5307 = vrot.slane %v5306, 4
      %v5309 = vshll.u32 %v5210, 16
      %v5311 = vrot.slane %v5309, 5
      %v5312 = vsel %vm1894, %v5307, %v5311
      %v5313 = vshrl.u32 %v5210, 16
      %v5315 = vrot.slane %v5313, 4
      %v5316 = vor.u32 %v5315, %v5311
      %v5317 = vrot.slane %v5316, 4
      %v5319 = vshll.u32 %v5211, 16
      %v5321 = vrot.slane %v5319, 5
      %v5322 = vsel %vm1894, %v5317, %v5321
      %v5324 = vshrl.u32 %v5212, 16
      %v5326 = vrot.slane %v5324, 4
      %v5327 = vshll.u32 %v5212, 16
      %v5329 = vrot.slane %v5327, 5
      %v5330 = vor.u32 %v5326, %v5329
      %v5331 = vrot.slane %v5330, 4
      %v5333 = vshll.u32 %v5213, 16
      %v5335 = vrot.slane %v5333, 5
      %v5336 = vsel %vm1894, %v5331, %v5335
      %v5337 = vshrl.u32 %v5213, 16
      %v5339 = vrot.slane %v5337, 4
      %v5340 = vor.u32 %v5339, %v5335
      %v5341 = vrot.slane %v5340, 4
      %v5343 = vshll.u32 %v5214, 16
      %v5345 = vrot.slane %v5343, 5
      %v5346 = vsel %vm1894, %v5341, %v5345
      %v5348 = vshrl.u32 %v5215, 16
      %v5350 = vrot.slane %v5348, 4
      %v5351 = vshll.u32 %v5215, 16
      %v5353 = vrot.slane %v5351, 5
      %v5354 = vor.u32 %v5350, %v5353
      %v5355 = vrot.slane %v5354, 4
      %v5357 = vshll.u32 %v5216, 16
      %v5359 = vrot.slane %v5357, 5
      %v5360 = vsel %vm1894, %v5355, %v5359
      %v5361 = vshrl.u32 %v5216, 16
      %v5363 = vrot.slane %v5361, 4
      %v5364 = vor.u32 %v5363, %v5359
      %v5365 = vrot.slane %v5364, 4
      %v5367 = vshll.u32 %v5217, 16
      %v5369 = vrot.slane %v5367, 5
      %v5370 = vsel %vm1894, %v5365, %v5369
      %v5372 = vshrl.u32 %v5218, 16
      %v5374 = vrot.slane %v5372, 4
      %v5375 = vshll.u32 %v5218, 16
      %v5377 = vrot.slane %v5375, 5
      %v5378 = vor.u32 %v5374, %v5377
      %v5379 = vrot.slane %v5378, 4
      %v5381 = vshll.u32 %v5219, 16
      %v5383 = vrot.slane %v5381, 5
      %v5384 = vsel %vm1894, %v5379, %v5383
      %v5385 = vshrl.u32 %v5219, 16
      %v5387 = vrot.slane %v5385, 4
      %v5388 = vor.u32 %v5387, %v5383
      %v5389 = vrot.slane %v5388, 4
      %v5391 = vshll.u32 %v5220, 16
      %v5393 = vrot.slane %v5391, 5
      %v5394 = vsel %vm1894, %v5389, %v5393
      %v5396 = vshrl.u32 %v5221, 16
      %v5398 = vrot.slane %v5396, 4
      %v5399 = vshll.u32 %v5221, 16
      %v5401 = vrot.slane %v5399, 5
      %v5402 = vor.u32 %v5398, %v5401
      %v5403 = vrot.slane %v5402, 4
      %v5405 = vshll.u32 %v5222, 16
      %v5407 = vrot.slane %v5405, 5
      %v5408 = vsel %vm1894, %v5403, %v5407
      %v5409 = vshrl.u32 %v5222, 16
      %v5411 = vrot.slane %v5409, 4
      %v5412 = vor.u32 %v5411, %v5407
      %v5413 = vrot.slane %v5412, 4
      %v5415 = vshll.u32 %v5223, 16
      %v5417 = vrot.slane %v5415, 5
      %v5418 = vsel %vm1894, %v5413, %v5417
      %v5420 = vshrl.u32 %v5224, 16
      %v5422 = vrot.slane %v5420, 4
      %v5423 = vshll.u32 %v5224, 16
      %v5425 = vrot.slane %v5423, 5
      %v5426 = vor.u32 %v5422, %v5425
      %v5427 = vrot.slane %v5426, 4
      %v5429 = vshll.u32 %v5225, 16
      %v5431 = vrot.slane %v5429, 5
      %v5432 = vsel %vm1894, %v5427, %v5431
      %v5433 = vshrl.u32 %v5225, 16
      %v5435 = vrot.slane %v5433, 4
      %v5436 = vor.u32 %v5435, %v5431
      %v5437 = vrot.slane %v5436, 4
      %v5439 = vshll.u32 %v5226, 16
      %v5441 = vrot.slane %v5439, 5
      %v5442 = vsel %vm1894, %v5437, %v5441
      %v5444 = vshrl.u32 %v5227, 16
      %v5446 = vrot.slane %v5444, 4
      %v5447 = vshll.u32 %v5227, 16
      %v5449 = vrot.slane %v5447, 5
      %v5450 = vor.u32 %v5446, %v5449
      %v5451 = vrot.slane %v5450, 4
      %v5453 = vshll.u32 %v5228, 16
      %v5455 = vrot.slane %v5453, 5
      %v5456 = vsel %vm1894, %v5451, %v5455
      %v5457 = vshrl.u32 %v5228, 16
      %v5459 = vrot.slane %v5457, 4
      %v5460 = vor.u32 %v5459, %v5455
      %v5461 = vrot.slane %v5460, 4
      %v5463 = vshll.u32 %v5229, 16
      %v5465 = vrot.slane %v5463, 5
      %v5466 = vsel %vm1894, %v5461, %v5465
      %v5468 = vshrl.u32 %v5230, 16
      %v5470 = vrot.slane %v5468, 4
      %v5471 = vshll.u32 %v5230, 16
      %v5473 = vrot.slane %v5471, 5
      %v5474 = vor.u32 %v5470, %v5473
      %v5475 = vrot.slane %v5474, 4
      %v5477 = vshll.u32 %v5231, 16
      %v5479 = vrot.slane %v5477, 5
      %v5480 = vsel %vm1894, %v5475, %v5479
      %v5481 = vshrl.u32 %v5231, 16
      %v5483 = vrot.slane %v5481, 4
      %v5484 = vor.u32 %v5483, %v5479
      %v5485 = vrot.slane %v5484, 4
      %v5487 = vshll.u32 %v5232, 16
      %v5489 = vrot.slane %v5487, 5
      %v5490 = vsel %vm1894, %v5485, %v5489
      %v5492 = vshrl.u32 %v5233, 16
      %v5494 = vrot.slane %v5492, 4
      %v5495 = vshll.u32 %v5233, 16
      %v5497 = vrot.slane %v5495, 5
      %v5498 = vor.u32 %v5494, %v5497
      %v5499 = vrot.slane %v5498, 4
      %v5501 = vshll.u32 %v5234, 16
      %v5503 = vrot.slane %v5501, 5
      %v5504 = vsel %vm1894, %v5499, %v5503
      %v5505 = vshrl.u32 %v5234, 16
      %v5507 = vrot.slane %v5505, 4
      %v5508 = vor.u32 %v5507, %v5503
      %v5509 = vrot.slane %v5508, 4
      %v5511 = vshll.u32 %v5235, 16
      %v5513 = vrot.slane %v5511, 5
      %v5514 = vsel %vm1894, %v5509, %v5513
      %v5516 = vshrl.u32 %v5236, 16
      %v5518 = vrot.slane %v5516, 4
      %v5519 = vshll.u32 %v5236, 16
      %v5521 = vrot.slane %v5519, 5
      %v5522 = vor.u32 %v5518, %v5521
      %v5523 = vrot.slane %v5522, 4
      %v5525 = vshll.u32 %v5237, 16
      %v5527 = vrot.slane %v5525, 5
      %v5528 = vsel %vm1894, %v5523, %v5527
      %v5529 = vshrl.u32 %v5237, 16
      %v5531 = vrot.slane %v5529, 4
      %v5532 = vor.u32 %v5531, %v5527
      %v5533 = vrot.slane %v5532, 4
      %v5535 = vshll.u32 %v5238, 16
      %v5537 = vrot.slane %v5535, 5
      %v5538 = vsel %vm1894, %v5533, %v5537
      %v5540 = vshrl.u32 %v5239, 16
      %v5542 = vrot.slane %v5540, 4
      %v5543 = vshll.u32 %v5239, 16
      %v5545 = vrot.slane %v5543, 5
      %v5546 = vor.u32 %v5542, %v5545
      %v5547 = vrot.slane %v5546, 4
      %v5549 = vshll.u32 %v5240, 16
      %v5551 = vrot.slane %v5549, 5
      %v5552 = vsel %vm1894, %v5547, %v5551
      %v5553 = vshrl.u32 %v5240, 16
      %v5555 = vrot.slane %v5553, 4
      %v5556 = vor.u32 %v5555, %v5551
      %v5557 = vrot.slane %v5556, 4
      %v5559 = vshll.u32 %v5241, 16
      %v5561 = vrot.slane %v5559, 5
      %v5562 = vsel %vm1894, %v5557, %v5561
      %v5564 = vshrl.u32 %v5242, 16
      %v5566 = vrot.slane %v5564, 4
      %v5567 = vshll.u32 %v5242, 16
      %v5569 = vrot.slane %v5567, 5
      %v5570 = vor.u32 %v5566, %v5569
      %v5571 = vrot.slane %v5570, 4
      %v5573 = vshll.u32 %v5243, 16
      %v5575 = vrot.slane %v5573, 5
      %v5576 = vsel %vm1894, %v5571, %v5575
      %v5577 = vshrl.u32 %v5243, 16
      %v5579 = vrot.slane %v5577, 4
      %v5580 = vor.u32 %v5579, %v5575
      %v5581 = vrot.slane %v5580, 4
      %v5583 = vshll.u32 %v5244, 16
      %v5585 = vrot.slane %v5583, 5
      %v5586 = vsel %vm1894, %v5581, %v5585
      %v5588 = vshrl.u32 %v5245, 16
      %v5590 = vrot.slane %v5588, 4
      %v5591 = vshll.u32 %v5245, 16
      %v5593 = vrot.slane %v5591, 5
      %v5594 = vor.u32 %v5590, %v5593
      %v5595 = vrot.slane %v5594, 4
      %v5597 = vshll.u32 %v5246, 16
      %v5599 = vrot.slane %v5597, 5
      %v5600 = vsel %vm1894, %v5595, %v5599
      %v5601 = vshrl.u32 %v5246, 16
      %v5603 = vrot.slane %v5601, 4
      %v5604 = vor.u32 %v5603, %v5599
      %v5605 = vrot.slane %v5604, 4
      %v5607 = vshll.u32 %v5247, 16
      %v5609 = vrot.slane %v5607, 5
      %v5610 = vsel %vm1894, %v5605, %v5609
      %v5612 = vshrl.u32 %v5248, 16
      %v5614 = vrot.slane %v5612, 4
      %v5615 = vshll.u32 %v5248, 16
      %v5617 = vrot.slane %v5615, 5
      %v5618 = vor.u32 %v5614, %v5617
      %v5619 = vrot.slane %v5618, 4
      %v5621 = vshll.u32 %v5249, 16
      %v5623 = vrot.slane %v5621, 5
      %v5624 = vsel %vm1894, %v5619, %v5623
      %v5625 = vshrl.u32 %v5249, 16
      %v5627 = vrot.slane %v5625, 4
      %v5628 = vor.u32 %v5627, %v5623
      %v5629 = vrot.slane %v5628, 4
      %v5631 = vshll.u32 %v5250, 16
      %v5633 = vrot.slane %v5631, 5
      %v5634 = vsel %vm1894, %v5629, %v5633
      %s5635 = scalar_lea.vmem %s6, 14
      %v5636 = vld [vmem:[%s5635] sm:$0x3]
      %v5637 = vunpack.c.l.b16 %v5264
      %v5638 = vunpack.c.l.b16 %v5274
      %v5639 = vunpack.c.l.b16 %v5288
      %v5640 = vunpack.c.l.b16 %v5298
      %v5641 = vunpack.c.l.b16 %v5312
      %v5642 = vunpack.c.l.b16 %v5322
      %v5643 = vunpack.c.l.b16 %v5336
      %v5644 = vunpack.c.l.b16 %v5346
      %v5645 = vunpack.c.l.b16 %v5360
      %v5646 = vunpack.c.l.b16 %v5370
      %v5647 = vunpack.c.l.b16 %v5384
      %v5648 = vunpack.c.l.b16 %v5394
      %v5649 = vunpack.c.l.b16 %v5408
      %v5650 = vunpack.c.l.b16 %v5418
      %v5651 = vunpack.c.l.b16 %v5432
      %v5652 = vunpack.c.l.b16 %v5442
      %v5653 = vunpack.c.l.b16 %v5456
      %v5654 = vunpack.c.l.b16 %v5466
      %v5655 = vunpack.c.l.b16 %v5480
      %v5656 = vunpack.c.l.b16 %v5490
      %v5657 = vunpack.c.l.b16 %v5504
      %v5658 = vunpack.c.l.b16 %v5514
      %v5659 = vunpack.c.l.b16 %v5528
      %v5660 = vunpack.c.l.b16 %v5538
      %v5661 = vunpack.c.l.b16 %v5552
      %v5662 = vunpack.c.l.b16 %v5562
      %v5663 = vunpack.c.l.b16 %v5576
      %v5664 = vunpack.c.l.b16 %v5586
      %v5665 = vunpack.c.l.b16 %v5600
      %v5666 = vunpack.c.l.b16 %v5610
      %v5667 = vunpack.c.l.b16 %v5624
      %v5668 = vunpack.c.l.b16 %v5634
      %v5669 = vpack.c.b16 %v5638, %v5637
      %v5670 = vpack.c.b16 %v5640, %v5639
      %v5671 = vpack.c.b16 %v5642, %v5641
      %v5672 = vpack.c.b16 %v5644, %v5643
      %v5673 = vpack.c.b16 %v5646, %v5645
      %v5674 = vpack.c.b16 %v5648, %v5647
      %v5675 = vpack.c.b16 %v5650, %v5649
      %v5676 = vpack.c.b16 %v5652, %v5651
      %v5677 = vpack.c.b16 %v5654, %v5653
      %v5678 = vpack.c.b16 %v5656, %v5655
      %v5679 = vpack.c.b16 %v5658, %v5657
      %v5680 = vpack.c.b16 %v5660, %v5659
      %v5681 = vpack.c.b16 %v5662, %v5661
      %v5682 = vpack.c.b16 %v5664, %v5663
      %v5683 = vpack.c.b16 %v5666, %v5665
      %v5684 = vpack.c.b16 %v5668, %v5667
      %v5686 = vsel %vm721, %v5669, 0
      %v5689 = vsel %vm721, %v5670, 0
      %v5692 = vsel %vm721, %v5671, 0
      %v5695 = vsel %vm721, %v5672, 0
      %v5698 = vsel %vm721, %v5673, 0
      %v5701 = vsel %vm721, %v5674, 0
      %v5704 = vsel %vm721, %v5675, 0
      %v5707 = vsel %vm721, %v5676, 0
      %v5710 = vsel %vm721, %v5677, 0
      %v5713 = vsel %vm721, %v5678, 0
      %v5716 = vsel %vm721, %v5679, 0
      %v5719 = vsel %vm721, %v5680, 0
      %v5722 = vsel %vm721, %v5681, 0
      %v5725 = vsel %vm721, %v5682, 0
      %v5728 = vsel %vm721, %v5683, 0
      %v5731 = vsel %vm721, %v5684, 0
      %v5734 = vsel %vm1052, %v5636, 0
      %5736 = vmatprep.subr.bf16.mxu0 0
      %5737 = vmatpush1.bf16.msra.mxu0 %v5734
      %5738 = vmatprep.subr.bf16.mxu0 0
      %5739 = vmatpush1.bf16.msra.mxu0 0
      %5740 = vmatprep.subr.bf16.mxu0 0
      %5741 = vmatpush1.bf16.msra.mxu0 0
      %5742 = vmatprep.subr.bf16.mxu0 0
      %5743 = vmatpush1.bf16.msra.mxu0 0
      %5744 = vmatprep.subr.bf16.mxu0 0
      %5745 = vmatpush1.bf16.msra.mxu0 0
      %5746 = vmatprep.subr.bf16.mxu0 0
      %5747 = vmatpush1.bf16.msra.mxu0 0
      %5748 = vmatprep.subr.bf16.mxu0 0
      %5749 = vmatpush1.bf16.msra.mxu0 0
      %5750 = vmatprep.subr.bf16.mxu0 0
      %5751 = vmatpush1.bf16.msra.mxu0 0
      %5752 = vmatprep.subr.bf16.mxu0 0
      %5753 = vmatpush1.bf16.msra.mxu0 0
      %5754 = vmatprep.subr.bf16.mxu0 0
      %5755 = vmatpush1.bf16.msra.mxu0 0
      %5756 = vmatprep.subr.bf16.mxu0 0
      %5757 = vmatpush1.bf16.msra.mxu0 0
      %5758 = vmatprep.subr.bf16.mxu0 0
      %5759 = vmatpush1.bf16.msra.mxu0 0
      %5760 = vmatprep.subr.bf16.mxu0 0
      %5761 = vmatpush1.bf16.msra.mxu0 0
      %5762 = vmatprep.subr.bf16.mxu0 0
      %5763 = vmatpush1.bf16.msra.mxu0 0
      %5764 = vmatprep.subr.bf16.mxu0 0
      %5765 = vmatpush1.bf16.msra.mxu0 0
      %5766 = vmatprep.subr.bf16.mxu0 0
      %5767 = vmatpush1.bf16.msra.mxu0 0
      %5768 = vmatprep.mubr.bf16.mxu0 0
      %5769 = vmatmul.mubr.bf16.gmra.mrb[0].mxu0 %v5686
      %v5770 = vpop.f32.mrb[0].mxu0
      %v5771 = vadd.f32 0.0, %v5770
      %v5772 = vpop.f32.mrb[0].mxu0
      %v5773 = vpop.f32.mrb[0].mxu0
      %v5774 = vadd.f32 0.0, %v5773
      %v5775 = vpop.f32.mrb[0].mxu0
      %5776 = vmatprep.mubr.bf16.mxu0 0
      %5777 = vmatmul.mubr.bf16.gmra.mrb[0].mxu0 %v5689
      %v5778 = vpop.f32.mrb[0].mxu0
      %v5779 = vadd.f32 0.0, %v5778
      %v5780 = vpop.f32.mrb[0].mxu0
      %v5781 = vpop.f32.mrb[0].mxu0
      %v5782 = vadd.f32 0.0, %v5781
      %v5783 = vpop.f32.mrb[0].mxu0
      %5784 = vmatprep.mubr.bf16.mxu0 0
      %5785 = vmatmul.mubr.bf16.gmra.mrb[0].mxu0 %v5692
      %v5786 = vpop.f32.mrb[0].mxu0
      %v5787 = vadd.f32 0.0, %v5786
      %v5788 = vpop.f32.mrb[0].mxu0
      %v5789 = vpop.f32.mrb[0].mxu0
      %v5790 = vadd.f32 0.0, %v5789
      %v5791 = vpop.f32.mrb[0].mxu0
      %5792 = vmatprep.mubr.bf16.mxu0 0
      %5793 = vmatmul.mubr.bf16.gmra.mrb[0].mxu0 %v5695
      %v5794 = vpop.f32.mrb[0].mxu0
      %v5795 = vadd.f32 0.0, %v5794
      %v5796 = vpop.f32.mrb[0].mxu0
      %v5797 = vpop.f32.mrb[0].mxu0
      %v5798 = vadd.f32 0.0, %v5797
      %v5799 = vpop.f32.mrb[0].mxu0
      %5800 = vmatprep.mubr.bf16.mxu0 0
      %5801 = vmatmul.mubr.bf16.gmra.mrb[0].mxu0 %v5698
      %v5802 = vpop.f32.mrb[0].mxu0
      %v5803 = vadd.f32 0.0, %v5802
      %v5804 = vpop.f32.mrb[0].mxu0
      %v5805 = vpop.f32.mrb[0].mxu0
      %v5806 = vadd.f32 0.0, %v5805
      %v5807 = vpop.f32.mrb[0].mxu0
      %5808 = vmatprep.mubr.bf16.mxu0 0
      %5809 = vmatmul.mubr.bf16.gmra.mrb[0].mxu0 %v5701
      %v5810 = vpop.f32.mrb[0].mxu0
      %v5811 = vadd.f32 0.0, %v5810
      %v5812 = vpop.f32.mrb[0].mxu0
      %v5813 = vpop.f32.mrb[0].mxu0
      %v5814 = vadd.f32 0.0, %v5813
      %v5815 = vpop.f32.mrb[0].mxu0
      %5816 = vmatprep.mubr.bf16.mxu0 0
      %5817 = vmatmul.mubr.bf16.gmra.mrb[0].mxu0 %v5704
      %v5818 = vpop.f32.mrb[0].mxu0
      %v5819 = vadd.f32 0.0, %v5818
      %v5820 = vpop.f32.mrb[0].mxu0
      %v5821 = vpop.f32.mrb[0].mxu0
      %v5822 = vadd.f32 0.0, %v5821
      %v5823 = vpop.f32.mrb[0].mxu0
      %5824 = vmatprep.mubr.bf16.mxu0 0
      %5825 = vmatmul.mubr.bf16.gmra.mrb[0].mxu0 %v5707
      %v5826 = vpop.f32.mrb[0].mxu0
      %v5827 = vadd.f32 0.0, %v5826
      %v5828 = vpop.f32.mrb[0].mxu0
      %v5829 = vpop.f32.mrb[0].mxu0
      %v5830 = vadd.f32 0.0, %v5829
      %v5831 = vpop.f32.mrb[0].mxu0
      %5832 = vmatprep.mubr.bf16.mxu0 0
      %5833 = vmatmul.mubr.bf16.gmra.mrb[0].mxu0 %v5710
      %v5834 = vpop.f32.mrb[0].mxu0
      %v5835 = vadd.f32 0.0, %v5834
      %v5836 = vpop.f32.mrb[0].mxu0
      %v5837 = vpop.f32.mrb[0].mxu0
      %v5838 = vadd.f32 0.0, %v5837
      %v5839 = vpop.f32.mrb[0].mxu0
      %5840 = vmatprep.mubr.bf16.mxu0 0
      %5841 = vmatmul.mubr.bf16.gmra.mrb[0].mxu0 %v5713
      %v5842 = vpop.f32.mrb[0].mxu0
      %v5843 = vadd.f32 0.0, %v5842
      %v5844 = vpop.f32.mrb[0].mxu0
      %v5845 = vpop.f32.mrb[0].mxu0
      %v5846 = vadd.f32 0.0, %v5845
      %v5847 = vpop.f32.mrb[0].mxu0
      %5848 = vmatprep.mubr.bf16.mxu0 0
      %5849 = vmatmul.mubr.bf16.gmra.mrb[0].mxu0 %v5716
      %v5850 = vpop.f32.mrb[0].mxu0
      %v5851 = vadd.f32 0.0, %v5850
      %v5852 = vpop.f32.mrb[0].mxu0
      %v5853 = vpop.f32.mrb[0].mxu0
      %v5854 = vadd.f32 0.0, %v5853
      %v5855 = vpop.f32.mrb[0].mxu0
      %5856 = vmatprep.mubr.bf16.mxu0 0
      %5857 = vmatmul.mubr.bf16.gmra.mrb[0].mxu0 %v5719
      %v5858 = vpop.f32.mrb[0].mxu0
      %v5859 = vadd.f32 0.0, %v5858
      %v5860 = vpop.f32.mrb[0].mxu0
      %v5861 = vpop.f32.mrb[0].mxu0
      %v5862 = vadd.f32 0.0, %v5861
      %v5863 = vpop.f32.mrb[0].mxu0
      %5864 = vmatprep.mubr.bf16.mxu0 0
      %5865 = vmatmul.mubr.bf16.gmra.mrb[0].mxu0 %v5722
      %v5866 = vpop.f32.mrb[0].mxu0
      %v5867 = vadd.f32 0.0, %v5866
      %v5868 = vpop.f32.mrb[0].mxu0
      %v5869 = vpop.f32.mrb[0].mxu0
      %v5870 = vadd.f32 0.0, %v5869
      %v5871 = vpop.f32.mrb[0].mxu0
      %5872 = vmatprep.mubr.bf16.mxu0 0
      %5873 = vmatmul.mubr.bf16.gmra.mrb[0].mxu0 %v5725
      %v5874 = vpop.f32.mrb[0].mxu0
      %v5875 = vadd.f32 0.0, %v5874
      %v5876 = vpop.f32.mrb[0].mxu0
      %v5877 = vpop.f32.mrb[0].mxu0
      %v5878 = vadd.f32 0.0, %v5877
      %v5879 = vpop.f32.mrb[0].mxu0
      %5880 = vmatprep.mubr.bf16.mxu0 0
      %5881 = vmatmul.mubr.bf16.gmra.mrb[0].mxu0 %v5728
      %v5882 = vpop.f32.mrb[0].mxu0
      %v5883 = vadd.f32 0.0, %v5882
      %v5884 = vpop.f32.mrb[0].mxu0
      %v5885 = vpop.f32.mrb[0].mxu0
      %v5886 = vadd.f32 0.0, %v5885
      %v5887 = vpop.f32.mrb[0].mxu0
      %5888 = vmatprep.mubr.bf16.mxu0 0
      %5889 = vmatmul.mubr.bf16.gmra.mrb[0].mxu0 %v5731
      %v5890 = vpop.f32.mrb[0].mxu0
      %v5891 = vadd.f32 0.0, %v5890
      %v5892 = vpop.f32.mrb[0].mxu0
      %v5893 = vpop.f32.mrb[0].mxu0
      %v5894 = vadd.f32 0.0, %v5893
      %v5895 = vpop.f32.mrb[0].mxu0
      %5896 = vdwg.mxu0
      %v5897 = vadd.f32 %v5171, %v5771
      %v5898 = vadd.f32 %v5172, %v5774
      %v5899 = vadd.f32 %v5173, %v5779
      %v5900 = vadd.f32 %v5174, %v5782
      %v5901 = vadd.f32 %v5175, %v5787
      %v5902 = vadd.f32 %v5176, %v5790
      %v5903 = vadd.f32 %v5177, %v5795
      %v5904 = vadd.f32 %v5178, %v5798
      %v5905 = vadd.f32 %v5179, %v5803
      %v5906 = vadd.f32 %v5180, %v5806
      %v5907 = vadd.f32 %v5181, %v5811
      %v5908 = vadd.f32 %v5182, %v5814
      %v5909 = vadd.f32 %v5183, %v5819
      %v5910 = vadd.f32 %v5184, %v5822
      %v5911 = vadd.f32 %v5185, %v5827
      %v5912 = vadd.f32 %v5186, %v5830
      %v5913 = vadd.f32 %v5187, %v5835
      %v5914 = vadd.f32 %v5188, %v5838
      %v5915 = vadd.f32 %v5189, %v5843
      %v5916 = vadd.f32 %v5190, %v5846
      %v5917 = vadd.f32 %v5191, %v5851
      %v5918 = vadd.f32 %v5192, %v5854
      %v5919 = vadd.f32 %v5193, %v5859
      %v5920 = vadd.f32 %v5194, %v5862
      %v5921 = vadd.f32 %v5195, %v5867
      %v5922 = vadd.f32 %v5196, %v5870
      %v5923 = vadd.f32 %v5197, %v5875
      %v5924 = vadd.f32 %v5198, %v5878
      %v5925 = vadd.f32 %v5199, %v5883
      %v5926 = vadd.f32 %v5200, %v5886
      %v5927 = vadd.f32 %v5201, %v5891
      %v5928 = vadd.f32 %v5202, %v5894
      %v5929 = vld [vmem:[%s4844] sm:$0xe]
      %v5930 = vld [vmem:[%s4844 + $0xc] sm:$0xe]
      %v5931 = vld [vmem:[%s4844 + $0x18] sm:$0xe]
      %v5932 = vld [vmem:[%s4844 + $0x24] sm:$0xe]
      %v5933 = vld [vmem:[%s4844 + $0x30] sm:$0xe]
      %v5934 = vld [vmem:[%s4844 + $0x3c] sm:$0xe]
      %v5935 = vld [vmem:[%s4844 + $0x48] sm:$0xe]
      %v5936 = vld [vmem:[%s4844 + $0x54] sm:$0xe]
      %v5937 = vld [vmem:[%s4844 + $0x60] sm:$0xe]
      %v5938 = vld [vmem:[%s4844 + $0x6c] sm:$0xe]
      %v5939 = vld [vmem:[%s4844 + $0x78] sm:$0xe]
      %v5940 = vld [vmem:[%s4844 + $0x84] sm:$0xe]
      %v5941 = vld [vmem:[%s4844 + $0x90] sm:$0xe]
      %v5942 = vld [vmem:[%s4844 + $0x9c] sm:$0xe]
      %v5943 = vld [vmem:[%s4844 + $0xa8] sm:$0xe]
      %v5944 = vld [vmem:[%s4844 + $0xb4] sm:$0xe]
      %v5993 = vrot.slane %v5929, 5
      %v5994 = vrot.slane %v5993, 4
      %v5995 = vrot.slane %v5204, 5
      %v5996 = vsel %vm2883, %v5994, %v5995
      %v5997 = vrot.slane %v5995, 4
      %v5998 = vrot.slane %v5205, 5
      %v5999 = vsel %vm2883, %v5997, %v5998
      %v6000 = vrot.slane %v5930, 5
      %v6001 = vrot.slane %v6000, 4
      %v6002 = vrot.slane %v5207, 5
      %v6003 = vsel %vm2883, %v6001, %v6002
      %v6004 = vrot.slane %v6002, 4
      %v6005 = vrot.slane %v5208, 5
      %v6006 = vsel %vm2883, %v6004, %v6005
      %v6007 = vrot.slane %v5931, 5
      %v6008 = vrot.slane %v6007, 4
      %v6009 = vrot.slane %v5210, 5
      %v6010 = vsel %vm2883, %v6008, %v6009
      %v6011 = vrot.slane %v6009, 4
      %v6012 = vrot.slane %v5211, 5
      %v6013 = vsel %vm2883, %v6011, %v6012
      %v6014 = vrot.slane %v5932, 5
      %v6015 = vrot.slane %v6014, 4
      %v6016 = vrot.slane %v5213, 5
      %v6017 = vsel %vm2883, %v6015, %v6016
      %v6018 = vrot.slane %v6016, 4
      %v6019 = vrot.slane %v5214, 5
      %v6020 = vsel %vm2883, %v6018, %v6019
      %v6021 = vrot.slane %v5933, 5
      %v6022 = vrot.slane %v6021, 4
      %v6023 = vrot.slane %v5216, 5
      %v6024 = vsel %vm2883, %v6022, %v6023
      %v6025 = vrot.slane %v6023, 4
      %v6026 = vrot.slane %v5217, 5
      %v6027 = vsel %vm2883, %v6025, %v6026
      %v6028 = vrot.slane %v5934, 5
      %v6029 = vrot.slane %v6028, 4
      %v6030 = vrot.slane %v5219, 5
      %v6031 = vsel %vm2883, %v6029, %v6030
      %v6032 = vrot.slane %v6030, 4
      %v6033 = vrot.slane %v5220, 5
      %v6034 = vsel %vm2883, %v6032, %v6033
      %v6035 = vrot.slane %v5935, 5
      %v6036 = vrot.slane %v6035, 4
      %v6037 = vrot.slane %v5222, 5
      %v6038 = vsel %vm2883, %v6036, %v6037
      %v6039 = vrot.slane %v6037, 4
      %v6040 = vrot.slane %v5223, 5
      %v6041 = vsel %vm2883, %v6039, %v6040
      %v6042 = vrot.slane %v5936, 5
      %v6043 = vrot.slane %v6042, 4
      %v6044 = vrot.slane %v5225, 5
      %v6045 = vsel %vm2883, %v6043, %v6044
      %v6046 = vrot.slane %v6044, 4
      %v6047 = vrot.slane %v5226, 5
      %v6048 = vsel %vm2883, %v6046, %v6047
      %v6049 = vrot.slane %v5937, 5
      %v6050 = vrot.slane %v6049, 4
      %v6051 = vrot.slane %v5228, 5
      %v6052 = vsel %vm2883, %v6050, %v6051
      %v6053 = vrot.slane %v6051, 4
      %v6054 = vrot.slane %v5229, 5
      %v6055 = vsel %vm2883, %v6053, %v6054
      %v6056 = vrot.slane %v5938, 5
      %v6057 = vrot.slane %v6056, 4
      %v6058 = vrot.slane %v5231, 5
      %v6059 = vsel %vm2883, %v6057, %v6058
      %v6060 = vrot.slane %v6058, 4
      %v6061 = vrot.slane %v5232, 5
      %v6062 = vsel %vm2883, %v6060, %v6061
      %v6063 = vrot.slane %v5939, 5
      %v6064 = vrot.slane %v6063, 4
      %v6065 = vrot.slane %v5234, 5
      %v6066 = vsel %vm2883, %v6064, %v6065
      %v6067 = vrot.slane %v6065, 4
      %v6068 = vrot.slane %v5235, 5
      %v6069 = vsel %vm2883, %v6067, %v6068
      %v6070 = vrot.slane %v5940, 5
      %v6071 = vrot.slane %v6070, 4
      %v6072 = vrot.slane %v5237, 5
      %v6073 = vsel %vm2883, %v6071, %v6072
      %v6074 = vrot.slane %v6072, 4
      %v6075 = vrot.slane %v5238, 5
      %v6076 = vsel %vm2883, %v6074, %v6075
      %v6077 = vrot.slane %v5941, 5
      %v6078 = vrot.slane %v6077, 4
      %v6079 = vrot.slane %v5240, 5
      %v6080 = vsel %vm2883, %v6078, %v6079
      %v6081 = vrot.slane %v6079, 4
      %v6082 = vrot.slane %v5241, 5
      %v6083 = vsel %vm2883, %v6081, %v6082
      %v6084 = vrot.slane %v5942, 5
      %v6085 = vrot.slane %v6084, 4
      %v6086 = vrot.slane %v5243, 5
      %v6087 = vsel %vm2883, %v6085, %v6086
      %v6088 = vrot.slane %v6086, 4
      %v6089 = vrot.slane %v5244, 5
      %v6090 = vsel %vm2883, %v6088, %v6089
      %v6091 = vrot.slane %v5943, 5
      %v6092 = vrot.slane %v6091, 4
      %v6093 = vrot.slane %v5246, 5
      %v6094 = vsel %vm2883, %v6092, %v6093
      %v6095 = vrot.slane %v6093, 4
      %v6096 = vrot.slane %v5247, 5
      %v6097 = vsel %vm2883, %v6095, %v6096
      %v6098 = vrot.slane %v5944, 5
      %v6099 = vrot.slane %v6098, 4
      %v6100 = vrot.slane %v5249, 5
      %v6101 = vsel %vm2883, %v6099, %v6100
      %v6102 = vrot.slane %v6100, 4
      %v6103 = vrot.slane %v5250, 5
      %v6104 = vsel %vm2883, %v6102, %v6103
      %s6105 = scalar_lea.vmem %s6, 16
      %v6106 = vld [vmem:[%s6105] sm:$0x3]
      %v6107 = vunpack.c.l.b16 %v5996
      %v6108 = vunpack.c.l.b16 %v5999
      %v6109 = vunpack.c.l.b16 %v6003
      %v6110 = vunpack.c.l.b16 %v6006
      %v6111 = vunpack.c.l.b16 %v6010
      %v6112 = vunpack.c.l.b16 %v6013
      %v6113 = vunpack.c.l.b16 %v6017
      %v6114 = vunpack.c.l.b16 %v6020
      %v6115 = vunpack.c.l.b16 %v6024
      %v6116 = vunpack.c.l.b16 %v6027
      %v6117 = vunpack.c.l.b16 %v6031
      %v6118 = vunpack.c.l.b16 %v6034
      %v6119 = vunpack.c.l.b16 %v6038
      %v6120 = vunpack.c.l.b16 %v6041
      %v6121 = vunpack.c.l.b16 %v6045
      %v6122 = vunpack.c.l.b16 %v6048
      %v6123 = vunpack.c.l.b16 %v6052
      %v6124 = vunpack.c.l.b16 %v6055
      %v6125 = vunpack.c.l.b16 %v6059
      %v6126 = vunpack.c.l.b16 %v6062
      %v6127 = vunpack.c.l.b16 %v6066
      %v6128 = vunpack.c.l.b16 %v6069
      %v6129 = vunpack.c.l.b16 %v6073
      %v6130 = vunpack.c.l.b16 %v6076
      %v6131 = vunpack.c.l.b16 %v6080
      %v6132 = vunpack.c.l.b16 %v6083
      %v6133 = vunpack.c.l.b16 %v6087
      %v6134 = vunpack.c.l.b16 %v6090
      %v6135 = vunpack.c.l.b16 %v6094
      %v6136 = vunpack.c.l.b16 %v6097
      %v6137 = vunpack.c.l.b16 %v6101
      %v6138 = vunpack.c.l.b16 %v6104
      %v6139 = vpack.c.b16 %v6108, %v6107
      %v6140 = vpack.c.b16 %v6110, %v6109
      %v6141 = vpack.c.b16 %v6112, %v6111
      %v6142 = vpack.c.b16 %v6114, %v6113
      %v6143 = vpack.c.b16 %v6116, %v6115
      %v6144 = vpack.c.b16 %v6118, %v6117
      %v6145 = vpack.c.b16 %v6120, %v6119
      %v6146 = vpack.c.b16 %v6122, %v6121
      %v6147 = vpack.c.b16 %v6124, %v6123
      %v6148 = vpack.c.b16 %v6126, %v6125
      %v6149 = vpack.c.b16 %v6128, %v6127
      %v6150 = vpack.c.b16 %v6130, %v6129
      %v6151 = vpack.c.b16 %v6132, %v6131
      %v6152 = vpack.c.b16 %v6134, %v6133
      %v6153 = vpack.c.b16 %v6136, %v6135
      %v6154 = vpack.c.b16 %v6138, %v6137
      %v6156 = vsel %vm721, %v6139, 0
      %v6159 = vsel %vm721, %v6140, 0
      %v6162 = vsel %vm721, %v6141, 0
      %v6165 = vsel %vm721, %v6142, 0
      %v6168 = vsel %vm721, %v6143, 0
      %v6171 = vsel %vm721, %v6144, 0
      %v6174 = vsel %vm721, %v6145, 0
      %v6177 = vsel %vm721, %v6146, 0
      %v6180 = vsel %vm721, %v6147, 0
      %v6183 = vsel %vm721, %v6148, 0
      %v6186 = vsel %vm721, %v6149, 0
      %v6189 = vsel %vm721, %v6150, 0
      %v6192 = vsel %vm721, %v6151, 0
      %v6195 = vsel %vm721, %v6152, 0
      %v6198 = vsel %vm721, %v6153, 0
      %v6201 = vsel %vm721, %v6154, 0
      %v6204 = vsel %vm1052, %v6106, 0
      %6206 = vmatprep.subr.bf16.mxu0 0
      %6207 = vmatpush1.bf16.msra.mxu0 %v6204
      %6208 = vmatprep.subr.bf16.mxu0 0
      %6209 = vmatpush1.bf16.msra.mxu0 0
      %6210 = vmatprep.subr.bf16.mxu0 0
      %6211 = vmatpush1.bf16.msra.mxu0 0
      %6212 = vmatprep.subr.bf16.mxu0 0
      %6213 = vmatpush1.bf16.msra.mxu0 0
      %6214 = vmatprep.subr.bf16.mxu0 0
      %6215 = vmatpush1.bf16.msra.mxu0 0
      %6216 = vmatprep.subr.bf16.mxu0 0
      %6217 = vmatpush1.bf16.msra.mxu0 0
      %6218 = vmatprep.subr.bf16.mxu0 0
      %6219 = vmatpush1.bf16.msra.mxu0 0
      %6220 = vmatprep.subr.bf16.mxu0 0
      %6221 = vmatpush1.bf16.msra.mxu0 0
      %6222 = vmatprep.subr.bf16.mxu0 0
      %6223 = vmatpush1.bf16.msra.mxu0 0
      %6224 = vmatprep.subr.bf16.mxu0 0
      %6225 = vmatpush1.bf16.msra.mxu0 0
      %6226 = vmatprep.subr.bf16.mxu0 0
      %6227 = vmatpush1.bf16.msra.mxu0 0
      %6228 = vmatprep.subr.bf16.mxu0 0
      %6229 = vmatpush1.bf16.msra.mxu0 0
      %6230 = vmatprep.subr.bf16.mxu0 0
      %6231 = vmatpush1.bf16.msra.mxu0 0
      %6232 = vmatprep.subr.bf16.mxu0 0
      %6233 = vmatpush1.bf16.msra.mxu0 0
      %6234 = vmatprep.subr.bf16.mxu0 0
      %6235 = vmatpush1.bf16.msra.mxu0 0
      %6236 = vmatprep.subr.bf16.mxu0 0
      %6237 = vmatpush1.bf16.msra.mxu0 0
      %6238 = vmatprep.mubr.bf16.mxu0 0
      %6239 = vmatmul.mubr.bf16.gmra.mrb[0].mxu0 %v6156
      %v6240 = vpop.f32.mrb[0].mxu0
      %v6241 = vadd.f32 0.0, %v6240
      %v6242 = vpop.f32.mrb[0].mxu0
      %v6243 = vpop.f32.mrb[0].mxu0
      %v6244 = vadd.f32 0.0, %v6243
      %v6245 = vpop.f32.mrb[0].mxu0
      %6246 = vmatprep.mubr.bf16.mxu0 0
      %6247 = vmatmul.mubr.bf16.gmra.mrb[0].mxu0 %v6159
      %v6248 = vpop.f32.mrb[0].mxu0
      %v6249 = vadd.f32 0.0, %v6248
      %v6250 = vpop.f32.mrb[0].mxu0
      %v6251 = vpop.f32.mrb[0].mxu0
      %v6252 = vadd.f32 0.0, %v6251
      %v6253 = vpop.f32.mrb[0].mxu0
      %6254 = vmatprep.mubr.bf16.mxu0 0
      %6255 = vmatmul.mubr.bf16.gmra.mrb[0].mxu0 %v6162
      %v6256 = vpop.f32.mrb[0].mxu0
      %v6257 = vadd.f32 0.0, %v6256
      %v6258 = vpop.f32.mrb[0].mxu0
      %v6259 = vpop.f32.mrb[0].mxu0
      %v6260 = vadd.f32 0.0, %v6259
      %v6261 = vpop.f32.mrb[0].mxu0
      %6262 = vmatprep.mubr.bf16.mxu0 0
      %6263 = vmatmul.mubr.bf16.gmra.mrb[0].mxu0 %v6165
      %v6264 = vpop.f32.mrb[0].mxu0
      %v6265 = vadd.f32 0.0, %v6264
      %v6266 = vpop.f32.mrb[0].mxu0
      %v6267 = vpop.f32.mrb[0].mxu0
      %v6268 = vadd.f32 0.0, %v6267
      %v6269 = vpop.f32.mrb[0].mxu0
      %6270 = vmatprep.mubr.bf16.mxu0 0
      %6271 = vmatmul.mubr.bf16.gmra.mrb[0].mxu0 %v6168
      %v6272 = vpop.f32.mrb[0].mxu0
      %v6273 = vadd.f32 0.0, %v6272
      %v6274 = vpop.f32.mrb[0].mxu0
      %v6275 = vpop.f32.mrb[0].mxu0
      %v6276 = vadd.f32 0.0, %v6275
      %v6277 = vpop.f32.mrb[0].mxu0
      %6278 = vmatprep.mubr.bf16.mxu0 0
      %6279 = vmatmul.mubr.bf16.gmra.mrb[0].mxu0 %v6171
      %v6280 = vpop.f32.mrb[0].mxu0
      %v6281 = vadd.f32 0.0, %v6280
      %v6282 = vpop.f32.mrb[0].mxu0
      %v6283 = vpop.f32.mrb[0].mxu0
      %v6284 = vadd.f32 0.0, %v6283
      %v6285 = vpop.f32.mrb[0].mxu0
      %6286 = vmatprep.mubr.bf16.mxu0 0
      %6287 = vmatmul.mubr.bf16.gmra.mrb[0].mxu0 %v6174
      %v6288 = vpop.f32.mrb[0].mxu0
      %v6289 = vadd.f32 0.0, %v6288
      %v6290 = vpop.f32.mrb[0].mxu0
      %v6291 = vpop.f32.mrb[0].mxu0
      %v6292 = vadd.f32 0.0, %v6291
      %v6293 = vpop.f32.mrb[0].mxu0
      %6294 = vmatprep.mubr.bf16.mxu0 0
      %6295 = vmatmul.mubr.bf16.gmra.mrb[0].mxu0 %v6177
      %v6296 = vpop.f32.mrb[0].mxu0
      %v6297 = vadd.f32 0.0, %v6296
      %v6298 = vpop.f32.mrb[0].mxu0
      %v6299 = vpop.f32.mrb[0].mxu0
      %v6300 = vadd.f32 0.0, %v6299
      %v6301 = vpop.f32.mrb[0].mxu0
      %6302 = vmatprep.mubr.bf16.mxu0 0
      %6303 = vmatmul.mubr.bf16.gmra.mrb[0].mxu0 %v6180
      %v6304 = vpop.f32.mrb[0].mxu0
      %v6305 = vadd.f32 0.0, %v6304
      %v6306 = vpop.f32.mrb[0].mxu0
      %v6307 = vpop.f32.mrb[0].mxu0
      %v6308 = vadd.f32 0.0, %v6307
      %v6309 = vpop.f32.mrb[0].mxu0
      %6310 = vmatprep.mubr.bf16.mxu0 0
      %6311 = vmatmul.mubr.bf16.gmra.mrb[0].mxu0 %v6183
      %v6312 = vpop.f32.mrb[0].mxu0
      %v6313 = vadd.f32 0.0, %v6312
      %v6314 = vpop.f32.mrb[0].mxu0
      %v6315 = vpop.f32.mrb[0].mxu0
      %v6316 = vadd.f32 0.0, %v6315
      %v6317 = vpop.f32.mrb[0].mxu0
      %6318 = vmatprep.mubr.bf16.mxu0 0
      %6319 = vmatmul.mubr.bf16.gmra.mrb[0].mxu0 %v6186
      %v6320 = vpop.f32.mrb[0].mxu0
      %v6321 = vadd.f32 0.0, %v6320
      %v6322 = vpop.f32.mrb[0].mxu0
      %v6323 = vpop.f32.mrb[0].mxu0
      %v6324 = vadd.f32 0.0, %v6323
      %v6325 = vpop.f32.mrb[0].mxu0
      %6326 = vmatprep.mubr.bf16.mxu0 0
      %6327 = vmatmul.mubr.bf16.gmra.mrb[0].mxu0 %v6189
      %v6328 = vpop.f32.mrb[0].mxu0
      %v6329 = vadd.f32 0.0, %v6328
      %v6330 = vpop.f32.mrb[0].mxu0
      %v6331 = vpop.f32.mrb[0].mxu0
      %v6332 = vadd.f32 0.0, %v6331
      %v6333 = vpop.f32.mrb[0].mxu0
      %6334 = vmatprep.mubr.bf16.mxu0 0
      %6335 = vmatmul.mubr.bf16.gmra.mrb[0].mxu0 %v6192
      %v6336 = vpop.f32.mrb[0].mxu0
      %v6337 = vadd.f32 0.0, %v6336
      %v6338 = vpop.f32.mrb[0].mxu0
      %v6339 = vpop.f32.mrb[0].mxu0
      %v6340 = vadd.f32 0.0, %v6339
      %v6341 = vpop.f32.mrb[0].mxu0
      %6342 = vmatprep.mubr.bf16.mxu0 0
      %6343 = vmatmul.mubr.bf16.gmra.mrb[0].mxu0 %v6195
      %v6344 = vpop.f32.mrb[0].mxu0
      %v6345 = vadd.f32 0.0, %v6344
      %v6346 = vpop.f32.mrb[0].mxu0
      %v6347 = vpop.f32.mrb[0].mxu0
      %v6348 = vadd.f32 0.0, %v6347
      %v6349 = vpop.f32.mrb[0].mxu0
      %6350 = vmatprep.mubr.bf16.mxu0 0
      %6351 = vmatmul.mubr.bf16.gmra.mrb[0].mxu0 %v6198
      %v6352 = vpop.f32.mrb[0].mxu0
      %v6353 = vadd.f32 0.0, %v6352
      %v6354 = vpop.f32.mrb[0].mxu0
      %v6355 = vpop.f32.mrb[0].mxu0
      %v6356 = vadd.f32 0.0, %v6355
      %v6357 = vpop.f32.mrb[0].mxu0
      %6358 = vmatprep.mubr.bf16.mxu0 0
      %6359 = vmatmul.mubr.bf16.gmra.mrb[0].mxu0 %v6201
      %v6360 = vpop.f32.mrb[0].mxu0
      %v6361 = vadd.f32 0.0, %v6360
      %v6362 = vpop.f32.mrb[0].mxu0
      %v6363 = vpop.f32.mrb[0].mxu0
      %v6364 = vadd.f32 0.0, %v6363
      %v6365 = vpop.f32.mrb[0].mxu0
      %6366 = vdwg.mxu0
      %v6367 = vadd.f32 %v5897, %v6241
      %v6368 = vadd.f32 %v5898, %v6244
      %v6369 = vadd.f32 %v5899, %v6249
      %v6370 = vadd.f32 %v5900, %v6252
      %v6371 = vadd.f32 %v5901, %v6257
      %v6372 = vadd.f32 %v5902, %v6260
      %v6373 = vadd.f32 %v5903, %v6265
      %v6374 = vadd.f32 %v5904, %v6268
      %v6375 = vadd.f32 %v5905, %v6273
      %v6376 = vadd.f32 %v5906, %v6276
      %v6377 = vadd.f32 %v5907, %v6281
      %v6378 = vadd.f32 %v5908, %v6284
      %v6379 = vadd.f32 %v5909, %v6289
      %v6380 = vadd.f32 %v5910, %v6292
      %v6381 = vadd.f32 %v5911, %v6297
      %v6382 = vadd.f32 %v5912, %v6300
      %v6383 = vadd.f32 %v5913, %v6305
      %v6384 = vadd.f32 %v5914, %v6308
      %v6385 = vadd.f32 %v5915, %v6313
      %v6386 = vadd.f32 %v5916, %v6316
      %v6387 = vadd.f32 %v5917, %v6321
      %v6388 = vadd.f32 %v5918, %v6324
      %v6389 = vadd.f32 %v5919, %v6329
      %v6390 = vadd.f32 %v5920, %v6332
      %v6391 = vadd.f32 %v5921, %v6337
      %v6392 = vadd.f32 %v5922, %v6340
      %v6393 = vadd.f32 %v5923, %v6345
      %v6394 = vadd.f32 %v5924, %v6348
      %v6395 = vadd.f32 %v5925, %v6353
      %v6396 = vadd.f32 %v5926, %v6356
      %v6397 = vadd.f32 %v5927, %v6361
      %v6398 = vadd.f32 %v5928, %v6364
      %v6400 = vlaneseq
      %v6401 = vshrl.u32 %v6400, 7
      %v6402 = vsub.s32 0, %v6401
      %v6403 = vrot.slane %v1842, %v6402
      %v6405 = vadd.f32 %v6367, %v6403
      %v6406 = vadd.f32 %v6368, %v6403
      %v6407 = vadd.f32 %v6369, %v6403
      %v6408 = vadd.f32 %v6370, %v6403
      %v6409 = vadd.f32 %v6371, %v6403
      %v6410 = vadd.f32 %v6372, %v6403
      %v6411 = vadd.f32 %v6373, %v6403
      %v6412 = vadd.f32 %v6374, %v6403
      %v6413 = vadd.f32 %v6375, %v6403
      %v6414 = vadd.f32 %v6376, %v6403
      %v6415 = vadd.f32 %v6377, %v6403
      %v6416 = vadd.f32 %v6378, %v6403
      %v6417 = vadd.f32 %v6379, %v6403
      %v6418 = vadd.f32 %v6380, %v6403
      %v6419 = vadd.f32 %v6381, %v6403
      %v6420 = vadd.f32 %v6382, %v6403
      %v6421 = vadd.f32 %v6383, %v6403
      %v6422 = vadd.f32 %v6384, %v6403
      %v6423 = vadd.f32 %v6385, %v6403
      %v6424 = vadd.f32 %v6386, %v6403
      %v6425 = vadd.f32 %v6387, %v6403
      %v6426 = vadd.f32 %v6388, %v6403
      %v6427 = vadd.f32 %v6389, %v6403
      %v6428 = vadd.f32 %v6390, %v6403
      %v6429 = vadd.f32 %v6391, %v6403
      %v6430 = vadd.f32 %v6392, %v6403
      %v6431 = vadd.f32 %v6393, %v6403
      %v6432 = vadd.f32 %v6394, %v6403
      %v6433 = vadd.f32 %v6395, %v6403
      %v6434 = vadd.f32 %v6396, %v6403
      %v6435 = vadd.f32 %v6397, %v6403
      %v6436 = vadd.f32 %v6398, %v6403
      %v6437 = vld [vmem:[%s4] sm:$0x1]
      %v6438 = vld [vmem:[%s5] sm:$0x1]
      %v6439 = vsel %vm721, %v6405, 0.0
      %v6440 = vsel %vm721, %v6406, 0.0
      %v6441 = vadd.f32 %v6439, %v6440
      %v6442 = vsel %vm721, %v6407, 0.0
      %v6443 = vadd.f32 %v6441, %v6442
      %v6444 = vsel %vm721, %v6408, 0.0
      %v6445 = vadd.f32 %v6443, %v6444
      %v6446 = vsel %vm721, %v6409, 0.0
      %v6447 = vadd.f32 %v6445, %v6446
      %v6448 = vsel %vm721, %v6410, 0.0
      %v6449 = vadd.f32 %v6447, %v6448
      %v6450 = vsel %vm721, %v6411, 0.0
      %v6451 = vadd.f32 %v6449, %v6450
      %v6452 = vsel %vm721, %v6412, 0.0
      %v6453 = vadd.f32 %v6451, %v6452
      %v6454 = vsel %vm721, %v6413, 0.0
      %v6455 = vadd.f32 %v6453, %v6454
      %v6456 = vsel %vm721, %v6414, 0.0
      %v6457 = vadd.f32 %v6455, %v6456
      %v6458 = vsel %vm721, %v6415, 0.0
      %v6459 = vadd.f32 %v6457, %v6458
      %v6460 = vsel %vm721, %v6416, 0.0
      %v6461 = vadd.f32 %v6459, %v6460
      %v6462 = vsel %vm721, %v6417, 0.0
      %v6463 = vadd.f32 %v6461, %v6462
      %v6464 = vsel %vm721, %v6418, 0.0
      %v6465 = vadd.f32 %v6463, %v6464
      %v6466 = vsel %vm721, %v6419, 0.0
      %v6467 = vadd.f32 %v6465, %v6466
      %v6468 = vsel %vm721, %v6420, 0.0
      %v6469 = vadd.f32 %v6467, %v6468
      %v6470 = vsel %vm721, %v6421, 0.0
      %v6471 = vadd.f32 %v6469, %v6470
      %v6472 = vsel %vm721, %v6422, 0.0
      %v6473 = vadd.f32 %v6471, %v6472
      %v6474 = vsel %vm721, %v6423, 0.0
      %v6475 = vadd.f32 %v6473, %v6474
      %v6476 = vsel %vm721, %v6424, 0.0
      %v6477 = vadd.f32 %v6475, %v6476
      %v6478 = vsel %vm721, %v6425, 0.0
      %v6479 = vadd.f32 %v6477, %v6478
      %v6480 = vsel %vm721, %v6426, 0.0
      %v6481 = vadd.f32 %v6479, %v6480
      %v6482 = vsel %vm721, %v6427, 0.0
      %v6483 = vadd.f32 %v6481, %v6482
      %v6484 = vsel %vm721, %v6428, 0.0
      %v6485 = vadd.f32 %v6483, %v6484
      %v6486 = vsel %vm721, %v6429, 0.0
      %v6487 = vadd.f32 %v6485, %v6486
      %v6488 = vsel %vm721, %v6430, 0.0
      %v6489 = vadd.f32 %v6487, %v6488
      %v6490 = vsel %vm721, %v6431, 0.0
      %v6491 = vadd.f32 %v6489, %v6490
      %v6492 = vsel %vm721, %v6432, 0.0
      %v6493 = vadd.f32 %v6491, %v6492
      %v6494 = vsel %vm721, %v6433, 0.0
      %v6495 = vadd.f32 %v6493, %v6494
      %v6496 = vsel %vm721, %v6434, 0.0
      %v6497 = vadd.f32 %v6495, %v6496
      %v6498 = vsel %vm721, %v6435, 0.0
      %v6499 = vadd.f32 %v6497, %v6498
      %v6500 = vsel %vm721, %v6436, 0.0
      %v6501 = vadd.f32 %v6499, %v6500
      %v6502 = vrot.slane %v6501, 4
      %v6503 = vadd.f32 %v6501, %v6502
      %v6504 = vrot.slane %v6503, 2
      %v6505 = vadd.f32 %v6503, %v6504
      %v6506 = vrot.slane %v6505, 1
      %v6507 = vadd.f32 %v6505, %v6506
      %v6508 = vmul.f32 %v6405, %v6405
      %v6509 = vmul.f32 %v6406, %v6406
      %v6510 = vmul.f32 %v6407, %v6407
      %v6511 = vmul.f32 %v6408, %v6408
      %v6512 = vmul.f32 %v6409, %v6409
      %v6513 = vmul.f32 %v6410, %v6410
      %v6514 = vmul.f32 %v6411, %v6411
      %v6515 = vmul.f32 %v6412, %v6412
      %v6516 = vmul.f32 %v6413, %v6413
      %v6517 = vmul.f32 %v6414, %v6414
      %v6518 = vmul.f32 %v6415, %v6415
      %v6519 = vmul.f32 %v6416, %v6416
      %v6520 = vmul.f32 %v6417, %v6417
      %v6521 = vmul.f32 %v6418, %v6418
      %v6522 = vmul.f32 %v6419, %v6419
      %v6523 = vmul.f32 %v6420, %v6420
      %v6524 = vmul.f32 %v6421, %v6421
      %v6525 = vmul.f32 %v6422, %v6422
      %v6526 = vmul.f32 %v6423, %v6423
      %v6527 = vmul.f32 %v6424, %v6424
      %v6528 = vmul.f32 %v6425, %v6425
      %v6529 = vmul.f32 %v6426, %v6426
      %v6530 = vmul.f32 %v6427, %v6427
      %v6531 = vmul.f32 %v6428, %v6428
      %v6532 = vmul.f32 %v6429, %v6429
      %v6533 = vmul.f32 %v6430, %v6430
      %v6534 = vmul.f32 %v6431, %v6431
      %v6535 = vmul.f32 %v6432, %v6432
      %v6536 = vmul.f32 %v6433, %v6433
      %v6537 = vmul.f32 %v6434, %v6434
      %v6538 = vmul.f32 %v6435, %v6435
      %v6539 = vmul.f32 %v6436, %v6436
      %v6540 = vsel %vm721, %v6508, 0.0
      %v6541 = vsel %vm721, %v6509, 0.0
      %v6542 = vadd.f32 %v6540, %v6541
      %v6543 = vsel %vm721, %v6510, 0.0
      %v6544 = vadd.f32 %v6542, %v6543
      %v6545 = vsel %vm721, %v6511, 0.0
      %v6546 = vadd.f32 %v6544, %v6545
      %v6547 = vsel %vm721, %v6512, 0.0
      %v6548 = vadd.f32 %v6546, %v6547
      %v6549 = vsel %vm721, %v6513, 0.0
      %v6550 = vadd.f32 %v6548, %v6549
      %v6551 = vsel %vm721, %v6514, 0.0
      %v6552 = vadd.f32 %v6550, %v6551
      %v6553 = vsel %vm721, %v6515, 0.0
      %v6554 = vadd.f32 %v6552, %v6553
      %v6555 = vsel %vm721, %v6516, 0.0
      %v6556 = vadd.f32 %v6554, %v6555
      %v6557 = vsel %vm721, %v6517, 0.0
      %v6558 = vadd.f32 %v6556, %v6557
      %v6559 = vsel %vm721, %v6518, 0.0
      %v6560 = vadd.f32 %v6558, %v6559
      %v6561 = vsel %vm721, %v6519, 0.0
      %v6562 = vadd.f32 %v6560, %v6561
      %v6563 = vsel %vm721, %v6520, 0.0
      %v6564 = vadd.f32 %v6562, %v6563
      %v6565 = vsel %vm721, %v6521, 0.0
      %v6566 = vadd.f32 %v6564, %v6565
      %v6567 = vsel %vm721, %v6522, 0.0
      %v6568 = vadd.f32 %v6566, %v6567
      %v6569 = vsel %vm721, %v6523, 0.0
      %v6570 = vadd.f32 %v6568, %v6569
      %v6571 = vsel %vm721, %v6524, 0.0
      %v6572 = vadd.f32 %v6570, %v6571
      %v6573 = vsel %vm721, %v6525, 0.0
      %v6574 = vadd.f32 %v6572, %v6573
      %v6575 = vsel %vm721, %v6526, 0.0
      %v6576 = vadd.f32 %v6574, %v6575
      %v6577 = vsel %vm721, %v6527, 0.0
      %v6578 = vadd.f32 %v6576, %v6577
      %v6579 = vsel %vm721, %v6528, 0.0
      %v6580 = vadd.f32 %v6578, %v6579
      %v6581 = vsel %vm721, %v6529, 0.0
      %v6582 = vadd.f32 %v6580, %v6581
      %v6583 = vsel %vm721, %v6530, 0.0
      %v6584 = vadd.f32 %v6582, %v6583
      %v6585 = vsel %vm721, %v6531, 0.0
      %v6586 = vadd.f32 %v6584, %v6585
      %v6587 = vsel %vm721, %v6532, 0.0
      %v6588 = vadd.f32 %v6586, %v6587
      %v6589 = vsel %vm721, %v6533, 0.0
      %v6590 = vadd.f32 %v6588, %v6589
      %v6591 = vsel %vm721, %v6534, 0.0
      %v6592 = vadd.f32 %v6590, %v6591
      %v6593 = vsel %vm721, %v6535, 0.0
      %v6594 = vadd.f32 %v6592, %v6593
      %v6595 = vsel %vm721, %v6536, 0.0
      %v6596 = vadd.f32 %v6594, %v6595
      %v6597 = vsel %vm721, %v6537, 0.0
      %v6598 = vadd.f32 %v6596, %v6597
      %v6599 = vsel %vm721, %v6538, 0.0
      %v6600 = vadd.f32 %v6598, %v6599
      %v6601 = vsel %vm721, %v6539, 0.0
      %v6602 = vadd.f32 %v6600, %v6601
      %v6603 = vrot.slane %v6602, 4
      %v6604 = vadd.f32 %v6602, %v6603
      %v6605 = vrot.slane %v6604, 2
      %v6606 = vadd.f32 %v6604, %v6605
      %v6607 = vrot.slane %v6606, 1
      %v6608 = vadd.f32 %v6606, %v6607
      %v6610 = vsel %vm721, %v6507, 0
      %6612 = vmatprep.subr.mxu0 0.0
      %6613 = vmatpush1.msra.mxu0 %v897
      %6614 = vmatprep.subr.mxu0 0.0
      %6615 = vmatpush1.msra.mxu0 0.0
      %6616 = vmatprep.subr.mxu0 0.0
      %6617 = vmatpush1.msra.mxu0 0.0
      %6618 = vmatprep.subr.mxu0 0.0
      %6619 = vmatpush1.msra.mxu0 0.0
      %6620 = vmatprep.subr.mxu0 0.0
      %6621 = vmatpush1.msra.mxu0 0.0
      %6622 = vmatprep.subr.mxu0 0.0
      %6623 = vmatpush1.msra.mxu0 0.0
      %6624 = vmatprep.subr.mxu0 0.0
      %6625 = vmatpush1.msra.mxu0 0.0
      %6626 = vmatprep.subr.mxu0 0.0
      %6627 = vmatpush1.msra.mxu0 0.0
      %6628 = vmatprep.subr.mxu0 0.0
      %6629 = vmatpush1.msra.mxu0 0.0
      %6630 = vmatprep.subr.mxu0 0.0
      %6631 = vmatpush1.msra.mxu0 0.0
      %6632 = vmatprep.subr.mxu0 0.0
      %6633 = vmatpush1.msra.mxu0 0.0
      %6634 = vmatprep.subr.mxu0 0.0
      %6635 = vmatpush1.msra.mxu0 0.0
      %6636 = vmatprep.subr.mxu0 0.0
      %6637 = vmatpush1.msra.mxu0 0.0
      %6638 = vmatprep.subr.mxu0 0.0
      %6639 = vmatpush1.msra.mxu0 0.0
      %6640 = vmatprep.subr.mxu0 0.0
      %6641 = vmatpush1.msra.mxu0 0.0
      %6642 = vmatprep.subr.mxu0 0.0
      %6643 = vmatpush1.msra.mxu0 0.0
      %6644 = vmatprep.subr.mxu0 0.0
      %6645 = vmatpush1.msra.mxu0 0.0
      %6646 = vmatprep.subr.mxu0 0.0
      %6647 = vmatpush1.msra.mxu0 0.0
      %6648 = vmatprep.subr.mxu0 0.0
      %6649 = vmatpush1.msra.mxu0 0.0
      %6650 = vmatprep.subr.mxu0 0.0
      %6651 = vmatpush1.msra.mxu0 0.0
      %6652 = vmatprep.subr.mxu0 0.0
      %6653 = vmatpush1.msra.mxu0 0.0
      %6654 = vmatprep.subr.mxu0 0.0
      %6655 = vmatpush1.msra.mxu0 0.0
      %6656 = vmatprep.subr.mxu0 0.0
      %6657 = vmatpush1.msra.mxu0 0.0
      %6658 = vmatprep.subr.mxu0 0.0
      %6659 = vmatpush1.msra.mxu0 0.0
      %6660 = vmatprep.subr.mxu0 0.0
      %6661 = vmatpush1.msra.mxu0 0.0
      %6662 = vmatprep.subr.mxu0 0.0
      %6663 = vmatpush1.msra.mxu0 0.0
      %6664 = vmatprep.subr.mxu0 0.0
      %6665 = vmatpush1.msra.mxu0 0.0
      %6666 = vmatprep.subr.mxu0 0.0
      %6667 = vmatpush1.msra.mxu0 0.0
      %6668 = vmatprep.subr.mxu0 0.0
      %6669 = vmatpush1.msra.mxu0 0.0
      %6670 = vmatprep.subr.mxu0 0.0
      %6671 = vmatpush1.msra.mxu0 0.0
      %6672 = vmatprep.subr.mxu0 0.0
      %6673 = vmatpush1.msra.mxu0 0.0
      %6674 = vmatprep.subr.mxu0 0.0
      %6675 = vmatpush1.msra.mxu0 0.0
      %6676 = vmatprep.mubr.f32.mxu0 0.0
      %6677 = vmatmul.mubr.f32.gmra.mrb[0].mxu0 %v6610
      %v6678 = vpop.f32.mrb[0].mxu0
      %v6679 = vadd.f32 0.0, %v6678
      %v6680 = vpop.f32.mrb[0].mxu0
      %6681 = vdwg.mxu0
      %v6683 = vsel %vm721, %v6608, 0
      %6685 = vmatprep.subr.mxu0 0.0
      %6686 = vmatpush1.msra.mxu0 %v897
      %6687 = vmatprep.subr.mxu0 0.0
      %6688 = vmatpush1.msra.mxu0 0.0
      %6689 = vmatprep.subr.mxu0 0.0
      %6690 = vmatpush1.msra.mxu0 0.0
      %6691 = vmatprep.subr.mxu0 0.0
      %6692 = vmatpush1.msra.mxu0 0.0
      %6693 = vmatprep.subr.mxu0 0.0
      %6694 = vmatpush1.msra.mxu0 0.0
      %6695 = vmatprep.subr.mxu0 0.0
      %6696 = vmatpush1.msra.mxu0 0.0
      %6697 = vmatprep.subr.mxu0 0.0
      %6698 = vmatpush1.msra.mxu0 0.0
      %6699 = vmatprep.subr.mxu0 0.0
      %6700 = vmatpush1.msra.mxu0 0.0
      %6701 = vmatprep.subr.mxu0 0.0
      %6702 = vmatpush1.msra.mxu0 0.0
      %6703 = vmatprep.subr.mxu0 0.0
      %6704 = vmatpush1.msra.mxu0 0.0
      %6705 = vmatprep.subr.mxu0 0.0
      %6706 = vmatpush1.msra.mxu0 0.0
      %6707 = vmatprep.subr.mxu0 0.0
      %6708 = vmatpush1.msra.mxu0 0.0
      %6709 = vmatprep.subr.mxu0 0.0
      %6710 = vmatpush1.msra.mxu0 0.0
      %6711 = vmatprep.subr.mxu0 0.0
      %6712 = vmatpush1.msra.mxu0 0.0
      %6713 = vmatprep.subr.mxu0 0.0
      %6714 = vmatpush1.msra.mxu0 0.0
      %6715 = vmatprep.subr.mxu0 0.0
      %6716 = vmatpush1.msra.mxu0 0.0
      %6717 = vmatprep.subr.mxu0 0.0
      %6718 = vmatpush1.msra.mxu0 0.0
      %6719 = vmatprep.subr.mxu0 0.0
      %6720 = vmatpush1.msra.mxu0 0.0
      %6721 = vmatprep.subr.mxu0 0.0
      %6722 = vmatpush1.msra.mxu0 0.0
      %6723 = vmatprep.subr.mxu0 0.0
      %6724 = vmatpush1.msra.mxu0 0.0
      %6725 = vmatprep.subr.mxu0 0.0
      %6726 = vmatpush1.msra.mxu0 0.0
      %6727 = vmatprep.subr.mxu0 0.0
      %6728 = vmatpush1.msra.mxu0 0.0
      %6729 = vmatprep.subr.mxu0 0.0
      %6730 = vmatpush1.msra.mxu0 0.0
      %6731 = vmatprep.subr.mxu0 0.0
      %6732 = vmatpush1.msra.mxu0 0.0
      %6733 = vmatprep.subr.mxu0 0.0
      %6734 = vmatpush1.msra.mxu0 0.0
      %6735 = vmatprep.subr.mxu0 0.0
      %6736 = vmatpush1.msra.mxu0 0.0
      %6737 = vmatprep.subr.mxu0 0.0
      %6738 = vmatpush1.msra.mxu0 0.0
      %6739 = vmatprep.subr.mxu0 0.0
      %6740 = vmatpush1.msra.mxu0 0.0
      %6741 = vmatprep.subr.mxu0 0.0
      %6742 = vmatpush1.msra.mxu0 0.0
      %6743 = vmatprep.subr.mxu0 0.0
      %6744 = vmatpush1.msra.mxu0 0.0
      %6745 = vmatprep.subr.mxu0 0.0
      %6746 = vmatpush1.msra.mxu0 0.0
      %6747 = vmatprep.subr.mxu0 0.0
      %6748 = vmatpush1.msra.mxu0 0.0
      %6749 = vmatprep.mubr.f32.mxu0 0.0
      %6750 = vmatmul.mubr.f32.gmra.mrb[0].mxu0 %v6683
      %v6751 = vpop.f32.mrb[0].mxu0
      %v6752 = vadd.f32 0.0, %v6751
      %v6753 = vpop.f32.mrb[0].mxu0
      %6754 = vdwg.mxu0
      %v6755 = vmul.f32 %v6679, 0.001953125
      %v6756 = vmul.f32 %v6752, 0.001953125
      %v6757 = vmul.f32 %v6755, %v6755
      %v6758 = vsub.f32 %v6756, %v6757
      %v6759 = vadd.f32 %v6758, 1e-05
      %v6760 = vrsqrt.pop %v6759
      %v6762 = vsel %vm1048, %v6755, 0
      %6764 = vmatprep.subr.mxu0 0.0
      %6765 = vmatpush1.msra.mxu0 %v1054
      %6766 = vmatprep.subr.mxu0 0.0
      %6767 = vmatpush1.msra.mxu0 0.0
      %6768 = vmatprep.subr.mxu0 0.0
      %6769 = vmatpush1.msra.mxu0 0.0
      %6770 = vmatprep.subr.mxu0 0.0
      %6771 = vmatpush1.msra.mxu0 0.0
      %6772 = vmatprep.subr.mxu0 0.0
      %6773 = vmatpush1.msra.mxu0 0.0
      %6774 = vmatprep.subr.mxu0 0.0
      %6775 = vmatpush1.msra.mxu0 0.0
      %6776 = vmatprep.subr.mxu0 0.0
      %6777 = vmatpush1.msra.mxu0 0.0
      %6778 = vmatprep.subr.mxu0 0.0
      %6779 = vmatpush1.msra.mxu0 0.0
      %6780 = vmatprep.subr.mxu0 0.0
      %6781 = vmatpush1.msra.mxu0 0.0
      %6782 = vmatprep.subr.mxu0 0.0
      %6783 = vmatpush1.msra.mxu0 0.0
      %6784 = vmatprep.subr.mxu0 0.0
      %6785 = vmatpush1.msra.mxu0 0.0
      %6786 = vmatprep.subr.mxu0 0.0
      %6787 = vmatpush1.msra.mxu0 0.0
      %6788 = vmatprep.subr.mxu0 0.0
      %6789 = vmatpush1.msra.mxu0 0.0
      %6790 = vmatprep.subr.mxu0 0.0
      %6791 = vmatpush1.msra.mxu0 0.0
      %6792 = vmatprep.subr.mxu0 0.0
      %6793 = vmatpush1.msra.mxu0 0.0
      %6794 = vmatprep.subr.mxu0 0.0
      %6795 = vmatpush1.msra.mxu0 0.0
      %6796 = vmatprep.subr.mxu0 0.0
      %6797 = vmatpush1.msra.mxu0 0.0
      %6798 = vmatprep.subr.mxu0 0.0
      %6799 = vmatpush1.msra.mxu0 0.0
      %6800 = vmatprep.subr.mxu0 0.0
      %6801 = vmatpush1.msra.mxu0 0.0
      %6802 = vmatprep.subr.mxu0 0.0
      %6803 = vmatpush1.msra.mxu0 0.0
      %6804 = vmatprep.subr.mxu0 0.0
      %6805 = vmatpush1.msra.mxu0 0.0
      %6806 = vmatprep.subr.mxu0 0.0
      %6807 = vmatpush1.msra.mxu0 0.0
      %6808 = vmatprep.subr.mxu0 0.0
      %6809 = vmatpush1.msra.mxu0 0.0
      %6810 = vmatprep.subr.mxu0 0.0
      %6811 = vmatpush1.msra.mxu0 0.0
      %6812 = vmatprep.subr.mxu0 0.0
      %6813 = vmatpush1.msra.mxu0 0.0
      %6814 = vmatprep.subr.mxu0 0.0
      %6815 = vmatpush1.msra.mxu0 0.0
      %6816 = vmatprep.subr.mxu0 0.0
      %6817 = vmatpush1.msra.mxu0 0.0
      %6818 = vmatprep.subr.mxu0 0.0
      %6819 = vmatpush1.msra.mxu0 0.0
      %6820 = vmatprep.subr.mxu0 0.0
      %6821 = vmatpush1.msra.mxu0 0.0
      %6822 = vmatprep.subr.mxu0 0.0
      %6823 = vmatpush1.msra.mxu0 0.0
      %6824 = vmatprep.subr.mxu0 0.0
      %6825 = vmatpush1.msra.mxu0 0.0
      %6826 = vmatprep.subr.mxu0 0.0
      %6827 = vmatpush1.msra.mxu0 0.0
      %6828 = vmatprep.mubr.f32.mxu0 0.0
      %6829 = vmatmul.mubr.f32.gmra.mrb[0].mxu0 %v6762
      %v6830 = vpop.f32.mrb[0].mxu0
      %v6831 = vadd.f32 0.0, %v6830
      %v6832 = vpop.f32.mrb[0].mxu0
      %6833 = vdwg.mxu0
      %v6835 = vsel %vm1048, %v6760, 0
      %6837 = vmatprep.subr.mxu0 0.0
      %6838 = vmatpush1.msra.mxu0 %v1054
      %6839 = vmatprep.subr.mxu0 0.0
      %6840 = vmatpush1.msra.mxu0 0.0
      %6841 = vmatprep.subr.mxu0 0.0
      %6842 = vmatpush1.msra.mxu0 0.0
      %6843 = vmatprep.subr.mxu0 0.0
      %6844 = vmatpush1.msra.mxu0 0.0
      %6845 = vmatprep.subr.mxu0 0.0
      %6846 = vmatpush1.msra.mxu0 0.0
      %6847 = vmatprep.subr.mxu0 0.0
      %6848 = vmatpush1.msra.mxu0 0.0
      %6849 = vmatprep.subr.mxu0 0.0
      %6850 = vmatpush1.msra.mxu0 0.0
      %6851 = vmatprep.subr.mxu0 0.0
      %6852 = vmatpush1.msra.mxu0 0.0
      %6853 = vmatprep.subr.mxu0 0.0
      %6854 = vmatpush1.msra.mxu0 0.0
      %6855 = vmatprep.subr.mxu0 0.0
      %6856 = vmatpush1.msra.mxu0 0.0
      %6857 = vmatprep.subr.mxu0 0.0
      %6858 = vmatpush1.msra.mxu0 0.0
      %6859 = vmatprep.subr.mxu0 0.0
      %6860 = vmatpush1.msra.mxu0 0.0
      %6861 = vmatprep.subr.mxu0 0.0
      %6862 = vmatpush1.msra.mxu0 0.0
      %6863 = vmatprep.subr.mxu0 0.0
      %6864 = vmatpush1.msra.mxu0 0.0
      %6865 = vmatprep.subr.mxu0 0.0
      %6866 = vmatpush1.msra.mxu0 0.0
      %6867 = vmatprep.subr.mxu0 0.0
      %6868 = vmatpush1.msra.mxu0 0.0
      %6869 = vmatprep.subr.mxu0 0.0
      %6870 = vmatpush1.msra.mxu0 0.0
      %6871 = vmatprep.subr.mxu0 0.0
      %6872 = vmatpush1.msra.mxu0 0.0
      %6873 = vmatprep.subr.mxu0 0.0
      %6874 = vmatpush1.msra.mxu0 0.0
      %6875 = vmatprep.subr.mxu0 0.0
      %6876 = vmatpush1.msra.mxu0 0.0
      %6877 = vmatprep.subr.mxu0 0.0
      %6878 = vmatpush1.msra.mxu0 0.0
      %6879 = vmatprep.subr.mxu0 0.0
      %6880 = vmatpush1.msra.mxu0 0.0
      %6881 = vmatprep.subr.mxu0 0.0
      %6882 = vmatpush1.msra.mxu0 0.0
      %6883 = vmatprep.subr.mxu0 0.0
      %6884 = vmatpush1.msra.mxu0 0.0
      %6885 = vmatprep.subr.mxu0 0.0
      %6886 = vmatpush1.msra.mxu0 0.0
      %6887 = vmatprep.subr.mxu0 0.0
      %6888 = vmatpush1.msra.mxu0 0.0
      %6889 = vmatprep.subr.mxu0 0.0
      %6890 = vmatpush1.msra.mxu0 0.0
      %6891 = vmatprep.subr.mxu0 0.0
      %6892 = vmatpush1.msra.mxu0 0.0
      %6893 = vmatprep.subr.mxu0 0.0
      %6894 = vmatpush1.msra.mxu0 0.0
      %6895 = vmatprep.subr.mxu0 0.0
      %6896 = vmatpush1.msra.mxu0 0.0
      %6897 = vmatprep.subr.mxu0 0.0
      %6898 = vmatpush1.msra.mxu0 0.0
      %6899 = vmatprep.subr.mxu0 0.0
      %6900 = vmatpush1.msra.mxu0 0.0
      %6901 = vmatprep.mubr.f32.mxu0 0.0
      %6902 = vmatmul.mubr.f32.gmra.mrb[0].mxu0 %v6835
      %v6903 = vpop.f32.mrb[0].mxu0
      %v6904 = vadd.f32 0.0, %v6903
      %v6905 = vpop.f32.mrb[0].mxu0
      %6906 = vdwg.mxu0
      %v6907 = vmul.f32 %v6904, %v6437
      %v6908 = vmul.f32 %v6831, %v6904
      %v6909 = vmul.f32 %v6908, %v6437
      %v6910 = vsub.f32 %v6438, %v6909
      %v6911 = vlaneseq
      %v6912 = vshrl.u32 %v6911, 7
      %v6913 = vsub.s32 0, %v6912
      %v6914 = vrot.slane %v6907, %v6913
      %v6915 = vmul.f32 %v6405, %v6914
      %v6916 = vmul.f32 %v6406, %v6914
      %v6917 = vmul.f32 %v6407, %v6914
      %v6918 = vmul.f32 %v6408, %v6914
      %v6919 = vmul.f32 %v6409, %v6914
      %v6920 = vmul.f32 %v6410, %v6914
      %v6921 = vmul.f32 %v6411, %v6914
      %v6922 = vmul.f32 %v6412, %v6914
      %v6923 = vmul.f32 %v6413, %v6914
      %v6924 = vmul.f32 %v6414, %v6914
      %v6925 = vmul.f32 %v6415, %v6914
      %v6926 = vmul.f32 %v6416, %v6914
      %v6927 = vmul.f32 %v6417, %v6914
      %v6928 = vmul.f32 %v6418, %v6914
      %v6929 = vmul.f32 %v6419, %v6914
      %v6930 = vmul.f32 %v6420, %v6914
      %v6931 = vmul.f32 %v6421, %v6914
      %v6932 = vmul.f32 %v6422, %v6914
      %v6933 = vmul.f32 %v6423, %v6914
      %v6934 = vmul.f32 %v6424, %v6914
      %v6935 = vmul.f32 %v6425, %v6914
      %v6936 = vmul.f32 %v6426, %v6914
      %v6937 = vmul.f32 %v6427, %v6914
      %v6938 = vmul.f32 %v6428, %v6914
      %v6939 = vmul.f32 %v6429, %v6914
      %v6940 = vmul.f32 %v6430, %v6914
      %v6941 = vmul.f32 %v6431, %v6914
      %v6942 = vmul.f32 %v6432, %v6914
      %v6943 = vmul.f32 %v6433, %v6914
      %v6944 = vmul.f32 %v6434, %v6914
      %v6945 = vmul.f32 %v6435, %v6914
      %v6946 = vmul.f32 %v6436, %v6914
      %v6948 = vlaneseq
      %v6949 = vshrl.u32 %v6948, 7
      %v6950 = vsub.s32 0, %v6949
      %v6951 = vrot.slane %v6910, %v6950
      %v6953 = vadd.f32 %v6915, %v6951
      %v6954 = vadd.f32 %v6916, %v6951
      %v6955 = vadd.f32 %v6917, %v6951
      %v6956 = vadd.f32 %v6918, %v6951
      %v6957 = vadd.f32 %v6919, %v6951
      %v6958 = vadd.f32 %v6920, %v6951
      %v6959 = vadd.f32 %v6921, %v6951
      %v6960 = vadd.f32 %v6922, %v6951
      %v6961 = vadd.f32 %v6923, %v6951
      %v6962 = vadd.f32 %v6924, %v6951
      %v6963 = vadd.f32 %v6925, %v6951
      %v6964 = vadd.f32 %v6926, %v6951
      %v6965 = vadd.f32 %v6927, %v6951
      %v6966 = vadd.f32 %v6928, %v6951
      %v6967 = vadd.f32 %v6929, %v6951
      %v6968 = vadd.f32 %v6930, %v6951
      %v6969 = vadd.f32 %v6931, %v6951
      %v6970 = vadd.f32 %v6932, %v6951
      %v6971 = vadd.f32 %v6933, %v6951
      %v6972 = vadd.f32 %v6934, %v6951
      %v6973 = vadd.f32 %v6935, %v6951
      %v6974 = vadd.f32 %v6936, %v6951
      %v6975 = vadd.f32 %v6937, %v6951
      %v6976 = vadd.f32 %v6938, %v6951
      %v6977 = vadd.f32 %v6939, %v6951
      %v6978 = vadd.f32 %v6940, %v6951
      %v6979 = vadd.f32 %v6941, %v6951
      %v6980 = vadd.f32 %v6942, %v6951
      %v6981 = vadd.f32 %v6943, %v6951
      %v6982 = vadd.f32 %v6944, %v6951
      %v6983 = vadd.f32 %v6945, %v6951
      %v6984 = vadd.f32 %v6946, %v6951
      %v6985 = vmax.f32 %v6953, 0.0
      %v6986 = vmax.f32 %v6954, 0.0
      %v6987 = vmax.f32 %v6955, 0.0
      %v6988 = vmax.f32 %v6956, 0.0
      %v6989 = vmax.f32 %v6957, 0.0
      %v6990 = vmax.f32 %v6958, 0.0
      %v6991 = vmax.f32 %v6959, 0.0
      %v6992 = vmax.f32 %v6960, 0.0
      %v6993 = vmax.f32 %v6961, 0.0
      %v6994 = vmax.f32 %v6962, 0.0
      %v6995 = vmax.f32 %v6963, 0.0
      %v6996 = vmax.f32 %v6964, 0.0
      %v6997 = vmax.f32 %v6965, 0.0
      %v6998 = vmax.f32 %v6966, 0.0
      %v6999 = vmax.f32 %v6967, 0.0
      %v7000 = vmax.f32 %v6968, 0.0
      %v7001 = vmax.f32 %v6969, 0.0
      %v7002 = vmax.f32 %v6970, 0.0
      %v7003 = vmax.f32 %v6971, 0.0
      %v7004 = vmax.f32 %v6972, 0.0
      %v7005 = vmax.f32 %v6973, 0.0
      %v7006 = vmax.f32 %v6974, 0.0
      %v7007 = vmax.f32 %v6975, 0.0
      %v7008 = vmax.f32 %v6976, 0.0
      %v7009 = vmax.f32 %v6977, 0.0
      %v7010 = vmax.f32 %v6978, 0.0
      %v7011 = vmax.f32 %v6979, 0.0
      %v7012 = vmax.f32 %v6980, 0.0
      %v7013 = vmax.f32 %v6981, 0.0
      %v7014 = vmax.f32 %v6982, 0.0
      %v7015 = vmax.f32 %v6983, 0.0
      %v7016 = vmax.f32 %v6984, 0.0
      %v7017 = vpack.c.bf16 %v6986, %v6985
      %v7018 = vpack.c.bf16 %v6988, %v6987
      %v7019 = vpack.c.bf16 %v6990, %v6989
      %v7020 = vpack.c.bf16 %v6992, %v6991
      %v7021 = vpack.c.bf16 %v6994, %v6993
      %v7022 = vpack.c.bf16 %v6996, %v6995
      %v7023 = vpack.c.bf16 %v6998, %v6997
      %v7024 = vpack.c.bf16 %v7000, %v6999
      %v7025 = vpack.c.bf16 %v7002, %v7001
      %v7026 = vpack.c.bf16 %v7004, %v7003
      %v7027 = vpack.c.bf16 %v7006, %v7005
      %v7028 = vpack.c.bf16 %v7008, %v7007
      %v7029 = vpack.c.bf16 %v7010, %v7009
      %v7030 = vpack.c.bf16 %v7012, %v7011
      %v7031 = vpack.c.bf16 %v7014, %v7013
      %v7032 = vpack.c.bf16 %v7016, %v7015
      %v7049 = vunpack.c.l.b16 %v7017
      %v7050 = vunpack.c.h.b16 %v7017
      %v7051 = vunpack.c.l.b16 %v7018
      %v7052 = vunpack.c.h.b16 %v7018
      %v7053 = vunpack.c.l.b16 %v7019
      %v7054 = vunpack.c.h.b16 %v7019
      %v7055 = vunpack.c.l.b16 %v7020
      %v7056 = vunpack.c.h.b16 %v7020
      %v7057 = vunpack.c.l.b16 %v7021
      %v7058 = vunpack.c.h.b16 %v7021
      %v7059 = vunpack.c.l.b16 %v7022
      %v7060 = vunpack.c.h.b16 %v7022
      %v7061 = vunpack.c.l.b16 %v7023
      %v7062 = vunpack.c.h.b16 %v7023
      %v7063 = vunpack.c.l.b16 %v7024
      %v7064 = vunpack.c.h.b16 %v7024
      %v7065 = vunpack.c.l.b16 %v7025
      %v7066 = vunpack.c.h.b16 %v7025
      %v7067 = vunpack.c.l.b16 %v7026
      %v7068 = vunpack.c.h.b16 %v7026
      %v7069 = vunpack.c.l.b16 %v7027
      %v7070 = vunpack.c.h.b16 %v7027
      %v7071 = vunpack.c.l.b16 %v7028
      %v7072 = vunpack.c.h.b16 %v7028
      %v7073 = vunpack.c.l.b16 %v7029
      %v7074 = vunpack.c.h.b16 %v7029
      %v7075 = vunpack.c.l.b16 %v7030
      %v7076 = vunpack.c.h.b16 %v7030
      %v7077 = vunpack.c.l.b16 %v7031
      %v7078 = vunpack.c.h.b16 %v7031
      %v7079 = vunpack.c.l.b16 %v7032
      %v7080 = vunpack.c.h.b16 %v7032
      %v7081 = vpack.c.b16 %v7049, %v7049
      %v7082 = vpack.c.b16 %v7050, %v7050
      %v7083 = vpack.c.b16 %v7051, %v7051
      %v7084 = vpack.c.b16 %v7052, %v7052
      %v7085 = vpack.c.b16 %v7053, %v7053
      %v7086 = vpack.c.b16 %v7054, %v7054
      %v7087 = vpack.c.b16 %v7055, %v7055
      %v7088 = vpack.c.b16 %v7056, %v7056
      %v7089 = vpack.c.b16 %v7057, %v7057
      %v7090 = vpack.c.b16 %v7058, %v7058
      %v7091 = vpack.c.b16 %v7059, %v7059
      %v7092 = vpack.c.b16 %v7060, %v7060
      %v7093 = vpack.c.b16 %v7061, %v7061
      %v7094 = vpack.c.b16 %v7062, %v7062
      %v7095 = vpack.c.b16 %v7063, %v7063
      %v7096 = vpack.c.b16 %v7064, %v7064
      %v7097 = vpack.c.b16 %v7065, %v7065
      %v7098 = vpack.c.b16 %v7066, %v7066
      %v7099 = vpack.c.b16 %v7067, %v7067
      %v7100 = vpack.c.b16 %v7068, %v7068
      %v7101 = vpack.c.b16 %v7069, %v7069
      %v7102 = vpack.c.b16 %v7070, %v7070
      %v7103 = vpack.c.b16 %v7071, %v7071
      %v7104 = vpack.c.b16 %v7072, %v7072
      %v7105 = vpack.c.b16 %v7073, %v7073
      %v7106 = vpack.c.b16 %v7074, %v7074
      %v7107 = vpack.c.b16 %v7075, %v7075
      %v7108 = vpack.c.b16 %v7076, %v7076
      %v7109 = vpack.c.b16 %v7077, %v7077
      %v7110 = vpack.c.b16 %v7078, %v7078
      %v7111 = vpack.c.b16 %v7079, %v7079
      %v7112 = vpack.c.b16 %v7080, %v7080
      %v7114 = vshrl.u32 %v7081, 16
      %v7116 = vrot.slane %v7114, 7
      %v7117 = vshll.u32 %v7081, 16
      %v7119 = vor.u32 %v7116, %v7117
      %v7120 = vrot.slane %v7116, 4
      %v7122 = vshrl.u32 %v7082, 16
      %v7124 = vrot.slane %v7122, 7
      %v7125 = vshll.u32 %v7082, 16
      %v7127 = vor.u32 %v7124, %v7125
      %v7128 = vsel %vm1406, %v7120, %v7127
      %v7129 = vrot.slane %v7124, 4
      %v7131 = vshrl.u32 %v7083, 16
      %v7133 = vrot.slane %v7131, 7
      %v7134 = vshll.u32 %v7083, 16
      %v7136 = vor.u32 %v7133, %v7134
      %v7137 = vrot.slane %v7133, 4
      %v7139 = vshrl.u32 %v7084, 16
      %v7141 = vrot.slane %v7139, 7
      %v7142 = vshll.u32 %v7084, 16
      %v7144 = vor.u32 %v7141, %v7142
      %v7145 = vsel %vm1406, %v7137, %v7144
      %v7146 = vrot.slane %v7141, 4
      %v7148 = vshrl.u32 %v7085, 16
      %v7150 = vrot.slane %v7148, 7
      %v7151 = vshll.u32 %v7085, 16
      %v7153 = vor.u32 %v7150, %v7151
      %v7154 = vrot.slane %v7150, 4
      %v7156 = vshrl.u32 %v7086, 16
      %v7158 = vrot.slane %v7156, 7
      %v7159 = vshll.u32 %v7086, 16
      %v7161 = vor.u32 %v7158, %v7159
      %v7162 = vsel %vm1406, %v7154, %v7161
      %v7163 = vrot.slane %v7158, 4
      %v7165 = vshrl.u32 %v7087, 16
      %v7167 = vrot.slane %v7165, 7
      %v7168 = vshll.u32 %v7087, 16
      %v7170 = vor.u32 %v7167, %v7168
      %v7171 = vrot.slane %v7167, 4
      %v7173 = vshrl.u32 %v7088, 16
      %v7175 = vrot.slane %v7173, 7
      %v7176 = vshll.u32 %v7088, 16
      %v7178 = vor.u32 %v7175, %v7176
      %v7179 = vsel %vm1406, %v7171, %v7178
      %v7180 = vrot.slane %v7175, 4
      %v7182 = vshrl.u32 %v7089, 16
      %v7184 = vrot.slane %v7182, 7
      %v7185 = vshll.u32 %v7089, 16
      %v7187 = vor.u32 %v7184, %v7185
      %v7188 = vrot.slane %v7184, 4
      %v7190 = vshrl.u32 %v7090, 16
      %v7192 = vrot.slane %v7190, 7
      %v7193 = vshll.u32 %v7090, 16
      %v7195 = vor.u32 %v7192, %v7193
      %v7196 = vsel %vm1406, %v7188, %v7195
      %v7197 = vrot.slane %v7192, 4
      %v7199 = vshrl.u32 %v7091, 16
      %v7201 = vrot.slane %v7199, 7
      %v7202 = vshll.u32 %v7091, 16
      %v7204 = vor.u32 %v7201, %v7202
      %v7205 = vrot.slane %v7201, 4
      %v7207 = vshrl.u32 %v7092, 16
      %v7209 = vrot.slane %v7207, 7
      %v7210 = vshll.u32 %v7092, 16
      %v7212 = vor.u32 %v7209, %v7210
      %v7213 = vsel %vm1406, %v7205, %v7212
      %v7214 = vrot.slane %v7209, 4
      %v7216 = vshrl.u32 %v7093, 16
      %v7218 = vrot.slane %v7216, 7
      %v7219 = vshll.u32 %v7093, 16
      %v7221 = vor.u32 %v7218, %v7219
      %v7222 = vrot.slane %v7218, 4
      %v7224 = vshrl.u32 %v7094, 16
      %v7226 = vrot.slane %v7224, 7
      %v7227 = vshll.u32 %v7094, 16
      %v7229 = vor.u32 %v7226, %v7227
      %v7230 = vsel %vm1406, %v7222, %v7229
      %v7231 = vrot.slane %v7226, 4
      %v7233 = vshrl.u32 %v7095, 16
      %v7235 = vrot.slane %v7233, 7
      %v7236 = vshll.u32 %v7095, 16
      %v7238 = vor.u32 %v7235, %v7236
      %v7239 = vrot.slane %v7235, 4
      %v7241 = vshrl.u32 %v7096, 16
      %v7243 = vrot.slane %v7241, 7
      %v7244 = vshll.u32 %v7096, 16
      %v7246 = vor.u32 %v7243, %v7244
      %v7247 = vsel %vm1406, %v7239, %v7246
      %v7248 = vrot.slane %v7243, 4
      %v7250 = vshrl.u32 %v7097, 16
      %v7252 = vrot.slane %v7250, 7
      %v7253 = vshll.u32 %v7097, 16
      %v7255 = vor.u32 %v7252, %v7253
      %v7256 = vrot.slane %v7252, 4
      %v7258 = vshrl.u32 %v7098, 16
      %v7260 = vrot.slane %v7258, 7
      %v7261 = vshll.u32 %v7098, 16
      %v7263 = vor.u32 %v7260, %v7261
      %v7264 = vsel %vm1406, %v7256, %v7263
      %v7265 = vrot.slane %v7260, 4
      %v7267 = vshrl.u32 %v7099, 16
      %v7269 = vrot.slane %v7267, 7
      %v7270 = vshll.u32 %v7099, 16
      %v7272 = vor.u32 %v7269, %v7270
      %v7273 = vrot.slane %v7269, 4
      %v7275 = vshrl.u32 %v7100, 16
      %v7277 = vrot.slane %v7275, 7
      %v7278 = vshll.u32 %v7100, 16
      %v7280 = vor.u32 %v7277, %v7278
      %v7281 = vsel %vm1406, %v7273, %v7280
      %v7282 = vrot.slane %v7277, 4
      %v7284 = vshrl.u32 %v7101, 16
      %v7286 = vrot.slane %v7284, 7
      %v7287 = vshll.u32 %v7101, 16
      %v7289 = vor.u32 %v7286, %v7287
      %v7290 = vrot.slane %v7286, 4
      %v7292 = vshrl.u32 %v7102, 16
      %v7294 = vrot.slane %v7292, 7
      %v7295 = vshll.u32 %v7102, 16
      %v7297 = vor.u32 %v7294, %v7295
      %v7298 = vsel %vm1406, %v7290, %v7297
      %v7299 = vrot.slane %v7294, 4
      %v7301 = vshrl.u32 %v7103, 16
      %v7303 = vrot.slane %v7301, 7
      %v7304 = vshll.u32 %v7103, 16
      %v7306 = vor.u32 %v7303, %v7304
      %v7307 = vrot.slane %v7303, 4
      %v7309 = vshrl.u32 %v7104, 16
      %v7311 = vrot.slane %v7309, 7
      %v7312 = vshll.u32 %v7104, 16
      %v7314 = vor.u32 %v7311, %v7312
      %v7315 = vsel %vm1406, %v7307, %v7314
      %v7316 = vrot.slane %v7311, 4
      %v7318 = vshrl.u32 %v7105, 16
      %v7320 = vrot.slane %v7318, 7
      %v7321 = vshll.u32 %v7105, 16
      %v7323 = vor.u32 %v7320, %v7321
      %v7324 = vrot.slane %v7320, 4
      %v7326 = vshrl.u32 %v7106, 16
      %v7328 = vrot.slane %v7326, 7
      %v7329 = vshll.u32 %v7106, 16
      %v7331 = vor.u32 %v7328, %v7329
      %v7332 = vsel %vm1406, %v7324, %v7331
      %v7333 = vrot.slane %v7328, 4
      %v7335 = vshrl.u32 %v7107, 16
      %v7337 = vrot.slane %v7335, 7
      %v7338 = vshll.u32 %v7107, 16
      %v7340 = vor.u32 %v7337, %v7338
      %v7341 = vrot.slane %v7337, 4
      %v7343 = vshrl.u32 %v7108, 16
      %v7345 = vrot.slane %v7343, 7
      %v7346 = vshll.u32 %v7108, 16
      %v7348 = vor.u32 %v7345, %v7346
      %v7349 = vsel %vm1406, %v7341, %v7348
      %v7350 = vrot.slane %v7345, 4
      %v7352 = vshrl.u32 %v7109, 16
      %v7354 = vrot.slane %v7352, 7
      %v7355 = vshll.u32 %v7109, 16
      %v7357 = vor.u32 %v7354, %v7355
      %v7358 = vrot.slane %v7354, 4
      %v7360 = vshrl.u32 %v7110, 16
      %v7362 = vrot.slane %v7360, 7
      %v7363 = vshll.u32 %v7110, 16
      %v7365 = vor.u32 %v7362, %v7363
      %v7366 = vsel %vm1406, %v7358, %v7365
      %v7367 = vrot.slane %v7362, 4
      %v7369 = vshrl.u32 %v7111, 16
      %v7371 = vrot.slane %v7369, 7
      %v7372 = vshll.u32 %v7111, 16
      %v7374 = vor.u32 %v7371, %v7372
      %v7375 = vrot.slane %v7371, 4
      %v7377 = vshrl.u32 %v7112, 16
      %v7379 = vrot.slane %v7377, 7
      %v7380 = vshll.u32 %v7112, 16
      %v7382 = vor.u32 %v7379, %v7380
      %v7383 = vsel %vm1406, %v7375, %v7382
      %v7384 = vrot.slane %v7379, 4
      %v7433 = vsel %vm1729, %v7119, %v3648
      %7434 = vst [vmem:[%s1727] sm:$0xf] %v7433
      %7435 = vst.msk [vmem:[%s1727 + $0x4] sm:$0xf] %vm435, %v7128
      %v7436 = vld [vmem:[%s1727 + $0x8] sm:$0x1]
      %v7437 = vsel %vm446, %v7129, %v7436
      %7438 = vst [vmem:[%s1727 + $0x8] sm:$0x1] %v7437
      %v7439 = vld [vmem:[%s1727 + $0xc] sm:$0xf]
      %v7440 = vsel %vm1729, %v7136, %v7439
      %7441 = vst [vmem:[%s1727 + $0xc] sm:$0xf] %v7440
      %7442 = vst.msk [vmem:[%s1727 + $0x10] sm:$0xf] %vm435, %v7145
      %v7443 = vld [vmem:[%s1727 + $0x14] sm:$0x1]
      %v7444 = vsel %vm446, %v7146, %v7443
      %7445 = vst [vmem:[%s1727 + $0x14] sm:$0x1] %v7444
      %v7446 = vld [vmem:[%s1727 + $0x18] sm:$0xf]
      %v7447 = vsel %vm1729, %v7153, %v7446
      %7448 = vst [vmem:[%s1727 + $0x18] sm:$0xf] %v7447
      %7449 = vst.msk [vmem:[%s1727 + $0x1c] sm:$0xf] %vm435, %v7162
      %v7450 = vld [vmem:[%s1727 + $0x20] sm:$0x1]
      %v7451 = vsel %vm446, %v7163, %v7450
      %7452 = vst [vmem:[%s1727 + $0x20] sm:$0x1] %v7451
      %v7453 = vld [vmem:[%s1727 + $0x24] sm:$0xf]
      %v7454 = vsel %vm1729, %v7170, %v7453
      %7455 = vst [vmem:[%s1727 + $0x24] sm:$0xf] %v7454
      %7456 = vst.msk [vmem:[%s1727 + $0x28] sm:$0xf] %vm435, %v7179
      %v7457 = vld [vmem:[%s1727 + $0x2c] sm:$0x1]
      %v7458 = vsel %vm446, %v7180, %v7457
      %7459 = vst [vmem:[%s1727 + $0x2c] sm:$0x1] %v7458
      %v7460 = vld [vmem:[%s1727 + $0x30] sm:$0xf]
      %v7461 = vsel %vm1729, %v7187, %v7460
      %7462 = vst [vmem:[%s1727 + $0x30] sm:$0xf] %v7461
      %7463 = vst.msk [vmem:[%s1727 + $0x34] sm:$0xf] %vm435, %v7196
      %v7464 = vld [vmem:[%s1727 + $0x38] sm:$0x1]
      %v7465 = vsel %vm446, %v7197, %v7464
      %7466 = vst [vmem:[%s1727 + $0x38] sm:$0x1] %v7465
      %v7467 = vld [vmem:[%s1727 + $0x3c] sm:$0xf]
      %v7468 = vsel %vm1729, %v7204, %v7467
      %7469 = vst [vmem:[%s1727 + $0x3c] sm:$0xf] %v7468
      %7470 = vst.msk [vmem:[%s1727 + $0x40] sm:$0xf] %vm435, %v7213
      %v7471 = vld [vmem:[%s1727 + $0x44] sm:$0x1]
      %v7472 = vsel %vm446, %v7214, %v7471
      %7473 = vst [vmem:[%s1727 + $0x44] sm:$0x1] %v7472
      %v7474 = vld [vmem:[%s1727 + $0x48] sm:$0xf]
      %v7475 = vsel %vm1729, %v7221, %v7474
      %7476 = vst [vmem:[%s1727 + $0x48] sm:$0xf] %v7475
      %7477 = vst.msk [vmem:[%s1727 + $0x4c] sm:$0xf] %vm435, %v7230
      %v7478 = vld [vmem:[%s1727 + $0x50] sm:$0x1]
      %v7479 = vsel %vm446, %v7231, %v7478
      %7480 = vst [vmem:[%s1727 + $0x50] sm:$0x1] %v7479
      %v7481 = vld [vmem:[%s1727 + $0x54] sm:$0xf]
      %v7482 = vsel %vm1729, %v7238, %v7481
      %7483 = vst [vmem:[%s1727 + $0x54] sm:$0xf] %v7482
      %7484 = vst.msk [vmem:[%s1727 + $0x58] sm:$0xf] %vm435, %v7247
      %v7485 = vld [vmem:[%s1727 + $0x5c] sm:$0x1]
      %v7486 = vsel %vm446, %v7248, %v7485
      %7487 = vst [vmem:[%s1727 + $0x5c] sm:$0x1] %v7486
      %v7488 = vld [vmem:[%s1727 + $0x60] sm:$0xf]
      %v7489 = vsel %vm1729, %v7255, %v7488
      %7490 = vst [vmem:[%s1727 + $0x60] sm:$0xf] %v7489
      %7491 = vst.msk [vmem:[%s1727 + $0x64] sm:$0xf] %vm435, %v7264
      %v7492 = vld [vmem:[%s1727 + $0x68] sm:$0x1]
      %v7493 = vsel %vm446, %v7265, %v7492
      %7494 = vst [vmem:[%s1727 + $0x68] sm:$0x1] %v7493
      %v7495 = vld [vmem:[%s1727 + $0x6c] sm:$0xf]
      %v7496 = vsel %vm1729, %v7272, %v7495
      %7497 = vst [vmem:[%s1727 + $0x6c] sm:$0xf] %v7496
      %7498 = vst.msk [vmem:[%s1727 + $0x70] sm:$0xf] %vm435, %v7281
      %v7499 = vld [vmem:[%s1727 + $0x74] sm:$0x1]
      %v7500 = vsel %vm446, %v7282, %v7499
      %7501 = vst [vmem:[%s1727 + $0x74] sm:$0x1] %v7500
      %v7502 = vld [vmem:[%s1727 + $0x78] sm:$0xf]
      %v7503 = vsel %vm1729, %v7289, %v7502
      %7504 = vst [vmem:[%s1727 + $0x78] sm:$0xf] %v7503
      %7505 = vst.msk [vmem:[%s1727 + $0x7c] sm:$0xf] %vm435, %v7298
      %v7506 = vld [vmem:[%s1727 + $0x80] sm:$0x1]
      %v7507 = vsel %vm446, %v7299, %v7506
      %7508 = vst [vmem:[%s1727 + $0x80] sm:$0x1] %v7507
      %v7509 = vld [vmem:[%s1727 + $0x84] sm:$0xf]
      %v7510 = vsel %vm1729, %v7306, %v7509
      %7511 = vst [vmem:[%s1727 + $0x84] sm:$0xf] %v7510
      %7512 = vst.msk [vmem:[%s1727 + $0x88] sm:$0xf] %vm435, %v7315
      %v7513 = vld [vmem:[%s1727 + $0x8c] sm:$0x1]
      %v7514 = vsel %vm446, %v7316, %v7513
      %7515 = vst [vmem:[%s1727 + $0x8c] sm:$0x1] %v7514
      %v7516 = vld [vmem:[%s1727 + $0x90] sm:$0xf]
      %v7517 = vsel %vm1729, %v7323, %v7516
      %7518 = vst [vmem:[%s1727 + $0x90] sm:$0xf] %v7517
      %7519 = vst.msk [vmem:[%s1727 + $0x94] sm:$0xf] %vm435, %v7332
      %v7520 = vld [vmem:[%s1727 + $0x98] sm:$0x1]
      %v7521 = vsel %vm446, %v7333, %v7520
      %7522 = vst [vmem:[%s1727 + $0x98] sm:$0x1] %v7521
      %v7523 = vld [vmem:[%s1727 + $0x9c] sm:$0xf]
      %v7524 = vsel %vm1729, %v7340, %v7523
      %7525 = vst [vmem:[%s1727 + $0x9c] sm:$0xf] %v7524
      %7526 = vst.msk [vmem:[%s1727 + $0xa0] sm:$0xf] %vm435, %v7349
      %v7527 = vld [vmem:[%s1727 + $0xa4] sm:$0x1]
      %v7528 = vsel %vm446, %v7350, %v7527
      %7529 = vst [vmem:[%s1727 + $0xa4] sm:$0x1] %v7528
      %v7530 = vld [vmem:[%s1727 + $0xa8] sm:$0xf]
      %v7531 = vsel %vm1729, %v7357, %v7530
      %7532 = vst [vmem:[%s1727 + $0xa8] sm:$0xf] %v7531
      %7533 = vst.msk [vmem:[%s1727 + $0xac] sm:$0xf] %vm435, %v7366
      %v7534 = vld [vmem:[%s1727 + $0xb0] sm:$0x1]
      %v7535 = vsel %vm446, %v7367, %v7534
      %7536 = vst [vmem:[%s1727 + $0xb0] sm:$0x1] %v7535
      %v7537 = vld [vmem:[%s1727 + $0xb4] sm:$0xf]
      %v7538 = vsel %vm1729, %v7374, %v7537
      %7539 = vst [vmem:[%s1727 + $0xb4] sm:$0xf] %v7538
      %7540 = vst.msk [vmem:[%s1727 + $0xb8] sm:$0xf] %vm435, %v7383
      %v7541 = vld [vmem:[%s1727 + $0xbc] sm:$0x1]
      %v7542 = vsel %vm446, %v7384, %v7541
      %7543 = vst [vmem:[%s1727 + $0xbc] sm:$0x1] %v7542
      %v7544 = vld [vmem:[%s9] sm:$0x1]
      %v7545 = vld [vmem:[#allocation2] sm:$0xf]
      %v7546 = vld [vmem:[#allocation2 + $0x4] sm:$0xf]
      %v7547 = vld [vmem:[#allocation2 + $0xc] sm:$0xf]
      %v7548 = vld [vmem:[#allocation2 + $0x10] sm:$0xf]
      %v7549 = vld [vmem:[#allocation2 + $0x18] sm:$0xf]
      %v7550 = vld [vmem:[#allocation2 + $0x1c] sm:$0xf]
      %v7551 = vld [vmem:[#allocation2 + $0x24] sm:$0xf]
      %v7552 = vld [vmem:[#allocation2 + $0x28] sm:$0xf]
      %v7553 = vld [vmem:[#allocation2 + $0x30] sm:$0xf]
      %v7554 = vld [vmem:[#allocation2 + $0x34] sm:$0xf]
      %v7555 = vld [vmem:[#allocation2 + $0x3c] sm:$0xf]
      %v7556 = vld [vmem:[#allocation2 + $0x40] sm:$0xf]
      %v7557 = vld [vmem:[#allocation2 + $0x48] sm:$0xf]
      %v7558 = vld [vmem:[#allocation2 + $0x4c] sm:$0xf]
      %v7559 = vld [vmem:[#allocation2 + $0x54] sm:$0xf]
      %v7560 = vld [vmem:[#allocation2 + $0x58] sm:$0xf]
      %v7561 = vld [vmem:[#allocation2 + $0x60] sm:$0xf]
      %v7562 = vld [vmem:[#allocation2 + $0x64] sm:$0xf]
      %v7563 = vld [vmem:[#allocation2 + $0x6c] sm:$0xf]
      %v7564 = vld [vmem:[#allocation2 + $0x70] sm:$0xf]
      %v7565 = vld [vmem:[#allocation2 + $0x78] sm:$0xf]
      %v7566 = vld [vmem:[#allocation2 + $0x7c] sm:$0xf]
      %v7567 = vld [vmem:[#allocation2 + $0x84] sm:$0xf]
      %v7568 = vld [vmem:[#allocation2 + $0x88] sm:$0xf]
      %v7569 = vld [vmem:[#allocation2 + $0x90] sm:$0xf]
      %v7570 = vld [vmem:[#allocation2 + $0x94] sm:$0xf]
      %v7571 = vld [vmem:[#allocation2 + $0x9c] sm:$0xf]
      %v7572 = vld [vmem:[#allocation2 + $0xa0] sm:$0xf]
      %v7573 = vld [vmem:[#allocation2 + $0xa8] sm:$0xf]
      %v7574 = vld [vmem:[#allocation2 + $0xac] sm:$0xf]
      %v7575 = vld [vmem:[#allocation2 + $0xb4] sm:$0xf]
      %v7576 = vld [vmem:[#allocation2 + $0xb8] sm:$0xf]
      %v7577 = vld [vmem:[%s8] sm:$0x3]
      %v7578 = vld [vmem:[#allocation2 + $0x8] sm:$0x1]
      %v7579 = vld [vmem:[#allocation2 + $0x14] sm:$0x1]
      %v7580 = vld [vmem:[#allocation2 + $0x20] sm:$0x1]
      %v7581 = vld [vmem:[#allocation2 + $0x2c] sm:$0x1]
      %v7582 = vld [vmem:[#allocation2 + $0x38] sm:$0x1]
      %v7583 = vld [vmem:[#allocation2 + $0x44] sm:$0x1]
      %v7584 = vld [vmem:[#allocation2 + $0x50] sm:$0x1]
      %v7585 = vld [vmem:[#allocation2 + $0x5c] sm:$0x1]
      %v7586 = vld [vmem:[#allocation2 + $0x68] sm:$0x1]
      %v7587 = vld [vmem:[#allocation2 + $0x74] sm:$0x1]
      %v7588 = vld [vmem:[#allocation2 + $0x80] sm:$0x1]
      %v7589 = vld [vmem:[#allocation2 + $0x8c] sm:$0x1]
      %v7590 = vld [vmem:[#allocation2 + $0x98] sm:$0x1]
      %v7591 = vld [vmem:[#allocation2 + $0xa4] sm:$0x1]
      %v7592 = vld [vmem:[#allocation2 + $0xb0] sm:$0x1]
      %v7593 = vld [vmem:[#allocation2 + $0xbc] sm:$0x1]
      %v7595 = vshrl.u32 %v7545, 16
      %v7597 = vrot.slane %v7595, 4
      %v7598 = vshll.u32 %v7545, 16
      %v7600 = vrot.slane %v7598, 5
      %v7601 = vor.u32 %v7597, %v7600
      %v7602 = vrot.slane %v7601, 4
      %v7604 = vshll.u32 %v7546, 16
      %v7606 = vrot.slane %v7604, 5
      %v7607 = vsel %vm1894, %v7602, %v7606
      %v7608 = vshrl.u32 %v7546, 16
      %v7610 = vrot.slane %v7608, 4
      %v7611 = vor.u32 %v7610, %v7606
      %v7612 = vrot.slane %v7611, 4
      %v7614 = vshll.u32 %v7578, 16
      %v7616 = vrot.slane %v7614, 5
      %v7617 = vsel %vm1894, %v7612, %v7616
      %v7619 = vshrl.u32 %v7547, 16
      %v7621 = vrot.slane %v7619, 4
      %v7622 = vshll.u32 %v7547, 16
      %v7624 = vrot.slane %v7622, 5
      %v7625 = vor.u32 %v7621, %v7624
      %v7626 = vrot.slane %v7625, 4
      %v7628 = vshll.u32 %v7548, 16
      %v7630 = vrot.slane %v7628, 5
      %v7631 = vsel %vm1894, %v7626, %v7630
      %v7632 = vshrl.u32 %v7548, 16
      %v7634 = vrot.slane %v7632, 4
      %v7635 = vor.u32 %v7634, %v7630
      %v7636 = vrot.slane %v7635, 4
      %v7638 = vshll.u32 %v7579, 16
      %v7640 = vrot.slane %v7638, 5
      %v7641 = vsel %vm1894, %v7636, %v7640
      %v7643 = vshrl.u32 %v7549, 16
      %v7645 = vrot.slane %v7643, 4
      %v7646 = vshll.u32 %v7549, 16
      %v7648 = vrot.slane %v7646, 5
      %v7649 = vor.u32 %v7645, %v7648
      %v7650 = vrot.slane %v7649, 4
      %v7652 = vshll.u32 %v7550, 16
      %v7654 = vrot.slane %v7652, 5
      %v7655 = vsel %vm1894, %v7650, %v7654
      %v7656 = vshrl.u32 %v7550, 16
      %v7658 = vrot.slane %v7656, 4
      %v7659 = vor.u32 %v7658, %v7654
      %v7660 = vrot.slane %v7659, 4
      %v7662 = vshll.u32 %v7580, 16
      %v7664 = vrot.slane %v7662, 5
      %v7665 = vsel %vm1894, %v7660, %v7664
      %v7667 = vshrl.u32 %v7551, 16
      %v7669 = vrot.slane %v7667, 4
      %v7670 = vshll.u32 %v7551, 16
      %v7672 = vrot.slane %v7670, 5
      %v7673 = vor.u32 %v7669, %v7672
      %v7674 = vrot.slane %v7673, 4
      %v7676 = vshll.u32 %v7552, 16
      %v7678 = vrot.slane %v7676, 5
      %v7679 = vsel %vm1894, %v7674, %v7678
      %v7680 = vshrl.u32 %v7552, 16
      %v7682 = vrot.slane %v7680, 4
      %v7683 = vor.u32 %v7682, %v7678
      %v7684 = vrot.slane %v7683, 4
      %v7686 = vshll.u32 %v7581, 16
      %v7688 = vrot.slane %v7686, 5
      %v7689 = vsel %vm1894, %v7684, %v7688
      %v7691 = vshrl.u32 %v7553, 16
      %v7693 = vrot.slane %v7691, 4
      %v7694 = vshll.u32 %v7553, 16
      %v7696 = vrot.slane %v7694, 5
      %v7697 = vor.u32 %v7693, %v7696
      %v7698 = vrot.slane %v7697, 4
      %v7700 = vshll.u32 %v7554, 16
      %v7702 = vrot.slane %v7700, 5
      %v7703 = vsel %vm1894, %v7698, %v7702
      %v7704 = vshrl.u32 %v7554, 16
      %v7706 = vrot.slane %v7704, 4
      %v7707 = vor.u32 %v7706, %v7702
      %v7708 = vrot.slane %v7707, 4
      %v7710 = vshll.u32 %v7582, 16
      %v7712 = vrot.slane %v7710, 5
      %v7713 = vsel %vm1894, %v7708, %v7712
      %v7715 = vshrl.u32 %v7555, 16
      %v7717 = vrot.slane %v7715, 4
      %v7718 = vshll.u32 %v7555, 16
      %v7720 = vrot.slane %v7718, 5
      %v7721 = vor.u32 %v7717, %v7720
      %v7722 = vrot.slane %v7721, 4
      %v7724 = vshll.u32 %v7556, 16
      %v7726 = vrot.slane %v7724, 5
      %v7727 = vsel %vm1894, %v7722, %v7726
      %v7728 = vshrl.u32 %v7556, 16
      %v7730 = vrot.slane %v7728, 4
      %v7731 = vor.u32 %v7730, %v7726
      %v7732 = vrot.slane %v7731, 4
      %v7734 = vshll.u32 %v7583, 16
      %v7736 = vrot.slane %v7734, 5
      %v7737 = vsel %vm1894, %v7732, %v7736
      %v7739 = vshrl.u32 %v7557, 16
      %v7741 = vrot.slane %v7739, 4
      %v7742 = vshll.u32 %v7557, 16
      %v7744 = vrot.slane %v7742, 5
      %v7745 = vor.u32 %v7741, %v7744
      %v7746 = vrot.slane %v7745, 4
      %v7748 = vshll.u32 %v7558, 16
      %v7750 = vrot.slane %v7748, 5
      %v7751 = vsel %vm1894, %v7746, %v7750
      %v7752 = vshrl.u32 %v7558, 16
      %v7754 = vrot.slane %v7752, 4
      %v7755 = vor.u32 %v7754, %v7750
      %v7756 = vrot.slane %v7755, 4
      %v7758 = vshll.u32 %v7584, 16
      %v7760 = vrot.slane %v7758, 5
      %v7761 = vsel %vm1894, %v7756, %v7760
      %v7763 = vshrl.u32 %v7559, 16
      %v7765 = vrot.slane %v7763, 4
      %v7766 = vshll.u32 %v7559, 16
      %v7768 = vrot.slane %v7766, 5
      %v7769 = vor.u32 %v7765, %v7768
      %v7770 = vrot.slane %v7769, 4
      %v7772 = vshll.u32 %v7560, 16
      %v7774 = vrot.slane %v7772, 5
      %v7775 = vsel %vm1894, %v7770, %v7774
      %v7776 = vshrl.u32 %v7560, 16
      %v7778 = vrot.slane %v7776, 4
      %v7779 = vor.u32 %v7778, %v7774
      %v7780 = vrot.slane %v7779, 4
      %v7782 = vshll.u32 %v7585, 16
      %v7784 = vrot.slane %v7782, 5
      %v7785 = vsel %vm1894, %v7780, %v7784
      %v7787 = vshrl.u32 %v7561, 16
      %v7789 = vrot.slane %v7787, 4
      %v7790 = vshll.u32 %v7561, 16
      %v7792 = vrot.slane %v7790, 5
      %v7793 = vor.u32 %v7789, %v7792
      %v7794 = vrot.slane %v7793, 4
      %v7796 = vshll.u32 %v7562, 16
      %v7798 = vrot.slane %v7796, 5
      %v7799 = vsel %vm1894, %v7794, %v7798
      %v7800 = vshrl.u32 %v7562, 16
      %v7802 = vrot.slane %v7800, 4
      %v7803 = vor.u32 %v7802, %v7798
      %v7804 = vrot.slane %v7803, 4
      %v7806 = vshll.u32 %v7586, 16
      %v7808 = vrot.slane %v7806, 5
      %v7809 = vsel %vm1894, %v7804, %v7808
      %v7811 = vshrl.u32 %v7563, 16
      %v7813 = vrot.slane %v7811, 4
      %v7814 = vshll.u32 %v7563, 16
      %v7816 = vrot.slane %v7814, 5
      %v7817 = vor.u32 %v7813, %v7816
      %v7818 = vrot.slane %v7817, 4
      %v7820 = vshll.u32 %v7564, 16
      %v7822 = vrot.slane %v7820, 5
      %v7823 = vsel %vm1894, %v7818, %v7822
      %v7824 = vshrl.u32 %v7564, 16
      %v7826 = vrot.slane %v7824, 4
      %v7827 = vor.u32 %v7826, %v7822
      %v7828 = vrot.slane %v7827, 4
      %v7830 = vshll.u32 %v7587, 16
      %v7832 = vrot.slane %v7830, 5
      %v7833 = vsel %vm1894, %v7828, %v7832
      %v7835 = vshrl.u32 %v7565, 16
      %v7837 = vrot.slane %v7835, 4
      %v7838 = vshll.u32 %v7565, 16
      %v7840 = vrot.slane %v7838, 5
      %v7841 = vor.u32 %v7837, %v7840
      %v7842 = vrot.slane %v7841, 4
      %v7844 = vshll.u32 %v7566, 16
      %v7846 = vrot.slane %v7844, 5
      %v7847 = vsel %vm1894, %v7842, %v7846
      %v7848 = vshrl.u32 %v7566, 16
      %v7850 = vrot.slane %v7848, 4
      %v7851 = vor.u32 %v7850, %v7846
      %v7852 = vrot.slane %v7851, 4
      %v7854 = vshll.u32 %v7588, 16
      %v7856 = vrot.slane %v7854, 5
      %v7857 = vsel %vm1894, %v7852, %v7856
      %v7859 = vshrl.u32 %v7567, 16
      %v7861 = vrot.slane %v7859, 4
      %v7862 = vshll.u32 %v7567, 16
      %v7864 = vrot.slane %v7862, 5
      %v7865 = vor.u32 %v7861, %v7864
      %v7866 = vrot.slane %v7865, 4
      %v7868 = vshll.u32 %v7568, 16
      %v7870 = vrot.slane %v7868, 5
      %v7871 = vsel %vm1894, %v7866, %v7870
      %v7872 = vshrl.u32 %v7568, 16
      %v7874 = vrot.slane %v7872, 4
      %v7875 = vor.u32 %v7874, %v7870
      %v7876 = vrot.slane %v7875, 4
      %v7878 = vshll.u32 %v7589, 16
      %v7880 = vrot.slane %v7878, 5
      %v7881 = vsel %vm1894, %v7876, %v7880
      %v7883 = vshrl.u32 %v7569, 16
      %v7885 = vrot.slane %v7883, 4
      %v7886 = vshll.u32 %v7569, 16
      %v7888 = vrot.slane %v7886, 5
      %v7889 = vor.u32 %v7885, %v7888
      %v7890 = vrot.slane %v7889, 4
      %v7892 = vshll.u32 %v7570, 16
      %v7894 = vrot.slane %v7892, 5
      %v7895 = vsel %vm1894, %v7890, %v7894
      %v7896 = vshrl.u32 %v7570, 16
      %v7898 = vrot.slane %v7896, 4
      %v7899 = vor.u32 %v7898, %v7894
      %v7900 = vrot.slane %v7899, 4
      %v7902 = vshll.u32 %v7590, 16
      %v7904 = vrot.slane %v7902, 5
      %v7905 = vsel %vm1894, %v7900, %v7904
      %v7907 = vshrl.u32 %v7571, 16
      %v7909 = vrot.slane %v7907, 4
      %v7910 = vshll.u32 %v7571, 16
      %v7912 = vrot.slane %v7910, 5
      %v7913 = vor.u32 %v7909, %v7912
      %v7914 = vrot.slane %v7913, 4
      %v7916 = vshll.u32 %v7572, 16
      %v7918 = vrot.slane %v7916, 5
      %v7919 = vsel %vm1894, %v7914, %v7918
      %v7920 = vshrl.u32 %v7572, 16
      %v7922 = vrot.slane %v7920, 4
      %v7923 = vor.u32 %v7922, %v7918
      %v7924 = vrot.slane %v7923, 4
      %v7926 = vshll.u32 %v7591, 16
      %v7928 = vrot.slane %v7926, 5
      %v7929 = vsel %vm1894, %v7924, %v7928
      %v7931 = vshrl.u32 %v7573, 16
      %v7933 = vrot.slane %v7931, 4
      %v7934 = vshll.u32 %v7573, 16
      %v7936 = vrot.slane %v7934, 5
      %v7937 = vor.u32 %v7933, %v7936
      %v7938 = vrot.slane %v7937, 4
      %v7940 = vshll.u32 %v7574, 16
      %v7942 = vrot.slane %v7940, 5
      %v7943 = vsel %vm1894, %v7938, %v7942
      %v7944 = vshrl.u32 %v7574, 16
      %v7946 = vrot.slane %v7944, 4
      %v7947 = vor.u32 %v7946, %v7942
      %v7948 = vrot.slane %v7947, 4
      %v7950 = vshll.u32 %v7592, 16
      %v7952 = vrot.slane %v7950, 5
      %v7953 = vsel %vm1894, %v7948, %v7952
      %v7955 = vshrl.u32 %v7575, 16
      %v7957 = vrot.slane %v7955, 4
      %v7958 = vshll.u32 %v7575, 16
      %v7960 = vrot.slane %v7958, 5
      %v7961 = vor.u32 %v7957, %v7960
      %v7962 = vrot.slane %v7961, 4
      %v7964 = vshll.u32 %v7576, 16
      %v7966 = vrot.slane %v7964, 5
      %v7967 = vsel %vm1894, %v7962, %v7966
      %v7968 = vshrl.u32 %v7576, 16
      %v7970 = vrot.slane %v7968, 4
      %v7971 = vor.u32 %v7970, %v7966
      %v7972 = vrot.slane %v7971, 4
      %v7974 = vshll.u32 %v7593, 16
      %v7976 = vrot.slane %v7974, 5
      %v7977 = vsel %vm1894, %v7972, %v7976
      %s7978 = scalar_lea.vmem %s8, 2
      %v7979 = vld [vmem:[%s7978] sm:$0x3]
      %v7980 = vunpack.c.l.b16 %v7607
      %v7981 = vunpack.c.l.b16 %v7617
      %v7982 = vunpack.c.l.b16 %v7631
      %v7983 = vunpack.c.l.b16 %v7641
      %v7984 = vunpack.c.l.b16 %v7655
      %v7985 = vunpack.c.l.b16 %v7665
      %v7986 = vunpack.c.l.b16 %v7679
      %v7987 = vunpack.c.l.b16 %v7689
      %v7988 = vunpack.c.l.b16 %v7703
      %v7989 = vunpack.c.l.b16 %v7713
      %v7990 = vunpack.c.l.b16 %v7727
      %v7991 = vunpack.c.l.b16 %v7737
      %v7992 = vunpack.c.l.b16 %v7751
      %v7993 = vunpack.c.l.b16 %v7761
      %v7994 = vunpack.c.l.b16 %v7775
      %v7995 = vunpack.c.l.b16 %v7785
      %v7996 = vunpack.c.l.b16 %v7799
      %v7997 = vunpack.c.l.b16 %v7809
      %v7998 = vunpack.c.l.b16 %v7823
      %v7999 = vunpack.c.l.b16 %v7833
      %v8000 = vunpack.c.l.b16 %v7847
      %v8001 = vunpack.c.l.b16 %v7857
      %v8002 = vunpack.c.l.b16 %v7871
      %v8003 = vunpack.c.l.b16 %v7881
      %v8004 = vunpack.c.l.b16 %v7895
      %v8005 = vunpack.c.l.b16 %v7905
      %v8006 = vunpack.c.l.b16 %v7919
      %v8007 = vunpack.c.l.b16 %v7929
      %v8008 = vunpack.c.l.b16 %v7943
      %v8009 = vunpack.c.l.b16 %v7953
      %v8010 = vunpack.c.l.b16 %v7967
      %v8011 = vunpack.c.l.b16 %v7977
      %v8012 = vpack.c.b16 %v7981, %v7980
      %v8013 = vpack.c.b16 %v7983, %v7982
      %v8014 = vpack.c.b16 %v7985, %v7984
      %v8015 = vpack.c.b16 %v7987, %v7986
      %v8016 = vpack.c.b16 %v7989, %v7988
      %v8017 = vpack.c.b16 %v7991, %v7990
      %v8018 = vpack.c.b16 %v7993, %v7992
      %v8019 = vpack.c.b16 %v7995, %v7994
      %v8020 = vpack.c.b16 %v7997, %v7996
      %v8021 = vpack.c.b16 %v7999, %v7998
      %v8022 = vpack.c.b16 %v8001, %v8000
      %v8023 = vpack.c.b16 %v8003, %v8002
      %v8024 = vpack.c.b16 %v8005, %v8004
      %v8025 = vpack.c.b16 %v8007, %v8006
      %v8026 = vpack.c.b16 %v8009, %v8008
      %v8027 = vpack.c.b16 %v8011, %v8010
      %v8029 = vsel %vm721, %v8012, 0
      %v8032 = vsel %vm721, %v8013, 0
      %v8035 = vsel %vm721, %v8014, 0
      %v8038 = vsel %vm721, %v8015, 0
      %v8041 = vsel %vm721, %v8016, 0
      %v8044 = vsel %vm721, %v8017, 0
      %v8047 = vsel %vm721, %v8018, 0
      %v8050 = vsel %vm721, %v8019, 0
      %v8053 = vsel %vm721, %v8020, 0
      %v8056 = vsel %vm721, %v8021, 0
      %v8059 = vsel %vm721, %v8022, 0
      %v8062 = vsel %vm721, %v8023, 0
      %v8065 = vsel %vm721, %v8024, 0
      %v8068 = vsel %vm721, %v8025, 0
      %v8071 = vsel %vm721, %v8026, 0
      %v8074 = vsel %vm721, %v8027, 0
      %v8077 = vsel %vm1052, %v7979, 0
      %8079 = vmatprep.subr.bf16.mxu0 0
      %8080 = vmatpush1.bf16.msra.mxu0 %v8077
      %8081 = vmatprep.subr.bf16.mxu0 0
      %8082 = vmatpush1.bf16.msra.mxu0 0
      %8083 = vmatprep.subr.bf16.mxu0 0
      %8084 = vmatpush1.bf16.msra.mxu0 0
      %8085 = vmatprep.subr.bf16.mxu0 0
      %8086 = vmatpush1.bf16.msra.mxu0 0
      %8087 = vmatprep.subr.bf16.mxu0 0
      %8088 = vmatpush1.bf16.msra.mxu0 0
      %8089 = vmatprep.subr.bf16.mxu0 0
      %8090 = vmatpush1.bf16.msra.mxu0 0
      %8091 = vmatprep.subr.bf16.mxu0 0
      %8092 = vmatpush1.bf16.msra.mxu0 0
      %8093 = vmatprep.subr.bf16.mxu0 0
      %8094 = vmatpush1.bf16.msra.mxu0 0
      %8095 = vmatprep.subr.bf16.mxu0 0
      %8096 = vmatpush1.bf16.msra.mxu0 0
      %8097 = vmatprep.subr.bf16.mxu0 0
      %8098 = vmatpush1.bf16.msra.mxu0 0
      %8099 = vmatprep.subr.bf16.mxu0 0
      %8100 = vmatpush1.bf16.msra.mxu0 0
      %8101 = vmatprep.subr.bf16.mxu0 0
      %8102 = vmatpush1.bf16.msra.mxu0 0
      %8103 = vmatprep.subr.bf16.mxu0 0
      %8104 = vmatpush1.bf16.msra.mxu0 0
      %8105 = vmatprep.subr.bf16.mxu0 0
      %8106 = vmatpush1.bf16.msra.mxu0 0
      %8107 = vmatprep.subr.bf16.mxu0 0
      %8108 = vmatpush1.bf16.msra.mxu0 0
      %8109 = vmatprep.subr.bf16.mxu0 0
      %8110 = vmatpush1.bf16.msra.mxu0 0
      %8111 = vmatprep.mubr.bf16.mxu0 0
      %8112 = vmatmul.mubr.bf16.gmra.mrb[0].mxu0 %v8029
      %v8113 = vpop.f32.mrb[0].mxu0
      %v8114 = vadd.f32 0.0, %v8113
      %v8115 = vpop.f32.mrb[0].mxu0
      %v8116 = vpop.f32.mrb[0].mxu0
      %v8117 = vadd.f32 0.0, %v8116
      %v8118 = vpop.f32.mrb[0].mxu0
      %8119 = vmatprep.mubr.bf16.mxu0 0
      %8120 = vmatmul.mubr.bf16.gmra.mrb[0].mxu0 %v8032
      %v8121 = vpop.f32.mrb[0].mxu0
      %v8122 = vadd.f32 0.0, %v8121
      %v8123 = vpop.f32.mrb[0].mxu0
      %v8124 = vpop.f32.mrb[0].mxu0
      %v8125 = vadd.f32 0.0, %v8124
      %v8126 = vpop.f32.mrb[0].mxu0
      %8127 = vmatprep.mubr.bf16.mxu0 0
      %8128 = vmatmul.mubr.bf16.gmra.mrb[0].mxu0 %v8035
      %v8129 = vpop.f32.mrb[0].mxu0
      %v8130 = vadd.f32 0.0, %v8129
      %v8131 = vpop.f32.mrb[0].mxu0
      %v8132 = vpop.f32.mrb[0].mxu0
      %v8133 = vadd.f32 0.0, %v8132
      %v8134 = vpop.f32.mrb[0].mxu0
      %8135 = vmatprep.mubr.bf16.mxu0 0
      %8136 = vmatmul.mubr.bf16.gmra.mrb[0].mxu0 %v8038
      %v8137 = vpop.f32.mrb[0].mxu0
      %v8138 = vadd.f32 0.0, %v8137
      %v8139 = vpop.f32.mrb[0].mxu0
      %v8140 = vpop.f32.mrb[0].mxu0
      %v8141 = vadd.f32 0.0, %v8140
      %v8142 = vpop.f32.mrb[0].mxu0
      %8143 = vmatprep.mubr.bf16.mxu0 0
      %8144 = vmatmul.mubr.bf16.gmra.mrb[0].mxu0 %v8041
      %v8145 = vpop.f32.mrb[0].mxu0
      %v8146 = vadd.f32 0.0, %v8145
      %v8147 = vpop.f32.mrb[0].mxu0
      %v8148 = vpop.f32.mrb[0].mxu0
      %v8149 = vadd.f32 0.0, %v8148
      %v8150 = vpop.f32.mrb[0].mxu0
      %8151 = vmatprep.mubr.bf16.mxu0 0
      %8152 = vmatmul.mubr.bf16.gmra.mrb[0].mxu0 %v8044
      %v8153 = vpop.f32.mrb[0].mxu0
      %v8154 = vadd.f32 0.0, %v8153
      %v8155 = vpop.f32.mrb[0].mxu0
      %v8156 = vpop.f32.mrb[0].mxu0
      %v8157 = vadd.f32 0.0, %v8156
      %v8158 = vpop.f32.mrb[0].mxu0
      %8159 = vmatprep.mubr.bf16.mxu0 0
      %8160 = vmatmul.mubr.bf16.gmra.mrb[0].mxu0 %v8047
      %v8161 = vpop.f32.mrb[0].mxu0
      %v8162 = vadd.f32 0.0, %v8161
      %v8163 = vpop.f32.mrb[0].mxu0
      %v8164 = vpop.f32.mrb[0].mxu0
      %v8165 = vadd.f32 0.0, %v8164
      %v8166 = vpop.f32.mrb[0].mxu0
      %8167 = vmatprep.mubr.bf16.mxu0 0
      %8168 = vmatmul.mubr.bf16.gmra.mrb[0].mxu0 %v8050
      %v8169 = vpop.f32.mrb[0].mxu0
      %v8170 = vadd.f32 0.0, %v8169
      %v8171 = vpop.f32.mrb[0].mxu0
      %v8172 = vpop.f32.mrb[0].mxu0
      %v8173 = vadd.f32 0.0, %v8172
      %v8174 = vpop.f32.mrb[0].mxu0
      %8175 = vmatprep.mubr.bf16.mxu0 0
      %8176 = vmatmul.mubr.bf16.gmra.mrb[0].mxu0 %v8053
      %v8177 = vpop.f32.mrb[0].mxu0
      %v8178 = vadd.f32 0.0, %v8177
      %v8179 = vpop.f32.mrb[0].mxu0
      %v8180 = vpop.f32.mrb[0].mxu0
      %v8181 = vadd.f32 0.0, %v8180
      %v8182 = vpop.f32.mrb[0].mxu0
      %8183 = vmatprep.mubr.bf16.mxu0 0
      %8184 = vmatmul.mubr.bf16.gmra.mrb[0].mxu0 %v8056
      %v8185 = vpop.f32.mrb[0].mxu0
      %v8186 = vadd.f32 0.0, %v8185
      %v8187 = vpop.f32.mrb[0].mxu0
      %v8188 = vpop.f32.mrb[0].mxu0
      %v8189 = vadd.f32 0.0, %v8188
      %v8190 = vpop.f32.mrb[0].mxu0
      %8191 = vmatprep.mubr.bf16.mxu0 0
      %8192 = vmatmul.mubr.bf16.gmra.mrb[0].mxu0 %v8059
      %v8193 = vpop.f32.mrb[0].mxu0
      %v8194 = vadd.f32 0.0, %v8193
      %v8195 = vpop.f32.mrb[0].mxu0
      %v8196 = vpop.f32.mrb[0].mxu0
      %v8197 = vadd.f32 0.0, %v8196
      %v8198 = vpop.f32.mrb[0].mxu0
      %8199 = vmatprep.mubr.bf16.mxu0 0
      %8200 = vmatmul.mubr.bf16.gmra.mrb[0].mxu0 %v8062
      %v8201 = vpop.f32.mrb[0].mxu0
      %v8202 = vadd.f32 0.0, %v8201
      %v8203 = vpop.f32.mrb[0].mxu0
      %v8204 = vpop.f32.mrb[0].mxu0
      %v8205 = vadd.f32 0.0, %v8204
      %v8206 = vpop.f32.mrb[0].mxu0
      %8207 = vmatprep.mubr.bf16.mxu0 0
      %8208 = vmatmul.mubr.bf16.gmra.mrb[0].mxu0 %v8065
      %v8209 = vpop.f32.mrb[0].mxu0
      %v8210 = vadd.f32 0.0, %v8209
      %v8211 = vpop.f32.mrb[0].mxu0
      %v8212 = vpop.f32.mrb[0].mxu0
      %v8213 = vadd.f32 0.0, %v8212
      %v8214 = vpop.f32.mrb[0].mxu0
      %8215 = vmatprep.mubr.bf16.mxu0 0
      %8216 = vmatmul.mubr.bf16.gmra.mrb[0].mxu0 %v8068
      %v8217 = vpop.f32.mrb[0].mxu0
      %v8218 = vadd.f32 0.0, %v8217
      %v8219 = vpop.f32.mrb[0].mxu0
      %v8220 = vpop.f32.mrb[0].mxu0
      %v8221 = vadd.f32 0.0, %v8220
      %v8222 = vpop.f32.mrb[0].mxu0
      %8223 = vmatprep.mubr.bf16.mxu0 0
      %8224 = vmatmul.mubr.bf16.gmra.mrb[0].mxu0 %v8071
      %v8225 = vpop.f32.mrb[0].mxu0
      %v8226 = vadd.f32 0.0, %v8225
      %v8227 = vpop.f32.mrb[0].mxu0
      %v8228 = vpop.f32.mrb[0].mxu0
      %v8229 = vadd.f32 0.0, %v8228
      %v8230 = vpop.f32.mrb[0].mxu0
      %8231 = vmatprep.mubr.bf16.mxu0 0
      %8232 = vmatmul.mubr.bf16.gmra.mrb[0].mxu0 %v8074
      %v8233 = vpop.f32.mrb[0].mxu0
      %v8234 = vadd.f32 0.0, %v8233
      %v8235 = vpop.f32.mrb[0].mxu0
      %v8236 = vpop.f32.mrb[0].mxu0
      %v8237 = vadd.f32 0.0, %v8236
      %v8238 = vpop.f32.mrb[0].mxu0
      %8239 = vdwg.mxu0
      %v8272 = vunpack.c.l.b16 %v7545
      %v8273 = vunpack.c.l.b16 %v7546
      %v8274 = vunpack.c.l.b16 %v7547
      %v8275 = vunpack.c.l.b16 %v7548
      %v8276 = vunpack.c.l.b16 %v7549
      %v8277 = vunpack.c.l.b16 %v7550
      %v8278 = vunpack.c.l.b16 %v7551
      %v8279 = vunpack.c.l.b16 %v7552
      %v8280 = vunpack.c.l.b16 %v7553
      %v8281 = vunpack.c.l.b16 %v7554
      %v8282 = vunpack.c.l.b16 %v7555
      %v8283 = vunpack.c.l.b16 %v7556
      %v8284 = vunpack.c.l.b16 %v7557
      %v8285 = vunpack.c.l.b16 %v7558
      %v8286 = vunpack.c.l.b16 %v7559
      %v8287 = vunpack.c.l.b16 %v7560
      %v8288 = vunpack.c.l.b16 %v7561
      %v8289 = vunpack.c.l.b16 %v7562
      %v8290 = vunpack.c.l.b16 %v7563
      %v8291 = vunpack.c.l.b16 %v7564
      %v8292 = vunpack.c.l.b16 %v7565
      %v8293 = vunpack.c.l.b16 %v7566
      %v8294 = vunpack.c.l.b16 %v7567
      %v8295 = vunpack.c.l.b16 %v7568
      %v8296 = vunpack.c.l.b16 %v7569
      %v8297 = vunpack.c.l.b16 %v7570
      %v8298 = vunpack.c.l.b16 %v7571
      %v8299 = vunpack.c.l.b16 %v7572
      %v8300 = vunpack.c.l.b16 %v7573
      %v8301 = vunpack.c.l.b16 %v7574
      %v8302 = vunpack.c.l.b16 %v7575
      %v8303 = vunpack.c.l.b16 %v7576
      %v8304 = vpack.c.b16 %v8273, %v8272
      %v8305 = vpack.c.b16 %v8275, %v8274
      %v8306 = vpack.c.b16 %v8277, %v8276
      %v8307 = vpack.c.b16 %v8279, %v8278
      %v8308 = vpack.c.b16 %v8281, %v8280
      %v8309 = vpack.c.b16 %v8283, %v8282
      %v8310 = vpack.c.b16 %v8285, %v8284
      %v8311 = vpack.c.b16 %v8287, %v8286
      %v8312 = vpack.c.b16 %v8289, %v8288
      %v8313 = vpack.c.b16 %v8291, %v8290
      %v8314 = vpack.c.b16 %v8293, %v8292
      %v8315 = vpack.c.b16 %v8295, %v8294
      %v8316 = vpack.c.b16 %v8297, %v8296
      %v8317 = vpack.c.b16 %v8299, %v8298
      %v8318 = vpack.c.b16 %v8301, %v8300
      %v8319 = vpack.c.b16 %v8303, %v8302
      %v8321 = vsel %vm721, %v8304, 0
      %v8324 = vsel %vm721, %v8305, 0
      %v8327 = vsel %vm721, %v8306, 0
      %v8330 = vsel %vm721, %v8307, 0
      %v8333 = vsel %vm721, %v8308, 0
      %v8336 = vsel %vm721, %v8309, 0
      %v8339 = vsel %vm721, %v8310, 0
      %v8342 = vsel %vm721, %v8311, 0
      %v8345 = vsel %vm721, %v8312, 0
      %v8348 = vsel %vm721, %v8313, 0
      %v8351 = vsel %vm721, %v8314, 0
      %v8354 = vsel %vm721, %v8315, 0
      %v8357 = vsel %vm721, %v8316, 0
      %v8360 = vsel %vm721, %v8317, 0
      %v8363 = vsel %vm721, %v8318, 0
      %v8366 = vsel %vm721, %v8319, 0
      %v8369 = vsel %vm1052, %v7577, 0
      %8371 = vmatprep.subr.bf16.mxu0 0
      %8372 = vmatpush1.bf16.msra.mxu0 %v8369
      %8373 = vmatprep.subr.bf16.mxu0 0
      %8374 = vmatpush1.bf16.msra.mxu0 0
      %8375 = vmatprep.subr.bf16.mxu0 0
      %8376 = vmatpush1.bf16.msra.mxu0 0
      %8377 = vmatprep.subr.bf16.mxu0 0
      %8378 = vmatpush1.bf16.msra.mxu0 0
      %8379 = vmatprep.subr.bf16.mxu0 0
      %8380 = vmatpush1.bf16.msra.mxu0 0
      %8381 = vmatprep.subr.bf16.mxu0 0
      %8382 = vmatpush1.bf16.msra.mxu0 0
      %8383 = vmatprep.subr.bf16.mxu0 0
      %8384 = vmatpush1.bf16.msra.mxu0 0
      %8385 = vmatprep.subr.bf16.mxu0 0
      %8386 = vmatpush1.bf16.msra.mxu0 0
      %8387 = vmatprep.subr.bf16.mxu0 0
      %8388 = vmatpush1.bf16.msra.mxu0 0
      %8389 = vmatprep.subr.bf16.mxu0 0
      %8390 = vmatpush1.bf16.msra.mxu0 0
      %8391 = vmatprep.subr.bf16.mxu0 0
      %8392 = vmatpush1.bf16.msra.mxu0 0
      %8393 = vmatprep.subr.bf16.mxu0 0
      %8394 = vmatpush1.bf16.msra.mxu0 0
      %8395 = vmatprep.subr.bf16.mxu0 0
      %8396 = vmatpush1.bf16.msra.mxu0 0
      %8397 = vmatprep.subr.bf16.mxu0 0
      %8398 = vmatpush1.bf16.msra.mxu0 0
      %8399 = vmatprep.subr.bf16.mxu0 0
      %8400 = vmatpush1.bf16.msra.mxu0 0
      %8401 = vmatprep.subr.bf16.mxu0 0
      %8402 = vmatpush1.bf16.msra.mxu0 0
      %8403 = vmatprep.mubr.bf16.mxu0 0
      %8404 = vmatmul.mubr.bf16.gmra.mrb[0].mxu0 %v8321
      %v8405 = vpop.f32.mrb[0].mxu0
      %v8406 = vadd.f32 %v8114, %v8405
      %v8407 = vpop.f32.mrb[0].mxu0
      %v8408 = vpop.f32.mrb[0].mxu0
      %v8409 = vadd.f32 %v8117, %v8408
      %v8410 = vpop.f32.mrb[0].mxu0
      %8411 = vmatprep.mubr.bf16.mxu0 0
      %8412 = vmatmul.mubr.bf16.gmra.mrb[0].mxu0 %v8324
      %v8413 = vpop.f32.mrb[0].mxu0
      %v8414 = vadd.f32 %v8122, %v8413
      %v8415 = vpop.f32.mrb[0].mxu0
      %v8416 = vpop.f32.mrb[0].mxu0
      %v8417 = vadd.f32 %v8125, %v8416
      %v8418 = vpop.f32.mrb[0].mxu0
      %8419 = vmatprep.mubr.bf16.mxu0 0
      %8420 = vmatmul.mubr.bf16.gmra.mrb[0].mxu0 %v8327
      %v8421 = vpop.f32.mrb[0].mxu0
      %v8422 = vadd.f32 %v8130, %v8421
      %v8423 = vpop.f32.mrb[0].mxu0
      %v8424 = vpop.f32.mrb[0].mxu0
      %v8425 = vadd.f32 %v8133, %v8424
      %v8426 = vpop.f32.mrb[0].mxu0
      %8427 = vmatprep.mubr.bf16.mxu0 0
      %8428 = vmatmul.mubr.bf16.gmra.mrb[0].mxu0 %v8330
      %v8429 = vpop.f32.mrb[0].mxu0
      %v8430 = vadd.f32 %v8138, %v8429
      %v8431 = vpop.f32.mrb[0].mxu0
      %v8432 = vpop.f32.mrb[0].mxu0
      %v8433 = vadd.f32 %v8141, %v8432
      %v8434 = vpop.f32.mrb[0].mxu0
      %8435 = vmatprep.mubr.bf16.mxu0 0
      %8436 = vmatmul.mubr.bf16.gmra.mrb[0].mxu0 %v8333
      %v8437 = vpop.f32.mrb[0].mxu0
      %v8438 = vadd.f32 %v8146, %v8437
      %v8439 = vpop.f32.mrb[0].mxu0
      %v8440 = vpop.f32.mrb[0].mxu0
      %v8441 = vadd.f32 %v8149, %v8440
      %v8442 = vpop.f32.mrb[0].mxu0
      %8443 = vmatprep.mubr.bf16.mxu0 0
      %8444 = vmatmul.mubr.bf16.gmra.mrb[0].mxu0 %v8336
      %v8445 = vpop.f32.mrb[0].mxu0
      %v8446 = vadd.f32 %v8154, %v8445
      %v8447 = vpop.f32.mrb[0].mxu0
      %v8448 = vpop.f32.mrb[0].mxu0
      %v8449 = vadd.f32 %v8157, %v8448
      %v8450 = vpop.f32.mrb[0].mxu0
      %8451 = vmatprep.mubr.bf16.mxu0 0
      %8452 = vmatmul.mubr.bf16.gmra.mrb[0].mxu0 %v8339
      %v8453 = vpop.f32.mrb[0].mxu0
      %v8454 = vadd.f32 %v8162, %v8453
      %v8455 = vpop.f32.mrb[0].mxu0
      %v8456 = vpop.f32.mrb[0].mxu0
      %v8457 = vadd.f32 %v8165, %v8456
      %v8458 = vpop.f32.mrb[0].mxu0
      %8459 = vmatprep.mubr.bf16.mxu0 0
      %8460 = vmatmul.mubr.bf16.gmra.mrb[0].mxu0 %v8342
      %v8461 = vpop.f32.mrb[0].mxu0
      %v8462 = vadd.f32 %v8170, %v8461
      %v8463 = vpop.f32.mrb[0].mxu0
      %v8464 = vpop.f32.mrb[0].mxu0
      %v8465 = vadd.f32 %v8173, %v8464
      %v8466 = vpop.f32.mrb[0].mxu0
      %8467 = vmatprep.mubr.bf16.mxu0 0
      %8468 = vmatmul.mubr.bf16.gmra.mrb[0].mxu0 %v8345
      %v8469 = vpop.f32.mrb[0].mxu0
      %v8470 = vadd.f32 %v8178, %v8469
      %v8471 = vpop.f32.mrb[0].mxu0
      %v8472 = vpop.f32.mrb[0].mxu0
      %v8473 = vadd.f32 %v8181, %v8472
      %v8474 = vpop.f32.mrb[0].mxu0
      %8475 = vmatprep.mubr.bf16.mxu0 0
      %8476 = vmatmul.mubr.bf16.gmra.mrb[0].mxu0 %v8348
      %v8477 = vpop.f32.mrb[0].mxu0
      %v8478 = vadd.f32 %v8186, %v8477
      %v8479 = vpop.f32.mrb[0].mxu0
      %v8480 = vpop.f32.mrb[0].mxu0
      %v8481 = vadd.f32 %v8189, %v8480
      %v8482 = vpop.f32.mrb[0].mxu0
      %8483 = vmatprep.mubr.bf16.mxu0 0
      %8484 = vmatmul.mubr.bf16.gmra.mrb[0].mxu0 %v8351
      %v8485 = vpop.f32.mrb[0].mxu0
      %v8486 = vadd.f32 %v8194, %v8485
      %v8487 = vpop.f32.mrb[0].mxu0
      %v8488 = vpop.f32.mrb[0].mxu0
      %v8489 = vadd.f32 %v8197, %v8488
      %v8490 = vpop.f32.mrb[0].mxu0
      %8491 = vmatprep.mubr.bf16.mxu0 0
      %8492 = vmatmul.mubr.bf16.gmra.mrb[0].mxu0 %v8354
      %v8493 = vpop.f32.mrb[0].mxu0
      %v8494 = vadd.f32 %v8202, %v8493
      %v8495 = vpop.f32.mrb[0].mxu0
      %v8496 = vpop.f32.mrb[0].mxu0
      %v8497 = vadd.f32 %v8205, %v8496
      %v8498 = vpop.f32.mrb[0].mxu0
      %8499 = vmatprep.mubr.bf16.mxu0 0
      %8500 = vmatmul.mubr.bf16.gmra.mrb[0].mxu0 %v8357
      %v8501 = vpop.f32.mrb[0].mxu0
      %v8502 = vadd.f32 %v8210, %v8501
      %v8503 = vpop.f32.mrb[0].mxu0
      %v8504 = vpop.f32.mrb[0].mxu0
      %v8505 = vadd.f32 %v8213, %v8504
      %v8506 = vpop.f32.mrb[0].mxu0
      %8507 = vmatprep.mubr.bf16.mxu0 0
      %8508 = vmatmul.mubr.bf16.gmra.mrb[0].mxu0 %v8360
      %v8509 = vpop.f32.mrb[0].mxu0
      %v8510 = vadd.f32 %v8218, %v8509
      %v8511 = vpop.f32.mrb[0].mxu0
      %v8512 = vpop.f32.mrb[0].mxu0
      %v8513 = vadd.f32 %v8221, %v8512
      %v8514 = vpop.f32.mrb[0].mxu0
      %8515 = vmatprep.mubr.bf16.mxu0 0
      %8516 = vmatmul.mubr.bf16.gmra.mrb[0].mxu0 %v8363
      %v8517 = vpop.f32.mrb[0].mxu0
      %v8518 = vadd.f32 %v8226, %v8517
      %v8519 = vpop.f32.mrb[0].mxu0
      %v8520 = vpop.f32.mrb[0].mxu0
      %v8521 = vadd.f32 %v8229, %v8520
      %v8522 = vpop.f32.mrb[0].mxu0
      %8523 = vmatprep.mubr.bf16.mxu0 0
      %8524 = vmatmul.mubr.bf16.gmra.mrb[0].mxu0 %v8366
      %v8525 = vpop.f32.mrb[0].mxu0
      %v8526 = vadd.f32 %v8234, %v8525
      %v8527 = vpop.f32.mrb[0].mxu0
      %v8528 = vpop.f32.mrb[0].mxu0
      %v8529 = vadd.f32 %v8237, %v8528
      %v8530 = vpop.f32.mrb[0].mxu0
      %8531 = vdwg.mxu0
      %v8532 = vld [vmem:[#allocation2] sm:$0xe]
      %v8533 = vld [vmem:[#allocation2 + $0xc] sm:$0xe]
      %v8534 = vld [vmem:[#allocation2 + $0x18] sm:$0xe]
      %v8535 = vld [vmem:[#allocation2 + $0x24] sm:$0xe]
      %v8536 = vld [vmem:[#allocation2 + $0x30] sm:$0xe]
      %v8537 = vld [vmem:[#allocation2 + $0x3c] sm:$0xe]
      %v8538 = vld [vmem:[#allocation2 + $0x48] sm:$0xe]
      %v8539 = vld [vmem:[#allocation2 + $0x54] sm:$0xe]
      %v8540 = vld [vmem:[#allocation2 + $0x60] sm:$0xe]
      %v8541 = vld [vmem:[#allocation2 + $0x6c] sm:$0xe]
      %v8542 = vld [vmem:[#allocation2 + $0x78] sm:$0xe]
      %v8543 = vld [vmem:[#allocation2 + $0x84] sm:$0xe]
      %v8544 = vld [vmem:[#allocation2 + $0x90] sm:$0xe]
      %v8545 = vld [vmem:[#allocation2 + $0x9c] sm:$0xe]
      %v8546 = vld [vmem:[#allocation2 + $0xa8] sm:$0xe]
      %v8547 = vld [vmem:[#allocation2 + $0xb4] sm:$0xe]
      %v8580 = vrot.slane %v8532, 5
      %v8581 = vrot.slane %v8580, 4
      %v8582 = vrot.slane %v7546, 5
      %v8583 = vsel %vm2883, %v8581, %v8582
      %v8584 = vrot.slane %v8582, 4
      %v8585 = vrot.slane %v7578, 5
      %v8586 = vsel %vm2883, %v8584, %v8585
      %v8587 = vrot.slane %v8533, 5
      %v8588 = vrot.slane %v8587, 4
      %v8589 = vrot.slane %v7548, 5
      %v8590 = vsel %vm2883, %v8588, %v8589
      %v8591 = vrot.slane %v8589, 4
      %v8592 = vrot.slane %v7579, 5
      %v8593 = vsel %vm2883, %v8591, %v8592
      %v8594 = vrot.slane %v8534, 5
      %v8595 = vrot.slane %v8594, 4
      %v8596 = vrot.slane %v7550, 5
      %v8597 = vsel %vm2883, %v8595, %v8596
      %v8598 = vrot.slane %v8596, 4
      %v8599 = vrot.slane %v7580, 5
      %v8600 = vsel %vm2883, %v8598, %v8599
      %v8601 = vrot.slane %v8535, 5
      %v8602 = vrot.slane %v8601, 4
      %v8603 = vrot.slane %v7552, 5
      %v8604 = vsel %vm2883, %v8602, %v8603
      %v8605 = vrot.slane %v8603, 4
      %v8606 = vrot.slane %v7581, 5
      %v8607 = vsel %vm2883, %v8605, %v8606
      %v8608 = vrot.slane %v8536, 5
      %v8609 = vrot.slane %v8608, 4
      %v8610 = vrot.slane %v7554, 5
      %v8611 = vsel %vm2883, %v8609, %v8610
      %v8612 = vrot.slane %v8610, 4
      %v8613 = vrot.slane %v7582, 5
      %v8614 = vsel %vm2883, %v8612, %v8613
      %v8615 = vrot.slane %v8537, 5
      %v8616 = vrot.slane %v8615, 4
      %v8617 = vrot.slane %v7556, 5
      %v8618 = vsel %vm2883, %v8616, %v8617
      %v8619 = vrot.slane %v8617, 4
      %v8620 = vrot.slane %v7583, 5
      %v8621 = vsel %vm2883, %v8619, %v8620
      %v8622 = vrot.slane %v8538, 5
      %v8623 = vrot.slane %v8622, 4
      %v8624 = vrot.slane %v7558, 5
      %v8625 = vsel %vm2883, %v8623, %v8624
      %v8626 = vrot.slane %v8624, 4
      %v8627 = vrot.slane %v7584, 5
      %v8628 = vsel %vm2883, %v8626, %v8627
      %v8629 = vrot.slane %v8539, 5
      %v8630 = vrot.slane %v8629, 4
      %v8631 = vrot.slane %v7560, 5
      %v8632 = vsel %vm2883, %v8630, %v8631
      %v8633 = vrot.slane %v8631, 4
      %v8634 = vrot.slane %v7585, 5
      %v8635 = vsel %vm2883, %v8633, %v8634
      %v8636 = vrot.slane %v8540, 5
      %v8637 = vrot.slane %v8636, 4
      %v8638 = vrot.slane %v7562, 5
      %v8639 = vsel %vm2883, %v8637, %v8638
      %v8640 = vrot.slane %v8638, 4
      %v8641 = vrot.slane %v7586, 5
      %v8642 = vsel %vm2883, %v8640, %v8641
      %v8643 = vrot.slane %v8541, 5
      %v8644 = vrot.slane %v8643, 4
      %v8645 = vrot.slane %v7564, 5
      %v8646 = vsel %vm2883, %v8644, %v8645
      %v8647 = vrot.slane %v8645, 4
      %v8648 = vrot.slane %v7587, 5
      %v8649 = vsel %vm2883, %v8647, %v8648
      %v8650 = vrot.slane %v8542, 5
      %v8651 = vrot.slane %v8650, 4
      %v8652 = vrot.slane %v7566, 5
      %v8653 = vsel %vm2883, %v8651, %v8652
      %v8654 = vrot.slane %v8652, 4
      %v8655 = vrot.slane %v7588, 5
      %v8656 = vsel %vm2883, %v8654, %v8655
      %v8657 = vrot.slane %v8543, 5
      %v8658 = vrot.slane %v8657, 4
      %v8659 = vrot.slane %v7568, 5
      %v8660 = vsel %vm2883, %v8658, %v8659
      %v8661 = vrot.slane %v8659, 4
      %v8662 = vrot.slane %v7589, 5
      %v8663 = vsel %vm2883, %v8661, %v8662
      %v8664 = vrot.slane %v8544, 5
      %v8665 = vrot.slane %v8664, 4
      %v8666 = vrot.slane %v7570, 5
      %v8667 = vsel %vm2883, %v8665, %v8666
      %v8668 = vrot.slane %v8666, 4
      %v8669 = vrot.slane %v7590, 5
      %v8670 = vsel %vm2883, %v8668, %v8669
      %v8671 = vrot.slane %v8545, 5
      %v8672 = vrot.slane %v8671, 4
      %v8673 = vrot.slane %v7572, 5
      %v8674 = vsel %vm2883, %v8672, %v8673
      %v8675 = vrot.slane %v8673, 4
      %v8676 = vrot.slane %v7591, 5
      %v8677 = vsel %vm2883, %v8675, %v8676
      %v8678 = vrot.slane %v8546, 5
      %v8679 = vrot.slane %v8678, 4
      %v8680 = vrot.slane %v7574, 5
      %v8681 = vsel %vm2883, %v8679, %v8680
      %v8682 = vrot.slane %v8680, 4
      %v8683 = vrot.slane %v7592, 5
      %v8684 = vsel %vm2883, %v8682, %v8683
      %v8685 = vrot.slane %v8547, 5
      %v8686 = vrot.slane %v8685, 4
      %v8687 = vrot.slane %v7576, 5
      %v8688 = vsel %vm2883, %v8686, %v8687
      %v8689 = vrot.slane %v8687, 4
      %v8690 = vrot.slane %v7593, 5
      %v8691 = vsel %vm2883, %v8689, %v8690
      %s8692 = scalar_lea.vmem %s8, 4
      %v8693 = vld [vmem:[%s8692] sm:$0x3]
      %v8694 = vunpack.c.l.b16 %v8583
      %v8695 = vunpack.c.l.b16 %v8586
      %v8696 = vunpack.c.l.b16 %v8590
      %v8697 = vunpack.c.l.b16 %v8593
      %v8698 = vunpack.c.l.b16 %v8597
      %v8699 = vunpack.c.l.b16 %v8600
      %v8700 = vunpack.c.l.b16 %v8604
      %v8701 = vunpack.c.l.b16 %v8607
      %v8702 = vunpack.c.l.b16 %v8611
      %v8703 = vunpack.c.l.b16 %v8614
      %v8704 = vunpack.c.l.b16 %v8618
      %v8705 = vunpack.c.l.b16 %v8621
      %v8706 = vunpack.c.l.b16 %v8625
      %v8707 = vunpack.c.l.b16 %v8628
      %v8708 = vunpack.c.l.b16 %v8632
      %v8709 = vunpack.c.l.b16 %v8635
      %v8710 = vunpack.c.l.b16 %v8639
      %v8711 = vunpack.c.l.b16 %v8642
      %v8712 = vunpack.c.l.b16 %v8646
      %v8713 = vunpack.c.l.b16 %v8649
      %v8714 = vunpack.c.l.b16 %v8653
      %v8715 = vunpack.c.l.b16 %v8656
      %v8716 = vunpack.c.l.b16 %v8660
      %v8717 = vunpack.c.l.b16 %v8663
      %v8718 = vunpack.c.l.b16 %v8667
      %v8719 = vunpack.c.l.b16 %v8670
      %v8720 = vunpack.c.l.b16 %v8674
      %v8721 = vunpack.c.l.b16 %v8677
      %v8722 = vunpack.c.l.b16 %v8681
      %v8723 = vunpack.c.l.b16 %v8684
      %v8724 = vunpack.c.l.b16 %v8688
      %v8725 = vunpack.c.l.b16 %v8691
      %v8726 = vpack.c.b16 %v8695, %v8694
      %v8727 = vpack.c.b16 %v8697, %v8696
      %v8728 = vpack.c.b16 %v8699, %v8698
      %v8729 = vpack.c.b16 %v8701, %v8700
      %v8730 = vpack.c.b16 %v8703, %v8702
      %v8731 = vpack.c.b16 %v8705, %v8704
      %v8732 = vpack.c.b16 %v8707, %v8706
      %v8733 = vpack.c.b16 %v8709, %v8708
      %v8734 = vpack.c.b16 %v8711, %v8710
      %v8735 = vpack.c.b16 %v8713, %v8712
      %v8736 = vpack.c.b16 %v8715, %v8714
      %v8737 = vpack.c.b16 %v8717, %v8716
      %v8738 = vpack.c.b16 %v8719, %v8718
      %v8739 = vpack.c.b16 %v8721, %v8720
      %v8740 = vpack.c.b16 %v8723, %v8722
      %v8741 = vpack.c.b16 %v8725, %v8724
      %v8743 = vsel %vm721, %v8726, 0
      %v8746 = vsel %vm721, %v8727, 0
      %v8749 = vsel %vm721, %v8728, 0
      %v8752 = vsel %vm721, %v8729, 0
      %v8755 = vsel %vm721, %v8730, 0
      %v8758 = vsel %vm721, %v8731, 0
      %v8761 = vsel %vm721, %v8732, 0
      %v8764 = vsel %vm721, %v8733, 0
      %v8767 = vsel %vm721, %v8734, 0
      %v8770 = vsel %vm721, %v8735, 0
      %v8773 = vsel %vm721, %v8736, 0
      %v8776 = vsel %vm721, %v8737, 0
      %v8779 = vsel %vm721, %v8738, 0
      %v8782 = vsel %vm721, %v8739, 0
      %v8785 = vsel %vm721, %v8740, 0
      %v8788 = vsel %vm721, %v8741, 0
      %v8791 = vsel %vm1052, %v8693, 0
      %8793 = vmatprep.subr.bf16.mxu0 0
      %8794 = vmatpush1.bf16.msra.mxu0 %v8791
      %8795 = vmatprep.subr.bf16.mxu0 0
      %8796 = vmatpush1.bf16.msra.mxu0 0
      %8797 = vmatprep.subr.bf16.mxu0 0
      %8798 = vmatpush1.bf16.msra.mxu0 0
      %8799 = vmatprep.subr.bf16.mxu0 0
      %8800 = vmatpush1.bf16.msra.mxu0 0
      %8801 = vmatprep.subr.bf16.mxu0 0
      %8802 = vmatpush1.bf16.msra.mxu0 0
      %8803 = vmatprep.subr.bf16.mxu0 0
      %8804 = vmatpush1.bf16.msra.mxu0 0
      %8805 = vmatprep.subr.bf16.mxu0 0
      %8806 = vmatpush1.bf16.msra.mxu0 0
      %8807 = vmatprep.subr.bf16.mxu0 0
      %8808 = vmatpush1.bf16.msra.mxu0 0
      %8809 = vmatprep.subr.bf16.mxu0 0
      %8810 = vmatpush1.bf16.msra.mxu0 0
      %8811 = vmatprep.subr.bf16.mxu0 0
      %8812 = vmatpush1.bf16.msra.mxu0 0
      %8813 = vmatprep.subr.bf16.mxu0 0
      %8814 = vmatpush1.bf16.msra.mxu0 0
      %8815 = vmatprep.subr.bf16.mxu0 0
      %8816 = vmatpush1.bf16.msra.mxu0 0
      %8817 = vmatprep.subr.bf16.mxu0 0
      %8818 = vmatpush1.bf16.msra.mxu0 0
      %8819 = vmatprep.subr.bf16.mxu0 0
      %8820 = vmatpush1.bf16.msra.mxu0 0
      %8821 = vmatprep.subr.bf16.mxu0 0
      %8822 = vmatpush1.bf16.msra.mxu0 0
      %8823 = vmatprep.subr.bf16.mxu0 0
      %8824 = vmatpush1.bf16.msra.mxu0 0
      %8825 = vmatprep.mubr.bf16.mxu0 0
      %8826 = vmatmul.mubr.bf16.gmra.mrb[0].mxu0 %v8743
      %v8827 = vpop.f32.mrb[0].mxu0
      %v8828 = vadd.f32 0.0, %v8827
      %v8829 = vpop.f32.mrb[0].mxu0
      %v8830 = vpop.f32.mrb[0].mxu0
      %v8831 = vadd.f32 0.0, %v8830
      %v8832 = vpop.f32.mrb[0].mxu0
      %8833 = vmatprep.mubr.bf16.mxu0 0
      %8834 = vmatmul.mubr.bf16.gmra.mrb[0].mxu0 %v8746
      %v8835 = vpop.f32.mrb[0].mxu0
      %v8836 = vadd.f32 0.0, %v8835
      %v8837 = vpop.f32.mrb[0].mxu0
      %v8838 = vpop.f32.mrb[0].mxu0
      %v8839 = vadd.f32 0.0, %v8838
      %v8840 = vpop.f32.mrb[0].mxu0
      %8841 = vmatprep.mubr.bf16.mxu0 0
      %8842 = vmatmul.mubr.bf16.gmra.mrb[0].mxu0 %v8749
      %v8843 = vpop.f32.mrb[0].mxu0
      %v8844 = vadd.f32 0.0, %v8843
      %v8845 = vpop.f32.mrb[0].mxu0
      %v8846 = vpop.f32.mrb[0].mxu0
      %v8847 = vadd.f32 0.0, %v8846
      %v8848 = vpop.f32.mrb[0].mxu0
      %8849 = vmatprep.mubr.bf16.mxu0 0
      %8850 = vmatmul.mubr.bf16.gmra.mrb[0].mxu0 %v8752
      %v8851 = vpop.f32.mrb[0].mxu0
      %v8852 = vadd.f32 0.0, %v8851
      %v8853 = vpop.f32.mrb[0].mxu0
      %v8854 = vpop.f32.mrb[0].mxu0
      %v8855 = vadd.f32 0.0, %v8854
      %v8856 = vpop.f32.mrb[0].mxu0
      %8857 = vmatprep.mubr.bf16.mxu0 0
      %8858 = vmatmul.mubr.bf16.gmra.mrb[0].mxu0 %v8755
      %v8859 = vpop.f32.mrb[0].mxu0
      %v8860 = vadd.f32 0.0, %v8859
      %v8861 = vpop.f32.mrb[0].mxu0
      %v8862 = vpop.f32.mrb[0].mxu0
      %v8863 = vadd.f32 0.0, %v8862
      %v8864 = vpop.f32.mrb[0].mxu0
      %8865 = vmatprep.mubr.bf16.mxu0 0
      %8866 = vmatmul.mubr.bf16.gmra.mrb[0].mxu0 %v8758
      %v8867 = vpop.f32.mrb[0].mxu0
      %v8868 = vadd.f32 0.0, %v8867
      %v8869 = vpop.f32.mrb[0].mxu0
      %v8870 = vpop.f32.mrb[0].mxu0
      %v8871 = vadd.f32 0.0, %v8870
      %v8872 = vpop.f32.mrb[0].mxu0
      %8873 = vmatprep.mubr.bf16.mxu0 0
      %8874 = vmatmul.mubr.bf16.gmra.mrb[0].mxu0 %v8761
      %v8875 = vpop.f32.mrb[0].mxu0
      %v8876 = vadd.f32 0.0, %v8875
      %v8877 = vpop.f32.mrb[0].mxu0
      %v8878 = vpop.f32.mrb[0].mxu0
      %v8879 = vadd.f32 0.0, %v8878
      %v8880 = vpop.f32.mrb[0].mxu0
      %8881 = vmatprep.mubr.bf16.mxu0 0
      %8882 = vmatmul.mubr.bf16.gmra.mrb[0].mxu0 %v8764
      %v8883 = vpop.f32.mrb[0].mxu0
      %v8884 = vadd.f32 0.0, %v8883
      %v8885 = vpop.f32.mrb[0].mxu0
      %v8886 = vpop.f32.mrb[0].mxu0
      %v8887 = vadd.f32 0.0, %v8886
      %v8888 = vpop.f32.mrb[0].mxu0
      %8889 = vmatprep.mubr.bf16.mxu0 0
      %8890 = vmatmul.mubr.bf16.gmra.mrb[0].mxu0 %v8767
      %v8891 = vpop.f32.mrb[0].mxu0
      %v8892 = vadd.f32 0.0, %v8891
      %v8893 = vpop.f32.mrb[0].mxu0
      %v8894 = vpop.f32.mrb[0].mxu0
      %v8895 = vadd.f32 0.0, %v8894
      %v8896 = vpop.f32.mrb[0].mxu0
      %8897 = vmatprep.mubr.bf16.mxu0 0
      %8898 = vmatmul.mubr.bf16.gmra.mrb[0].mxu0 %v8770
      %v8899 = vpop.f32.mrb[0].mxu0
      %v8900 = vadd.f32 0.0, %v8899
      %v8901 = vpop.f32.mrb[0].mxu0
      %v8902 = vpop.f32.mrb[0].mxu0
      %v8903 = vadd.f32 0.0, %v8902
      %v8904 = vpop.f32.mrb[0].mxu0
      %8905 = vmatprep.mubr.bf16.mxu0 0
      %8906 = vmatmul.mubr.bf16.gmra.mrb[0].mxu0 %v8773
      %v8907 = vpop.f32.mrb[0].mxu0
      %v8908 = vadd.f32 0.0, %v8907
      %v8909 = vpop.f32.mrb[0].mxu0
      %v8910 = vpop.f32.mrb[0].mxu0
      %v8911 = vadd.f32 0.0, %v8910
      %v8912 = vpop.f32.mrb[0].mxu0
      %8913 = vmatprep.mubr.bf16.mxu0 0
      %8914 = vmatmul.mubr.bf16.gmra.mrb[0].mxu0 %v8776
      %v8915 = vpop.f32.mrb[0].mxu0
      %v8916 = vadd.f32 0.0, %v8915
      %v8917 = vpop.f32.mrb[0].mxu0
      %v8918 = vpop.f32.mrb[0].mxu0
      %v8919 = vadd.f32 0.0, %v8918
      %v8920 = vpop.f32.mrb[0].mxu0
      %8921 = vmatprep.mubr.bf16.mxu0 0
      %8922 = vmatmul.mubr.bf16.gmra.mrb[0].mxu0 %v8779
      %v8923 = vpop.f32.mrb[0].mxu0
      %v8924 = vadd.f32 0.0, %v8923
      %v8925 = vpop.f32.mrb[0].mxu0
      %v8926 = vpop.f32.mrb[0].mxu0
      %v8927 = vadd.f32 0.0, %v8926
      %v8928 = vpop.f32.mrb[0].mxu0
      %8929 = vmatprep.mubr.bf16.mxu0 0
      %8930 = vmatmul.mubr.bf16.gmra.mrb[0].mxu0 %v8782
      %v8931 = vpop.f32.mrb[0].mxu0
      %v8932 = vadd.f32 0.0, %v8931
      %v8933 = vpop.f32.mrb[0].mxu0
      %v8934 = vpop.f32.mrb[0].mxu0
      %v8935 = vadd.f32 0.0, %v8934
      %v8936 = vpop.f32.mrb[0].mxu0
      %8937 = vmatprep.mubr.bf16.mxu0 0
      %8938 = vmatmul.mubr.bf16.gmra.mrb[0].mxu0 %v8785
      %v8939 = vpop.f32.mrb[0].mxu0
      %v8940 = vadd.f32 0.0, %v8939
      %v8941 = vpop.f32.mrb[0].mxu0
      %v8942 = vpop.f32.mrb[0].mxu0
      %v8943 = vadd.f32 0.0, %v8942
      %v8944 = vpop.f32.mrb[0].mxu0
      %8945 = vmatprep.mubr.bf16.mxu0 0
      %8946 = vmatmul.mubr.bf16.gmra.mrb[0].mxu0 %v8788
      %v8947 = vpop.f32.mrb[0].mxu0
      %v8948 = vadd.f32 0.0, %v8947
      %v8949 = vpop.f32.mrb[0].mxu0
      %v8950 = vpop.f32.mrb[0].mxu0
      %v8951 = vadd.f32 0.0, %v8950
      %v8952 = vpop.f32.mrb[0].mxu0
      %8953 = vdwg.mxu0
      %v8954 = vadd.f32 %v8406, %v8828
      %v8955 = vadd.f32 %v8409, %v8831
      %v8956 = vadd.f32 %v8414, %v8836
      %v8957 = vadd.f32 %v8417, %v8839
      %v8958 = vadd.f32 %v8422, %v8844
      %v8959 = vadd.f32 %v8425, %v8847
      %v8960 = vadd.f32 %v8430, %v8852
      %v8961 = vadd.f32 %v8433, %v8855
      %v8962 = vadd.f32 %v8438, %v8860
      %v8963 = vadd.f32 %v8441, %v8863
      %v8964 = vadd.f32 %v8446, %v8868
      %v8965 = vadd.f32 %v8449, %v8871
      %v8966 = vadd.f32 %v8454, %v8876
      %v8967 = vadd.f32 %v8457, %v8879
      %v8968 = vadd.f32 %v8462, %v8884
      %v8969 = vadd.f32 %v8465, %v8887
      %v8970 = vadd.f32 %v8470, %v8892
      %v8971 = vadd.f32 %v8473, %v8895
      %v8972 = vadd.f32 %v8478, %v8900
      %v8973 = vadd.f32 %v8481, %v8903
      %v8974 = vadd.f32 %v8486, %v8908
      %v8975 = vadd.f32 %v8489, %v8911
      %v8976 = vadd.f32 %v8494, %v8916
      %v8977 = vadd.f32 %v8497, %v8919
      %v8978 = vadd.f32 %v8502, %v8924
      %v8979 = vadd.f32 %v8505, %v8927
      %v8980 = vadd.f32 %v8510, %v8932
      %v8981 = vadd.f32 %v8513, %v8935
      %v8982 = vadd.f32 %v8518, %v8940
      %v8983 = vadd.f32 %v8521, %v8943
      %v8984 = vadd.f32 %v8526, %v8948
      %v8985 = vadd.f32 %v8529, %v8951
      %v8986 = vld [vmem:[%s1727] sm:$0xf]
      %v8987 = vld [vmem:[%s1727 + $0x4] sm:$0xf]
      %v8988 = vld [vmem:[%s1727 + $0xc] sm:$0xf]
      %v8989 = vld [vmem:[%s1727 + $0x10] sm:$0xf]
      %v8990 = vld [vmem:[%s1727 + $0x18] sm:$0xf]
      %v8991 = vld [vmem:[%s1727 + $0x1c] sm:$0xf]
      %v8992 = vld [vmem:[%s1727 + $0x24] sm:$0xf]
      %v8993 = vld [vmem:[%s1727 + $0x28] sm:$0xf]
      %v8994 = vld [vmem:[%s1727 + $0x30] sm:$0xf]
      %v8995 = vld [vmem:[%s1727 + $0x34] sm:$0xf]
      %v8996 = vld [vmem:[%s1727 + $0x3c] sm:$0xf]
      %v8997 = vld [vmem:[%s1727 + $0x40] sm:$0xf]
      %v8998 = vld [vmem:[%s1727 + $0x48] sm:$0xf]
      %v8999 = vld [vmem:[%s1727 + $0x4c] sm:$0xf]
      %v9000 = vld [vmem:[%s1727 + $0x54] sm:$0xf]
      %v9001 = vld [vmem:[%s1727 + $0x58] sm:$0xf]
      %v9002 = vld [vmem:[%s1727 + $0x60] sm:$0xf]
      %v9003 = vld [vmem:[%s1727 + $0x64] sm:$0xf]
      %v9004 = vld [vmem:[%s1727 + $0x6c] sm:$0xf]
      %v9005 = vld [vmem:[%s1727 + $0x70] sm:$0xf]
      %v9006 = vld [vmem:[%s1727 + $0x78] sm:$0xf]
      %v9007 = vld [vmem:[%s1727 + $0x7c] sm:$0xf]
      %v9008 = vld [vmem:[%s1727 + $0x84] sm:$0xf]
      %v9009 = vld [vmem:[%s1727 + $0x88] sm:$0xf]
      %v9010 = vld [vmem:[%s1727 + $0x90] sm:$0xf]
      %v9011 = vld [vmem:[%s1727 + $0x94] sm:$0xf]
      %v9012 = vld [vmem:[%s1727 + $0x9c] sm:$0xf]
      %v9013 = vld [vmem:[%s1727 + $0xa0] sm:$0xf]
      %v9014 = vld [vmem:[%s1727 + $0xa8] sm:$0xf]
      %v9015 = vld [vmem:[%s1727 + $0xac] sm:$0xf]
      %v9016 = vld [vmem:[%s1727 + $0xb4] sm:$0xf]
      %v9017 = vld [vmem:[%s1727 + $0xb8] sm:$0xf]
      %s9018 = scalar_lea.vmem %s8, 6
      %v9019 = vld [vmem:[%s9018] sm:$0x3]
      %v9052 = vunpack.c.l.b16 %v8986
      %v9053 = vunpack.c.l.b16 %v8987
      %v9054 = vunpack.c.l.b16 %v8988
      %v9055 = vunpack.c.l.b16 %v8989
      %v9056 = vunpack.c.l.b16 %v8990
      %v9057 = vunpack.c.l.b16 %v8991
      %v9058 = vunpack.c.l.b16 %v8992
      %v9059 = vunpack.c.l.b16 %v8993
      %v9060 = vunpack.c.l.b16 %v8994
      %v9061 = vunpack.c.l.b16 %v8995
      %v9062 = vunpack.c.l.b16 %v8996
      %v9063 = vunpack.c.l.b16 %v8997
      %v9064 = vunpack.c.l.b16 %v8998
      %v9065 = vunpack.c.l.b16 %v8999
      %v9066 = vunpack.c.l.b16 %v9000
      %v9067 = vunpack.c.l.b16 %v9001
      %v9068 = vunpack.c.l.b16 %v9002
      %v9069 = vunpack.c.l.b16 %v9003
      %v9070 = vunpack.c.l.b16 %v9004
      %v9071 = vunpack.c.l.b16 %v9005
      %v9072 = vunpack.c.l.b16 %v9006
      %v9073 = vunpack.c.l.b16 %v9007
      %v9074 = vunpack.c.l.b16 %v9008
      %v9075 = vunpack.c.l.b16 %v9009
      %v9076 = vunpack.c.l.b16 %v9010
      %v9077 = vunpack.c.l.b16 %v9011
      %v9078 = vunpack.c.l.b16 %v9012
      %v9079 = vunpack.c.l.b16 %v9013
      %v9080 = vunpack.c.l.b16 %v9014
      %v9081 = vunpack.c.l.b16 %v9015
      %v9082 = vunpack.c.l.b16 %v9016
      %v9083 = vunpack.c.l.b16 %v9017
      %v9084 = vpack.c.b16 %v9053, %v9052
      %v9085 = vpack.c.b16 %v9055, %v9054
      %v9086 = vpack.c.b16 %v9057, %v9056
      %v9087 = vpack.c.b16 %v9059, %v9058
      %v9088 = vpack.c.b16 %v9061, %v9060
      %v9089 = vpack.c.b16 %v9063, %v9062
      %v9090 = vpack.c.b16 %v9065, %v9064
      %v9091 = vpack.c.b16 %v9067, %v9066
      %v9092 = vpack.c.b16 %v9069, %v9068
      %v9093 = vpack.c.b16 %v9071, %v9070
      %v9094 = vpack.c.b16 %v9073, %v9072
      %v9095 = vpack.c.b16 %v9075, %v9074
      %v9096 = vpack.c.b16 %v9077, %v9076
      %v9097 = vpack.c.b16 %v9079, %v9078
      %v9098 = vpack.c.b16 %v9081, %v9080
      %v9099 = vpack.c.b16 %v9083, %v9082
      %v9101 = vsel %vm721, %v9084, 0
      %v9104 = vsel %vm721, %v9085, 0
      %v9107 = vsel %vm721, %v9086, 0
      %v9110 = vsel %vm721, %v9087, 0
      %v9113 = vsel %vm721, %v9088, 0
      %v9116 = vsel %vm721, %v9089, 0
      %v9119 = vsel %vm721, %v9090, 0
      %v9122 = vsel %vm721, %v9091, 0
      %v9125 = vsel %vm721, %v9092, 0
      %v9128 = vsel %vm721, %v9093, 0
      %v9131 = vsel %vm721, %v9094, 0
      %v9134 = vsel %vm721, %v9095, 0
      %v9137 = vsel %vm721, %v9096, 0
      %v9140 = vsel %vm721, %v9097, 0
      %v9143 = vsel %vm721, %v9098, 0
      %v9146 = vsel %vm721, %v9099, 0
      %v9149 = vsel %vm1052, %v9019, 0
      %9151 = vmatprep.subr.bf16.mxu0 0
      %9152 = vmatpush1.bf16.msra.mxu0 %v9149
      %9153 = vmatprep.subr.bf16.mxu0 0
      %9154 = vmatpush1.bf16.msra.mxu0 0
      %9155 = vmatprep.subr.bf16.mxu0 0
      %9156 = vmatpush1.bf16.msra.mxu0 0
      %9157 = vmatprep.subr.bf16.mxu0 0
      %9158 = vmatpush1.bf16.msra.mxu0 0
      %9159 = vmatprep.subr.bf16.mxu0 0
      %9160 = vmatpush1.bf16.msra.mxu0 0
      %9161 = vmatprep.subr.bf16.mxu0 0
      %9162 = vmatpush1.bf16.msra.mxu0 0
      %9163 = vmatprep.subr.bf16.mxu0 0
      %9164 = vmatpush1.bf16.msra.mxu0 0
      %9165 = vmatprep.subr.bf16.mxu0 0
      %9166 = vmatpush1.bf16.msra.mxu0 0
      %9167 = vmatprep.subr.bf16.mxu0 0
      %9168 = vmatpush1.bf16.msra.mxu0 0
      %9169 = vmatprep.subr.bf16.mxu0 0
      %9170 = vmatpush1.bf16.msra.mxu0 0
      %9171 = vmatprep.subr.bf16.mxu0 0
      %9172 = vmatpush1.bf16.msra.mxu0 0
      %9173 = vmatprep.subr.bf16.mxu0 0
      %9174 = vmatpush1.bf16.msra.mxu0 0
      %9175 = vmatprep.subr.bf16.mxu0 0
      %9176 = vmatpush1.bf16.msra.mxu0 0
      %9177 = vmatprep.subr.bf16.mxu0 0
      %9178 = vmatpush1.bf16.msra.mxu0 0
      %9179 = vmatprep.subr.bf16.mxu0 0
      %9180 = vmatpush1.bf16.msra.mxu0 0
      %9181 = vmatprep.subr.bf16.mxu0 0
      %9182 = vmatpush1.bf16.msra.mxu0 0
      %9183 = vmatprep.mubr.bf16.mxu0 0
      %9184 = vmatmul.mubr.bf16.gmra.mrb[0].mxu0 %v9101
      %v9185 = vpop.f32.mrb[0].mxu0
      %v9186 = vadd.f32 0.0, %v9185
      %v9187 = vpop.f32.mrb[0].mxu0
      %v9188 = vpop.f32.mrb[0].mxu0
      %v9189 = vadd.f32 0.0, %v9188
      %v9190 = vpop.f32.mrb[0].mxu0
      %9191 = vmatprep.mubr.bf16.mxu0 0
      %9192 = vmatmul.mubr.bf16.gmra.mrb[0].mxu0 %v9104
      %v9193 = vpop.f32.mrb[0].mxu0
      %v9194 = vadd.f32 0.0, %v9193
      %v9195 = vpop.f32.mrb[0].mxu0
      %v9196 = vpop.f32.mrb[0].mxu0
      %v9197 = vadd.f32 0.0, %v9196
      %v9198 = vpop.f32.mrb[0].mxu0
      %9199 = vmatprep.mubr.bf16.mxu0 0
      %9200 = vmatmul.mubr.bf16.gmra.mrb[0].mxu0 %v9107
      %v9201 = vpop.f32.mrb[0].mxu0
      %v9202 = vadd.f32 0.0, %v9201
      %v9203 = vpop.f32.mrb[0].mxu0
      %v9204 = vpop.f32.mrb[0].mxu0
      %v9205 = vadd.f32 0.0, %v9204
      %v9206 = vpop.f32.mrb[0].mxu0
      %9207 = vmatprep.mubr.bf16.mxu0 0
      %9208 = vmatmul.mubr.bf16.gmra.mrb[0].mxu0 %v9110
      %v9209 = vpop.f32.mrb[0].mxu0
      %v9210 = vadd.f32 0.0, %v9209
      %v9211 = vpop.f32.mrb[0].mxu0
      %v9212 = vpop.f32.mrb[0].mxu0
      %v9213 = vadd.f32 0.0, %v9212
      %v9214 = vpop.f32.mrb[0].mxu0
      %9215 = vmatprep.mubr.bf16.mxu0 0
      %9216 = vmatmul.mubr.bf16.gmra.mrb[0].mxu0 %v9113
      %v9217 = vpop.f32.mrb[0].mxu0
      %v9218 = vadd.f32 0.0, %v9217
      %v9219 = vpop.f32.mrb[0].mxu0
      %v9220 = vpop.f32.mrb[0].mxu0
      %v9221 = vadd.f32 0.0, %v9220
      %v9222 = vpop.f32.mrb[0].mxu0
      %9223 = vmatprep.mubr.bf16.mxu0 0
      %9224 = vmatmul.mubr.bf16.gmra.mrb[0].mxu0 %v9116
      %v9225 = vpop.f32.mrb[0].mxu0
      %v9226 = vadd.f32 0.0, %v9225
      %v9227 = vpop.f32.mrb[0].mxu0
      %v9228 = vpop.f32.mrb[0].mxu0
      %v9229 = vadd.f32 0.0, %v9228
      %v9230 = vpop.f32.mrb[0].mxu0
      %9231 = vmatprep.mubr.bf16.mxu0 0
      %9232 = vmatmul.mubr.bf16.gmra.mrb[0].mxu0 %v9119
      %v9233 = vpop.f32.mrb[0].mxu0
      %v9234 = vadd.f32 0.0, %v9233
      %v9235 = vpop.f32.mrb[0].mxu0
      %v9236 = vpop.f32.mrb[0].mxu0
      %v9237 = vadd.f32 0.0, %v9236
      %v9238 = vpop.f32.mrb[0].mxu0
      %9239 = vmatprep.mubr.bf16.mxu0 0
      %9240 = vmatmul.mubr.bf16.gmra.mrb[0].mxu0 %v9122
      %v9241 = vpop.f32.mrb[0].mxu0
      %v9242 = vadd.f32 0.0, %v9241
      %v9243 = vpop.f32.mrb[0].mxu0
      %v9244 = vpop.f32.mrb[0].mxu0
      %v9245 = vadd.f32 0.0, %v9244
      %v9246 = vpop.f32.mrb[0].mxu0
      %9247 = vmatprep.mubr.bf16.mxu0 0
      %9248 = vmatmul.mubr.bf16.gmra.mrb[0].mxu0 %v9125
      %v9249 = vpop.f32.mrb[0].mxu0
      %v9250 = vadd.f32 0.0, %v9249
      %v9251 = vpop.f32.mrb[0].mxu0
      %v9252 = vpop.f32.mrb[0].mxu0
      %v9253 = vadd.f32 0.0, %v9252
      %v9254 = vpop.f32.mrb[0].mxu0
      %9255 = vmatprep.mubr.bf16.mxu0 0
      %9256 = vmatmul.mubr.bf16.gmra.mrb[0].mxu0 %v9128
      %v9257 = vpop.f32.mrb[0].mxu0
      %v9258 = vadd.f32 0.0, %v9257
      %v9259 = vpop.f32.mrb[0].mxu0
      %v9260 = vpop.f32.mrb[0].mxu0
      %v9261 = vadd.f32 0.0, %v9260
      %v9262 = vpop.f32.mrb[0].mxu0
      %9263 = vmatprep.mubr.bf16.mxu0 0
      %9264 = vmatmul.mubr.bf16.gmra.mrb[0].mxu0 %v9131
      %v9265 = vpop.f32.mrb[0].mxu0
      %v9266 = vadd.f32 0.0, %v9265
      %v9267 = vpop.f32.mrb[0].mxu0
      %v9268 = vpop.f32.mrb[0].mxu0
      %v9269 = vadd.f32 0.0, %v9268
      %v9270 = vpop.f32.mrb[0].mxu0
      %9271 = vmatprep.mubr.bf16.mxu0 0
      %9272 = vmatmul.mubr.bf16.gmra.mrb[0].mxu0 %v9134
      %v9273 = vpop.f32.mrb[0].mxu0
      %v9274 = vadd.f32 0.0, %v9273
      %v9275 = vpop.f32.mrb[0].mxu0
      %v9276 = vpop.f32.mrb[0].mxu0
      %v9277 = vadd.f32 0.0, %v9276
      %v9278 = vpop.f32.mrb[0].mxu0
      %9279 = vmatprep.mubr.bf16.mxu0 0
      %9280 = vmatmul.mubr.bf16.gmra.mrb[0].mxu0 %v9137
      %v9281 = vpop.f32.mrb[0].mxu0
      %v9282 = vadd.f32 0.0, %v9281
      %v9283 = vpop.f32.mrb[0].mxu0
      %v9284 = vpop.f32.mrb[0].mxu0
      %v9285 = vadd.f32 0.0, %v9284
      %v9286 = vpop.f32.mrb[0].mxu0
      %9287 = vmatprep.mubr.bf16.mxu0 0
      %9288 = vmatmul.mubr.bf16.gmra.mrb[0].mxu0 %v9140
      %v9289 = vpop.f32.mrb[0].mxu0
      %v9290 = vadd.f32 0.0, %v9289
      %v9291 = vpop.f32.mrb[0].mxu0
      %v9292 = vpop.f32.mrb[0].mxu0
      %v9293 = vadd.f32 0.0, %v9292
      %v9294 = vpop.f32.mrb[0].mxu0
      %9295 = vmatprep.mubr.bf16.mxu0 0
      %9296 = vmatmul.mubr.bf16.gmra.mrb[0].mxu0 %v9143
      %v9297 = vpop.f32.mrb[0].mxu0
      %v9298 = vadd.f32 0.0, %v9297
      %v9299 = vpop.f32.mrb[0].mxu0
      %v9300 = vpop.f32.mrb[0].mxu0
      %v9301 = vadd.f32 0.0, %v9300
      %v9302 = vpop.f32.mrb[0].mxu0
      %9303 = vmatprep.mubr.bf16.mxu0 0
      %9304 = vmatmul.mubr.bf16.gmra.mrb[0].mxu0 %v9146
      %v9305 = vpop.f32.mrb[0].mxu0
      %v9306 = vadd.f32 0.0, %v9305
      %v9307 = vpop.f32.mrb[0].mxu0
      %v9308 = vpop.f32.mrb[0].mxu0
      %v9309 = vadd.f32 0.0, %v9308
      %v9310 = vpop.f32.mrb[0].mxu0
      %9311 = vdwg.mxu0
      %v9312 = vadd.f32 %v8954, %v9186
      %v9313 = vadd.f32 %v8955, %v9189
      %v9314 = vadd.f32 %v8956, %v9194
      %v9315 = vadd.f32 %v8957, %v9197
      %v9316 = vadd.f32 %v8958, %v9202
      %v9317 = vadd.f32 %v8959, %v9205
      %v9318 = vadd.f32 %v8960, %v9210
      %v9319 = vadd.f32 %v8961, %v9213
      %v9320 = vadd.f32 %v8962, %v9218
      %v9321 = vadd.f32 %v8963, %v9221
      %v9322 = vadd.f32 %v8964, %v9226
      %v9323 = vadd.f32 %v8965, %v9229
      %v9324 = vadd.f32 %v8966, %v9234
      %v9325 = vadd.f32 %v8967, %v9237
      %v9326 = vadd.f32 %v8968, %v9242
      %v9327 = vadd.f32 %v8969, %v9245
      %v9328 = vadd.f32 %v8970, %v9250
      %v9329 = vadd.f32 %v8971, %v9253
      %v9330 = vadd.f32 %v8972, %v9258
      %v9331 = vadd.f32 %v8973, %v9261
      %v9332 = vadd.f32 %v8974, %v9266
      %v9333 = vadd.f32 %v8975, %v9269
      %v9334 = vadd.f32 %v8976, %v9274
      %v9335 = vadd.f32 %v8977, %v9277
      %v9336 = vadd.f32 %v8978, %v9282
      %v9337 = vadd.f32 %v8979, %v9285
      %v9338 = vadd.f32 %v8980, %v9290
      %v9339 = vadd.f32 %v8981, %v9293
      %v9340 = vadd.f32 %v8982, %v9298
      %v9341 = vadd.f32 %v8983, %v9301
      %v9342 = vadd.f32 %v8984, %v9306
      %v9343 = vadd.f32 %v8985, %v9309
      %v9344 = vld [vmem:[%s1727] sm:$0xf]
      %v9345 = vld [vmem:[%s1727 + $0x4] sm:$0xf]
      %v9346 = vld [vmem:[%s1727 + $0x8] sm:$0x1]
      %v9347 = vld [vmem:[%s1727 + $0xc] sm:$0xf]
      %v9348 = vld [vmem:[%s1727 + $0x10] sm:$0xf]
      %v9349 = vld [vmem:[%s1727 + $0x14] sm:$0x1]
      %v9350 = vld [vmem:[%s1727 + $0x18] sm:$0xf]
      %v9351 = vld [vmem:[%s1727 + $0x1c] sm:$0xf]
      %v9352 = vld [vmem:[%s1727 + $0x20] sm:$0x1]
      %v9353 = vld [vmem:[%s1727 + $0x24] sm:$0xf]
      %v9354 = vld [vmem:[%s1727 + $0x28] sm:$0xf]
      %v9355 = vld [vmem:[%s1727 + $0x2c] sm:$0x1]
      %v9356 = vld [vmem:[%s1727 + $0x30] sm:$0xf]
      %v9357 = vld [vmem:[%s1727 + $0x34] sm:$0xf]
      %v9358 = vld [vmem:[%s1727 + $0x38] sm:$0x1]
      %v9359 = vld [vmem:[%s1727 + $0x3c] sm:$0xf]
      %v9360 = vld [vmem:[%s1727 + $0x40] sm:$0xf]
      %v9361 = vld [vmem:[%s1727 + $0x44] sm:$0x1]
      %v9362 = vld [vmem:[%s1727 + $0x48] sm:$0xf]
      %v9363 = vld [vmem:[%s1727 + $0x4c] sm:$0xf]
      %v9364 = vld [vmem:[%s1727 + $0x50] sm:$0x1]
      %v9365 = vld [vmem:[%s1727 + $0x54] sm:$0xf]
      %v9366 = vld [vmem:[%s1727 + $0x58] sm:$0xf]
      %v9367 = vld [vmem:[%s1727 + $0x5c] sm:$0x1]
      %v9368 = vld [vmem:[%s1727 + $0x60] sm:$0xf]
      %v9369 = vld [vmem:[%s1727 + $0x64] sm:$0xf]
      %v9370 = vld [vmem:[%s1727 + $0x68] sm:$0x1]
      %v9371 = vld [vmem:[%s1727 + $0x6c] sm:$0xf]
      %v9372 = vld [vmem:[%s1727 + $0x70] sm:$0xf]
      %v9373 = vld [vmem:[%s1727 + $0x74] sm:$0x1]
      %v9374 = vld [vmem:[%s1727 + $0x78] sm:$0xf]
      %v9375 = vld [vmem:[%s1727 + $0x7c] sm:$0xf]
      %v9376 = vld [vmem:[%s1727 + $0x80] sm:$0x1]
      %v9377 = vld [vmem:[%s1727 + $0x84] sm:$0xf]
      %v9378 = vld [vmem:[%s1727 + $0x88] sm:$0xf]
      %v9379 = vld [vmem:[%s1727 + $0x8c] sm:$0x1]
      %v9380 = vld [vmem:[%s1727 + $0x90] sm:$0xf]
      %v9381 = vld [vmem:[%s1727 + $0x94] sm:$0xf]
      %v9382 = vld [vmem:[%s1727 + $0x98] sm:$0x1]
      %v9383 = vld [vmem:[%s1727 + $0x9c] sm:$0xf]
      %v9384 = vld [vmem:[%s1727 + $0xa0] sm:$0xf]
      %v9385 = vld [vmem:[%s1727 + $0xa4] sm:$0x1]
      %v9386 = vld [vmem:[%s1727 + $0xa8] sm:$0xf]
      %v9387 = vld [vmem:[%s1727 + $0xac] sm:$0xf]
      %v9388 = vld [vmem:[%s1727 + $0xb0] sm:$0x1]
      %v9389 = vld [vmem:[%s1727 + $0xb4] sm:$0xf]
      %v9390 = vld [vmem:[%s1727 + $0xb8] sm:$0xf]
      %v9391 = vld [vmem:[%s1727 + $0xbc] sm:$0x1]
      %v9393 = vshrl.u32 %v9344, 16
      %v9395 = vrot.slane %v9393, 4
      %v9396 = vshll.u32 %v9344, 16
      %v9398 = vrot.slane %v9396, 5
      %v9399 = vor.u32 %v9395, %v9398
      %v9400 = vrot.slane %v9399, 4
      %v9402 = vshll.u32 %v9345, 16
      %v9404 = vrot.slane %v9402, 5
      %v9405 = vsel %vm1894, %v9400, %v9404
      %v9406 = vshrl.u32 %v9345, 16
      %v9408 = vrot.slane %v9406, 4
      %v9409 = vor.u32 %v9408, %v9404
      %v9410 = vrot.slane %v9409, 4
      %v9412 = vshll.u32 %v9346, 16
      %v9414 = vrot.slane %v9412, 5
      %v9415 = vsel %vm1894, %v9410, %v9414
      %v9417 = vshrl.u32 %v9347, 16
      %v9419 = vrot.slane %v9417, 4
      %v9420 = vshll.u32 %v9347, 16
      %v9422 = vrot.slane %v9420, 5
      %v9423 = vor.u32 %v9419, %v9422
      %v9424 = vrot.slane %v9423, 4
      %v9426 = vshll.u32 %v9348, 16
      %v9428 = vrot.slane %v9426, 5
      %v9429 = vsel %vm1894, %v9424, %v9428
      %v9430 = vshrl.u32 %v9348, 16
      %v9432 = vrot.slane %v9430, 4
      %v9433 = vor.u32 %v9432, %v9428
      %v9434 = vrot.slane %v9433, 4
      %v9436 = vshll.u32 %v9349, 16
      %v9438 = vrot.slane %v9436, 5
      %v9439 = vsel %vm1894, %v9434, %v9438
      %v9441 = vshrl.u32 %v9350, 16
      %v9443 = vrot.slane %v9441, 4
      %v9444 = vshll.u32 %v9350, 16
      %v9446 = vrot.slane %v9444, 5
      %v9447 = vor.u32 %v9443, %v9446
      %v9448 = vrot.slane %v9447, 4
      %v9450 = vshll.u32 %v9351, 16
      %v9452 = vrot.slane %v9450, 5
      %v9453 = vsel %vm1894, %v9448, %v9452
      %v9454 = vshrl.u32 %v9351, 16
      %v9456 = vrot.slane %v9454, 4
      %v9457 = vor.u32 %v9456, %v9452
      %v9458 = vrot.slane %v9457, 4
      %v9460 = vshll.u32 %v9352, 16
      %v9462 = vrot.slane %v9460, 5
      %v9463 = vsel %vm1894, %v9458, %v9462
      %v9465 = vshrl.u32 %v9353, 16
      %v9467 = vrot.slane %v9465, 4
      %v9468 = vshll.u32 %v9353, 16
      %v9470 = vrot.slane %v9468, 5
      %v9471 = vor.u32 %v9467, %v9470
      %v9472 = vrot.slane %v9471, 4
      %v9474 = vshll.u32 %v9354, 16
      %v9476 = vrot.slane %v9474, 5
      %v9477 = vsel %vm1894, %v9472, %v9476
      %v9478 = vshrl.u32 %v9354, 16
      %v9480 = vrot.slane %v9478, 4
      %v9481 = vor.u32 %v9480, %v9476
      %v9482 = vrot.slane %v9481, 4
      %v9484 = vshll.u32 %v9355, 16
      %v9486 = vrot.slane %v9484, 5
      %v9487 = vsel %vm1894, %v9482, %v9486
      %v9489 = vshrl.u32 %v9356, 16
      %v9491 = vrot.slane %v9489, 4
      %v9492 = vshll.u32 %v9356, 16
      %v9494 = vrot.slane %v9492, 5
      %v9495 = vor.u32 %v9491, %v9494
      %v9496 = vrot.slane %v9495, 4
      %v9498 = vshll.u32 %v9357, 16
      %v9500 = vrot.slane %v9498, 5
      %v9501 = vsel %vm1894, %v9496, %v9500
      %v9502 = vshrl.u32 %v9357, 16
      %v9504 = vrot.slane %v9502, 4
      %v9505 = vor.u32 %v9504, %v9500
      %v9506 = vrot.slane %v9505, 4
      %v9508 = vshll.u32 %v9358, 16
      %v9510 = vrot.slane %v9508, 5
      %v9511 = vsel %vm1894, %v9506, %v9510
      %v9513 = vshrl.u32 %v9359, 16
      %v9515 = vrot.slane %v9513, 4
      %v9516 = vshll.u32 %v9359, 16
      %v9518 = vrot.slane %v9516, 5
      %v9519 = vor.u32 %v9515, %v9518
      %v9520 = vrot.slane %v9519, 4
      %v9522 = vshll.u32 %v9360, 16
      %v9524 = vrot.slane %v9522, 5
      %v9525 = vsel %vm1894, %v9520, %v9524
      %v9526 = vshrl.u32 %v9360, 16
      %v9528 = vrot.slane %v9526, 4
      %v9529 = vor.u32 %v9528, %v9524
      %v9530 = vrot.slane %v9529, 4
      %v9532 = vshll.u32 %v9361, 16
      %v9534 = vrot.slane %v9532, 5
      %v9535 = vsel %vm1894, %v9530, %v9534
      %v9537 = vshrl.u32 %v9362, 16
      %v9539 = vrot.slane %v9537, 4
      %v9540 = vshll.u32 %v9362, 16
      %v9542 = vrot.slane %v9540, 5
      %v9543 = vor.u32 %v9539, %v9542
      %v9544 = vrot.slane %v9543, 4
      %v9546 = vshll.u32 %v9363, 16
      %v9548 = vrot.slane %v9546, 5
      %v9549 = vsel %vm1894, %v9544, %v9548
      %v9550 = vshrl.u32 %v9363, 16
      %v9552 = vrot.slane %v9550, 4
      %v9553 = vor.u32 %v9552, %v9548
      %v9554 = vrot.slane %v9553, 4
      %v9556 = vshll.u32 %v9364, 16
      %v9558 = vrot.slane %v9556, 5
      %v9559 = vsel %vm1894, %v9554, %v9558
      %v9561 = vshrl.u32 %v9365, 16
      %v9563 = vrot.slane %v9561, 4
      %v9564 = vshll.u32 %v9365, 16
      %v9566 = vrot.slane %v9564, 5
      %v9567 = vor.u32 %v9563, %v9566
      %v9568 = vrot.slane %v9567, 4
      %v9570 = vshll.u32 %v9366, 16
      %v9572 = vrot.slane %v9570, 5
      %v9573 = vsel %vm1894, %v9568, %v9572
      %v9574 = vshrl.u32 %v9366, 16
      %v9576 = vrot.slane %v9574, 4
      %v9577 = vor.u32 %v9576, %v9572
      %v9578 = vrot.slane %v9577, 4
      %v9580 = vshll.u32 %v9367, 16
      %v9582 = vrot.slane %v9580, 5
      %v9583 = vsel %vm1894, %v9578, %v9582
      %v9585 = vshrl.u32 %v9368, 16
      %v9587 = vrot.slane %v9585, 4
      %v9588 = vshll.u32 %v9368, 16
      %v9590 = vrot.slane %v9588, 5
      %v9591 = vor.u32 %v9587, %v9590
      %v9592 = vrot.slane %v9591, 4
      %v9594 = vshll.u32 %v9369, 16
      %v9596 = vrot.slane %v9594, 5
      %v9597 = vsel %vm1894, %v9592, %v9596
      %v9598 = vshrl.u32 %v9369, 16
      %v9600 = vrot.slane %v9598, 4
      %v9601 = vor.u32 %v9600, %v9596
      %v9602 = vrot.slane %v9601, 4
      %v9604 = vshll.u32 %v9370, 16
      %v9606 = vrot.slane %v9604, 5
      %v9607 = vsel %vm1894, %v9602, %v9606
      %v9609 = vshrl.u32 %v9371, 16
      %v9611 = vrot.slane %v9609, 4
      %v9612 = vshll.u32 %v9371, 16
      %v9614 = vrot.slane %v9612, 5
      %v9615 = vor.u32 %v9611, %v9614
      %v9616 = vrot.slane %v9615, 4
      %v9618 = vshll.u32 %v9372, 16
      %v9620 = vrot.slane %v9618, 5
      %v9621 = vsel %vm1894, %v9616, %v9620
      %v9622 = vshrl.u32 %v9372, 16
      %v9624 = vrot.slane %v9622, 4
      %v9625 = vor.u32 %v9624, %v9620
      %v9626 = vrot.slane %v9625, 4
      %v9628 = vshll.u32 %v9373, 16
      %v9630 = vrot.slane %v9628, 5
      %v9631 = vsel %vm1894, %v9626, %v9630
      %v9633 = vshrl.u32 %v9374, 16
      %v9635 = vrot.slane %v9633, 4
      %v9636 = vshll.u32 %v9374, 16
      %v9638 = vrot.slane %v9636, 5
      %v9639 = vor.u32 %v9635, %v9638
      %v9640 = vrot.slane %v9639, 4
      %v9642 = vshll.u32 %v9375, 16
      %v9644 = vrot.slane %v9642, 5
      %v9645 = vsel %vm1894, %v9640, %v9644
      %v9646 = vshrl.u32 %v9375, 16
      %v9648 = vrot.slane %v9646, 4
      %v9649 = vor.u32 %v9648, %v9644
      %v9650 = vrot.slane %v9649, 4
      %v9652 = vshll.u32 %v9376, 16
      %v9654 = vrot.slane %v9652, 5
      %v9655 = vsel %vm1894, %v9650, %v9654
      %v9657 = vshrl.u32 %v9377, 16
      %v9659 = vrot.slane %v9657, 4
      %v9660 = vshll.u32 %v9377, 16
      %v9662 = vrot.slane %v9660, 5
      %v9663 = vor.u32 %v9659, %v9662
      %v9664 = vrot.slane %v9663, 4
      %v9666 = vshll.u32 %v9378, 16
      %v9668 = vrot.slane %v9666, 5
      %v9669 = vsel %vm1894, %v9664, %v9668
      %v9670 = vshrl.u32 %v9378, 16
      %v9672 = vrot.slane %v9670, 4
      %v9673 = vor.u32 %v9672, %v9668
      %v9674 = vrot.slane %v9673, 4
      %v9676 = vshll.u32 %v9379, 16
      %v9678 = vrot.slane %v9676, 5
      %v9679 = vsel %vm1894, %v9674, %v9678
      %v9681 = vshrl.u32 %v9380, 16
      %v9683 = vrot.slane %v9681, 4
      %v9684 = vshll.u32 %v9380, 16
      %v9686 = vrot.slane %v9684, 5
      %v9687 = vor.u32 %v9683, %v9686
      %v9688 = vrot.slane %v9687, 4
      %v9690 = vshll.u32 %v9381, 16
      %v9692 = vrot.slane %v9690, 5
      %v9693 = vsel %vm1894, %v9688, %v9692
      %v9694 = vshrl.u32 %v9381, 16
      %v9696 = vrot.slane %v9694, 4
      %v9697 = vor.u32 %v9696, %v9692
      %v9698 = vrot.slane %v9697, 4
      %v9700 = vshll.u32 %v9382, 16
      %v9702 = vrot.slane %v9700, 5
      %v9703 = vsel %vm1894, %v9698, %v9702
      %v9705 = vshrl.u32 %v9383, 16
      %v9707 = vrot.slane %v9705, 4
      %v9708 = vshll.u32 %v9383, 16
      %v9710 = vrot.slane %v9708, 5
      %v9711 = vor.u32 %v9707, %v9710
      %v9712 = vrot.slane %v9711, 4
      %v9714 = vshll.u32 %v9384, 16
      %v9716 = vrot.slane %v9714, 5
      %v9717 = vsel %vm1894, %v9712, %v9716
      %v9718 = vshrl.u32 %v9384, 16
      %v9720 = vrot.slane %v9718, 4
      %v9721 = vor.u32 %v9720, %v9716
      %v9722 = vrot.slane %v9721, 4
      %v9724 = vshll.u32 %v9385, 16
      %v9726 = vrot.slane %v9724, 5
      %v9727 = vsel %vm1894, %v9722, %v9726
      %v9729 = vshrl.u32 %v9386, 16
      %v9731 = vrot.slane %v9729, 4
      %v9732 = vshll.u32 %v9386, 16
      %v9734 = vrot.slane %v9732, 5
      %v9735 = vor.u32 %v9731, %v9734
      %v9736 = vrot.slane %v9735, 4
      %v9738 = vshll.u32 %v9387, 16
      %v9740 = vrot.slane %v9738, 5
      %v9741 = vsel %vm1894, %v9736, %v9740
      %v9742 = vshrl.u32 %v9387, 16
      %v9744 = vrot.slane %v9742, 4
      %v9745 = vor.u32 %v9744, %v9740
      %v9746 = vrot.slane %v9745, 4
      %v9748 = vshll.u32 %v9388, 16
      %v9750 = vrot.slane %v9748, 5
      %v9751 = vsel %vm1894, %v9746, %v9750
      %v9753 = vshrl.u32 %v9389, 16
      %v9755 = vrot.slane %v9753, 4
      %v9756 = vshll.u32 %v9389, 16
      %v9758 = vrot.slane %v9756, 5
      %v9759 = vor.u32 %v9755, %v9758
      %v9760 = vrot.slane %v9759, 4
      %v9762 = vshll.u32 %v9390, 16
      %v9764 = vrot.slane %v9762, 5
      %v9765 = vsel %vm1894, %v9760, %v9764
      %v9766 = vshrl.u32 %v9390, 16
      %v9768 = vrot.slane %v9766, 4
      %v9769 = vor.u32 %v9768, %v9764
      %v9770 = vrot.slane %v9769, 4
      %v9772 = vshll.u32 %v9391, 16
      %v9774 = vrot.slane %v9772, 5
      %v9775 = vsel %vm1894, %v9770, %v9774
      %s9776 = scalar_lea.vmem %s8, 8
      %v9777 = vld [vmem:[%s9776] sm:$0x3]
      %v9778 = vunpack.c.l.b16 %v9405
      %v9779 = vunpack.c.l.b16 %v9415
      %v9780 = vunpack.c.l.b16 %v9429
      %v9781 = vunpack.c.l.b16 %v9439
      %v9782 = vunpack.c.l.b16 %v9453
      %v9783 = vunpack.c.l.b16 %v9463
      %v9784 = vunpack.c.l.b16 %v9477
      %v9785 = vunpack.c.l.b16 %v9487
      %v9786 = vunpack.c.l.b16 %v9501
      %v9787 = vunpack.c.l.b16 %v9511
      %v9788 = vunpack.c.l.b16 %v9525
      %v9789 = vunpack.c.l.b16 %v9535
      %v9790 = vunpack.c.l.b16 %v9549
      %v9791 = vunpack.c.l.b16 %v9559
      %v9792 = vunpack.c.l.b16 %v9573
      %v9793 = vunpack.c.l.b16 %v9583
      %v9794 = vunpack.c.l.b16 %v9597
      %v9795 = vunpack.c.l.b16 %v9607
      %v9796 = vunpack.c.l.b16 %v9621
      %v9797 = vunpack.c.l.b16 %v9631
      %v9798 = vunpack.c.l.b16 %v9645
      %v9799 = vunpack.c.l.b16 %v9655
      %v9800 = vunpack.c.l.b16 %v9669
      %v9801 = vunpack.c.l.b16 %v9679
      %v9802 = vunpack.c.l.b16 %v9693
      %v9803 = vunpack.c.l.b16 %v9703
      %v9804 = vunpack.c.l.b16 %v9717
      %v9805 = vunpack.c.l.b16 %v9727
      %v9806 = vunpack.c.l.b16 %v9741
      %v9807 = vunpack.c.l.b16 %v9751
      %v9808 = vunpack.c.l.b16 %v9765
      %v9809 = vunpack.c.l.b16 %v9775
      %v9810 = vpack.c.b16 %v9779, %v9778
      %v9811 = vpack.c.b16 %v9781, %v9780
      %v9812 = vpack.c.b16 %v9783, %v9782
      %v9813 = vpack.c.b16 %v9785, %v9784
      %v9814 = vpack.c.b16 %v9787, %v9786
      %v9815 = vpack.c.b16 %v9789, %v9788
      %v9816 = vpack.c.b16 %v9791, %v9790
      %v9817 = vpack.c.b16 %v9793, %v9792
      %v9818 = vpack.c.b16 %v9795, %v9794
      %v9819 = vpack.c.b16 %v9797, %v9796
      %v9820 = vpack.c.b16 %v9799, %v9798
      %v9821 = vpack.c.b16 %v9801, %v9800
      %v9822 = vpack.c.b16 %v9803, %v9802
      %v9823 = vpack.c.b16 %v9805, %v9804
      %v9824 = vpack.c.b16 %v9807, %v9806
      %v9825 = vpack.c.b16 %v9809, %v9808
      %v9827 = vsel %vm721, %v9810, 0
      %v9830 = vsel %vm721, %v9811, 0
      %v9833 = vsel %vm721, %v9812, 0
      %v9836 = vsel %vm721, %v9813, 0
      %v9839 = vsel %vm721, %v9814, 0
      %v9842 = vsel %vm721, %v9815, 0
      %v9845 = vsel %vm721, %v9816, 0
      %v9848 = vsel %vm721, %v9817, 0
      %v9851 = vsel %vm721, %v9818, 0
      %v9854 = vsel %vm721, %v9819, 0
      %v9857 = vsel %vm721, %v9820, 0
      %v9860 = vsel %vm721, %v9821, 0
      %v9863 = vsel %vm721, %v9822, 0
      %v9866 = vsel %vm721, %v9823, 0
      %v9869 = vsel %vm721, %v9824, 0
      %v9872 = vsel %vm721, %v9825, 0
      %v9875 = vsel %vm1052, %v9777, 0
      %9877 = vmatprep.subr.bf16.mxu0 0
      %9878 = vmatpush1.bf16.msra.mxu0 %v9875
      %9879 = vmatprep.subr.bf16.mxu0 0
      %9880 = vmatpush1.bf16.msra.mxu0 0
      %9881 = vmatprep.subr.bf16.mxu0 0
      %9882 = vmatpush1.bf16.msra.mxu0 0
      %9883 = vmatprep.subr.bf16.mxu0 0
      %9884 = vmatpush1.bf16.msra.mxu0 0
      %9885 = vmatprep.subr.bf16.mxu0 0
      %9886 = vmatpush1.bf16.msra.mxu0 0
      %9887 = vmatprep.subr.bf16.mxu0 0
      %9888 = vmatpush1.bf16.msra.mxu0 0
      %9889 = vmatprep.subr.bf16.mxu0 0
      %9890 = vmatpush1.bf16.msra.mxu0 0
      %9891 = vmatprep.subr.bf16.mxu0 0
      %9892 = vmatpush1.bf16.msra.mxu0 0
      %9893 = vmatprep.subr.bf16.mxu0 0
      %9894 = vmatpush1.bf16.msra.mxu0 0
      %9895 = vmatprep.subr.bf16.mxu0 0
      %9896 = vmatpush1.bf16.msra.mxu0 0
      %9897 = vmatprep.subr.bf16.mxu0 0
      %9898 = vmatpush1.bf16.msra.mxu0 0
      %9899 = vmatprep.subr.bf16.mxu0 0
      %9900 = vmatpush1.bf16.msra.mxu0 0
      %9901 = vmatprep.subr.bf16.mxu0 0
      %9902 = vmatpush1.bf16.msra.mxu0 0
      %9903 = vmatprep.subr.bf16.mxu0 0
      %9904 = vmatpush1.bf16.msra.mxu0 0
      %9905 = vmatprep.subr.bf16.mxu0 0
      %9906 = vmatpush1.bf16.msra.mxu0 0
      %9907 = vmatprep.subr.bf16.mxu0 0
      %9908 = vmatpush1.bf16.msra.mxu0 0
      %9909 = vmatprep.mubr.bf16.mxu0 0
      %9910 = vmatmul.mubr.bf16.gmra.mrb[0].mxu0 %v9827
      %v9911 = vpop.f32.mrb[0].mxu0
      %v9912 = vadd.f32 0.0, %v9911
      %v9913 = vpop.f32.mrb[0].mxu0
      %v9914 = vpop.f32.mrb[0].mxu0
      %v9915 = vadd.f32 0.0, %v9914
      %v9916 = vpop.f32.mrb[0].mxu0
      %9917 = vmatprep.mubr.bf16.mxu0 0
      %9918 = vmatmul.mubr.bf16.gmra.mrb[0].mxu0 %v9830
      %v9919 = vpop.f32.mrb[0].mxu0
      %v9920 = vadd.f32 0.0, %v9919
      %v9921 = vpop.f32.mrb[0].mxu0
      %v9922 = vpop.f32.mrb[0].mxu0
      %v9923 = vadd.f32 0.0, %v9922
      %v9924 = vpop.f32.mrb[0].mxu0
      %9925 = vmatprep.mubr.bf16.mxu0 0
      %9926 = vmatmul.mubr.bf16.gmra.mrb[0].mxu0 %v9833
      %v9927 = vpop.f32.mrb[0].mxu0
      %v9928 = vadd.f32 0.0, %v9927
      %v9929 = vpop.f32.mrb[0].mxu0
      %v9930 = vpop.f32.mrb[0].mxu0
      %v9931 = vadd.f32 0.0, %v9930
      %v9932 = vpop.f32.mrb[0].mxu0
      %9933 = vmatprep.mubr.bf16.mxu0 0
      %9934 = vmatmul.mubr.bf16.gmra.mrb[0].mxu0 %v9836
      %v9935 = vpop.f32.mrb[0].mxu0
      %v9936 = vadd.f32 0.0, %v9935
      %v9937 = vpop.f32.mrb[0].mxu0
      %v9938 = vpop.f32.mrb[0].mxu0
      %v9939 = vadd.f32 0.0, %v9938
      %v9940 = vpop.f32.mrb[0].mxu0
      %9941 = vmatprep.mubr.bf16.mxu0 0
      %9942 = vmatmul.mubr.bf16.gmra.mrb[0].mxu0 %v9839
      %v9943 = vpop.f32.mrb[0].mxu0
      %v9944 = vadd.f32 0.0, %v9943
      %v9945 = vpop.f32.mrb[0].mxu0
      %v9946 = vpop.f32.mrb[0].mxu0
      %v9947 = vadd.f32 0.0, %v9946
      %v9948 = vpop.f32.mrb[0].mxu0
      %9949 = vmatprep.mubr.bf16.mxu0 0
      %9950 = vmatmul.mubr.bf16.gmra.mrb[0].mxu0 %v9842
      %v9951 = vpop.f32.mrb[0].mxu0
      %v9952 = vadd.f32 0.0, %v9951
      %v9953 = vpop.f32.mrb[0].mxu0
      %v9954 = vpop.f32.mrb[0].mxu0
      %v9955 = vadd.f32 0.0, %v9954
      %v9956 = vpop.f32.mrb[0].mxu0
      %9957 = vmatprep.mubr.bf16.mxu0 0
      %9958 = vmatmul.mubr.bf16.gmra.mrb[0].mxu0 %v9845
      %v9959 = vpop.f32.mrb[0].mxu0
      %v9960 = vadd.f32 0.0, %v9959
      %v9961 = vpop.f32.mrb[0].mxu0
      %v9962 = vpop.f32.mrb[0].mxu0
      %v9963 = vadd.f32 0.0, %v9962
      %v9964 = vpop.f32.mrb[0].mxu0
      %9965 = vmatprep.mubr.bf16.mxu0 0
      %9966 = vmatmul.mubr.bf16.gmra.mrb[0].mxu0 %v9848
      %v9967 = vpop.f32.mrb[0].mxu0
      %v9968 = vadd.f32 0.0, %v9967
      %v9969 = vpop.f32.mrb[0].mxu0
      %v9970 = vpop.f32.mrb[0].mxu0
      %v9971 = vadd.f32 0.0, %v9970
      %v9972 = vpop.f32.mrb[0].mxu0
      %9973 = vmatprep.mubr.bf16.mxu0 0
      %9974 = vmatmul.mubr.bf16.gmra.mrb[0].mxu0 %v9851
      %v9975 = vpop.f32.mrb[0].mxu0
      %v9976 = vadd.f32 0.0, %v9975
      %v9977 = vpop.f32.mrb[0].mxu0
      %v9978 = vpop.f32.mrb[0].mxu0
      %v9979 = vadd.f32 0.0, %v9978
      %v9980 = vpop.f32.mrb[0].mxu0
      %9981 = vmatprep.mubr.bf16.mxu0 0
      %9982 = vmatmul.mubr.bf16.gmra.mrb[0].mxu0 %v9854
      %v9983 = vpop.f32.mrb[0].mxu0
      %v9984 = vadd.f32 0.0, %v9983
      %v9985 = vpop.f32.mrb[0].mxu0
      %v9986 = vpop.f32.mrb[0].mxu0
      %v9987 = vadd.f32 0.0, %v9986
      %v9988 = vpop.f32.mrb[0].mxu0
      %9989 = vmatprep.mubr.bf16.mxu0 0
      %9990 = vmatmul.mubr.bf16.gmra.mrb[0].mxu0 %v9857
      %v9991 = vpop.f32.mrb[0].mxu0
      %v9992 = vadd.f32 0.0, %v9991
      %v9993 = vpop.f32.mrb[0].mxu0
      %v9994 = vpop.f32.mrb[0].mxu0
      %v9995 = vadd.f32 0.0, %v9994
      %v9996 = vpop.f32.mrb[0].mxu0
      %9997 = vmatprep.mubr.bf16.mxu0 0
      %9998 = vmatmul.mubr.bf16.gmra.mrb[0].mxu0 %v9860
      %v9999 = vpop.f32.mrb[0].mxu0
      %v10000 = vadd.f32 0.0, %v9999
      %v10001 = vpop.f32.mrb[0].mxu0
      %v10002 = vpop.f32.mrb[0].mxu0
      %v10003 = vadd.f32 0.0, %v10002
      %v10004 = vpop.f32.mrb[0].mxu0
      %10005 = vmatprep.mubr.bf16.mxu0 0
      %10006 = vmatmul.mubr.bf16.gmra.mrb[0].mxu0 %v9863
      %v10007 = vpop.f32.mrb[0].mxu0
      %v10008 = vadd.f32 0.0, %v10007
      %v10009 = vpop.f32.mrb[0].mxu0
      %v10010 = vpop.f32.mrb[0].mxu0
      %v10011 = vadd.f32 0.0, %v10010
      %v10012 = vpop.f32.mrb[0].mxu0
      %10013 = vmatprep.mubr.bf16.mxu0 0
      %10014 = vmatmul.mubr.bf16.gmra.mrb[0].mxu0 %v9866
      %v10015 = vpop.f32.mrb[0].mxu0
      %v10016 = vadd.f32 0.0, %v10015
      %v10017 = vpop.f32.mrb[0].mxu0
      %v10018 = vpop.f32.mrb[0].mxu0
      %v10019 = vadd.f32 0.0, %v10018
      %v10020 = vpop.f32.mrb[0].mxu0
      %10021 = vmatprep.mubr.bf16.mxu0 0
      %10022 = vmatmul.mubr.bf16.gmra.mrb[0].mxu0 %v9869
      %v10023 = vpop.f32.mrb[0].mxu0
      %v10024 = vadd.f32 0.0, %v10023
      %v10025 = vpop.f32.mrb[0].mxu0
      %v10026 = vpop.f32.mrb[0].mxu0
      %v10027 = vadd.f32 0.0, %v10026
      %v10028 = vpop.f32.mrb[0].mxu0
      %10029 = vmatprep.mubr.bf16.mxu0 0
      %10030 = vmatmul.mubr.bf16.gmra.mrb[0].mxu0 %v9872
      %v10031 = vpop.f32.mrb[0].mxu0
      %v10032 = vadd.f32 0.0, %v10031
      %v10033 = vpop.f32.mrb[0].mxu0
      %v10034 = vpop.f32.mrb[0].mxu0
      %v10035 = vadd.f32 0.0, %v10034
      %v10036 = vpop.f32.mrb[0].mxu0
      %10037 = vdwg.mxu0
      %v10038 = vadd.f32 %v9312, %v9912
      %v10039 = vadd.f32 %v9313, %v9915
      %v10040 = vadd.f32 %v9314, %v9920
      %v10041 = vadd.f32 %v9315, %v9923
      %v10042 = vadd.f32 %v9316, %v9928
      %v10043 = vadd.f32 %v9317, %v9931
      %v10044 = vadd.f32 %v9318, %v9936
      %v10045 = vadd.f32 %v9319, %v9939
      %v10046 = vadd.f32 %v9320, %v9944
      %v10047 = vadd.f32 %v9321, %v9947
      %v10048 = vadd.f32 %v9322, %v9952
      %v10049 = vadd.f32 %v9323, %v9955
      %v10050 = vadd.f32 %v9324, %v9960
      %v10051 = vadd.f32 %v9325, %v9963
      %v10052 = vadd.f32 %v9326, %v9968
      %v10053 = vadd.f32 %v9327, %v9971
      %v10054 = vadd.f32 %v9328, %v9976
      %v10055 = vadd.f32 %v9329, %v9979
      %v10056 = vadd.f32 %v9330, %v9984
      %v10057 = vadd.f32 %v9331, %v9987
      %v10058 = vadd.f32 %v9332, %v9992
      %v10059 = vadd.f32 %v9333, %v9995
      %v10060 = vadd.f32 %v9334, %v10000
      %v10061 = vadd.f32 %v9335, %v10003
      %v10062 = vadd.f32 %v9336, %v10008
      %v10063 = vadd.f32 %v9337, %v10011
      %v10064 = vadd.f32 %v9338, %v10016
      %v10065 = vadd.f32 %v9339, %v10019
      %v10066 = vadd.f32 %v9340, %v10024
      %v10067 = vadd.f32 %v9341, %v10027
      %v10068 = vadd.f32 %v9342, %v10032
      %v10069 = vadd.f32 %v9343, %v10035
      %v10070 = vld [vmem:[%s1727] sm:$0xe]
      %v10071 = vld [vmem:[%s1727 + $0xc] sm:$0xe]
      %v10072 = vld [vmem:[%s1727 + $0x18] sm:$0xe]
      %v10073 = vld [vmem:[%s1727 + $0x24] sm:$0xe]
      %v10074 = vld [vmem:[%s1727 + $0x30] sm:$0xe]
      %v10075 = vld [vmem:[%s1727 + $0x3c] sm:$0xe]
      %v10076 = vld [vmem:[%s1727 + $0x48] sm:$0xe]
      %v10077 = vld [vmem:[%s1727 + $0x54] sm:$0xe]
      %v10078 = vld [vmem:[%s1727 + $0x60] sm:$0xe]
      %v10079 = vld [vmem:[%s1727 + $0x6c] sm:$0xe]
      %v10080 = vld [vmem:[%s1727 + $0x78] sm:$0xe]
      %v10081 = vld [vmem:[%s1727 + $0x84] sm:$0xe]
      %v10082 = vld [vmem:[%s1727 + $0x90] sm:$0xe]
      %v10083 = vld [vmem:[%s1727 + $0x9c] sm:$0xe]
      %v10084 = vld [vmem:[%s1727 + $0xa8] sm:$0xe]
      %v10085 = vld [vmem:[%s1727 + $0xb4] sm:$0xe]
      %v10134 = vrot.slane %v10070, 5
      %v10135 = vrot.slane %v10134, 4
      %v10136 = vrot.slane %v9345, 5
      %v10137 = vsel %vm2883, %v10135, %v10136
      %v10138 = vrot.slane %v10136, 4
      %v10139 = vrot.slane %v9346, 5
      %v10140 = vsel %vm2883, %v10138, %v10139
      %v10141 = vrot.slane %v10071, 5
      %v10142 = vrot.slane %v10141, 4
      %v10143 = vrot.slane %v9348, 5
      %v10144 = vsel %vm2883, %v10142, %v10143
      %v10145 = vrot.slane %v10143, 4
      %v10146 = vrot.slane %v9349, 5
      %v10147 = vsel %vm2883, %v10145, %v10146
      %v10148 = vrot.slane %v10072, 5
      %v10149 = vrot.slane %v10148, 4
      %v10150 = vrot.slane %v9351, 5
      %v10151 = vsel %vm2883, %v10149, %v10150
      %v10152 = vrot.slane %v10150, 4
      %v10153 = vrot.slane %v9352, 5
      %v10154 = vsel %vm2883, %v10152, %v10153
      %v10155 = vrot.slane %v10073, 5
      %v10156 = vrot.slane %v10155, 4
      %v10157 = vrot.slane %v9354, 5
      %v10158 = vsel %vm2883, %v10156, %v10157
      %v10159 = vrot.slane %v10157, 4
      %v10160 = vrot.slane %v9355, 5
      %v10161 = vsel %vm2883, %v10159, %v10160
      %v10162 = vrot.slane %v10074, 5
      %v10163 = vrot.slane %v10162, 4
      %v10164 = vrot.slane %v9357, 5
      %v10165 = vsel %vm2883, %v10163, %v10164
      %v10166 = vrot.slane %v10164, 4
      %v10167 = vrot.slane %v9358, 5
      %v10168 = vsel %vm2883, %v10166, %v10167
      %v10169 = vrot.slane %v10075, 5
      %v10170 = vrot.slane %v10169, 4
      %v10171 = vrot.slane %v9360, 5
      %v10172 = vsel %vm2883, %v10170, %v10171
      %v10173 = vrot.slane %v10171, 4
      %v10174 = vrot.slane %v9361, 5
      %v10175 = vsel %vm2883, %v10173, %v10174
      %v10176 = vrot.slane %v10076, 5
      %v10177 = vrot.slane %v10176, 4
      %v10178 = vrot.slane %v9363, 5
      %v10179 = vsel %vm2883, %v10177, %v10178
      %v10180 = vrot.slane %v10178, 4
      %v10181 = vrot.slane %v9364, 5
      %v10182 = vsel %vm2883, %v10180, %v10181
      %v10183 = vrot.slane %v10077, 5
      %v10184 = vrot.slane %v10183, 4
      %v10185 = vrot.slane %v9366, 5
      %v10186 = vsel %vm2883, %v10184, %v10185
      %v10187 = vrot.slane %v10185, 4
      %v10188 = vrot.slane %v9367, 5
      %v10189 = vsel %vm2883, %v10187, %v10188
      %v10190 = vrot.slane %v10078, 5
      %v10191 = vrot.slane %v10190, 4
      %v10192 = vrot.slane %v9369, 5
      %v10193 = vsel %vm2883, %v10191, %v10192
      %v10194 = vrot.slane %v10192, 4
      %v10195 = vrot.slane %v9370, 5
      %v10196 = vsel %vm2883, %v10194, %v10195
      %v10197 = vrot.slane %v10079, 5
      %v10198 = vrot.slane %v10197, 4
      %v10199 = vrot.slane %v9372, 5
      %v10200 = vsel %vm2883, %v10198, %v10199
      %v10201 = vrot.slane %v10199, 4
      %v10202 = vrot.slane %v9373, 5
      %v10203 = vsel %vm2883, %v10201, %v10202
      %v10204 = vrot.slane %v10080, 5
      %v10205 = vrot.slane %v10204, 4
      %v10206 = vrot.slane %v9375, 5
      %v10207 = vsel %vm2883, %v10205, %v10206
      %v10208 = vrot.slane %v10206, 4
      %v10209 = vrot.slane %v9376, 5
      %v10210 = vsel %vm2883, %v10208, %v10209
      %v10211 = vrot.slane %v10081, 5
      %v10212 = vrot.slane %v10211, 4
      %v10213 = vrot.slane %v9378, 5
      %v10214 = vsel %vm2883, %v10212, %v10213
      %v10215 = vrot.slane %v10213, 4
      %v10216 = vrot.slane %v9379, 5
      %v10217 = vsel %vm2883, %v10215, %v10216
      %v10218 = vrot.slane %v10082, 5
      %v10219 = vrot.slane %v10218, 4
      %v10220 = vrot.slane %v9381, 5
      %v10221 = vsel %vm2883, %v10219, %v10220
      %v10222 = vrot.slane %v10220, 4
      %v10223 = vrot.slane %v9382, 5
      %v10224 = vsel %vm2883, %v10222, %v10223
      %v10225 = vrot.slane %v10083, 5
      %v10226 = vrot.slane %v10225, 4
      %v10227 = vrot.slane %v9384, 5
      %v10228 = vsel %vm2883, %v10226, %v10227
      %v10229 = vrot.slane %v10227, 4
      %v10230 = vrot.slane %v9385, 5
      %v10231 = vsel %vm2883, %v10229, %v10230
      %v10232 = vrot.slane %v10084, 5
      %v10233 = vrot.slane %v10232, 4
      %v10234 = vrot.slane %v9387, 5
      %v10235 = vsel %vm2883, %v10233, %v10234
      %v10236 = vrot.slane %v10234, 4
      %v10237 = vrot.slane %v9388, 5
      %v10238 = vsel %vm2883, %v10236, %v10237
      %v10239 = vrot.slane %v10085, 5
      %v10240 = vrot.slane %v10239, 4
      %v10241 = vrot.slane %v9390, 5
      %v10242 = vsel %vm2883, %v10240, %v10241
      %v10243 = vrot.slane %v10241, 4
      %v10244 = vrot.slane %v9391, 5
      %v10245 = vsel %vm2883, %v10243, %v10244
      %s10246 = scalar_lea.vmem %s8, 10
      %v10247 = vld [vmem:[%s10246] sm:$0x3]
      %v10248 = vunpack.c.l.b16 %v10137
      %v10249 = vunpack.c.l.b16 %v10140
      %v10250 = vunpack.c.l.b16 %v10144
      %v10251 = vunpack.c.l.b16 %v10147
      %v10252 = vunpack.c.l.b16 %v10151
      %v10253 = vunpack.c.l.b16 %v10154
      %v10254 = vunpack.c.l.b16 %v10158
      %v10255 = vunpack.c.l.b16 %v10161
      %v10256 = vunpack.c.l.b16 %v10165
      %v10257 = vunpack.c.l.b16 %v10168
      %v10258 = vunpack.c.l.b16 %v10172
      %v10259 = vunpack.c.l.b16 %v10175
      %v10260 = vunpack.c.l.b16 %v10179
      %v10261 = vunpack.c.l.b16 %v10182
      %v10262 = vunpack.c.l.b16 %v10186
      %v10263 = vunpack.c.l.b16 %v10189
      %v10264 = vunpack.c.l.b16 %v10193
      %v10265 = vunpack.c.l.b16 %v10196
      %v10266 = vunpack.c.l.b16 %v10200
      %v10267 = vunpack.c.l.b16 %v10203
      %v10268 = vunpack.c.l.b16 %v10207
      %v10269 = vunpack.c.l.b16 %v10210
      %v10270 = vunpack.c.l.b16 %v10214
      %v10271 = vunpack.c.l.b16 %v10217
      %v10272 = vunpack.c.l.b16 %v10221
      %v10273 = vunpack.c.l.b16 %v10224
      %v10274 = vunpack.c.l.b16 %v10228
      %v10275 = vunpack.c.l.b16 %v10231
      %v10276 = vunpack.c.l.b16 %v10235
      %v10277 = vunpack.c.l.b16 %v10238
      %v10278 = vunpack.c.l.b16 %v10242
      %v10279 = vunpack.c.l.b16 %v10245
      %v10280 = vpack.c.b16 %v10249, %v10248
      %v10281 = vpack.c.b16 %v10251, %v10250
      %v10282 = vpack.c.b16 %v10253, %v10252
      %v10283 = vpack.c.b16 %v10255, %v10254
      %v10284 = vpack.c.b16 %v10257, %v10256
      %v10285 = vpack.c.b16 %v10259, %v10258
      %v10286 = vpack.c.b16 %v10261, %v10260
      %v10287 = vpack.c.b16 %v10263, %v10262
      %v10288 = vpack.c.b16 %v10265, %v10264
      %v10289 = vpack.c.b16 %v10267, %v10266
      %v10290 = vpack.c.b16 %v10269, %v10268
      %v10291 = vpack.c.b16 %v10271, %v10270
      %v10292 = vpack.c.b16 %v10273, %v10272
      %v10293 = vpack.c.b16 %v10275, %v10274
      %v10294 = vpack.c.b16 %v10277, %v10276
      %v10295 = vpack.c.b16 %v10279, %v10278
      %v10297 = vsel %vm721, %v10280, 0
      %v10300 = vsel %vm721, %v10281, 0
      %v10303 = vsel %vm721, %v10282, 0
      %v10306 = vsel %vm721, %v10283, 0
      %v10309 = vsel %vm721, %v10284, 0
      %v10312 = vsel %vm721, %v10285, 0
      %v10315 = vsel %vm721, %v10286, 0
      %v10318 = vsel %vm721, %v10287, 0
      %v10321 = vsel %vm721, %v10288, 0
      %v10324 = vsel %vm721, %v10289, 0
      %v10327 = vsel %vm721, %v10290, 0
      %v10330 = vsel %vm721, %v10291, 0
      %v10333 = vsel %vm721, %v10292, 0
      %v10336 = vsel %vm721, %v10293, 0
      %v10339 = vsel %vm721, %v10294, 0
      %v10342 = vsel %vm721, %v10295, 0
      %v10345 = vsel %vm1052, %v10247, 0
      %10347 = vmatprep.subr.bf16.mxu0 0
      %10348 = vmatpush1.bf16.msra.mxu0 %v10345
      %10349 = vmatprep.subr.bf16.mxu0 0
      %10350 = vmatpush1.bf16.msra.mxu0 0
      %10351 = vmatprep.subr.bf16.mxu0 0
      %10352 = vmatpush1.bf16.msra.mxu0 0
      %10353 = vmatprep.subr.bf16.mxu0 0
      %10354 = vmatpush1.bf16.msra.mxu0 0
      %10355 = vmatprep.subr.bf16.mxu0 0
      %10356 = vmatpush1.bf16.msra.mxu0 0
      %10357 = vmatprep.subr.bf16.mxu0 0
      %10358 = vmatpush1.bf16.msra.mxu0 0
      %10359 = vmatprep.subr.bf16.mxu0 0
      %10360 = vmatpush1.bf16.msra.mxu0 0
      %10361 = vmatprep.subr.bf16.mxu0 0
      %10362 = vmatpush1.bf16.msra.mxu0 0
      %10363 = vmatprep.subr.bf16.mxu0 0
      %10364 = vmatpush1.bf16.msra.mxu0 0
      %10365 = vmatprep.subr.bf16.mxu0 0
      %10366 = vmatpush1.bf16.msra.mxu0 0
      %10367 = vmatprep.subr.bf16.mxu0 0
      %10368 = vmatpush1.bf16.msra.mxu0 0
      %10369 = vmatprep.subr.bf16.mxu0 0
      %10370 = vmatpush1.bf16.msra.mxu0 0
      %10371 = vmatprep.subr.bf16.mxu0 0
      %10372 = vmatpush1.bf16.msra.mxu0 0
      %10373 = vmatprep.subr.bf16.mxu0 0
      %10374 = vmatpush1.bf16.msra.mxu0 0
      %10375 = vmatprep.subr.bf16.mxu0 0
      %10376 = vmatpush1.bf16.msra.mxu0 0
      %10377 = vmatprep.subr.bf16.mxu0 0
      %10378 = vmatpush1.bf16.msra.mxu0 0
      %10379 = vmatprep.mubr.bf16.mxu0 0
      %10380 = vmatmul.mubr.bf16.gmra.mrb[0].mxu0 %v10297
      %v10381 = vpop.f32.mrb[0].mxu0
      %v10382 = vadd.f32 0.0, %v10381
      %v10383 = vpop.f32.mrb[0].mxu0
      %v10384 = vpop.f32.mrb[0].mxu0
      %v10385 = vadd.f32 0.0, %v10384
      %v10386 = vpop.f32.mrb[0].mxu0
      %10387 = vmatprep.mubr.bf16.mxu0 0
      %10388 = vmatmul.mubr.bf16.gmra.mrb[0].mxu0 %v10300
      %v10389 = vpop.f32.mrb[0].mxu0
      %v10390 = vadd.f32 0.0, %v10389
      %v10391 = vpop.f32.mrb[0].mxu0
      %v10392 = vpop.f32.mrb[0].mxu0
      %v10393 = vadd.f32 0.0, %v10392
      %v10394 = vpop.f32.mrb[0].mxu0
      %10395 = vmatprep.mubr.bf16.mxu0 0
      %10396 = vmatmul.mubr.bf16.gmra.mrb[0].mxu0 %v10303
      %v10397 = vpop.f32.mrb[0].mxu0
      %v10398 = vadd.f32 0.0, %v10397
      %v10399 = vpop.f32.mrb[0].mxu0
      %v10400 = vpop.f32.mrb[0].mxu0
      %v10401 = vadd.f32 0.0, %v10400
      %v10402 = vpop.f32.mrb[0].mxu0
      %10403 = vmatprep.mubr.bf16.mxu0 0
      %10404 = vmatmul.mubr.bf16.gmra.mrb[0].mxu0 %v10306
      %v10405 = vpop.f32.mrb[0].mxu0
      %v10406 = vadd.f32 0.0, %v10405
      %v10407 = vpop.f32.mrb[0].mxu0
      %v10408 = vpop.f32.mrb[0].mxu0
      %v10409 = vadd.f32 0.0, %v10408
      %v10410 = vpop.f32.mrb[0].mxu0
      %10411 = vmatprep.mubr.bf16.mxu0 0
      %10412 = vmatmul.mubr.bf16.gmra.mrb[0].mxu0 %v10309
      %v10413 = vpop.f32.mrb[0].mxu0
      %v10414 = vadd.f32 0.0, %v10413
      %v10415 = vpop.f32.mrb[0].mxu0
      %v10416 = vpop.f32.mrb[0].mxu0
      %v10417 = vadd.f32 0.0, %v10416
      %v10418 = vpop.f32.mrb[0].mxu0
      %10419 = vmatprep.mubr.bf16.mxu0 0
      %10420 = vmatmul.mubr.bf16.gmra.mrb[0].mxu0 %v10312
      %v10421 = vpop.f32.mrb[0].mxu0
      %v10422 = vadd.f32 0.0, %v10421
      %v10423 = vpop.f32.mrb[0].mxu0
      %v10424 = vpop.f32.mrb[0].mxu0
      %v10425 = vadd.f32 0.0, %v10424
      %v10426 = vpop.f32.mrb[0].mxu0
      %10427 = vmatprep.mubr.bf16.mxu0 0
      %10428 = vmatmul.mubr.bf16.gmra.mrb[0].mxu0 %v10315
      %v10429 = vpop.f32.mrb[0].mxu0
      %v10430 = vadd.f32 0.0, %v10429
      %v10431 = vpop.f32.mrb[0].mxu0
      %v10432 = vpop.f32.mrb[0].mxu0
      %v10433 = vadd.f32 0.0, %v10432
      %v10434 = vpop.f32.mrb[0].mxu0
      %10435 = vmatprep.mubr.bf16.mxu0 0
      %10436 = vmatmul.mubr.bf16.gmra.mrb[0].mxu0 %v10318
      %v10437 = vpop.f32.mrb[0].mxu0
      %v10438 = vadd.f32 0.0, %v10437
      %v10439 = vpop.f32.mrb[0].mxu0
      %v10440 = vpop.f32.mrb[0].mxu0
      %v10441 = vadd.f32 0.0, %v10440
      %v10442 = vpop.f32.mrb[0].mxu0
      %10443 = vmatprep.mubr.bf16.mxu0 0
      %10444 = vmatmul.mubr.bf16.gmra.mrb[0].mxu0 %v10321
      %v10445 = vpop.f32.mrb[0].mxu0
      %v10446 = vadd.f32 0.0, %v10445
      %v10447 = vpop.f32.mrb[0].mxu0
      %v10448 = vpop.f32.mrb[0].mxu0
      %v10449 = vadd.f32 0.0, %v10448
      %v10450 = vpop.f32.mrb[0].mxu0
      %10451 = vmatprep.mubr.bf16.mxu0 0
      %10452 = vmatmul.mubr.bf16.gmra.mrb[0].mxu0 %v10324
      %v10453 = vpop.f32.mrb[0].mxu0
      %v10454 = vadd.f32 0.0, %v10453
      %v10455 = vpop.f32.mrb[0].mxu0
      %v10456 = vpop.f32.mrb[0].mxu0
      %v10457 = vadd.f32 0.0, %v10456
      %v10458 = vpop.f32.mrb[0].mxu0
      %10459 = vmatprep.mubr.bf16.mxu0 0
      %10460 = vmatmul.mubr.bf16.gmra.mrb[0].mxu0 %v10327
      %v10461 = vpop.f32.mrb[0].mxu0
      %v10462 = vadd.f32 0.0, %v10461
      %v10463 = vpop.f32.mrb[0].mxu0
      %v10464 = vpop.f32.mrb[0].mxu0
      %v10465 = vadd.f32 0.0, %v10464
      %v10466 = vpop.f32.mrb[0].mxu0
      %10467 = vmatprep.mubr.bf16.mxu0 0
      %10468 = vmatmul.mubr.bf16.gmra.mrb[0].mxu0 %v10330
      %v10469 = vpop.f32.mrb[0].mxu0
      %v10470 = vadd.f32 0.0, %v10469
      %v10471 = vpop.f32.mrb[0].mxu0
      %v10472 = vpop.f32.mrb[0].mxu0
      %v10473 = vadd.f32 0.0, %v10472
      %v10474 = vpop.f32.mrb[0].mxu0
      %10475 = vmatprep.mubr.bf16.mxu0 0
      %10476 = vmatmul.mubr.bf16.gmra.mrb[0].mxu0 %v10333
      %v10477 = vpop.f32.mrb[0].mxu0
      %v10478 = vadd.f32 0.0, %v10477
      %v10479 = vpop.f32.mrb[0].mxu0
      %v10480 = vpop.f32.mrb[0].mxu0
      %v10481 = vadd.f32 0.0, %v10480
      %v10482 = vpop.f32.mrb[0].mxu0
      %10483 = vmatprep.mubr.bf16.mxu0 0
      %10484 = vmatmul.mubr.bf16.gmra.mrb[0].mxu0 %v10336
      %v10485 = vpop.f32.mrb[0].mxu0
      %v10486 = vadd.f32 0.0, %v10485
      %v10487 = vpop.f32.mrb[0].mxu0
      %v10488 = vpop.f32.mrb[0].mxu0
      %v10489 = vadd.f32 0.0, %v10488
      %v10490 = vpop.f32.mrb[0].mxu0
      %10491 = vmatprep.mubr.bf16.mxu0 0
      %10492 = vmatmul.mubr.bf16.gmra.mrb[0].mxu0 %v10339
      %v10493 = vpop.f32.mrb[0].mxu0
      %v10494 = vadd.f32 0.0, %v10493
      %v10495 = vpop.f32.mrb[0].mxu0
      %v10496 = vpop.f32.mrb[0].mxu0
      %v10497 = vadd.f32 0.0, %v10496
      %v10498 = vpop.f32.mrb[0].mxu0
      %10499 = vmatprep.mubr.bf16.mxu0 0
      %10500 = vmatmul.mubr.bf16.gmra.mrb[0].mxu0 %v10342
      %v10501 = vpop.f32.mrb[0].mxu0
      %v10502 = vadd.f32 0.0, %v10501
      %v10503 = vpop.f32.mrb[0].mxu0
      %v10504 = vpop.f32.mrb[0].mxu0
      %v10505 = vadd.f32 0.0, %v10504
      %v10506 = vpop.f32.mrb[0].mxu0
      %10507 = vdwg.mxu0
      %v10508 = vadd.f32 %v10038, %v10382
      %v10509 = vadd.f32 %v10039, %v10385
      %v10510 = vadd.f32 %v10040, %v10390
      %v10511 = vadd.f32 %v10041, %v10393
      %v10512 = vadd.f32 %v10042, %v10398
      %v10513 = vadd.f32 %v10043, %v10401
      %v10514 = vadd.f32 %v10044, %v10406
      %v10515 = vadd.f32 %v10045, %v10409
      %v10516 = vadd.f32 %v10046, %v10414
      %v10517 = vadd.f32 %v10047, %v10417
      %v10518 = vadd.f32 %v10048, %v10422
      %v10519 = vadd.f32 %v10049, %v10425
      %v10520 = vadd.f32 %v10050, %v10430
      %v10521 = vadd.f32 %v10051, %v10433
      %v10522 = vadd.f32 %v10052, %v10438
      %v10523 = vadd.f32 %v10053, %v10441
      %v10524 = vadd.f32 %v10054, %v10446
      %v10525 = vadd.f32 %v10055, %v10449
      %v10526 = vadd.f32 %v10056, %v10454
      %v10527 = vadd.f32 %v10057, %v10457
      %v10528 = vadd.f32 %v10058, %v10462
      %v10529 = vadd.f32 %v10059, %v10465
      %v10530 = vadd.f32 %v10060, %v10470
      %v10531 = vadd.f32 %v10061, %v10473
      %v10532 = vadd.f32 %v10062, %v10478
      %v10533 = vadd.f32 %v10063, %v10481
      %v10534 = vadd.f32 %v10064, %v10486
      %v10535 = vadd.f32 %v10065, %v10489
      %v10536 = vadd.f32 %v10066, %v10494
      %v10537 = vadd.f32 %v10067, %v10497
      %v10538 = vadd.f32 %v10068, %v10502
      %v10539 = vadd.f32 %v10069, %v10505
      %v10540 = vld [vmem:[%s4844] sm:$0xf]
      %v10541 = vld [vmem:[%s4844 + $0x4] sm:$0xf]
      %v10542 = vld [vmem:[%s4844 + $0xc] sm:$0xf]
      %v10543 = vld [vmem:[%s4844 + $0x10] sm:$0xf]
      %v10544 = vld [vmem:[%s4844 + $0x18] sm:$0xf]
      %v10545 = vld [vmem:[%s4844 + $0x1c] sm:$0xf]
      %v10546 = vld [vmem:[%s4844 + $0x24] sm:$0xf]
      %v10547 = vld [vmem:[%s4844 + $0x28] sm:$0xf]
      %v10548 = vld [vmem:[%s4844 + $0x30] sm:$0xf]
      %v10549 = vld [vmem:[%s4844 + $0x34] sm:$0xf]
      %v10550 = vld [vmem:[%s4844 + $0x3c] sm:$0xf]
      %v10551 = vld [vmem:[%s4844 + $0x40] sm:$0xf]
      %v10552 = vld [vmem:[%s4844 + $0x48] sm:$0xf]
      %v10553 = vld [vmem:[%s4844 + $0x4c] sm:$0xf]
      %v10554 = vld [vmem:[%s4844 + $0x54] sm:$0xf]
      %v10555 = vld [vmem:[%s4844 + $0x58] sm:$0xf]
      %v10556 = vld [vmem:[%s4844 + $0x60] sm:$0xf]
      %v10557 = vld [vmem:[%s4844 + $0x64] sm:$0xf]
      %v10558 = vld [vmem:[%s4844 + $0x6c] sm:$0xf]
      %v10559 = vld [vmem:[%s4844 + $0x70] sm:$0xf]
      %v10560 = vld [vmem:[%s4844 + $0x78] sm:$0xf]
      %v10561 = vld [vmem:[%s4844 + $0x7c] sm:$0xf]
      %v10562 = vld [vmem:[%s4844 + $0x84] sm:$0xf]
      %v10563 = vld [vmem:[%s4844 + $0x88] sm:$0xf]
      %v10564 = vld [vmem:[%s4844 + $0x90] sm:$0xf]
      %v10565 = vld [vmem:[%s4844 + $0x94] sm:$0xf]
      %v10566 = vld [vmem:[%s4844 + $0x9c] sm:$0xf]
      %v10567 = vld [vmem:[%s4844 + $0xa0] sm:$0xf]
      %v10568 = vld [vmem:[%s4844 + $0xa8] sm:$0xf]
      %v10569 = vld [vmem:[%s4844 + $0xac] sm:$0xf]
      %v10570 = vld [vmem:[%s4844 + $0xb4] sm:$0xf]
      %v10571 = vld [vmem:[%s4844 + $0xb8] sm:$0xf]
      %s10572 = scalar_lea.vmem %s8, 12
      %v10573 = vld [vmem:[%s10572] sm:$0x3]
      %v10606 = vunpack.c.l.b16 %v10540
      %v10607 = vunpack.c.l.b16 %v10541
      %v10608 = vunpack.c.l.b16 %v10542
      %v10609 = vunpack.c.l.b16 %v10543
      %v10610 = vunpack.c.l.b16 %v10544
      %v10611 = vunpack.c.l.b16 %v10545
      %v10612 = vunpack.c.l.b16 %v10546
      %v10613 = vunpack.c.l.b16 %v10547
      %v10614 = vunpack.c.l.b16 %v10548
      %v10615 = vunpack.c.l.b16 %v10549
      %v10616 = vunpack.c.l.b16 %v10550
      %v10617 = vunpack.c.l.b16 %v10551
      %v10618 = vunpack.c.l.b16 %v10552
      %v10619 = vunpack.c.l.b16 %v10553
      %v10620 = vunpack.c.l.b16 %v10554
      %v10621 = vunpack.c.l.b16 %v10555
      %v10622 = vunpack.c.l.b16 %v10556
      %v10623 = vunpack.c.l.b16 %v10557
      %v10624 = vunpack.c.l.b16 %v10558
      %v10625 = vunpack.c.l.b16 %v10559
      %v10626 = vunpack.c.l.b16 %v10560
      %v10627 = vunpack.c.l.b16 %v10561
      %v10628 = vunpack.c.l.b16 %v10562
      %v10629 = vunpack.c.l.b16 %v10563
      %v10630 = vunpack.c.l.b16 %v10564
      %v10631 = vunpack.c.l.b16 %v10565
      %v10632 = vunpack.c.l.b16 %v10566
      %v10633 = vunpack.c.l.b16 %v10567
      %v10634 = vunpack.c.l.b16 %v10568
      %v10635 = vunpack.c.l.b16 %v10569
      %v10636 = vunpack.c.l.b16 %v10570
      %v10637 = vunpack.c.l.b16 %v10571
      %v10638 = vpack.c.b16 %v10607, %v10606
      %v10639 = vpack.c.b16 %v10609, %v10608
      %v10640 = vpack.c.b16 %v10611, %v10610
      %v10641 = vpack.c.b16 %v10613, %v10612
      %v10642 = vpack.c.b16 %v10615, %v10614
      %v10643 = vpack.c.b16 %v10617, %v10616
      %v10644 = vpack.c.b16 %v10619, %v10618
      %v10645 = vpack.c.b16 %v10621, %v10620
      %v10646 = vpack.c.b16 %v10623, %v10622
      %v10647 = vpack.c.b16 %v10625, %v10624
      %v10648 = vpack.c.b16 %v10627, %v10626
      %v10649 = vpack.c.b16 %v10629, %v10628
      %v10650 = vpack.c.b16 %v10631, %v10630
      %v10651 = vpack.c.b16 %v10633, %v10632
      %v10652 = vpack.c.b16 %v10635, %v10634
      %v10653 = vpack.c.b16 %v10637, %v10636
      %v10655 = vsel %vm721, %v10638, 0
      %v10658 = vsel %vm721, %v10639, 0
      %v10661 = vsel %vm721, %v10640, 0
      %v10664 = vsel %vm721, %v10641, 0
      %v10667 = vsel %vm721, %v10642, 0
      %v10670 = vsel %vm721, %v10643, 0
      %v10673 = vsel %vm721, %v10644, 0
      %v10676 = vsel %vm721, %v10645, 0
      %v10679 = vsel %vm721, %v10646, 0
      %v10682 = vsel %vm721, %v10647, 0
      %v10685 = vsel %vm721, %v10648, 0
      %v10688 = vsel %vm721, %v10649, 0
      %v10691 = vsel %vm721, %v10650, 0
      %v10694 = vsel %vm721, %v10651, 0
      %v10697 = vsel %vm721, %v10652, 0
      %v10700 = vsel %vm721, %v10653, 0
      %v10703 = vsel %vm1052, %v10573, 0
      %10705 = vmatprep.subr.bf16.mxu0 0
      %10706 = vmatpush1.bf16.msra.mxu0 %v10703
      %10707 = vmatprep.subr.bf16.mxu0 0
      %10708 = vmatpush1.bf16.msra.mxu0 0
      %10709 = vmatprep.subr.bf16.mxu0 0
      %10710 = vmatpush1.bf16.msra.mxu0 0
      %10711 = vmatprep.subr.bf16.mxu0 0
      %10712 = vmatpush1.bf16.msra.mxu0 0
      %10713 = vmatprep.subr.bf16.mxu0 0
      %10714 = vmatpush1.bf16.msra.mxu0 0
      %10715 = vmatprep.subr.bf16.mxu0 0
      %10716 = vmatpush1.bf16.msra.mxu0 0
      %10717 = vmatprep.subr.bf16.mxu0 0
      %10718 = vmatpush1.bf16.msra.mxu0 0
      %10719 = vmatprep.subr.bf16.mxu0 0
      %10720 = vmatpush1.bf16.msra.mxu0 0
      %10721 = vmatprep.subr.bf16.mxu0 0
      %10722 = vmatpush1.bf16.msra.mxu0 0
      %10723 = vmatprep.subr.bf16.mxu0 0
      %10724 = vmatpush1.bf16.msra.mxu0 0
      %10725 = vmatprep.subr.bf16.mxu0 0
      %10726 = vmatpush1.bf16.msra.mxu0 0
      %10727 = vmatprep.subr.bf16.mxu0 0
      %10728 = vmatpush1.bf16.msra.mxu0 0
      %10729 = vmatprep.subr.bf16.mxu0 0
      %10730 = vmatpush1.bf16.msra.mxu0 0
      %10731 = vmatprep.subr.bf16.mxu0 0
      %10732 = vmatpush1.bf16.msra.mxu0 0
      %10733 = vmatprep.subr.bf16.mxu0 0
      %10734 = vmatpush1.bf16.msra.mxu0 0
      %10735 = vmatprep.subr.bf16.mxu0 0
      %10736 = vmatpush1.bf16.msra.mxu0 0
      %10737 = vmatprep.mubr.bf16.mxu0 0
      %10738 = vmatmul.mubr.bf16.gmra.mrb[0].mxu0 %v10655
      %v10739 = vpop.f32.mrb[0].mxu0
      %v10740 = vadd.f32 0.0, %v10739
      %v10741 = vpop.f32.mrb[0].mxu0
      %v10742 = vpop.f32.mrb[0].mxu0
      %v10743 = vadd.f32 0.0, %v10742
      %v10744 = vpop.f32.mrb[0].mxu0
      %10745 = vmatprep.mubr.bf16.mxu0 0
      %10746 = vmatmul.mubr.bf16.gmra.mrb[0].mxu0 %v10658
      %v10747 = vpop.f32.mrb[0].mxu0
      %v10748 = vadd.f32 0.0, %v10747
      %v10749 = vpop.f32.mrb[0].mxu0
      %v10750 = vpop.f32.mrb[0].mxu0
      %v10751 = vadd.f32 0.0, %v10750
      %v10752 = vpop.f32.mrb[0].mxu0
      %10753 = vmatprep.mubr.bf16.mxu0 0
      %10754 = vmatmul.mubr.bf16.gmra.mrb[0].mxu0 %v10661
      %v10755 = vpop.f32.mrb[0].mxu0
      %v10756 = vadd.f32 0.0, %v10755
      %v10757 = vpop.f32.mrb[0].mxu0
      %v10758 = vpop.f32.mrb[0].mxu0
      %v10759 = vadd.f32 0.0, %v10758
      %v10760 = vpop.f32.mrb[0].mxu0
      %10761 = vmatprep.mubr.bf16.mxu0 0
      %10762 = vmatmul.mubr.bf16.gmra.mrb[0].mxu0 %v10664
      %v10763 = vpop.f32.mrb[0].mxu0
      %v10764 = vadd.f32 0.0, %v10763
      %v10765 = vpop.f32.mrb[0].mxu0
      %v10766 = vpop.f32.mrb[0].mxu0
      %v10767 = vadd.f32 0.0, %v10766
      %v10768 = vpop.f32.mrb[0].mxu0
      %10769 = vmatprep.mubr.bf16.mxu0 0
      %10770 = vmatmul.mubr.bf16.gmra.mrb[0].mxu0 %v10667
      %v10771 = vpop.f32.mrb[0].mxu0
      %v10772 = vadd.f32 0.0, %v10771
      %v10773 = vpop.f32.mrb[0].mxu0
      %v10774 = vpop.f32.mrb[0].mxu0
      %v10775 = vadd.f32 0.0, %v10774
      %v10776 = vpop.f32.mrb[0].mxu0
      %10777 = vmatprep.mubr.bf16.mxu0 0
      %10778 = vmatmul.mubr.bf16.gmra.mrb[0].mxu0 %v10670
      %v10779 = vpop.f32.mrb[0].mxu0
      %v10780 = vadd.f32 0.0, %v10779
      %v10781 = vpop.f32.mrb[0].mxu0
      %v10782 = vpop.f32.mrb[0].mxu0
      %v10783 = vadd.f32 0.0, %v10782
      %v10784 = vpop.f32.mrb[0].mxu0
      %10785 = vmatprep.mubr.bf16.mxu0 0
      %10786 = vmatmul.mubr.bf16.gmra.mrb[0].mxu0 %v10673
      %v10787 = vpop.f32.mrb[0].mxu0
      %v10788 = vadd.f32 0.0, %v10787
      %v10789 = vpop.f32.mrb[0].mxu0
      %v10790 = vpop.f32.mrb[0].mxu0
      %v10791 = vadd.f32 0.0, %v10790
      %v10792 = vpop.f32.mrb[0].mxu0
      %10793 = vmatprep.mubr.bf16.mxu0 0
      %10794 = vmatmul.mubr.bf16.gmra.mrb[0].mxu0 %v10676
      %v10795 = vpop.f32.mrb[0].mxu0
      %v10796 = vadd.f32 0.0, %v10795
      %v10797 = vpop.f32.mrb[0].mxu0
      %v10798 = vpop.f32.mrb[0].mxu0
      %v10799 = vadd.f32 0.0, %v10798
      %v10800 = vpop.f32.mrb[0].mxu0
      %10801 = vmatprep.mubr.bf16.mxu0 0
      %10802 = vmatmul.mubr.bf16.gmra.mrb[0].mxu0 %v10679
      %v10803 = vpop.f32.mrb[0].mxu0
      %v10804 = vadd.f32 0.0, %v10803
      %v10805 = vpop.f32.mrb[0].mxu0
      %v10806 = vpop.f32.mrb[0].mxu0
      %v10807 = vadd.f32 0.0, %v10806
      %v10808 = vpop.f32.mrb[0].mxu0
      %10809 = vmatprep.mubr.bf16.mxu0 0
      %10810 = vmatmul.mubr.bf16.gmra.mrb[0].mxu0 %v10682
      %v10811 = vpop.f32.mrb[0].mxu0
      %v10812 = vadd.f32 0.0, %v10811
      %v10813 = vpop.f32.mrb[0].mxu0
      %v10814 = vpop.f32.mrb[0].mxu0
      %v10815 = vadd.f32 0.0, %v10814
      %v10816 = vpop.f32.mrb[0].mxu0
      %10817 = vmatprep.mubr.bf16.mxu0 0
      %10818 = vmatmul.mubr.bf16.gmra.mrb[0].mxu0 %v10685
      %v10819 = vpop.f32.mrb[0].mxu0
      %v10820 = vadd.f32 0.0, %v10819
      %v10821 = vpop.f32.mrb[0].mxu0
      %v10822 = vpop.f32.mrb[0].mxu0
      %v10823 = vadd.f32 0.0, %v10822
      %v10824 = vpop.f32.mrb[0].mxu0
      %10825 = vmatprep.mubr.bf16.mxu0 0
      %10826 = vmatmul.mubr.bf16.gmra.mrb[0].mxu0 %v10688
      %v10827 = vpop.f32.mrb[0].mxu0
      %v10828 = vadd.f32 0.0, %v10827
      %v10829 = vpop.f32.mrb[0].mxu0
      %v10830 = vpop.f32.mrb[0].mxu0
      %v10831 = vadd.f32 0.0, %v10830
      %v10832 = vpop.f32.mrb[0].mxu0
      %10833 = vmatprep.mubr.bf16.mxu0 0
      %10834 = vmatmul.mubr.bf16.gmra.mrb[0].mxu0 %v10691
      %v10835 = vpop.f32.mrb[0].mxu0
      %v10836 = vadd.f32 0.0, %v10835
      %v10837 = vpop.f32.mrb[0].mxu0
      %v10838 = vpop.f32.mrb[0].mxu0
      %v10839 = vadd.f32 0.0, %v10838
      %v10840 = vpop.f32.mrb[0].mxu0
      %10841 = vmatprep.mubr.bf16.mxu0 0
      %10842 = vmatmul.mubr.bf16.gmra.mrb[0].mxu0 %v10694
      %v10843 = vpop.f32.mrb[0].mxu0
      %v10844 = vadd.f32 0.0, %v10843
      %v10845 = vpop.f32.mrb[0].mxu0
      %v10846 = vpop.f32.mrb[0].mxu0
      %v10847 = vadd.f32 0.0, %v10846
      %v10848 = vpop.f32.mrb[0].mxu0
      %10849 = vmatprep.mubr.bf16.mxu0 0
      %10850 = vmatmul.mubr.bf16.gmra.mrb[0].mxu0 %v10697
      %v10851 = vpop.f32.mrb[0].mxu0
      %v10852 = vadd.f32 0.0, %v10851
      %v10853 = vpop.f32.mrb[0].mxu0
      %v10854 = vpop.f32.mrb[0].mxu0
      %v10855 = vadd.f32 0.0, %v10854
      %v10856 = vpop.f32.mrb[0].mxu0
      %10857 = vmatprep.mubr.bf16.mxu0 0
      %10858 = vmatmul.mubr.bf16.gmra.mrb[0].mxu0 %v10700
      %v10859 = vpop.f32.mrb[0].mxu0
      %v10860 = vadd.f32 0.0, %v10859
      %v10861 = vpop.f32.mrb[0].mxu0
      %v10862 = vpop.f32.mrb[0].mxu0
      %v10863 = vadd.f32 0.0, %v10862
      %v10864 = vpop.f32.mrb[0].mxu0
      %10865 = vdwg.mxu0
      %v10866 = vadd.f32 %v10508, %v10740
      %v10867 = vadd.f32 %v10509, %v10743
      %v10868 = vadd.f32 %v10510, %v10748
      %v10869 = vadd.f32 %v10511, %v10751
      %v10870 = vadd.f32 %v10512, %v10756
      %v10871 = vadd.f32 %v10513, %v10759
      %v10872 = vadd.f32 %v10514, %v10764
      %v10873 = vadd.f32 %v10515, %v10767
      %v10874 = vadd.f32 %v10516, %v10772
      %v10875 = vadd.f32 %v10517, %v10775
      %v10876 = vadd.f32 %v10518, %v10780
      %v10877 = vadd.f32 %v10519, %v10783
      %v10878 = vadd.f32 %v10520, %v10788
      %v10879 = vadd.f32 %v10521, %v10791
      %v10880 = vadd.f32 %v10522, %v10796
      %v10881 = vadd.f32 %v10523, %v10799
      %v10882 = vadd.f32 %v10524, %v10804
      %v10883 = vadd.f32 %v10525, %v10807
      %v10884 = vadd.f32 %v10526, %v10812
      %v10885 = vadd.f32 %v10527, %v10815
      %v10886 = vadd.f32 %v10528, %v10820
      %v10887 = vadd.f32 %v10529, %v10823
      %v10888 = vadd.f32 %v10530, %v10828
      %v10889 = vadd.f32 %v10531, %v10831
      %v10890 = vadd.f32 %v10532, %v10836
      %v10891 = vadd.f32 %v10533, %v10839
      %v10892 = vadd.f32 %v10534, %v10844
      %v10893 = vadd.f32 %v10535, %v10847
      %v10894 = vadd.f32 %v10536, %v10852
      %v10895 = vadd.f32 %v10537, %v10855
      %v10896 = vadd.f32 %v10538, %v10860
      %v10897 = vadd.f32 %v10539, %v10863
      %v10898 = vld [vmem:[%s4844] sm:$0xf]
      %v10899 = vld [vmem:[%s4844 + $0x4] sm:$0xf]
      %v10900 = vld [vmem:[%s4844 + $0x8] sm:$0x1]
      %v10901 = vld [vmem:[%s4844 + $0xc] sm:$0xf]
      %v10902 = vld [vmem:[%s4844 + $0x10] sm:$0xf]
      %v10903 = vld [vmem:[%s4844 + $0x14] sm:$0x1]
      %v10904 = vld [vmem:[%s4844 + $0x18] sm:$0xf]
      %v10905 = vld [vmem:[%s4844 + $0x1c] sm:$0xf]
      %v10906 = vld [vmem:[%s4844 + $0x20] sm:$0x1]
      %v10907 = vld [vmem:[%s4844 + $0x24] sm:$0xf]
      %v10908 = vld [vmem:[%s4844 + $0x28] sm:$0xf]
      %v10909 = vld [vmem:[%s4844 + $0x2c] sm:$0x1]
      %v10910 = vld [vmem:[%s4844 + $0x30] sm:$0xf]
      %v10911 = vld [vmem:[%s4844 + $0x34] sm:$0xf]
      %v10912 = vld [vmem:[%s4844 + $0x38] sm:$0x1]
      %v10913 = vld [vmem:[%s4844 + $0x3c] sm:$0xf]
      %v10914 = vld [vmem:[%s4844 + $0x40] sm:$0xf]
      %v10915 = vld [vmem:[%s4844 + $0x44] sm:$0x1]
      %v10916 = vld [vmem:[%s4844 + $0x48] sm:$0xf]
      %v10917 = vld [vmem:[%s4844 + $0x4c] sm:$0xf]
      %v10918 = vld [vmem:[%s4844 + $0x50] sm:$0x1]
      %v10919 = vld [vmem:[%s4844 + $0x54] sm:$0xf]
      %v10920 = vld [vmem:[%s4844 + $0x58] sm:$0xf]
      %v10921 = vld [vmem:[%s4844 + $0x5c] sm:$0x1]
      %v10922 = vld [vmem:[%s4844 + $0x60] sm:$0xf]
      %v10923 = vld [vmem:[%s4844 + $0x64] sm:$0xf]
      %v10924 = vld [vmem:[%s4844 + $0x68] sm:$0x1]
      %v10925 = vld [vmem:[%s4844 + $0x6c] sm:$0xf]
      %v10926 = vld [vmem:[%s4844 + $0x70] sm:$0xf]
      %v10927 = vld [vmem:[%s4844 + $0x74] sm:$0x1]
      %v10928 = vld [vmem:[%s4844 + $0x78] sm:$0xf]
      %v10929 = vld [vmem:[%s4844 + $0x7c] sm:$0xf]
      %v10930 = vld [vmem:[%s4844 + $0x80] sm:$0x1]
      %v10931 = vld [vmem:[%s4844 + $0x84] sm:$0xf]
      %v10932 = vld [vmem:[%s4844 + $0x88] sm:$0xf]
      %v10933 = vld [vmem:[%s4844 + $0x8c] sm:$0x1]
      %v10934 = vld [vmem:[%s4844 + $0x90] sm:$0xf]
      %v10935 = vld [vmem:[%s4844 + $0x94] sm:$0xf]
      %v10936 = vld [vmem:[%s4844 + $0x98] sm:$0x1]
      %v10937 = vld [vmem:[%s4844 + $0x9c] sm:$0xf]
      %v10938 = vld [vmem:[%s4844 + $0xa0] sm:$0xf]
      %v10939 = vld [vmem:[%s4844 + $0xa4] sm:$0x1]
      %v10940 = vld [vmem:[%s4844 + $0xa8] sm:$0xf]
      %v10941 = vld [vmem:[%s4844 + $0xac] sm:$0xf]
      %v10942 = vld [vmem:[%s4844 + $0xb0] sm:$0x1]
      %v10943 = vld [vmem:[%s4844 + $0xb4] sm:$0xf]
      %v10944 = vld [vmem:[%s4844 + $0xb8] sm:$0xf]
      %v10945 = vld [vmem:[%s4844 + $0xbc] sm:$0x1]
      %v10947 = vshrl.u32 %v10898, 16
      %v10949 = vrot.slane %v10947, 4
      %v10950 = vshll.u32 %v10898, 16
      %v10952 = vrot.slane %v10950, 5
      %v10953 = vor.u32 %v10949, %v10952
      %v10954 = vrot.slane %v10953, 4
      %v10956 = vshll.u32 %v10899, 16
      %v10958 = vrot.slane %v10956, 5
      %v10959 = vsel %vm1894, %v10954, %v10958
      %v10960 = vshrl.u32 %v10899, 16
      %v10962 = vrot.slane %v10960, 4
      %v10963 = vor.u32 %v10962, %v10958
      %v10964 = vrot.slane %v10963, 4
      %v10966 = vshll.u32 %v10900, 16
      %v10968 = vrot.slane %v10966, 5
      %v10969 = vsel %vm1894, %v10964, %v10968
      %v10971 = vshrl.u32 %v10901, 16
      %v10973 = vrot.slane %v10971, 4
      %v10974 = vshll.u32 %v10901, 16
      %v10976 = vrot.slane %v10974, 5
      %v10977 = vor.u32 %v10973, %v10976
      %v10978 = vrot.slane %v10977, 4
      %v10980 = vshll.u32 %v10902, 16
      %v10982 = vrot.slane %v10980, 5
      %v10983 = vsel %vm1894, %v10978, %v10982
      %v10984 = vshrl.u32 %v10902, 16
      %v10986 = vrot.slane %v10984, 4
      %v10987 = vor.u32 %v10986, %v10982
      %v10988 = vrot.slane %v10987, 4
      %v10990 = vshll.u32 %v10903, 16
      %v10992 = vrot.slane %v10990, 5
      %v10993 = vsel %vm1894, %v10988, %v10992
      %v10995 = vshrl.u32 %v10904, 16
      %v10997 = vrot.slane %v10995, 4
      %v10998 = vshll.u32 %v10904, 16
      %v11000 = vrot.slane %v10998, 5
      %v11001 = vor.u32 %v10997, %v11000
      %v11002 = vrot.slane %v11001, 4
      %v11004 = vshll.u32 %v10905, 16
      %v11006 = vrot.slane %v11004, 5
      %v11007 = vsel %vm1894, %v11002, %v11006
      %v11008 = vshrl.u32 %v10905, 16
      %v11010 = vrot.slane %v11008, 4
      %v11011 = vor.u32 %v11010, %v11006
      %v11012 = vrot.slane %v11011, 4
      %v11014 = vshll.u32 %v10906, 16
      %v11016 = vrot.slane %v11014, 5
      %v11017 = vsel %vm1894, %v11012, %v11016
      %v11019 = vshrl.u32 %v10907, 16
      %v11021 = vrot.slane %v11019, 4
      %v11022 = vshll.u32 %v10907, 16
      %v11024 = vrot.slane %v11022, 5
      %v11025 = vor.u32 %v11021, %v11024
      %v11026 = vrot.slane %v11025, 4
      %v11028 = vshll.u32 %v10908, 16
      %v11030 = vrot.slane %v11028, 5
      %v11031 = vsel %vm1894, %v11026, %v11030
      %v11032 = vshrl.u32 %v10908, 16
      %v11034 = vrot.slane %v11032, 4
      %v11035 = vor.u32 %v11034, %v11030
      %v11036 = vrot.slane %v11035, 4
      %v11038 = vshll.u32 %v10909, 16
      %v11040 = vrot.slane %v11038, 5
      %v11041 = vsel %vm1894, %v11036, %v11040
      %v11043 = vshrl.u32 %v10910, 16
      %v11045 = vrot.slane %v11043, 4
      %v11046 = vshll.u32 %v10910, 16
      %v11048 = vrot.slane %v11046, 5
      %v11049 = vor.u32 %v11045, %v11048
      %v11050 = vrot.slane %v11049, 4
      %v11052 = vshll.u32 %v10911, 16
      %v11054 = vrot.slane %v11052, 5
      %v11055 = vsel %vm1894, %v11050, %v11054
      %v11056 = vshrl.u32 %v10911, 16
      %v11058 = vrot.slane %v11056, 4
      %v11059 = vor.u32 %v11058, %v11054
      %v11060 = vrot.slane %v11059, 4
      %v11062 = vshll.u32 %v10912, 16
      %v11064 = vrot.slane %v11062, 5
      %v11065 = vsel %vm1894, %v11060, %v11064
      %v11067 = vshrl.u32 %v10913, 16
      %v11069 = vrot.slane %v11067, 4
      %v11070 = vshll.u32 %v10913, 16
      %v11072 = vrot.slane %v11070, 5
      %v11073 = vor.u32 %v11069, %v11072
      %v11074 = vrot.slane %v11073, 4
      %v11076 = vshll.u32 %v10914, 16
      %v11078 = vrot.slane %v11076, 5
      %v11079 = vsel %vm1894, %v11074, %v11078
      %v11080 = vshrl.u32 %v10914, 16
      %v11082 = vrot.slane %v11080, 4
      %v11083 = vor.u32 %v11082, %v11078
      %v11084 = vrot.slane %v11083, 4
      %v11086 = vshll.u32 %v10915, 16
      %v11088 = vrot.slane %v11086, 5
      %v11089 = vsel %vm1894, %v11084, %v11088
      %v11091 = vshrl.u32 %v10916, 16
      %v11093 = vrot.slane %v11091, 4
      %v11094 = vshll.u32 %v10916, 16
      %v11096 = vrot.slane %v11094, 5
      %v11097 = vor.u32 %v11093, %v11096
      %v11098 = vrot.slane %v11097, 4
      %v11100 = vshll.u32 %v10917, 16
      %v11102 = vrot.slane %v11100, 5
      %v11103 = vsel %vm1894, %v11098, %v11102
      %v11104 = vshrl.u32 %v10917, 16
      %v11106 = vrot.slane %v11104, 4
      %v11107 = vor.u32 %v11106, %v11102
      %v11108 = vrot.slane %v11107, 4
      %v11110 = vshll.u32 %v10918, 16
      %v11112 = vrot.slane %v11110, 5
      %v11113 = vsel %vm1894, %v11108, %v11112
      %v11115 = vshrl.u32 %v10919, 16
      %v11117 = vrot.slane %v11115, 4
      %v11118 = vshll.u32 %v10919, 16
      %v11120 = vrot.slane %v11118, 5
      %v11121 = vor.u32 %v11117, %v11120
      %v11122 = vrot.slane %v11121, 4
      %v11124 = vshll.u32 %v10920, 16
      %v11126 = vrot.slane %v11124, 5
      %v11127 = vsel %vm1894, %v11122, %v11126
      %v11128 = vshrl.u32 %v10920, 16
      %v11130 = vrot.slane %v11128, 4
      %v11131 = vor.u32 %v11130, %v11126
      %v11132 = vrot.slane %v11131, 4
      %v11134 = vshll.u32 %v10921, 16
      %v11136 = vrot.slane %v11134, 5
      %v11137 = vsel %vm1894, %v11132, %v11136
      %v11139 = vshrl.u32 %v10922, 16
      %v11141 = vrot.slane %v11139, 4
      %v11142 = vshll.u32 %v10922, 16
      %v11144 = vrot.slane %v11142, 5
      %v11145 = vor.u32 %v11141, %v11144
      %v11146 = vrot.slane %v11145, 4
      %v11148 = vshll.u32 %v10923, 16
      %v11150 = vrot.slane %v11148, 5
      %v11151 = vsel %vm1894, %v11146, %v11150
      %v11152 = vshrl.u32 %v10923, 16
      %v11154 = vrot.slane %v11152, 4
      %v11155 = vor.u32 %v11154, %v11150
      %v11156 = vrot.slane %v11155, 4
      %v11158 = vshll.u32 %v10924, 16
      %v11160 = vrot.slane %v11158, 5
      %v11161 = vsel %vm1894, %v11156, %v11160
      %v11163 = vshrl.u32 %v10925, 16
      %v11165 = vrot.slane %v11163, 4
      %v11166 = vshll.u32 %v10925, 16
      %v11168 = vrot.slane %v11166, 5
      %v11169 = vor.u32 %v11165, %v11168
      %v11170 = vrot.slane %v11169, 4
      %v11172 = vshll.u32 %v10926, 16
      %v11174 = vrot.slane %v11172, 5
      %v11175 = vsel %vm1894, %v11170, %v11174
      %v11176 = vshrl.u32 %v10926, 16
      %v11178 = vrot.slane %v11176, 4
      %v11179 = vor.u32 %v11178, %v11174
      %v11180 = vrot.slane %v11179, 4
      %v11182 = vshll.u32 %v10927, 16
      %v11184 = vrot.slane %v11182, 5
      %v11185 = vsel %vm1894, %v11180, %v11184
      %v11187 = vshrl.u32 %v10928, 16
      %v11189 = vrot.slane %v11187, 4
      %v11190 = vshll.u32 %v10928, 16
      %v11192 = vrot.slane %v11190, 5
      %v11193 = vor.u32 %v11189, %v11192
      %v11194 = vrot.slane %v11193, 4
      %v11196 = vshll.u32 %v10929, 16
      %v11198 = vrot.slane %v11196, 5
      %v11199 = vsel %vm1894, %v11194, %v11198
      %v11200 = vshrl.u32 %v10929, 16
      %v11202 = vrot.slane %v11200, 4
      %v11203 = vor.u32 %v11202, %v11198
      %v11204 = vrot.slane %v11203, 4
      %v11206 = vshll.u32 %v10930, 16
      %v11208 = vrot.slane %v11206, 5
      %v11209 = vsel %vm1894, %v11204, %v11208
      %v11211 = vshrl.u32 %v10931, 16
      %v11213 = vrot.slane %v11211, 4
      %v11214 = vshll.u32 %v10931, 16
      %v11216 = vrot.slane %v11214, 5
      %v11217 = vor.u32 %v11213, %v11216
      %v11218 = vrot.slane %v11217, 4
      %v11220 = vshll.u32 %v10932, 16
      %v11222 = vrot.slane %v11220, 5
      %v11223 = vsel %vm1894, %v11218, %v11222
      %v11224 = vshrl.u32 %v10932, 16
      %v11226 = vrot.slane %v11224, 4
      %v11227 = vor.u32 %v11226, %v11222
      %v11228 = vrot.slane %v11227, 4
      %v11230 = vshll.u32 %v10933, 16
      %v11232 = vrot.slane %v11230, 5
      %v11233 = vsel %vm1894, %v11228, %v11232
      %v11235 = vshrl.u32 %v10934, 16
      %v11237 = vrot.slane %v11235, 4
      %v11238 = vshll.u32 %v10934, 16
      %v11240 = vrot.slane %v11238, 5
      %v11241 = vor.u32 %v11237, %v11240
      %v11242 = vrot.slane %v11241, 4
      %v11244 = vshll.u32 %v10935, 16
      %v11246 = vrot.slane %v11244, 5
      %v11247 = vsel %vm1894, %v11242, %v11246
      %v11248 = vshrl.u32 %v10935, 16
      %v11250 = vrot.slane %v11248, 4
      %v11251 = vor.u32 %v11250, %v11246
      %v11252 = vrot.slane %v11251, 4
      %v11254 = vshll.u32 %v10936, 16
      %v11256 = vrot.slane %v11254, 5
      %v11257 = vsel %vm1894, %v11252, %v11256
      %v11259 = vshrl.u32 %v10937, 16
      %v11261 = vrot.slane %v11259, 4
      %v11262 = vshll.u32 %v10937, 16
      %v11264 = vrot.slane %v11262, 5
      %v11265 = vor.u32 %v11261, %v11264
      %v11266 = vrot.slane %v11265, 4
      %v11268 = vshll.u32 %v10938, 16
      %v11270 = vrot.slane %v11268, 5
      %v11271 = vsel %vm1894, %v11266, %v11270
      %v11272 = vshrl.u32 %v10938, 16
      %v11274 = vrot.slane %v11272, 4
      %v11275 = vor.u32 %v11274, %v11270
      %v11276 = vrot.slane %v11275, 4
      %v11278 = vshll.u32 %v10939, 16
      %v11280 = vrot.slane %v11278, 5
      %v11281 = vsel %vm1894, %v11276, %v11280
      %v11283 = vshrl.u32 %v10940, 16
      %v11285 = vrot.slane %v11283, 4
      %v11286 = vshll.u32 %v10940, 16
      %v11288 = vrot.slane %v11286, 5
      %v11289 = vor.u32 %v11285, %v11288
      %v11290 = vrot.slane %v11289, 4
      %v11292 = vshll.u32 %v10941, 16
      %v11294 = vrot.slane %v11292, 5
      %v11295 = vsel %vm1894, %v11290, %v11294
      %v11296 = vshrl.u32 %v10941, 16
      %v11298 = vrot.slane %v11296, 4
      %v11299 = vor.u32 %v11298, %v11294
      %v11300 = vrot.slane %v11299, 4
      %v11302 = vshll.u32 %v10942, 16
      %v11304 = vrot.slane %v11302, 5
      %v11305 = vsel %vm1894, %v11300, %v11304
      %v11307 = vshrl.u32 %v10943, 16
      %v11309 = vrot.slane %v11307, 4
      %v11310 = vshll.u32 %v10943, 16
      %v11312 = vrot.slane %v11310, 5
      %v11313 = vor.u32 %v11309, %v11312
      %v11314 = vrot.slane %v11313, 4
      %v11316 = vshll.u32 %v10944, 16
      %v11318 = vrot.slane %v11316, 5
      %v11319 = vsel %vm1894, %v11314, %v11318
      %v11320 = vshrl.u32 %v10944, 16
      %v11322 = vrot.slane %v11320, 4
      %v11323 = vor.u32 %v11322, %v11318
      %v11324 = vrot.slane %v11323, 4
      %v11326 = vshll.u32 %v10945, 16
      %v11328 = vrot.slane %v11326, 5
      %v11329 = vsel %vm1894, %v11324, %v11328
      %s11330 = scalar_lea.vmem %s8, 14
      %v11331 = vld [vmem:[%s11330] sm:$0x3]
      %v11332 = vunpack.c.l.b16 %v10959
      %v11333 = vunpack.c.l.b16 %v10969
      %v11334 = vunpack.c.l.b16 %v10983
      %v11335 = vunpack.c.l.b16 %v10993
      %v11336 = vunpack.c.l.b16 %v11007
      %v11337 = vunpack.c.l.b16 %v11017
      %v11338 = vunpack.c.l.b16 %v11031
      %v11339 = vunpack.c.l.b16 %v11041
      %v11340 = vunpack.c.l.b16 %v11055
      %v11341 = vunpack.c.l.b16 %v11065
      %v11342 = vunpack.c.l.b16 %v11079
      %v11343 = vunpack.c.l.b16 %v11089
      %v11344 = vunpack.c.l.b16 %v11103
      %v11345 = vunpack.c.l.b16 %v11113
      %v11346 = vunpack.c.l.b16 %v11127
      %v11347 = vunpack.c.l.b16 %v11137
      %v11348 = vunpack.c.l.b16 %v11151
      %v11349 = vunpack.c.l.b16 %v11161
      %v11350 = vunpack.c.l.b16 %v11175
      %v11351 = vunpack.c.l.b16 %v11185
      %v11352 = vunpack.c.l.b16 %v11199
      %v11353 = vunpack.c.l.b16 %v11209
      %v11354 = vunpack.c.l.b16 %v11223
      %v11355 = vunpack.c.l.b16 %v11233
      %v11356 = vunpack.c.l.b16 %v11247
      %v11357 = vunpack.c.l.b16 %v11257
      %v11358 = vunpack.c.l.b16 %v11271
      %v11359 = vunpack.c.l.b16 %v11281
      %v11360 = vunpack.c.l.b16 %v11295
      %v11361 = vunpack.c.l.b16 %v11305
      %v11362 = vunpack.c.l.b16 %v11319
      %v11363 = vunpack.c.l.b16 %v11329
      %v11364 = vpack.c.b16 %v11333, %v11332
      %v11365 = vpack.c.b16 %v11335, %v11334
      %v11366 = vpack.c.b16 %v11337, %v11336
      %v11367 = vpack.c.b16 %v11339, %v11338
      %v11368 = vpack.c.b16 %v11341, %v11340
      %v11369 = vpack.c.b16 %v11343, %v11342
      %v11370 = vpack.c.b16 %v11345, %v11344
      %v11371 = vpack.c.b16 %v11347, %v11346
      %v11372 = vpack.c.b16 %v11349, %v11348
      %v11373 = vpack.c.b16 %v11351, %v11350
      %v11374 = vpack.c.b16 %v11353, %v11352
      %v11375 = vpack.c.b16 %v11355, %v11354
      %v11376 = vpack.c.b16 %v11357, %v11356
      %v11377 = vpack.c.b16 %v11359, %v11358
      %v11378 = vpack.c.b16 %v11361, %v11360
      %v11379 = vpack.c.b16 %v11363, %v11362
      %v11381 = vsel %vm721, %v11364, 0
      %v11384 = vsel %vm721, %v11365, 0
      %v11387 = vsel %vm721, %v11366, 0
      %v11390 = vsel %vm721, %v11367, 0
      %v11393 = vsel %vm721, %v11368, 0
      %v11396 = vsel %vm721, %v11369, 0
      %v11399 = vsel %vm721, %v11370, 0
      %v11402 = vsel %vm721, %v11371, 0
      %v11405 = vsel %vm721, %v11372, 0
      %v11408 = vsel %vm721, %v11373, 0
      %v11411 = vsel %vm721, %v11374, 0
      %v11414 = vsel %vm721, %v11375, 0
      %v11417 = vsel %vm721, %v11376, 0
      %v11420 = vsel %vm721, %v11377, 0
      %v11423 = vsel %vm721, %v11378, 0
      %v11426 = vsel %vm721, %v11379, 0
      %v11429 = vsel %vm1052, %v11331, 0
      %11431 = vmatprep.subr.bf16.mxu0 0
      %11432 = vmatpush1.bf16.msra.mxu0 %v11429
      %11433 = vmatprep.subr.bf16.mxu0 0
      %11434 = vmatpush1.bf16.msra.mxu0 0
      %11435 = vmatprep.subr.bf16.mxu0 0
      %11436 = vmatpush1.bf16.msra.mxu0 0
      %11437 = vmatprep.subr.bf16.mxu0 0
      %11438 = vmatpush1.bf16.msra.mxu0 0
      %11439 = vmatprep.subr.bf16.mxu0 0
      %11440 = vmatpush1.bf16.msra.mxu0 0
      %11441 = vmatprep.subr.bf16.mxu0 0
      %11442 = vmatpush1.bf16.msra.mxu0 0
      %11443 = vmatprep.subr.bf16.mxu0 0
      %11444 = vmatpush1.bf16.msra.mxu0 0
      %11445 = vmatprep.subr.bf16.mxu0 0
      %11446 = vmatpush1.bf16.msra.mxu0 0
      %11447 = vmatprep.subr.bf16.mxu0 0
      %11448 = vmatpush1.bf16.msra.mxu0 0
      %11449 = vmatprep.subr.bf16.mxu0 0
      %11450 = vmatpush1.bf16.msra.mxu0 0
      %11451 = vmatprep.subr.bf16.mxu0 0
      %11452 = vmatpush1.bf16.msra.mxu0 0
      %11453 = vmatprep.subr.bf16.mxu0 0
      %11454 = vmatpush1.bf16.msra.mxu0 0
      %11455 = vmatprep.subr.bf16.mxu0 0
      %11456 = vmatpush1.bf16.msra.mxu0 0
      %11457 = vmatprep.subr.bf16.mxu0 0
      %11458 = vmatpush1.bf16.msra.mxu0 0
      %11459 = vmatprep.subr.bf16.mxu0 0
      %11460 = vmatpush1.bf16.msra.mxu0 0
      %11461 = vmatprep.subr.bf16.mxu0 0
      %11462 = vmatpush1.bf16.msra.mxu0 0
      %11463 = vmatprep.mubr.bf16.mxu0 0
      %11464 = vmatmul.mubr.bf16.gmra.mrb[0].mxu0 %v11381
      %v11465 = vpop.f32.mrb[0].mxu0
      %v11466 = vadd.f32 0.0, %v11465
      %v11467 = vpop.f32.mrb[0].mxu0
      %v11468 = vpop.f32.mrb[0].mxu0
      %v11469 = vadd.f32 0.0, %v11468
      %v11470 = vpop.f32.mrb[0].mxu0
      %11471 = vmatprep.mubr.bf16.mxu0 0
      %11472 = vmatmul.mubr.bf16.gmra.mrb[0].mxu0 %v11384
      %v11473 = vpop.f32.mrb[0].mxu0
      %v11474 = vadd.f32 0.0, %v11473
      %v11475 = vpop.f32.mrb[0].mxu0
      %v11476 = vpop.f32.mrb[0].mxu0
      %v11477 = vadd.f32 0.0, %v11476
      %v11478 = vpop.f32.mrb[0].mxu0
      %11479 = vmatprep.mubr.bf16.mxu0 0
      %11480 = vmatmul.mubr.bf16.gmra.mrb[0].mxu0 %v11387
      %v11481 = vpop.f32.mrb[0].mxu0
      %v11482 = vadd.f32 0.0, %v11481
      %v11483 = vpop.f32.mrb[0].mxu0
      %v11484 = vpop.f32.mrb[0].mxu0
      %v11485 = vadd.f32 0.0, %v11484
      %v11486 = vpop.f32.mrb[0].mxu0
      %11487 = vmatprep.mubr.bf16.mxu0 0
      %11488 = vmatmul.mubr.bf16.gmra.mrb[0].mxu0 %v11390
      %v11489 = vpop.f32.mrb[0].mxu0
      %v11490 = vadd.f32 0.0, %v11489
      %v11491 = vpop.f32.mrb[0].mxu0
      %v11492 = vpop.f32.mrb[0].mxu0
      %v11493 = vadd.f32 0.0, %v11492
      %v11494 = vpop.f32.mrb[0].mxu0
      %11495 = vmatprep.mubr.bf16.mxu0 0
      %11496 = vmatmul.mubr.bf16.gmra.mrb[0].mxu0 %v11393
      %v11497 = vpop.f32.mrb[0].mxu0
      %v11498 = vadd.f32 0.0, %v11497
      %v11499 = vpop.f32.mrb[0].mxu0
      %v11500 = vpop.f32.mrb[0].mxu0
      %v11501 = vadd.f32 0.0, %v11500
      %v11502 = vpop.f32.mrb[0].mxu0
      %11503 = vmatprep.mubr.bf16.mxu0 0
      %11504 = vmatmul.mubr.bf16.gmra.mrb[0].mxu0 %v11396
      %v11505 = vpop.f32.mrb[0].mxu0
      %v11506 = vadd.f32 0.0, %v11505
      %v11507 = vpop.f32.mrb[0].mxu0
      %v11508 = vpop.f32.mrb[0].mxu0
      %v11509 = vadd.f32 0.0, %v11508
      %v11510 = vpop.f32.mrb[0].mxu0
      %11511 = vmatprep.mubr.bf16.mxu0 0
      %11512 = vmatmul.mubr.bf16.gmra.mrb[0].mxu0 %v11399
      %v11513 = vpop.f32.mrb[0].mxu0
      %v11514 = vadd.f32 0.0, %v11513
      %v11515 = vpop.f32.mrb[0].mxu0
      %v11516 = vpop.f32.mrb[0].mxu0
      %v11517 = vadd.f32 0.0, %v11516
      %v11518 = vpop.f32.mrb[0].mxu0
      %11519 = vmatprep.mubr.bf16.mxu0 0
      %11520 = vmatmul.mubr.bf16.gmra.mrb[0].mxu0 %v11402
      %v11521 = vpop.f32.mrb[0].mxu0
      %v11522 = vadd.f32 0.0, %v11521
      %v11523 = vpop.f32.mrb[0].mxu0
      %v11524 = vpop.f32.mrb[0].mxu0
      %v11525 = vadd.f32 0.0, %v11524
      %v11526 = vpop.f32.mrb[0].mxu0
      %11527 = vmatprep.mubr.bf16.mxu0 0
      %11528 = vmatmul.mubr.bf16.gmra.mrb[0].mxu0 %v11405
      %v11529 = vpop.f32.mrb[0].mxu0
      %v11530 = vadd.f32 0.0, %v11529
      %v11531 = vpop.f32.mrb[0].mxu0
      %v11532 = vpop.f32.mrb[0].mxu0
      %v11533 = vadd.f32 0.0, %v11532
      %v11534 = vpop.f32.mrb[0].mxu0
      %11535 = vmatprep.mubr.bf16.mxu0 0
      %11536 = vmatmul.mubr.bf16.gmra.mrb[0].mxu0 %v11408
      %v11537 = vpop.f32.mrb[0].mxu0
      %v11538 = vadd.f32 0.0, %v11537
      %v11539 = vpop.f32.mrb[0].mxu0
      %v11540 = vpop.f32.mrb[0].mxu0
      %v11541 = vadd.f32 0.0, %v11540
      %v11542 = vpop.f32.mrb[0].mxu0
      %11543 = vmatprep.mubr.bf16.mxu0 0
      %11544 = vmatmul.mubr.bf16.gmra.mrb[0].mxu0 %v11411
      %v11545 = vpop.f32.mrb[0].mxu0
      %v11546 = vadd.f32 0.0, %v11545
      %v11547 = vpop.f32.mrb[0].mxu0
      %v11548 = vpop.f32.mrb[0].mxu0
      %v11549 = vadd.f32 0.0, %v11548
      %v11550 = vpop.f32.mrb[0].mxu0
      %11551 = vmatprep.mubr.bf16.mxu0 0
      %11552 = vmatmul.mubr.bf16.gmra.mrb[0].mxu0 %v11414
      %v11553 = vpop.f32.mrb[0].mxu0
      %v11554 = vadd.f32 0.0, %v11553
      %v11555 = vpop.f32.mrb[0].mxu0
      %v11556 = vpop.f32.mrb[0].mxu0
      %v11557 = vadd.f32 0.0, %v11556
      %v11558 = vpop.f32.mrb[0].mxu0
      %11559 = vmatprep.mubr.bf16.mxu0 0
      %11560 = vmatmul.mubr.bf16.gmra.mrb[0].mxu0 %v11417
      %v11561 = vpop.f32.mrb[0].mxu0
      %v11562 = vadd.f32 0.0, %v11561
      %v11563 = vpop.f32.mrb[0].mxu0
      %v11564 = vpop.f32.mrb[0].mxu0
      %v11565 = vadd.f32 0.0, %v11564
      %v11566 = vpop.f32.mrb[0].mxu0
      %11567 = vmatprep.mubr.bf16.mxu0 0
      %11568 = vmatmul.mubr.bf16.gmra.mrb[0].mxu0 %v11420
      %v11569 = vpop.f32.mrb[0].mxu0
      %v11570 = vadd.f32 0.0, %v11569
      %v11571 = vpop.f32.mrb[0].mxu0
      %v11572 = vpop.f32.mrb[0].mxu0
      %v11573 = vadd.f32 0.0, %v11572
      %v11574 = vpop.f32.mrb[0].mxu0
      %11575 = vmatprep.mubr.bf16.mxu0 0
      %11576 = vmatmul.mubr.bf16.gmra.mrb[0].mxu0 %v11423
      %v11577 = vpop.f32.mrb[0].mxu0
      %v11578 = vadd.f32 0.0, %v11577
      %v11579 = vpop.f32.mrb[0].mxu0
      %v11580 = vpop.f32.mrb[0].mxu0
      %v11581 = vadd.f32 0.0, %v11580
      %v11582 = vpop.f32.mrb[0].mxu0
      %11583 = vmatprep.mubr.bf16.mxu0 0
      %11584 = vmatmul.mubr.bf16.gmra.mrb[0].mxu0 %v11426
      %v11585 = vpop.f32.mrb[0].mxu0
      %v11586 = vadd.f32 0.0, %v11585
      %v11587 = vpop.f32.mrb[0].mxu0
      %v11588 = vpop.f32.mrb[0].mxu0
      %v11589 = vadd.f32 0.0, %v11588
      %v11590 = vpop.f32.mrb[0].mxu0
      %11591 = vdwg.mxu0
      %v11592 = vadd.f32 %v10866, %v11466
      %v11593 = vadd.f32 %v10867, %v11469
      %v11594 = vadd.f32 %v10868, %v11474
      %v11595 = vadd.f32 %v10869, %v11477
      %v11596 = vadd.f32 %v10870, %v11482
      %v11597 = vadd.f32 %v10871, %v11485
      %v11598 = vadd.f32 %v10872, %v11490
      %v11599 = vadd.f32 %v10873, %v11493
      %v11600 = vadd.f32 %v10874, %v11498
      %v11601 = vadd.f32 %v10875, %v11501
      %v11602 = vadd.f32 %v10876, %v11506
      %v11603 = vadd.f32 %v10877, %v11509
      %v11604 = vadd.f32 %v10878, %v11514
      %v11605 = vadd.f32 %v10879, %v11517
      %v11606 = vadd.f32 %v10880, %v11522
      %v11607 = vadd.f32 %v10881, %v11525
      %v11608 = vadd.f32 %v10882, %v11530
      %v11609 = vadd.f32 %v10883, %v11533
      %v11610 = vadd.f32 %v10884, %v11538
      %v11611 = vadd.f32 %v10885, %v11541
      %v11612 = vadd.f32 %v10886, %v11546
      %v11613 = vadd.f32 %v10887, %v11549
      %v11614 = vadd.f32 %v10888, %v11554
      %v11615 = vadd.f32 %v10889, %v11557
      %v11616 = vadd.f32 %v10890, %v11562
      %v11617 = vadd.f32 %v10891, %v11565
      %v11618 = vadd.f32 %v10892, %v11570
      %v11619 = vadd.f32 %v10893, %v11573
      %v11620 = vadd.f32 %v10894, %v11578
      %v11621 = vadd.f32 %v10895, %v11581
      %v11622 = vadd.f32 %v10896, %v11586
      %v11623 = vadd.f32 %v10897, %v11589
      %v11624 = vld [vmem:[%s4844] sm:$0xe]
      %v11625 = vld [vmem:[%s4844 + $0xc] sm:$0xe]
      %v11626 = vld [vmem:[%s4844 + $0x18] sm:$0xe]
      %v11627 = vld [vmem:[%s4844 + $0x24] sm:$0xe]
      %v11628 = vld [vmem:[%s4844 + $0x30] sm:$0xe]
      %v11629 = vld [vmem:[%s4844 + $0x3c] sm:$0xe]
      %v11630 = vld [vmem:[%s4844 + $0x48] sm:$0xe]
      %v11631 = vld [vmem:[%s4844 + $0x54] sm:$0xe]
      %v11632 = vld [vmem:[%s4844 + $0x60] sm:$0xe]
      %v11633 = vld [vmem:[%s4844 + $0x6c] sm:$0xe]
      %v11634 = vld [vmem:[%s4844 + $0x78] sm:$0xe]
      %v11635 = vld [vmem:[%s4844 + $0x84] sm:$0xe]
      %v11636 = vld [vmem:[%s4844 + $0x90] sm:$0xe]
      %v11637 = vld [vmem:[%s4844 + $0x9c] sm:$0xe]
      %v11638 = vld [vmem:[%s4844 + $0xa8] sm:$0xe]
      %v11639 = vld [vmem:[%s4844 + $0xb4] sm:$0xe]
      %v11688 = vrot.slane %v11624, 5
      %v11689 = vrot.slane %v11688, 4
      %v11690 = vrot.slane %v10899, 5
      %v11691 = vsel %vm2883, %v11689, %v11690
      %v11692 = vrot.slane %v11690, 4
      %v11693 = vrot.slane %v10900, 5
      %v11694 = vsel %vm2883, %v11692, %v11693
      %v11695 = vrot.slane %v11625, 5
      %v11696 = vrot.slane %v11695, 4
      %v11697 = vrot.slane %v10902, 5
      %v11698 = vsel %vm2883, %v11696, %v11697
      %v11699 = vrot.slane %v11697, 4
      %v11700 = vrot.slane %v10903, 5
      %v11701 = vsel %vm2883, %v11699, %v11700
      %v11702 = vrot.slane %v11626, 5
      %v11703 = vrot.slane %v11702, 4
      %v11704 = vrot.slane %v10905, 5
      %v11705 = vsel %vm2883, %v11703, %v11704
      %v11706 = vrot.slane %v11704, 4
      %v11707 = vrot.slane %v10906, 5
      %v11708 = vsel %vm2883, %v11706, %v11707
      %v11709 = vrot.slane %v11627, 5
      %v11710 = vrot.slane %v11709, 4
      %v11711 = vrot.slane %v10908, 5
      %v11712 = vsel %vm2883, %v11710, %v11711
      %v11713 = vrot.slane %v11711, 4
      %v11714 = vrot.slane %v10909, 5
      %v11715 = vsel %vm2883, %v11713, %v11714
      %v11716 = vrot.slane %v11628, 5
      %v11717 = vrot.slane %v11716, 4
      %v11718 = vrot.slane %v10911, 5
      %v11719 = vsel %vm2883, %v11717, %v11718
      %v11720 = vrot.slane %v11718, 4
      %v11721 = vrot.slane %v10912, 5
      %v11722 = vsel %vm2883, %v11720, %v11721
      %v11723 = vrot.slane %v11629, 5
      %v11724 = vrot.slane %v11723, 4
      %v11725 = vrot.slane %v10914, 5
      %v11726 = vsel %vm2883, %v11724, %v11725
      %v11727 = vrot.slane %v11725, 4
      %v11728 = vrot.slane %v10915, 5
      %v11729 = vsel %vm2883, %v11727, %v11728
      %v11730 = vrot.slane %v11630, 5
      %v11731 = vrot.slane %v11730, 4
      %v11732 = vrot.slane %v10917, 5
      %v11733 = vsel %vm2883, %v11731, %v11732
      %v11734 = vrot.slane %v11732, 4
      %v11735 = vrot.slane %v10918, 5
      %v11736 = vsel %vm2883, %v11734, %v11735
      %v11737 = vrot.slane %v11631, 5
      %v11738 = vrot.slane %v11737, 4
      %v11739 = vrot.slane %v10920, 5
      %v11740 = vsel %vm2883, %v11738, %v11739
      %v11741 = vrot.slane %v11739, 4
      %v11742 = vrot.slane %v10921, 5
      %v11743 = vsel %vm2883, %v11741, %v11742
      %v11744 = vrot.slane %v11632, 5
      %v11745 = vrot.slane %v11744, 4
      %v11746 = vrot.slane %v10923, 5
      %v11747 = vsel %vm2883, %v11745, %v11746
      %v11748 = vrot.slane %v11746, 4
      %v11749 = vrot.slane %v10924, 5
      %v11750 = vsel %vm2883, %v11748, %v11749
      %v11751 = vrot.slane %v11633, 5
      %v11752 = vrot.slane %v11751, 4
      %v11753 = vrot.slane %v10926, 5
      %v11754 = vsel %vm2883, %v11752, %v11753
      %v11755 = vrot.slane %v11753, 4
      %v11756 = vrot.slane %v10927, 5
      %v11757 = vsel %vm2883, %v11755, %v11756
      %v11758 = vrot.slane %v11634, 5
      %v11759 = vrot.slane %v11758, 4
      %v11760 = vrot.slane %v10929, 5
      %v11761 = vsel %vm2883, %v11759, %v11760
      %v11762 = vrot.slane %v11760, 4
      %v11763 = vrot.slane %v10930, 5
      %v11764 = vsel %vm2883, %v11762, %v11763
      %v11765 = vrot.slane %v11635, 5
      %v11766 = vrot.slane %v11765, 4
      %v11767 = vrot.slane %v10932, 5
      %v11768 = vsel %vm2883, %v11766, %v11767
      %v11769 = vrot.slane %v11767, 4
      %v11770 = vrot.slane %v10933, 5
      %v11771 = vsel %vm2883, %v11769, %v11770
      %v11772 = vrot.slane %v11636, 5
      %v11773 = vrot.slane %v11772, 4
      %v11774 = vrot.slane %v10935, 5
      %v11775 = vsel %vm2883, %v11773, %v11774
      %v11776 = vrot.slane %v11774, 4
      %v11777 = vrot.slane %v10936, 5
      %v11778 = vsel %vm2883, %v11776, %v11777
      %v11779 = vrot.slane %v11637, 5
      %v11780 = vrot.slane %v11779, 4
      %v11781 = vrot.slane %v10938, 5
      %v11782 = vsel %vm2883, %v11780, %v11781
      %v11783 = vrot.slane %v11781, 4
      %v11784 = vrot.slane %v10939, 5
      %v11785 = vsel %vm2883, %v11783, %v11784
      %v11786 = vrot.slane %v11638, 5
      %v11787 = vrot.slane %v11786, 4
      %v11788 = vrot.slane %v10941, 5
      %v11789 = vsel %vm2883, %v11787, %v11788
      %v11790 = vrot.slane %v11788, 4
      %v11791 = vrot.slane %v10942, 5
      %v11792 = vsel %vm2883, %v11790, %v11791
      %v11793 = vrot.slane %v11639, 5
      %v11794 = vrot.slane %v11793, 4
      %v11795 = vrot.slane %v10944, 5
      %v11796 = vsel %vm2883, %v11794, %v11795
      %v11797 = vrot.slane %v11795, 4
      %v11798 = vrot.slane %v10945, 5
      %v11799 = vsel %vm2883, %v11797, %v11798
      %s11800 = scalar_lea.vmem %s8, 16
      %v11801 = vld [vmem:[%s11800] sm:$0x3]
      %v11802 = vunpack.c.l.b16 %v11691
      %v11803 = vunpack.c.l.b16 %v11694
      %v11804 = vunpack.c.l.b16 %v11698
      %v11805 = vunpack.c.l.b16 %v11701
      %v11806 = vunpack.c.l.b16 %v11705
      %v11807 = vunpack.c.l.b16 %v11708
      %v11808 = vunpack.c.l.b16 %v11712
      %v11809 = vunpack.c.l.b16 %v11715
      %v11810 = vunpack.c.l.b16 %v11719
      %v11811 = vunpack.c.l.b16 %v11722
      %v11812 = vunpack.c.l.b16 %v11726
      %v11813 = vunpack.c.l.b16 %v11729
      %v11814 = vunpack.c.l.b16 %v11733
      %v11815 = vunpack.c.l.b16 %v11736
      %v11816 = vunpack.c.l.b16 %v11740
      %v11817 = vunpack.c.l.b16 %v11743
      %v11818 = vunpack.c.l.b16 %v11747
      %v11819 = vunpack.c.l.b16 %v11750
      %v11820 = vunpack.c.l.b16 %v11754
      %v11821 = vunpack.c.l.b16 %v11757
      %v11822 = vunpack.c.l.b16 %v11761
      %v11823 = vunpack.c.l.b16 %v11764
      %v11824 = vunpack.c.l.b16 %v11768
      %v11825 = vunpack.c.l.b16 %v11771
      %v11826 = vunpack.c.l.b16 %v11775
      %v11827 = vunpack.c.l.b16 %v11778
      %v11828 = vunpack.c.l.b16 %v11782
      %v11829 = vunpack.c.l.b16 %v11785
      %v11830 = vunpack.c.l.b16 %v11789
      %v11831 = vunpack.c.l.b16 %v11792
      %v11832 = vunpack.c.l.b16 %v11796
      %v11833 = vunpack.c.l.b16 %v11799
      %v11834 = vpack.c.b16 %v11803, %v11802
      %v11835 = vpack.c.b16 %v11805, %v11804
      %v11836 = vpack.c.b16 %v11807, %v11806
      %v11837 = vpack.c.b16 %v11809, %v11808
      %v11838 = vpack.c.b16 %v11811, %v11810
      %v11839 = vpack.c.b16 %v11813, %v11812
      %v11840 = vpack.c.b16 %v11815, %v11814
      %v11841 = vpack.c.b16 %v11817, %v11816
      %v11842 = vpack.c.b16 %v11819, %v11818
      %v11843 = vpack.c.b16 %v11821, %v11820
      %v11844 = vpack.c.b16 %v11823, %v11822
      %v11845 = vpack.c.b16 %v11825, %v11824
      %v11846 = vpack.c.b16 %v11827, %v11826
      %v11847 = vpack.c.b16 %v11829, %v11828
      %v11848 = vpack.c.b16 %v11831, %v11830
      %v11849 = vpack.c.b16 %v11833, %v11832
      %v11851 = vsel %vm721, %v11834, 0
      %v11854 = vsel %vm721, %v11835, 0
      %v11857 = vsel %vm721, %v11836, 0
      %v11860 = vsel %vm721, %v11837, 0
      %v11863 = vsel %vm721, %v11838, 0
      %v11866 = vsel %vm721, %v11839, 0
      %v11869 = vsel %vm721, %v11840, 0
      %v11872 = vsel %vm721, %v11841, 0
      %v11875 = vsel %vm721, %v11842, 0
      %v11878 = vsel %vm721, %v11843, 0
      %v11881 = vsel %vm721, %v11844, 0
      %v11884 = vsel %vm721, %v11845, 0
      %v11887 = vsel %vm721, %v11846, 0
      %v11890 = vsel %vm721, %v11847, 0
      %v11893 = vsel %vm721, %v11848, 0
      %v11896 = vsel %vm721, %v11849, 0
      %v11899 = vsel %vm1052, %v11801, 0
      %11901 = vmatprep.subr.bf16.mxu0 0
      %11902 = vmatpush1.bf16.msra.mxu0 %v11899
      %11903 = vmatprep.subr.bf16.mxu0 0
      %11904 = vmatpush1.bf16.msra.mxu0 0
      %11905 = vmatprep.subr.bf16.mxu0 0
      %11906 = vmatpush1.bf16.msra.mxu0 0
      %11907 = vmatprep.subr.bf16.mxu0 0
      %11908 = vmatpush1.bf16.msra.mxu0 0
      %11909 = vmatprep.subr.bf16.mxu0 0
      %11910 = vmatpush1.bf16.msra.mxu0 0
      %11911 = vmatprep.subr.bf16.mxu0 0
      %11912 = vmatpush1.bf16.msra.mxu0 0
      %11913 = vmatprep.subr.bf16.mxu0 0
      %11914 = vmatpush1.bf16.msra.mxu0 0
      %11915 = vmatprep.subr.bf16.mxu0 0
      %11916 = vmatpush1.bf16.msra.mxu0 0
      %11917 = vmatprep.subr.bf16.mxu0 0
      %11918 = vmatpush1.bf16.msra.mxu0 0
      %11919 = vmatprep.subr.bf16.mxu0 0
      %11920 = vmatpush1.bf16.msra.mxu0 0
      %11921 = vmatprep.subr.bf16.mxu0 0
      %11922 = vmatpush1.bf16.msra.mxu0 0
      %11923 = vmatprep.subr.bf16.mxu0 0
      %11924 = vmatpush1.bf16.msra.mxu0 0
      %11925 = vmatprep.subr.bf16.mxu0 0
      %11926 = vmatpush1.bf16.msra.mxu0 0
      %11927 = vmatprep.subr.bf16.mxu0 0
      %11928 = vmatpush1.bf16.msra.mxu0 0
      %11929 = vmatprep.subr.bf16.mxu0 0
      %11930 = vmatpush1.bf16.msra.mxu0 0
      %11931 = vmatprep.subr.bf16.mxu0 0
      %11932 = vmatpush1.bf16.msra.mxu0 0
      %11933 = vmatprep.mubr.bf16.mxu0 0
      %11934 = vmatmul.mubr.bf16.gmra.mrb[0].mxu0 %v11851
      %v11935 = vpop.f32.mrb[0].mxu0
      %v11936 = vadd.f32 0.0, %v11935
      %v11937 = vpop.f32.mrb[0].mxu0
      %v11938 = vpop.f32.mrb[0].mxu0
      %v11939 = vadd.f32 0.0, %v11938
      %v11940 = vpop.f32.mrb[0].mxu0
      %11941 = vmatprep.mubr.bf16.mxu0 0
      %11942 = vmatmul.mubr.bf16.gmra.mrb[0].mxu0 %v11854
      %v11943 = vpop.f32.mrb[0].mxu0
      %v11944 = vadd.f32 0.0, %v11943
      %v11945 = vpop.f32.mrb[0].mxu0
      %v11946 = vpop.f32.mrb[0].mxu0
      %v11947 = vadd.f32 0.0, %v11946
      %v11948 = vpop.f32.mrb[0].mxu0
      %11949 = vmatprep.mubr.bf16.mxu0 0
      %11950 = vmatmul.mubr.bf16.gmra.mrb[0].mxu0 %v11857
      %v11951 = vpop.f32.mrb[0].mxu0
      %v11952 = vadd.f32 0.0, %v11951
      %v11953 = vpop.f32.mrb[0].mxu0
      %v11954 = vpop.f32.mrb[0].mxu0
      %v11955 = vadd.f32 0.0, %v11954
      %v11956 = vpop.f32.mrb[0].mxu0
      %11957 = vmatprep.mubr.bf16.mxu0 0
      %11958 = vmatmul.mubr.bf16.gmra.mrb[0].mxu0 %v11860
      %v11959 = vpop.f32.mrb[0].mxu0
      %v11960 = vadd.f32 0.0, %v11959
      %v11961 = vpop.f32.mrb[0].mxu0
      %v11962 = vpop.f32.mrb[0].mxu0
      %v11963 = vadd.f32 0.0, %v11962
      %v11964 = vpop.f32.mrb[0].mxu0
      %11965 = vmatprep.mubr.bf16.mxu0 0
      %11966 = vmatmul.mubr.bf16.gmra.mrb[0].mxu0 %v11863
      %v11967 = vpop.f32.mrb[0].mxu0
      %v11968 = vadd.f32 0.0, %v11967
      %v11969 = vpop.f32.mrb[0].mxu0
      %v11970 = vpop.f32.mrb[0].mxu0
      %v11971 = vadd.f32 0.0, %v11970
      %v11972 = vpop.f32.mrb[0].mxu0
      %11973 = vmatprep.mubr.bf16.mxu0 0
      %11974 = vmatmul.mubr.bf16.gmra.mrb[0].mxu0 %v11866
      %v11975 = vpop.f32.mrb[0].mxu0
      %v11976 = vadd.f32 0.0, %v11975
      %v11977 = vpop.f32.mrb[0].mxu0
      %v11978 = vpop.f32.mrb[0].mxu0
      %v11979 = vadd.f32 0.0, %v11978
      %v11980 = vpop.f32.mrb[0].mxu0
      %11981 = vmatprep.mubr.bf16.mxu0 0
      %11982 = vmatmul.mubr.bf16.gmra.mrb[0].mxu0 %v11869
      %v11983 = vpop.f32.mrb[0].mxu0
      %v11984 = vadd.f32 0.0, %v11983
      %v11985 = vpop.f32.mrb[0].mxu0
      %v11986 = vpop.f32.mrb[0].mxu0
      %v11987 = vadd.f32 0.0, %v11986
      %v11988 = vpop.f32.mrb[0].mxu0
      %11989 = vmatprep.mubr.bf16.mxu0 0
      %11990 = vmatmul.mubr.bf16.gmra.mrb[0].mxu0 %v11872
      %v11991 = vpop.f32.mrb[0].mxu0
      %v11992 = vadd.f32 0.0, %v11991
      %v11993 = vpop.f32.mrb[0].mxu0
      %v11994 = vpop.f32.mrb[0].mxu0
      %v11995 = vadd.f32 0.0, %v11994
      %v11996 = vpop.f32.mrb[0].mxu0
      %11997 = vmatprep.mubr.bf16.mxu0 0
      %11998 = vmatmul.mubr.bf16.gmra.mrb[0].mxu0 %v11875
      %v11999 = vpop.f32.mrb[0].mxu0
      %v12000 = vadd.f32 0.0, %v11999
      %v12001 = vpop.f32.mrb[0].mxu0
      %v12002 = vpop.f32.mrb[0].mxu0
      %v12003 = vadd.f32 0.0, %v12002
      %v12004 = vpop.f32.mrb[0].mxu0
      %12005 = vmatprep.mubr.bf16.mxu0 0
      %12006 = vmatmul.mubr.bf16.gmra.mrb[0].mxu0 %v11878
      %v12007 = vpop.f32.mrb[0].mxu0
      %v12008 = vadd.f32 0.0, %v12007
      %v12009 = vpop.f32.mrb[0].mxu0
      %v12010 = vpop.f32.mrb[0].mxu0
      %v12011 = vadd.f32 0.0, %v12010
      %v12012 = vpop.f32.mrb[0].mxu0
      %12013 = vmatprep.mubr.bf16.mxu0 0
      %12014 = vmatmul.mubr.bf16.gmra.mrb[0].mxu0 %v11881
      %v12015 = vpop.f32.mrb[0].mxu0
      %v12016 = vadd.f32 0.0, %v12015
      %v12017 = vpop.f32.mrb[0].mxu0
      %v12018 = vpop.f32.mrb[0].mxu0
      %v12019 = vadd.f32 0.0, %v12018
      %v12020 = vpop.f32.mrb[0].mxu0
      %12021 = vmatprep.mubr.bf16.mxu0 0
      %12022 = vmatmul.mubr.bf16.gmra.mrb[0].mxu0 %v11884
      %v12023 = vpop.f32.mrb[0].mxu0
      %v12024 = vadd.f32 0.0, %v12023
      %v12025 = vpop.f32.mrb[0].mxu0
      %v12026 = vpop.f32.mrb[0].mxu0
      %v12027 = vadd.f32 0.0, %v12026
      %v12028 = vpop.f32.mrb[0].mxu0
      %12029 = vmatprep.mubr.bf16.mxu0 0
      %12030 = vmatmul.mubr.bf16.gmra.mrb[0].mxu0 %v11887
      %v12031 = vpop.f32.mrb[0].mxu0
      %v12032 = vadd.f32 0.0, %v12031
      %v12033 = vpop.f32.mrb[0].mxu0
      %v12034 = vpop.f32.mrb[0].mxu0
      %v12035 = vadd.f32 0.0, %v12034
      %v12036 = vpop.f32.mrb[0].mxu0
      %12037 = vmatprep.mubr.bf16.mxu0 0
      %12038 = vmatmul.mubr.bf16.gmra.mrb[0].mxu0 %v11890
      %v12039 = vpop.f32.mrb[0].mxu0
      %v12040 = vadd.f32 0.0, %v12039
      %v12041 = vpop.f32.mrb[0].mxu0
      %v12042 = vpop.f32.mrb[0].mxu0
      %v12043 = vadd.f32 0.0, %v12042
      %v12044 = vpop.f32.mrb[0].mxu0
      %12045 = vmatprep.mubr.bf16.mxu0 0
      %12046 = vmatmul.mubr.bf16.gmra.mrb[0].mxu0 %v11893
      %v12047 = vpop.f32.mrb[0].mxu0
      %v12048 = vadd.f32 0.0, %v12047
      %v12049 = vpop.f32.mrb[0].mxu0
      %v12050 = vpop.f32.mrb[0].mxu0
      %v12051 = vadd.f32 0.0, %v12050
      %v12052 = vpop.f32.mrb[0].mxu0
      %12053 = vmatprep.mubr.bf16.mxu0 0
      %12054 = vmatmul.mubr.bf16.gmra.mrb[0].mxu0 %v11896
      %v12055 = vpop.f32.mrb[0].mxu0
      %v12056 = vadd.f32 0.0, %v12055
      %v12057 = vpop.f32.mrb[0].mxu0
      %v12058 = vpop.f32.mrb[0].mxu0
      %v12059 = vadd.f32 0.0, %v12058
      %v12060 = vpop.f32.mrb[0].mxu0
      %12061 = vdwg.mxu0
      %v12062 = vadd.f32 %v11592, %v11936
      %v12063 = vadd.f32 %v11593, %v11939
      %v12064 = vadd.f32 %v11594, %v11944
      %v12065 = vadd.f32 %v11595, %v11947
      %v12066 = vadd.f32 %v11596, %v11952
      %v12067 = vadd.f32 %v11597, %v11955
      %v12068 = vadd.f32 %v11598, %v11960
      %v12069 = vadd.f32 %v11599, %v11963
      %v12070 = vadd.f32 %v11600, %v11968
      %v12071 = vadd.f32 %v11601, %v11971
      %v12072 = vadd.f32 %v11602, %v11976
      %v12073 = vadd.f32 %v11603, %v11979
      %v12074 = vadd.f32 %v11604, %v11984
      %v12075 = vadd.f32 %v11605, %v11987
      %v12076 = vadd.f32 %v11606, %v11992
      %v12077 = vadd.f32 %v11607, %v11995
      %v12078 = vadd.f32 %v11608, %v12000
      %v12079 = vadd.f32 %v11609, %v12003
      %v12080 = vadd.f32 %v11610, %v12008
      %v12081 = vadd.f32 %v11611, %v12011
      %v12082 = vadd.f32 %v11612, %v12016
      %v12083 = vadd.f32 %v11613, %v12019
      %v12084 = vadd.f32 %v11614, %v12024
      %v12085 = vadd.f32 %v11615, %v12027
      %v12086 = vadd.f32 %v11616, %v12032
      %v12087 = vadd.f32 %v11617, %v12035
      %v12088 = vadd.f32 %v11618, %v12040
      %v12089 = vadd.f32 %v11619, %v12043
      %v12090 = vadd.f32 %v11620, %v12048
      %v12091 = vadd.f32 %v11621, %v12051
      %v12092 = vadd.f32 %v11622, %v12056
      %v12093 = vadd.f32 %v11623, %v12059
      %v12095 = vlaneseq
      %v12096 = vshrl.u32 %v12095, 7
      %v12097 = vsub.s32 0, %v12096
      %v12098 = vrot.slane %v7544, %v12097
      %v12100 = vadd.f32 %v12062, %v12098
      %v12101 = vadd.f32 %v12063, %v12098
      %v12102 = vadd.f32 %v12064, %v12098
      %v12103 = vadd.f32 %v12065, %v12098
      %v12104 = vadd.f32 %v12066, %v12098
      %v12105 = vadd.f32 %v12067, %v12098
      %v12106 = vadd.f32 %v12068, %v12098
      %v12107 = vadd.f32 %v12069, %v12098
      %v12108 = vadd.f32 %v12070, %v12098
      %v12109 = vadd.f32 %v12071, %v12098
      %v12110 = vadd.f32 %v12072, %v12098
      %v12111 = vadd.f32 %v12073, %v12098
      %v12112 = vadd.f32 %v12074, %v12098
      %v12113 = vadd.f32 %v12075, %v12098
      %v12114 = vadd.f32 %v12076, %v12098
      %v12115 = vadd.f32 %v12077, %v12098
      %v12116 = vadd.f32 %v12078, %v12098
      %v12117 = vadd.f32 %v12079, %v12098
      %v12118 = vadd.f32 %v12080, %v12098
      %v12119 = vadd.f32 %v12081, %v12098
      %v12120 = vadd.f32 %v12082, %v12098
      %v12121 = vadd.f32 %v12083, %v12098
      %v12122 = vadd.f32 %v12084, %v12098
      %v12123 = vadd.f32 %v12085, %v12098
      %v12124 = vadd.f32 %v12086, %v12098
      %v12125 = vadd.f32 %v12087, %v12098
      %v12126 = vadd.f32 %v12088, %v12098
      %v12127 = vadd.f32 %v12089, %v12098
      %v12128 = vadd.f32 %v12090, %v12098
      %v12129 = vadd.f32 %v12091, %v12098
      %v12130 = vadd.f32 %v12092, %v12098
      %v12131 = vadd.f32 %v12093, %v12098
      %v12132 = vld [vmem:[%s423] sm:$0xf]
      %v12133 = vld [vmem:[%s423 + $0x4] sm:$0xf]
      %v12134 = vld [vmem:[%s423 + $0x8] sm:$0xf]
      %v12135 = vld [vmem:[%s423 + $0xc] sm:$0xf]
      %v12136 = vld [vmem:[%s423 + $0x10] sm:$0xf]
      %v12137 = vld [vmem:[%s423 + $0x14] sm:$0xf]
      %v12138 = vld [vmem:[%s423 + $0x18] sm:$0xf]
      %v12139 = vld [vmem:[%s423 + $0x1c] sm:$0xf]
      %v12140 = vld [vmem:[%s423 + $0x20] sm:$0xf]
      %v12141 = vld [vmem:[%s423 + $0x24] sm:$0xf]
      %v12142 = vld [vmem:[%s423 + $0x28] sm:$0xf]
      %v12143 = vld [vmem:[%s423 + $0x2c] sm:$0xf]
      %v12144 = vld [vmem:[%s423 + $0x30] sm:$0xf]
      %v12145 = vld [vmem:[%s423 + $0x34] sm:$0xf]
      %v12146 = vld [vmem:[%s423 + $0x38] sm:$0xf]
      %v12147 = vld [vmem:[%s423 + $0x3c] sm:$0xf]
      %v12148 = vld [vmem:[%s423 + $0x40] sm:$0xf]
      %v12149 = vld [vmem:[%s423 + $0x44] sm:$0xf]
      %v12150 = vld [vmem:[%s423 + $0x48] sm:$0xf]
      %v12151 = vld [vmem:[%s423 + $0x4c] sm:$0xf]
      %v12152 = vld [vmem:[%s423 + $0x50] sm:$0xf]
      %v12153 = vld [vmem:[%s423 + $0x54] sm:$0xf]
      %v12154 = vld [vmem:[%s423 + $0x58] sm:$0xf]
      %v12155 = vld [vmem:[%s423 + $0x5c] sm:$0xf]
      %v12156 = vld [vmem:[%s423 + $0x60] sm:$0xf]
      %v12157 = vld [vmem:[%s423 + $0x64] sm:$0xf]
      %v12158 = vld [vmem:[%s423 + $0x68] sm:$0xf]
      %v12159 = vld [vmem:[%s423 + $0x6c] sm:$0xf]
      %v12160 = vld [vmem:[%s423 + $0x70] sm:$0xf]
      %v12161 = vld [vmem:[%s423 + $0x74] sm:$0xf]
      %v12162 = vld [vmem:[%s423 + $0x78] sm:$0xf]
      %v12163 = vld [vmem:[%s423 + $0x7c] sm:$0xf]
      %v12164 = vunpack.c.l.bf16 %v12132
      %v12165 = vunpack.c.l.bf16 %v12133
      %v12166 = vunpack.c.l.bf16 %v12134
      %v12167 = vunpack.c.l.bf16 %v12135
      %v12168 = vunpack.c.l.bf16 %v12136
      %v12169 = vunpack.c.l.bf16 %v12137
      %v12170 = vunpack.c.l.bf16 %v12138
      %v12171 = vunpack.c.l.bf16 %v12139
      %v12172 = vunpack.c.l.bf16 %v12140
      %v12173 = vunpack.c.l.bf16 %v12141
      %v12174 = vunpack.c.l.bf16 %v12142
      %v12175 = vunpack.c.l.bf16 %v12143
      %v12176 = vunpack.c.l.bf16 %v12144
      %v12177 = vunpack.c.l.bf16 %v12145
      %v12178 = vunpack.c.l.bf16 %v12146
      %v12179 = vunpack.c.l.bf16 %v12147
      %v12180 = vunpack.c.l.bf16 %v12148
      %v12181 = vunpack.c.l.bf16 %v12149
      %v12182 = vunpack.c.l.bf16 %v12150
      %v12183 = vunpack.c.l.bf16 %v12151
      %v12184 = vunpack.c.l.bf16 %v12152
      %v12185 = vunpack.c.l.bf16 %v12153
      %v12186 = vunpack.c.l.bf16 %v12154
      %v12187 = vunpack.c.l.bf16 %v12155
      %v12188 = vunpack.c.l.bf16 %v12156
      %v12189 = vunpack.c.l.bf16 %v12157
      %v12190 = vunpack.c.l.bf16 %v12158
      %v12191 = vunpack.c.l.bf16 %v12159
      %v12192 = vunpack.c.l.bf16 %v12160
      %v12193 = vunpack.c.l.bf16 %v12161
      %v12194 = vunpack.c.l.bf16 %v12162
      %v12195 = vunpack.c.l.bf16 %v12163
      %v12196 = vld [vmem:[%s428] sm:$0xf]
      %v12197 = vld [vmem:[%s428 + $0x4] sm:$0xf]
      %v12198 = vld [vmem:[%s428 + $0x8] sm:$0xf]
      %v12199 = vld [vmem:[%s428 + $0xc] sm:$0xf]
      %v12200 = vld [vmem:[%s428 + $0x10] sm:$0xf]
      %v12201 = vld [vmem:[%s428 + $0x14] sm:$0xf]
      %v12202 = vld [vmem:[%s428 + $0x18] sm:$0xf]
      %v12203 = vld [vmem:[%s428 + $0x1c] sm:$0xf]
      %v12204 = vld [vmem:[%s428 + $0x20] sm:$0xf]
      %v12205 = vld [vmem:[%s428 + $0x24] sm:$0xf]
      %v12206 = vld [vmem:[%s428 + $0x28] sm:$0xf]
      %v12207 = vld [vmem:[%s428 + $0x2c] sm:$0xf]
      %v12208 = vld [vmem:[%s428 + $0x30] sm:$0xf]
      %v12209 = vld [vmem:[%s428 + $0x34] sm:$0xf]
      %v12210 = vld [vmem:[%s428 + $0x38] sm:$0xf]
      %v12211 = vld [vmem:[%s428 + $0x3c] sm:$0xf]
      %v12212 = vld [vmem:[%s428 + $0x40] sm:$0xf]
      %v12213 = vld [vmem:[%s428 + $0x44] sm:$0xf]
      %v12214 = vld [vmem:[%s428 + $0x48] sm:$0xf]
      %v12215 = vld [vmem:[%s428 + $0x4c] sm:$0xf]
      %v12216 = vld [vmem:[%s428 + $0x50] sm:$0xf]
      %v12217 = vld [vmem:[%s428 + $0x54] sm:$0xf]
      %v12218 = vld [vmem:[%s428 + $0x58] sm:$0xf]
      %v12219 = vld [vmem:[%s428 + $0x5c] sm:$0xf]
      %v12220 = vld [vmem:[%s428 + $0x60] sm:$0xf]
      %v12221 = vld [vmem:[%s428 + $0x64] sm:$0xf]
      %v12222 = vld [vmem:[%s428 + $0x68] sm:$0xf]
      %v12223 = vld [vmem:[%s428 + $0x6c] sm:$0xf]
      %v12224 = vld [vmem:[%s428 + $0x70] sm:$0xf]
      %v12225 = vld [vmem:[%s428 + $0x74] sm:$0xf]
      %v12226 = vld [vmem:[%s428 + $0x78] sm:$0xf]
      %v12227 = vld [vmem:[%s428 + $0x7c] sm:$0xf]
      %v12228 = vunpack.c.l.bf16 %v12196
      %v12229 = vunpack.c.l.bf16 %v12197
      %v12230 = vunpack.c.l.bf16 %v12198
      %v12231 = vunpack.c.l.bf16 %v12199
      %v12232 = vunpack.c.l.bf16 %v12200
      %v12233 = vunpack.c.l.bf16 %v12201
      %v12234 = vunpack.c.l.bf16 %v12202
      %v12235 = vunpack.c.l.bf16 %v12203
      %v12236 = vunpack.c.l.bf16 %v12204
      %v12237 = vunpack.c.l.bf16 %v12205
      %v12238 = vunpack.c.l.bf16 %v12206
      %v12239 = vunpack.c.l.bf16 %v12207
      %v12240 = vunpack.c.l.bf16 %v12208
      %v12241 = vunpack.c.l.bf16 %v12209
      %v12242 = vunpack.c.l.bf16 %v12210
      %v12243 = vunpack.c.l.bf16 %v12211
      %v12244 = vunpack.c.l.bf16 %v12212
      %v12245 = vunpack.c.l.bf16 %v12213
      %v12246 = vunpack.c.l.bf16 %v12214
      %v12247 = vunpack.c.l.bf16 %v12215
      %v12248 = vunpack.c.l.bf16 %v12216
      %v12249 = vunpack.c.l.bf16 %v12217
      %v12250 = vunpack.c.l.bf16 %v12218
      %v12251 = vunpack.c.l.bf16 %v12219
      %v12252 = vunpack.c.l.bf16 %v12220
      %v12253 = vunpack.c.l.bf16 %v12221
      %v12254 = vunpack.c.l.bf16 %v12222
      %v12255 = vunpack.c.l.bf16 %v12223
      %v12256 = vunpack.c.l.bf16 %v12224
      %v12257 = vunpack.c.l.bf16 %v12225
      %v12258 = vunpack.c.l.bf16 %v12226
      %v12259 = vunpack.c.l.bf16 %v12227
      %v12260 = vadd.f32 %v12164, %v12228
      %v12261 = vadd.f32 %v12165, %v12229
      %v12262 = vadd.f32 %v12166, %v12230
      %v12263 = vadd.f32 %v12167, %v12231
      %v12264 = vadd.f32 %v12168, %v12232
      %v12265 = vadd.f32 %v12169, %v12233
      %v12266 = vadd.f32 %v12170, %v12234
      %v12267 = vadd.f32 %v12171, %v12235
      %v12268 = vadd.f32 %v12172, %v12236
      %v12269 = vadd.f32 %v12173, %v12237
      %v12270 = vadd.f32 %v12174, %v12238
      %v12271 = vadd.f32 %v12175, %v12239
      %v12272 = vadd.f32 %v12176, %v12240
      %v12273 = vadd.f32 %v12177, %v12241
      %v12274 = vadd.f32 %v12178, %v12242
      %v12275 = vadd.f32 %v12179, %v12243
      %v12276 = vadd.f32 %v12180, %v12244
      %v12277 = vadd.f32 %v12181, %v12245
      %v12278 = vadd.f32 %v12182, %v12246
      %v12279 = vadd.f32 %v12183, %v12247
      %v12280 = vadd.f32 %v12184, %v12248
      %v12281 = vadd.f32 %v12185, %v12249
      %v12282 = vadd.f32 %v12186, %v12250
      %v12283 = vadd.f32 %v12187, %v12251
      %v12284 = vadd.f32 %v12188, %v12252
      %v12285 = vadd.f32 %v12189, %v12253
      %v12286 = vadd.f32 %v12190, %v12254
      %v12287 = vadd.f32 %v12191, %v12255
      %v12288 = vadd.f32 %v12192, %v12256
      %v12289 = vadd.f32 %v12193, %v12257
      %v12290 = vadd.f32 %v12194, %v12258
      %v12291 = vadd.f32 %v12195, %v12259
      %v12292 = vadd.f32 %v12100, %v12260
      %v12293 = vadd.f32 %v12101, %v12261
      %v12294 = vadd.f32 %v12102, %v12262
      %v12295 = vadd.f32 %v12103, %v12263
      %v12296 = vadd.f32 %v12104, %v12264
      %v12297 = vadd.f32 %v12105, %v12265
      %v12298 = vadd.f32 %v12106, %v12266
      %v12299 = vadd.f32 %v12107, %v12267
      %v12300 = vadd.f32 %v12108, %v12268
      %v12301 = vadd.f32 %v12109, %v12269
      %v12302 = vadd.f32 %v12110, %v12270
      %v12303 = vadd.f32 %v12111, %v12271
      %v12304 = vadd.f32 %v12112, %v12272
      %v12305 = vadd.f32 %v12113, %v12273
      %v12306 = vadd.f32 %v12114, %v12274
      %v12307 = vadd.f32 %v12115, %v12275
      %v12308 = vadd.f32 %v12116, %v12276
      %v12309 = vadd.f32 %v12117, %v12277
      %v12310 = vadd.f32 %v12118, %v12278
      %v12311 = vadd.f32 %v12119, %v12279
      %v12312 = vadd.f32 %v12120, %v12280
      %v12313 = vadd.f32 %v12121, %v12281
      %v12314 = vadd.f32 %v12122, %v12282
      %v12315 = vadd.f32 %v12123, %v12283
      %v12316 = vadd.f32 %v12124, %v12284
      %v12317 = vadd.f32 %v12125, %v12285
      %v12318 = vadd.f32 %v12126, %v12286
      %v12319 = vadd.f32 %v12127, %v12287
      %v12320 = vadd.f32 %v12128, %v12288
      %v12321 = vadd.f32 %v12129, %v12289
      %v12322 = vadd.f32 %v12130, %v12290
      %v12323 = vadd.f32 %v12131, %v12291
      %12324 = vst.msk [vmem:[%s433] sm:$0xff] %vm721, %v12292
      %12325 = vst.msk [vmem:[%s433 + $0x8] sm:$0xff] %vm721, %v12293
      %12326 = vst.msk [vmem:[%s433 + $0x10] sm:$0xff] %vm721, %v12294
      %12327 = vst.msk [vmem:[%s433 + $0x18] sm:$0xff] %vm721, %v12295
      %12328 = vst.msk [vmem:[%s433 + $0x20] sm:$0xff] %vm721, %v12296
      %12329 = vst.msk [vmem:[%s433 + $0x28] sm:$0xff] %vm721, %v12297
      %12330 = vst.msk [vmem:[%s433 + $0x30] sm:$0xff] %vm721, %v12298
      %12331 = vst.msk [vmem:[%s433 + $0x38] sm:$0xff] %vm721, %v12299
      %12332 = vst.msk [vmem:[%s433 + $0x40] sm:$0xff] %vm721, %v12300
      %12333 = vst.msk [vmem:[%s433 + $0x48] sm:$0xff] %vm721, %v12301
      %12334 = vst.msk [vmem:[%s433 + $0x50] sm:$0xff] %vm721, %v12302
      %12335 = vst.msk [vmem:[%s433 + $0x58] sm:$0xff] %vm721, %v12303
      %12336 = vst.msk [vmem:[%s433 + $0x60] sm:$0xff] %vm721, %v12304
      %12337 = vst.msk [vmem:[%s433 + $0x68] sm:$0xff] %vm721, %v12305
      %12338 = vst.msk [vmem:[%s433 + $0x70] sm:$0xff] %vm721, %v12306
      %12339 = vst.msk [vmem:[%s433 + $0x78] sm:$0xff] %vm721, %v12307
      %12340 = vst.msk [vmem:[%s433 + $0x80] sm:$0xff] %vm721, %v12308
      %12341 = vst.msk [vmem:[%s433 + $0x88] sm:$0xff] %vm721, %v12309
      %12342 = vst.msk [vmem:[%s433 + $0x90] sm:$0xff] %vm721, %v12310
      %12343 = vst.msk [vmem:[%s433 + $0x98] sm:$0xff] %vm721, %v12311
      %12344 = vst.msk [vmem:[%s433 + $0xa0] sm:$0xff] %vm721, %v12312
      %12345 = vst.msk [vmem:[%s433 + $0xa8] sm:$0xff] %vm721, %v12313
      %12346 = vst.msk [vmem:[%s433 + $0xb0] sm:$0xff] %vm721, %v12314
      %12347 = vst.msk [vmem:[%s433 + $0xb8] sm:$0xff] %vm721, %v12315
      %12348 = vst.msk [vmem:[%s433 + $0xc0] sm:$0xff] %vm721, %v12316
      %12349 = vst.msk [vmem:[%s433 + $0xc8] sm:$0xff] %vm721, %v12317
      %12350 = vst.msk [vmem:[%s433 + $0xd0] sm:$0xff] %vm721, %v12318
      %12351 = vst.msk [vmem:[%s433 + $0xd8] sm:$0xff] %vm721, %v12319
      %12352 = vst.msk [vmem:[%s433 + $0xe0] sm:$0xff] %vm721, %v12320
      %12353 = vst.msk [vmem:[%s433 + $0xe8] sm:$0xff] %vm721, %v12321
      %12354 = vst.msk [vmem:[%s433 + $0xf0] sm:$0xff] %vm721, %v12322
      %12355 = vst.msk [vmem:[%s433 + $0xf8] sm:$0xff] %vm721, %v12323
      %p12356 = scmp.lt.s32.totalorder %s23, 1
      %s12357 = scalar_select %p12356, %s23, 1
      %s12358 = smul.addr %s12357, 32
      %s12359 = smul.addr %s12358, 8
      %s12360 = scalar_lea.vmem %s12, %s12359
      // Predicated region
      $region69: #{tpu_custom_call.1} parent=67 // pred_check
        %p12361 = pneg %p303
      $region70: #{tpu_custom_call.1} parent=67 // pred_check_branch
        %12363 = sbr.rel (%p12361) target = $region72
      $region71: #{tpu_custom_call.1} parent=67 // pred_region
        _
      $region72: #{tpu_custom_call.1} parent=67 // pred_fallthru
        _
    $region68: #{tpu_custom_call.1} parent=5 // pred_fallthru
      _
    %p12364 = scmp.le.s32.totalorder 2, %s18
    // Predicated region
    $region73: #{tpu_custom_call.1} parent=5 // pred_check
      %p12365 = pneg %p12364
    $region74: #{tpu_custom_call.1} parent=5 // pred_check_branch
      %12367 = sbr.rel (%p12365) target = $region76
    $region75: #{tpu_custom_call.1} parent=5 // pred_region
      %s12368 = ssub.s32 %s18, 2
      // Predicated region
      $region77: #{tpu_custom_call.1} parent=75 // pred_check
        %p12369 = pneg %p309
      $region78: #{tpu_custom_call.1} parent=75 // pred_check_branch
        %12371 = sbr.rel (%p12369) target = $region80
      $region79: #{tpu_custom_call.1} parent=75 // pred_region
        %p12372 = scmp.lt.s32.totalorder %s24, 1
        %s12373 = scalar_select %p12372, %s24, 1
        %s12374 = smul.addr %s12373, 32
        %s12375 = smul.addr %s12374, 8
        %s12376 = scalar_lea.vmem %s12, %s12375
      $region80: #{tpu_custom_call.1} parent=75 // pred_fallthru
        _
    $region76: #{tpu_custom_call.1} parent=5 // pred_fallthru
      _
  $region6: #{tpu_custom_call.1} parent=0 // loop_footer
    %s22 = sadd.s32 1, %s18
  $region7: #{tpu_custom_call.1} parent=0 // loop_footer_branch
    %17 = sbr.rel target = $region3
  $region8: #{tpu_custom_call.1} parent=0 // loop_exit
    _

</llo_original>
